<compile_context>
chip_gen: v7x
topology: tpu7x:2x2x1
jax: 0.10.0
libtpu: 0.0.40
codegen_flags: <defaults>
</compile_context>

<pallas_src>
from functools import partial

import jax
import jax.numpy as jnp
from jax.experimental import pallas as pl
from jax.experimental.pallas import tpu as pltpu


_INV_SQRT2 = 0.7071067811865476


def _gelu_exact(x):
    # erf-based GELU == PyTorch F.gelu default
    # TODO(synk): tanh-approx GELU would route to the EUP slot; kept exact for parity.
    return 0.5 * x * (1.0 + jax.lax.erf(x * _INV_SQRT2))


def _cparams(grid_rank=1):
    # explicit scoped-VMEM cap that is safe on v5e/v6e (128 MiB phys) and v7x (64 MiB)
    return pltpu.CompilerParams(
        dimension_semantics=("parallel",) * grid_rank,
        vmem_limit_bytes=32 * 1024 * 1024,
    )


def _pick_tile_n(n, max_tile=8192):
    """Lane-dense pixel tile (multiple of 128); prefers exact divisors of n."""
    candidates = [t for t in (8192, 4096, 2048, 1024, 512, 256, 128) if t <= max_tile]
    for t in candidates:
        if t <= n and n % t == 0:
            return t
    if n <= 128:
        return n                              # single full-extent block
    # ragged tail: Pallas masks the out-of-range columns of the last block
    return min(candidates[0], (n // 128) * 128)


def _pick_tile_l(L, max_tile=256):
    """Mode-axis tile: full extent if small, else a 128-multiple (ragged tail masked).

    Never returns a huge full-extent block, so weight-block VMEM stays bounded
    at production mode counts (important on v7x's 64 MiB VMEM).
    """
    if L <= max_tile:
        return L
    if max_tile >= 256 and L % 256 == 0:
        return 256
    if L % 128 == 0:
        return 128
    return min(max_tile, (L // 128) * 128)


# ----------------------------------------------------------------------------
# Pallas kernels
# ----------------------------------------------------------------------------
def _linear_cf_kernel(x_ref, w_ref, b_ref, o_ref, *, act):
    # y (Cout, tn) = W (Cout, Cin) @ x (Cin, tn) + b (Cout, 1)
    # TODO(synk): default MXU f32 precision (bf16 decomposition); pass
    # precision=HIGHEST if bit-level parity with fp32 GEMMs is required.
    y = jnp.dot(w_ref[...], x_ref[...], preferred_element_type=jnp.float32)
    y = y + b_ref[...]
    if act:
        y = _gelu_exact(y)
    o_ref[...] = y.astype(o_ref.dtype)


def _fno_epilogue_kernel(*refs, has_residual, has_head):
    """gelu( mlp2(gelu(mlp1(x1))) + w(x) + b(grid) ) [+res] [-> fc1+GELU+fc2]."""
    (x1_ref, x_ref, g_ref,
     m1w_ref, m1b_ref, m2w_ref, m2b_ref,
     ww_ref, wb_ref, bw_ref, bb_ref) = refs[:11]
    i = 11
    res_ref = None
    if has_residual:
        res_ref = refs[i]
        i += 1
    if has_head:
        f1w_ref, f1b_ref, f2w_ref, f2b_ref = refs[i:i + 4]
        i += 4
    o_ref = refs[i]

    # spectral branch MLP: mlp2( gelu( mlp1(x1) ) )
    h = _gelu_exact(
        jnp.dot(m1w_ref[...], x1_ref[...], preferred_element_type=jnp.float32)
        + m1b_ref[...])
    y = jnp.dot(m2w_ref[...], h, preferred_element_type=jnp.float32) + m2b_ref[...]

    # identity branch 1x1 conv w(x)
    y = y + jnp.dot(ww_ref[...], x_ref[...], preferred_element_type=jnp.float32)
    y = y + wb_ref[...]

    # grid branch 1x1 conv b(grid): only 2 input channels -> VPU broadcast-MAC
    g = g_ref[...]
    bw = bw_ref[...]
    y = y + bw[:, 0:1] * g[0:1, :] + bw[:, 1:2] * g[1:2, :] + bb_ref[...]

    y = _gelu_exact(y)
    if has_residual:
        y = y + res_ref[...]                   # fused post-GELU skip (x + x0 / x + x1)

    if has_head:
        # fused projection head: fc1 + GELU + fc2 (the (256, tn) intermediate
        # never touches HBM, and the last (W, N) activation is never written out)
        hh = _gelu_exact(
            jnp.dot(f1w_ref[...], y, preferred_element_type=jnp.float32)
            + f1b_ref[...])
        y = jnp.dot(f2w_ref[...], hh, preferred_element_type=jnp.float32) + f2b_ref[...]

    o_ref[...] = y.astype(o_ref.dtype)


def _spectral_kernel(xr_ref, xi_ref, wr_ref, wi_ref, or_ref, oi_ref):
    """Per-mode complex channel mix:  out[o,l] = sum_i x[i,l] * w[i,o,l].

    Blocks (B is a squeezed grid axis):
      xr/xi : (Cin,  lblk)     wr/wi : (Cin, Cout, lblk)     out : (Cout, lblk)
    The contraction over the small Cin is a VPU broadcast-MAC, lane-dense over
    the mode axis; 2 f32 accumulators (no Gauss trick -> 2 weight streams, not 3).
    """
    cin = xr_ref.shape[0]
    acc_r = jnp.zeros(or_ref.shape, jnp.float32)
    acc_i = jnp.zeros(oi_ref.shape, jnp.float32)
    for i in range(cin):                       # static unroll over the small channel dim
        xr_i = xr_ref[i][None, :]              # (1, lblk)
        xi_i = xi_ref[i][None, :]
        wr_i = wr_ref[i]                       # (Cout, lblk)
        wi_i = wi_ref[i]
        acc_r = acc_r + xr_i * wr_i - xi_i * wi_i
        acc_i = acc_i + xr_i * wi_i + xi_i * wr_i
    or_ref[...] = acc_r
    oi_ref[...] = acc_i


# ----------------------------------------------------------------------------
# Pallas wrappers
# ----------------------------------------------------------------------------
def linear_cf_pallas(x, w, b, *, act=False, max_tile=8192):
    """Channels-first pointwise mix: y (Cout, N) = [gelu](w @ x + b)."""
    cin, n = x.shape
    cout = w.shape[0]
    tn = _pick_tile_n(n, max_tile)
    return pl.pallas_call(
        partial(_linear_cf_kernel, act=act),
        grid=(pl.cdiv(n, tn),),
        in_specs=[pl.BlockSpec((cin, tn), lambda j: (0, j)),
                  pl.BlockSpec((cout, cin), lambda j: (0, 0)),
                  pl.BlockSpec((cout, 1), lambda j: (0, 0))],
        out_specs=pl.BlockSpec((cout, tn), lambda j: (0, j)),
        out_shape=jax.ShapeDtypeStruct((cout, n), jnp.float32),
        compiler_params=_cparams(1),
    )(x, w, b.reshape(cout, 1))


def fno_epilogue_pallas(x1, x, g, p, residual=None, head=None, max_tile=8192):
    """gelu( mlp2(gelu(mlp1(x1))) + w(x) + b(g) ) [+ residual] [-> fused head]."""
    wc, n = x.shape
    tn = _pick_tile_n(n, max_tile)

    xw_spec = pl.BlockSpec((wc, tn), lambda j: (0, j))
    g_spec = pl.BlockSpec((2, tn), lambda j: (0, j))
    sq_spec = pl.BlockSpec((wc, wc), lambda j: (0, 0))
    b_spec = pl.BlockSpec((wc, 1), lambda j: (0, 0))
    bw_spec = pl.BlockSpec((wc, 2), lambda j: (0, 0))

    in_specs = [xw_spec, xw_spec, g_spec,
                sq_spec, b_spec, sq_spec, b_spec,
                sq_spec, b_spec, bw_spec, b_spec]
    args = [x1, x, g,
            p["mlp1_w"], p["mlp1_b"].reshape(wc, 1),
            p["mlp2_w"], p["mlp2_b"].reshape(wc, 1),
            p["w_w"], p["w_b"].reshape(wc, 1),
            p["b_w"], p["b_b"].reshape(wc, 1)]
    if residual is not None:
        in_specs.append(xw_spec)
        args.append(residual)

    cout = wc
    if head is not None:
        fc1_w, fc1_b, fc2_w, fc2_b = head
        hdim = fc1_w.shape[0]
        cout = fc2_w.shape[0]
        in_specs += [pl.BlockSpec((hdim, wc), lambda j: (0, 0)),
                     pl.BlockSpec((hdim, 1), lambda j: (0, 0)),
                     pl.BlockSpec((cout, hdim), lambda j: (0, 0)),
                     pl.BlockSpec((cout, 1), lambda j: (0, 0))]
        args += [fc1_w, fc1_b.reshape(hdim, 1), fc2_w, fc2_b.reshape(cout, 1)]

    return pl.pallas_call(
        partial(_fno_epilogue_kernel,
                has_residual=residual is not None,
                has_head=head is not None),
        grid=(pl.cdiv(n, tn),),
        in_specs=in_specs,
        out_specs=pl.BlockSpec((cout, tn), lambda j: (0, j)),
        out_shape=jax.ShapeDtypeStruct((cout, n), jnp.float32),
        compiler_params=_cparams(1),
    )(*args)


def _spectral_mix_pallas(xr, xi, wr, wi, max_tile_l=256):
    """xr, xi: (B, Cin, L); wr, wi: (Cin, Cout, L) -> (or, oi): (B, Cout, L).

    Grid = (L tiles, B).  B is the fastest axis, so the constant-index weight
    blocks stay resident across the B steps (weights are streamed once per
    L-tile regardless of batch size).
    """
    b, cin, L = xr.shape
    cout = wr.shape[1]
    lblk = _pick_tile_l(L, max_tile_l)

    x_spec = pl.BlockSpec((None, cin, lblk), lambda l, bb: (bb, 0, l))
    w_spec = pl.BlockSpec((cin, cout, lblk), lambda l, bb: (0, 0, l))
    o_spec = pl.BlockSpec((None, cout, lblk), lambda l, bb: (bb, 0, l))

    return pl.pallas_call(
        _spectral_kernel,
        grid=(pl.cdiv(L, lblk), b),
        in_specs=[x_spec, x_spec, w_spec, w_spec],
        out_specs=(o_spec, o_spec),
        out_shape=(jax.ShapeDtypeStruct((b, cout, L), jnp.float32),
                   jax.ShapeDtypeStruct((b, cout, L), jnp.float32)),
        compiler_params=_cparams(2),
    )(xr, xi, wr, wi)


# ----------------------------------------------------------------------------
# model pieces (FFT + glue in plain JAX, channel mixes in Pallas)
# ----------------------------------------------------------------------------
def spectral_conv2d_cf(x, p, modes1, modes2):
    """SpectralConv2d, channels-first: (Cin, B, V, X, Y) -> (Cout, B, V, X, Y)."""
    Cin, B, V, X, Y = x.shape
    Yh = Y // 2 + 1
    Cout = p["wr"].shape[1]
    Lh = V * modes1 * modes2

    # TODO(synk): rfft2/irfft2 have no Pallas primitive; they stay in XLA.
    x_ft = jnp.fft.rfft2(x, axes=(3, 4))                 # (Cin, B, V, X, Yh) complex64

    s1 = x_ft[:, :, :, :modes1, :modes2]                 # low modes
    s2 = x_ft[:, :, :, X - modes1:, :modes2]             # high (negative) modes

    def flat(s):
        return s.reshape(Cin, B, Lh)                     # contiguous reshape, no transpose

    # both corner slices handled in ONE pallas_call (stacked along L; the matching
    # weight concat is precomputed once at init, not per forward)
    xc = jnp.concatenate([flat(s1), flat(s2)], axis=-1)  # (Cin, B, 2*Lh)
    xr = jnp.transpose(jnp.real(xc), (1, 0, 2))          # (B, Cin, 2*Lh) — small arrays
    xi = jnp.transpose(jnp.imag(xc), (1, 0, 2))

    or_, oi_ = _spectral_mix_pallas(xr, xi, p["wr"], p["wi"])   # (B, Cout, 2*Lh)

    o = jnp.transpose(jax.lax.complex(or_, oi_), (1, 0, 2))     # (Cout, B, 2*Lh)
    o1 = o[:, :, :Lh].reshape(Cout, B, V, modes1, modes2)
    o2 = o[:, :, Lh:].reshape(Cout, B, V, modes1, modes2)

    out_ft = jnp.zeros((Cout, B, V, X, Yh), dtype=jnp.complex64)
    out_ft = out_ft.at[:, :, :, :modes1, :modes2].set(o1)
    out_ft = out_ft.at[:, :, :, X - modes1:, :modes2].set(o2)

    return jnp.fft.irfft2(out_ft, s=(X, Y), axes=(3, 4))


def fno2d_block_cf(x, grid_flat, p, modes1, modes2, residual=None, head=None):
    """One FNO2d layer, channels-first.  `residual` is the post-GELU skip.
    If `head` is given, the fc1/GELU/fc2 projection is fused into the epilogue
    and the return value is the flat (step, N) output."""
    Wc, B, V, X, Y = x.shape
    n = B * V * X * Y
    x1 = spectral_conv2d_cf(x, p["spec"], modes1, modes2)
    out = fno_epilogue_pallas(
        x1.reshape(Wc, n), x.reshape(Wc, n), grid_flat, p,
        residual=None if residual is None else residual.reshape(Wc, n),
        head=head,
        max_tile=2048 if head is not None else 8192)
    if head is not None:
        return out                              # (step, n)
    return out.reshape(Wc, B, V, X, Y)


def get_grid_cf(B, V, X, Y):
    gridx = jnp.linspace(9.5, 10.5, X, dtype=jnp.float32)
    gridy = jnp.linspace(-0.5, 0.5, Y, dtype=jnp.float32)
    gx = jnp.broadcast_to(gridx.reshape(1, 1, 1, X, 1), (1, B, V, X, Y))
    gy = jnp.broadcast_to(gridy.reshape(1, 1, 1, 1, Y), (1, B, V, X, Y))
    return jnp.concatenate([gx, gy], axis=0)             # (2, B, V, X, Y)


def fno_multi_forward(x, params, modes1, modes2):
    """x: (B, V, X, Y, T_in) -> (B, V, X, Y, step)."""
    B, V, X, Y, T = x.shape
    n = B * V * X * Y
    Wc = params["fc0_w"].shape[0]

    grid_cf = get_grid_cf(B, V, X, Y)                                   # (2, B,V,X,Y)
    grid_flat = grid_cf.reshape(2, n)
    x_cf = jnp.concatenate([jnp.transpose(x, (4, 0, 1, 2, 3)), grid_cf], axis=0)

    # fc0 lift (T_in+2 -> width), channels-first / lane-dense
    h = linear_cf_pallas(x_cf.reshape(T + 2, n), params["fc0_w"], params["fc0_b"])
    h = h.reshape(Wc, B, V, X, Y)

    # TODO(synk): bf16 activation storage (v6e/v7x) would ~halve HBM traffic;
    # kept f32 here for numerical parity with the PyTorch reference.
    x0 = fno2d_block_cf(h, grid_flat, params["f0"], modes1, modes2)
    xa = fno2d_block_cf(x0, grid_flat, params["f1"], modes1, modes2)
    xa = fno2d_block_cf(xa, grid_flat, params["f2"], modes1, modes2, residual=x0)
    x1 = fno2d_block_cf(xa, grid_flat, params["f3"], modes1, modes2)
    xb = fno2d_block_cf(x1, grid_flat, params["f4"], modes1, modes2)

    # final layer: epilogue + skip + fc1/GELU/fc2 head fused in one kernel
    head = (params["fc1_w"], params["fc1_b"], params["fc2_w"], params["fc2_b"])
    out = fno2d_block_cf(xb, grid_flat, params["f5"], modes1, modes2,
                         residual=x1, head=head)                        # (step, n)
    step = out.shape[0]
    return jnp.transpose(out.reshape(step, B, V, X, Y), (1, 2, 3, 4, 0))


# ----------------------------------------------------------------------------
# deterministic parameter init (shapes follow FNO_multi.__init__, channels-first)
# ----------------------------------------------------------------------------
def init_params(key, T_in, step, num_vars, modes1, modes2, width):
    keys = iter(jax.random.split(key, 128))

    def lin(cin, cout):
        w = jax.random.uniform(next(keys), (cout, cin), jnp.float32, -1.0, 1.0)
        w = w / jnp.sqrt(jnp.float32(cin))
        b = jax.random.uniform(next(keys), (cout,), jnp.float32, -0.1, 0.1)
        return w, b

    def spec(cin, cout):
        Lh = num_vars * modes1 * modes2
        scale = 1.0 / cin

        def wgt():
            return scale * jax.random.uniform(next(keys), (cin, cout, Lh), jnp.float32)

        w1r, w1i, w2r, w2i = wgt(), wgt(), wgt(), wgt()
        # pre-concatenate the two corner weights along the mode axis ONCE here,
        # so the forward pass never re-concatenates the big weight tensors
        return {"wr": jnp.concatenate([w1r, w2r], axis=-1),   # (Cin, Cout, 2*Lh)
                "wi": jnp.concatenate([w1i, w2i], axis=-1)}

    def fno2d(width):
        mlp1_w, mlp1_b = lin(width, width)
        mlp2_w, mlp2_b = lin(width, width)
        w_w, w_b = lin(width, width)
        b_w, b_b = lin(2, width)
        return {"spec": spec(width, width),
                "mlp1_w": mlp1_w, "mlp1_b": mlp1_b,
                "mlp2_w": mlp2_w, "mlp2_b": mlp2_b,
                "w_w": w_w, "w_b": w_b,
                "b_w": b_w, "b_b": b_b}

    fc0_w, fc0_b = lin(T_in + 2, width)
    fc1_w, fc1_b = lin(width, 256)
    fc2_w, fc2_b = lin(256, step)

    return {"fc0_w": fc0_w, "fc0_b": fc0_b,
            "f0": fno2d(width), "f1": fno2d(width), "f2": fno2d(width),
            "f3": fno2d(width), "f4": fno2d(width), "f5": fno2d(width),
            "fc1_w": fc1_w, "fc1_b": fc1_b,
            "fc2_w": fc2_w, "fc2_b": fc2_b}


# ----------------------------------------------------------------------------
if __name__ == "__main__":
    # small shapes consistent with the module: (batch, num_vars, x, y, T_in)
    B, V, X, Y = 2, 3, 16, 16
    T_in, step = 6, 5
    modes1 = modes2 = 4
    width_time = 16

    root = jax.random.PRNGKey(0)
    k_param, k_x = jax.random.split(root)

    params = init_params(k_param, T_in, step, V, modes1, modes2, width_time)
    x = jax.random.normal(k_x, (B, V, X, Y, T_in), dtype=jnp.float32)

    fwd = jax.jit(partial(fno_multi_forward, modes1=modes1, modes2=modes2))
    out = fwd(x, params)
    jax.block_until_ready(out)

    assert out.shape == (B, V, X, Y, step), out.shape
    assert out.dtype == jnp.float32
    print("KERNEL_OK")
</pallas_src>

<mosaic_0001>
module attributes {stable_mosaic.version = 11 : i64} {
  func.func @_linear_cf_kernel(%arg0: i32, %arg1: memref<8x512xf32, #tpu.memory_space<vmem>>, %arg2: memref<16x8xf32, #tpu.memory_space<vmem>>, %arg3: memref<16x1xf32, #tpu.memory_space<vmem>>, %arg4: memref<16x512xf32, #tpu.memory_space<vmem>>) attributes {dimension_semantics = [#tpu.dimension_semantics<parallel>], iteration_bounds = array<i64: 3>, scalar_prefetch = 0 : i64, scratch_operands = 0 : i64, tpu.core_type = #tpu.core_type<tc>, window_params = [{transform_indices = @transform_0, window_bounds = array<i64: 8, 512>}, {pipeline_mode = #tpu.pipeline_mode<synchronous>, transform_indices = @transform_1, window_bounds = array<i64: 16, 8>}, {pipeline_mode = #tpu.pipeline_mode<synchronous>, transform_indices = @transform_2, window_bounds = array<i64: 16, 1>}, {transform_indices = @transform_3, window_bounds = array<i64: 16, 512>}]} {
    %c0 = arith.constant 0 : index
    %c0_0 = arith.constant 0 : index
    %0 = vector.load %arg2[%c0, %c0_0] : memref<16x8xf32, #tpu.memory_space<vmem>>, vector<16x8xf32>
    %c0_1 = arith.constant 0 : index
    %c0_2 = arith.constant 0 : index
    %1 = vector.load %arg1[%c0_1, %c0_2] : memref<8x512xf32, #tpu.memory_space<vmem>>, vector<8x512xf32>
    %cst = arith.constant dense<0.000000e+00> : vector<16x512xf32>
    %2 = tpu.matmul %0, %1, %cst {dimension_numbers = #tpu.dot_dimension_numbers<[1], [0], [0], [1], [0, 0, 1, 1], [], []>} : vector<16x8xf32>, vector<8x512xf32>, vector<16x512xf32> -> vector<16x512xf32>
    %c0_3 = arith.constant 0 : index
    %c0_4 = arith.constant 0 : index
    %3 = vector.load %arg3[%c0_3, %c0_4] : memref<16x1xf32, #tpu.memory_space<vmem>>, vector<16x1xf32>
    %4 = vector.broadcast %3 : vector<16x1xf32> to vector<16x512xf32>
    %5 = arith.addf %2, %4 : vector<16x512xf32>
    %c0_5 = arith.constant 0 : index
    %c0_6 = arith.constant 0 : index
    %6 = vector.load %arg4[%c0_5, %c0_6] : memref<16x512xf32, #tpu.memory_space<vmem>>, vector<16x512xf32>
    tpu.vector_store %arg4[%c0_5, %c0_6], %5 {strides = array<i32>} : memref<16x512xf32, #tpu.memory_space<vmem>>, vector<16x512xf32>,
    return
  }
  func.func @transform_0(%arg0: i32) -> (i32, i32) {
    %c0_i32 = arith.constant 0 : i32
    %c0_i32_0 = arith.constant 0 : i32
    return %c0_i32, %arg0 : i32, i32
  }
  func.func @transform_1(%arg0: i32) -> (i32, i32) {
    %c0_i32 = arith.constant 0 : i32
    %c0_i32_0 = arith.constant 0 : i32
    %c0_i32_1 = arith.constant 0 : i32
    return %c0_i32, %c0_i32_0 : i32, i32
  }
  func.func @transform_2(%arg0: i32) -> (i32, i32) {
    %c0_i32 = arith.constant 0 : i32
    %c0_i32_0 = arith.constant 0 : i32
    %c0_i32_1 = arith.constant 0 : i32
    return %c0_i32, %c0_i32_0 : i32, i32
  }
  func.func @transform_3(%arg0: i32) -> (i32, i32) {
    %c0_i32 = arith.constant 0 : i32
    %c0_i32_0 = arith.constant 0 : i32
    return %c0_i32, %arg0 : i32, i32
  }
}

module attributes {stable_mosaic.version = 11 : i64} {
  func.func @_spectral_kernel(%arg0: i32, %arg1: i32, %arg2: memref<1x16x96xf32, #tpu.memory_space<vmem>>, %arg3: memref<1x16x96xf32, #tpu.memory_space<vmem>>, %arg4: memref<16x16x96xf32, #tpu.memory_space<vmem>>, %arg5: memref<16x16x96xf32, #tpu.memory_space<vmem>>, %arg6: memref<1x16x96xf32, #tpu.memory_space<vmem>>, %arg7: memref<1x16x96xf32, #tpu.memory_space<vmem>>) attributes {dimension_semantics = [#tpu.dimension_semantics<parallel>, #tpu.dimension_semantics<parallel>], iteration_bounds = array<i64: 1, 2>, scalar_prefetch = 0 : i64, scratch_operands = 0 : i64, tpu.core_type = #tpu.core_type<tc>, window_params = [{transform_indices = @transform_0, window_bounds = array<i64: 1, 16, 96>}, {transform_indices = @transform_1, window_bounds = array<i64: 1, 16, 96>}, {transform_indices = @transform_2, window_bounds = array<i64: 16, 16, 96>}, {transform_indices = @transform_3, window_bounds = array<i64: 16, 16, 96>}, {transform_indices = @transform_4, window_bounds = array<i64: 1, 16, 96>}, {transform_indices = @transform_5, window_bounds = array<i64: 1, 16, 96>}]} {
    %cst = arith.constant 0.000000e+00 : f32
    %0 = vector.broadcast %cst : f32 to vector<16x96xf32>
    %cst_0 = arith.constant 0.000000e+00 : f32
    %1 = vector.broadcast %cst_0 : f32 to vector<16x96xf32>
    %c0 = arith.constant 0 : index
    %c0_1 = arith.constant 0 : index
    %c0_2 = arith.constant 0 : index
    %2 = vector.load %arg2[%c0, %c0_1, %c0_2] : memref<1x16x96xf32, #tpu.memory_space<vmem>>, vector<1x1x96xf32>
    %3 = vector.shape_cast %2 : vector<1x1x96xf32> to vector<96xf32>
    %4 = vector.shape_cast %3 : vector<96xf32> to vector<1x96xf32>
    %c0_3 = arith.constant 0 : index
    %c0_4 = arith.constant 0 : index
    %c0_5 = arith.constant 0 : index
    %5 = vector.load %arg3[%c0_3, %c0_4, %c0_5] : memref<1x16x96xf32, #tpu.memory_space<vmem>>, vector<1x1x96xf32>
    %6 = vector.shape_cast %5 : vector<1x1x96xf32> to vector<96xf32>
    %7 = vector.shape_cast %6 : vector<96xf32> to vector<1x96xf32>
    %c0_6 = arith.constant 0 : index
    %c0_7 = arith.constant 0 : index
    %c0_8 = arith.constant 0 : index
    %8 = vector.load %arg4[%c0_6, %c0_7, %c0_8] : memref<16x16x96xf32, #tpu.memory_space<vmem>>, vector<1x16x96xf32>
    %9 = vector.shape_cast %8 : vector<1x16x96xf32> to vector<16x96xf32>
    %c0_9 = arith.constant 0 : index
    %c0_10 = arith.constant 0 : index
    %c0_11 = arith.constant 0 : index
    %10 = vector.load %arg5[%c0_9, %c0_10, %c0_11] : memref<16x16x96xf32, #tpu.memory_space<vmem>>, vector<1x16x96xf32>
    %11 = vector.shape_cast %10 : vector<1x16x96xf32> to vector<16x96xf32>
    %12 = vector.broadcast %4 : vector<1x96xf32> to vector<16x96xf32>
    %13 = arith.mulf %12, %9 : vector<16x96xf32>
    %14 = arith.addf %0, %13 : vector<16x96xf32>
    %15 = vector.broadcast %7 : vector<1x96xf32> to vector<16x96xf32>
    %16 = arith.mulf %15, %11 : vector<16x96xf32>
    %17 = arith.subf %14, %16 : vector<16x96xf32>
    %18 = vector.broadcast %4 : vector<1x96xf32> to vector<16x96xf32>
    %19 = arith.mulf %18, %11 : vector<16x96xf32>
    %20 = arith.addf %1, %19 : vector<16x96xf32>
    %21 = vector.broadcast %7 : vector<1x96xf32> to vector<16x96xf32>
    %22 = arith.mulf %21, %9 : vector<16x96xf32>
    %23 = arith.addf %20, %22 : vector<16x96xf32>
    %c0_12 = arith.constant 0 : index
    %c1 = arith.constant 1 : index
    %c0_13 = arith.constant 0 : index
    %24 = vector.load %arg2[%c0_12, %c1, %c0_13] : memref<1x16x96xf32, #tpu.memory_space<vmem>>, vector<1x1x96xf32>
    %25 = vector.shape_cast %24 : vector<1x1x96xf32> to vector<96xf32>
    %26 = vector.shape_cast %25 : vector<96xf32> to vector<1x96xf32>
    %c0_14 = arith.constant 0 : index
    %c1_15 = arith.constant 1 : index
    %c0_16 = arith.constant 0 : index
    %27 = vector.load %arg3[%c0_14, %c1_15, %c0_16] : memref<1x16x96xf32, #tpu.memory_space<vmem>>, vector<1x1x96xf32>
    %28 = vector.shape_cast %27 : vector<1x1x96xf32> to vector<96xf32>
    %29 = vector.shape_cast %28 : vector<96xf32> to vector<1x96xf32>
    %c1_17 = arith.constant 1 : index
    %c0_18 = arith.constant 0 : index
    %c0_19 = arith.constant 0 : index
    %30 = vector.load %arg4[%c1_17, %c0_18, %c0_19] : memref<16x16x96xf32, #tpu.memory_space<vmem>>, vector<1x16x96xf32>
    %31 = vector.shape_cast %30 : vector<1x16x96xf32> to vector<16x96xf32>
    %c1_20 = arith.constant 1 : index
    %c0_21 = arith.constant 0 : index
    %c0_22 = arith.constant 0 : index
    %32 = vector.load %arg5[%c1_20, %c0_21, %c0_22] : memref<16x16x96xf32, #tpu.memory_space<vmem>>, vector<1x16x96xf32>
    %33 = vector.shape_cast %32 : vector<1x16x96xf32> to vector<16x96xf32>
    %34 = vector.broadcast %26 : vector<1x96xf32> to vector<16x96xf32>
    %35 = arith.mulf %34, %31 : vector<16x96xf32>
    %36 = arith.addf %17, %35 : vector<16x96xf32>
    %37 = vector.broadcast %29 : vector<1x96xf32> to vector<16x96xf32>
    %38 = arith.mulf %37, %33 : vector<16x96xf32>
    %39 = arith.subf %36, %38 : vector<16x96xf32>
    %40 = vector.broadcast %26 : vector<1x96xf32> to vector<16x96xf32>
    %41 = arith.mulf %40, %33 : vector<16x96xf32>
    %42 = arith.addf %23, %41 : vector<16x96xf32>
    %43 = vector.broadcast %29 : vector<1x96xf32> to vector<16x96xf32>
    %44 = arith.mulf %43, %31 : vector<16x96xf32>
    %45 = arith.addf %42, %44 : vector<16x96xf32>
    %c0_23 = arith.constant 0 : index
    %c2 = arith.constant 2 : index
    %c0_24 = arith.constant 0 : index
    %46 = vector.load %arg2[%c0_23, %c2, %c0_24] : memref<1x16x96xf32, #tpu.memory_space<vmem>>, vector<1x1x96xf32>
    %47 = vector.shape_cast %46 : vector<1x1x96xf32> to vector<96xf32>
    %48 = vector.shape_cast %47 : vector<96xf32> to vector<1x96xf32>
    %c0_25 = arith.constant 0 : index
    %c2_26 = arith.constant 2 : index
    %c0_27 = arith.constant 0 : index
    %49 = vector.load %arg3[%c0_25, %c2_26, %c0_27] : memref<1x16x96xf32, #tpu.memory_space<vmem>>, vector<1x1x96xf32>
    %50 = vector.shape_cast %49 : vector<1x1x96xf32> to vector<96xf32>
    %51 = vector.shape_cast %50 : vector<96xf32> to vector<1x96xf32>
    %c2_28 = arith.constant 2 : index
    %c0_29 = arith.constant 0 : index
    %c0_30 = arith.constant 0 : index
    %52 = vector.load %arg4[%c2_28, %c0_29, %c0_30] : memref<16x16x96xf32, #tpu.memory_space<vmem>>, vector<1x16x96xf32>
    %53 = vector.shape_cast %52 : vector<1x16x96xf32> to vector<16x96xf32>
    %c2_31 = arith.constant 2 : index
    %c0_32 = arith.constant 0 : index
    %c0_33 = arith.constant 0 : index
    %54 = vector.load %arg5[%c2_31, %c0_32, %c0_33] : memref<16x16x96xf32, #tpu.memory_space<vmem>>, vector<1x16x96xf32>
    %55 = vector.shape_cast %54 : vector<1x16x96xf32> to vector<16x96xf32>
    %56 = vector.broadcast %48 : vector<1x96xf32> to vector<16x96xf32>
    %57 = arith.mulf %56, %53 : vector<16x96xf32>
    %58 = arith.addf %39, %57 : vector<16x96xf32>
    %59 = vector.broadcast %51 : vector<1x96xf32> to vector<16x96xf32>
    %60 = arith.mulf %59, %55 : vector<16x96xf32>
    %61 = arith.subf %58, %60 : vector<16x96xf32>
    %62 = vector.broadcast %48 : vector<1x96xf32> to vector<16x96xf32>
    %63 = arith.mulf %62, %55 : vector<16x96xf32>
    %64 = arith.addf %45, %63 : vector<16x96xf32>
    %65 = vector.broadcast %51 : vector<1x96xf32> to vector<16x96xf32>
    %66 = arith.mulf %65, %53 : vector<16x96xf32>
    %67 = arith.addf %64, %66 : vector<16x96xf32>
    %c0_34 = arith.constant 0 : index
    %c3 = arith.constant 3 : index
    %c0_35 = arith.constant 0 : index
    %68 = vector.load %arg2[%c0_34, %c3, %c0_35] : memref<1x16x96xf32, #tpu.memory_space<vmem>>, vector<1x1x96xf32>
    %69 = vector.shape_cast %68 : vector<1x1x96xf32> to vector<96xf32>
    %70 = vector.shape_cast %69 : vector<96xf32> to vector<1x96xf32>
    %c0_36 = arith.constant 0 : index
    %c3_37 = arith.constant 3 : index
    %c0_38 = arith.constant 0 : index
    %71 = vector.load %arg3[%c0_36, %c3_37, %c0_38] : memref<1x16x96xf32, #tpu.memory_space<vmem>>, vector<1x1x96xf32>
    %72 = vector.shape_cast %71 : vector<1x1x96xf32> to vector<96xf32>
    %73 = vector.shape_cast %72 : vector<96xf32> to vector<1x96xf32>
    %c3_39 = arith.constant 3 : index
    %c0_40 = arith.constant 0 : index
    %c0_41 = arith.constant 0 : index
    %74 = vector.load %arg4[%c3_39, %c0_40, %c0_41] : memref<16x16x96xf32, #tpu.memory_space<vmem>>, vector<1x16x96xf32>
    %75 = vector.shape_cast %74 : vector<1x16x96xf32> to vector<16x96xf32>
    %c3_42 = arith.constant 3 : index
    %c0_43 = arith.constant 0 : index
    %c0_44 = arith.constant 0 : index
    %76 = vector.load %arg5[%c3_42, %c0_43, %c0_44] : memref<16x16x96xf32, #tpu.memory_space<vmem>>, vector<1x16x96xf32>
    %77 = vector.shape_cast %76 : vector<1x16x96xf32> to vector<16x96xf32>
    %78 = vector.broadcast %70 : vector<1x96xf32> to vector<16x96xf32>
    %79 = arith.mulf %78, %75 : vector<16x96xf32>
    %80 = arith.addf %61, %79 : vector<16x96xf32>
    %81 = vector.broadcast %73 : vector<1x96xf32> to vector<16x96xf32>
    %82 = arith.mulf %81, %77 : vector<16x96xf32>
    %83 = arith.subf %80, %82 : vector<16x96xf32>
    %84 = vector.broadcast %70 : vector<1x96xf32> to vector<16x96xf32>
    %85 = arith.mulf %84, %77 : vector<16x96xf32>
    %86 = arith.addf %67, %85 : vector<16x96xf32>
    %87 = vector.broadcast %73 : vector<1x96xf32> to vector<16x96xf32>
    %88 = arith.mulf %87, %75 : vector<16x96xf32>
    %89 = arith.addf %86, %88 : vector<16x96xf32>
    %c0_45 = arith.constant 0 : index
    %c4 = arith.constant 4 : index
    %c0_46 = arith.constant 0 : index
    %90 = vector.load %arg2[%c0_45, %c4, %c0_46] : memref<1x16x96xf32, #tpu.memory_space<vmem>>, vector<1x1x96xf32>
    %91 = vector.shape_cast %90 : vector<1x1x96xf32> to vector<96xf32>
    %92 = vector.shape_cast %91 : vector<96xf32> to vector<1x96xf32>
    %c0_47 = arith.constant 0 : index
    %c4_48 = arith.constant 4 : index
    %c0_49 = arith.constant 0 : index
    %93 = vector.load %arg3[%c0_47, %c4_48, %c0_49] : memref<1x16x96xf32, #tpu.memory_space<vmem>>, vector<1x1x96xf32>
    %94 = vector.shape_cast %93 : vector<1x1x96xf32> to vector<96xf32>
    %95 = vector.shape_cast %94 : vector<96xf32> to vector<1x96xf32>
    %c4_50 = arith.constant 4 : index
    %c0_51 = arith.constant 0 : index
    %c0_52 = arith.constant 0 : index
    %96 = vector.load %arg4[%c4_50, %c0_51, %c0_52] : memref<16x16x96xf32, #tpu.memory_space<vmem>>, vector<1x16x96xf32>
    %97 = vector.shape_cast %96 : vector<1x16x96xf32> to vector<16x96xf32>
    %c4_53 = arith.constant 4 : index
    %c0_54 = arith.constant 0 : index
    %c0_55 = arith.constant 0 : index
    %98 = vector.load %arg5[%c4_53, %c0_54, %c0_55] : memref<16x16x96xf32, #tpu.memory_space<vmem>>, vector<1x16x96xf32>
    %99 = vector.shape_cast %98 : vector<1x16x96xf32> to vector<16x96xf32>
    %100 = vector.broadcast %92 : vector<1x96xf32> to vector<16x96xf32>
    %101 = arith.mulf %100, %97 : vector<16x96xf32>
    %102 = arith.addf %83, %101 : vector<16x96xf32>
    %103 = vector.broadcast %95 : vector<1x96xf32> to vector<16x96xf32>
    %104 = arith.mulf %103, %99 : vector<16x96xf32>
    %105 = arith.subf %102, %104 : vector<16x96xf32>
    %106 = vector.broadcast %92 : vector<1x96xf32> to vector<16x96xf32>
    %107 = arith.mulf %106, %99 : vector<16x96xf32>
    %108 = arith.addf %89, %107 : vector<16x96xf32>
    %109 = vector.broadcast %95 : vector<1x96xf32> to vector<16x96xf32>
    %110 = arith.mulf %109, %97 : vector<16x96xf32>
    %111 = arith.addf %108, %110 : vector<16x96xf32>
    %c0_56 = arith.constant 0 : index
    %c5 = arith.constant 5 : index
    %c0_57 = arith.constant 0 : index
    %112 = vector.load %arg2[%c0_56, %c5, %c0_57] : memref<1x16x96xf32, #tpu.memory_space<vmem>>, vector<1x1x96xf32>
    %113 = vector.shape_cast %112 : vector<1x1x96xf32> to vector<96xf32>
    %114 = vector.shape_cast %113 : vector<96xf32> to vector<1x96xf32>
    %c0_58 = arith.constant 0 : index
    %c5_59 = arith.constant 5 : index
    %c0_60 = arith.constant 0 : index
    %115 = vector.load %arg3[%c0_58, %c5_59, %c0_60] : memref<1x16x96xf32, #tpu.memory_space<vmem>>, vector<1x1x96xf32>
    %116 = vector.shape_cast %115 : vector<1x1x96xf32> to vector<96xf32>
    %117 = vector.shape_cast %116 : vector<96xf32> to vector<1x96xf32>
    %c5_61 = arith.constant 5 : index
    %c0_62 = arith.constant 0 : index
    %c0_63 = arith.constant 0 : index
    %118 = vector.load %arg4[%c5_61, %c0_62, %c0_63] : memref<16x16x96xf32, #tpu.memory_space<vmem>>, vector<1x16x96xf32>
    %119 = vector.shape_cast %118 : vector<1x16x96xf32> to vector<16x96xf32>
    %c5_64 = arith.constant 5 : index
    %c0_65 = arith.constant 0 : index
    %c0_66 = arith.constant 0 : index
    %120 = vector.load %arg5[%c5_64, %c0_65, %c0_66] : memref<16x16x96xf32, #tpu.memory_space<vmem>>, vector<1x16x96xf32>
    %121 = vector.shape_cast %120 : vector<1x16x96xf32> to vector<16x96xf32>
    %122 = vector.broadcast %114 : vector<1x96xf32> to vector<16x96xf32>
    %123 = arith.mulf %122, %119 : vector<16x96xf32>
    %124 = arith.addf %105, %123 : vector<16x96xf32>
    %125 = vector.broadcast %117 : vector<1x96xf32> to vector<16x96xf32>
    %126 = arith.mulf %125, %121 : vector<16x96xf32>
    %127 = arith.subf %124, %126 : vector<16x96xf32>
    %128 = vector.broadcast %114 : vector<1x96xf32> to vector<16x96xf32>
    %129 = arith.mulf %128, %121 : vector<16x96xf32>
    %130 = arith.addf %111, %129 : vector<16x96xf32>
    %131 = vector.broadcast %117 : vector<1x96xf32> to vector<16x96xf32>
    %132 = arith.mulf %131, %119 : vector<16x96xf32>
    %133 = arith.addf %130, %132 : vector<16x96xf32>
    %c0_67 = arith.constant 0 : index
    %c6 = arith.constant 6 : index
    %c0_68 = arith.constant 0 : index
    %134 = vector.load %arg2[%c0_67, %c6, %c0_68] : memref<1x16x96xf32, #tpu.memory_space<vmem>>, vector<1x1x96xf32>
    %135 = vector.shape_cast %134 : vector<1x1x96xf32> to vector<96xf32>
    %136 = vector.shape_cast %135 : vector<96xf32> to vector<1x96xf32>
    %c0_69 = arith.constant 0 : index
    %c6_70 = arith.constant 6 : index
    %c0_71 = arith.constant 0 : index
    %137 = vector.load %arg3[%c0_69, %c6_70, %c0_71] : memref<1x16x96xf32, #tpu.memory_space<vmem>>, vector<1x1x96xf32>
    %138 = vector.shape_cast %137 : vector<1x1x96xf32> to vector<96xf32>
    %139 = vector.shape_cast %138 : vector<96xf32> to vector<1x96xf32>
    %c6_72 = arith.constant 6 : index
    %c0_73 = arith.constant 0 : index
    %c0_74 = arith.constant 0 : index
    %140 = vector.load %arg4[%c6_72, %c0_73, %c0_74] : memref<16x16x96xf32, #tpu.memory_space<vmem>>, vector<1x16x96xf32>
    %141 = vector.shape_cast %140 : vector<1x16x96xf32> to vector<16x96xf32>
    %c6_75 = arith.constant 6 : index
    %c0_76 = arith.constant 0 : index
    %c0_77 = arith.constant 0 : index
    %142 = vector.load %arg5[%c6_75, %c0_76, %c0_77] : memref<16x16x96xf32, #tpu.memory_space<vmem>>, vector<1x16x96xf32>
    %143 = vector.shape_cast %142 : vector<1x16x96xf32> to vector<16x96xf32>
    %144 = vector.broadcast %136 : vector<1x96xf32> to vector<16x96xf32>
    %145 = arith.mulf %144, %141 : vector<16x96xf32>
    %146 = arith.addf %127, %145 : vector<16x96xf32>
    %147 = vector.broadcast %139 : vector<1x96xf32> to vector<16x96xf32>
    %148 = arith.mulf %147, %143 : vector<16x96xf32>
    %149 = arith.subf %146, %148 : vector<16x96xf32>
    %150 = vector.broadcast %136 : vector<1x96xf32> to vector<16x96xf32>
    %151 = arith.mulf %150, %143 : vector<16x96xf32>
    %152 = arith.addf %133, %151 : vector<16x96xf32>
    %153 = vector.broadcast %139 : vector<1x96xf32> to vector<16x96xf32>
    %154 = arith.mulf %153, %141 : vector<16x96xf32>
    %155 = arith.addf %152, %154 : vector<16x96xf32>
    %c0_78 = arith.constant 0 : index
    %c7 = arith.constant 7 : index
    %c0_79 = arith.constant 0 : index
    %156 = vector.load %arg2[%c0_78, %c7, %c0_79] : memref<1x16x96xf32, #tpu.memory_space<vmem>>, vector<1x1x96xf32>
    %157 = vector.shape_cast %156 : vector<1x1x96xf32> to vector<96xf32>
    %158 = vector.shape_cast %157 : vector<96xf32> to vector<1x96xf32>
    %c0_80 = arith.constant 0 : index
    %c7_81 = arith.constant 7 : index
    %c0_82 = arith.constant 0 : index
    %159 = vector.load %arg3[%c0_80, %c7_81, %c0_82] : memref<1x16x96xf32, #tpu.memory_space<vmem>>, vector<1x1x96xf32>
    %160 = vector.shape_cast %159 : vector<1x1x96xf32> to vector<96xf32>
    %161 = vector.shape_cast %160 : vector<96xf32> to vector<1x96xf32>
    %c7_83 = arith.constant 7 : index
    %c0_84 = arith.constant 0 : index
    %c0_85 = arith.constant 0 : index
    %162 = vector.load %arg4[%c7_83, %c0_84, %c0_85] : memref<16x16x96xf32, #tpu.memory_space<vmem>>, vector<1x16x96xf32>
    %163 = vector.shape_cast %162 : vector<1x16x96xf32> to vector<16x96xf32>
    %c7_86 = arith.constant 7 : index
    %c0_87 = arith.constant 0 : index
    %c0_88 = arith.constant 0 : index
    %164 = vector.load %arg5[%c7_86, %c0_87, %c0_88] : memref<16x16x96xf32, #tpu.memory_space<vmem>>, vector<1x16x96xf32>
    %165 = vector.shape_cast %164 : vector<1x16x96xf32> to vector<16x96xf32>
    %166 = vector.broadcast %158 : vector<1x96xf32> to vector<16x96xf32>
    %167 = arith.mulf %166, %163 : vector<16x96xf32>
    %168 = arith.addf %149, %167 : vector<16x96xf32>
    %169 = vector.broadcast %161 : vector<1x96xf32> to vector<16x96xf32>
    %170 = arith.mulf %169, %165 : vector<16x96xf32>
    %171 = arith.subf %168, %170 : vector<16x96xf32>
    %172 = vector.broadcast %158 : vector<1x96xf32> to vector<16x96xf32>
    %173 = arith.mulf %172, %165 : vector<16x96xf32>
    %174 = arith.addf %155, %173 : vector<16x96xf32>
    %175 = vector.broadcast %161 : vector<1x96xf32> to vector<16x96xf32>
    %176 = arith.mulf %175, %163 : vector<16x96xf32>
    %177 = arith.addf %174, %176 : vector<16x96xf32>
    %c0_89 = arith.constant 0 : index
    %c8 = arith.constant 8 : index
    %c0_90 = arith.constant 0 : index
    %178 = vector.load %arg2[%c0_89, %c8, %c0_90] : memref<1x16x96xf32, #tpu.memory_space<vmem>>, vector<1x1x96xf32>
    %179 = vector.shape_cast %178 : vector<1x1x96xf32> to vector<96xf32>
    %180 = vector.shape_cast %179 : vector<96xf32> to vector<1x96xf32>
    %c0_91 = arith.constant 0 : index
    %c8_92 = arith.constant 8 : index
    %c0_93 = arith.constant 0 : index
    %181 = vector.load %arg3[%c0_91, %c8_92, %c0_93] : memref<1x16x96xf32, #tpu.memory_space<vmem>>, vector<1x1x96xf32>
    %182 = vector.shape_cast %181 : vector<1x1x96xf32> to vector<96xf32>
    %183 = vector.shape_cast %182 : vector<96xf32> to vector<1x96xf32>
    %c8_94 = arith.constant 8 : index
    %c0_95 = arith.constant 0 : index
    %c0_96 = arith.constant 0 : index
    %184 = vector.load %arg4[%c8_94, %c0_95, %c0_96] : memref<16x16x96xf32, #tpu.memory_space<vmem>>, vector<1x16x96xf32>
    %185 = vector.shape_cast %184 : vector<1x16x96xf32> to vector<16x96xf32>
    %c8_97 = arith.constant 8 : index
    %c0_98 = arith.constant 0 : index
    %c0_99 = arith.constant 0 : index
    %186 = vector.load %arg5[%c8_97, %c0_98, %c0_99] : memref<16x16x96xf32, #tpu.memory_space<vmem>>, vector<1x16x96xf32>
    %187 = vector.shape_cast %186 : vector<1x16x96xf32> to vector<16x96xf32>
    %188 = vector.broadcast %180 : vector<1x96xf32> to vector<16x96xf32>
    %189 = arith.mulf %188, %185 : vector<16x96xf32>
    %190 = arith.addf %171, %189 : vector<16x96xf32>
    %191 = vector.broadcast %183 : vector<1x96xf32> to vector<16x96xf32>
    %192 = arith.mulf %191, %187 : vector<16x96xf32>
    %193 = arith.subf %190, %192 : vector<16x96xf32>
    %194 = vector.broadcast %180 : vector<1x96xf32> to vector<16x96xf32>
    %195 = arith.mulf %194, %187 : vector<16x96xf32>
    %196 = arith.addf %177, %195 : vector<16x96xf32>
    %197 = vector.broadcast %183 : vector<1x96xf32> to vector<16x96xf32>
    %198 = arith.mulf %197, %185 : vector<16x96xf32>
    %199 = arith.addf %196, %198 : vector<16x96xf32>
    %c0_100 = arith.constant 0 : index
    %c9 = arith.constant 9 : index
    %c0_101 = arith.constant 0 : index
    %200 = vector.load %arg2[%c0_100, %c9, %c0_101] : memref<1x16x96xf32, #tpu.memory_space<vmem>>, vector<1x1x96xf32>
    %201 = vector.shape_cast %200 : vector<1x1x96xf32> to vector<96xf32>
    %202 = vector.shape_cast %201 : vector<96xf32> to vector<1x96xf32>
    %c0_102 = arith.constant 0 : index
    %c9_103 = arith.constant 9 : index
    %c0_104 = arith.constant 0 : index
    %203 = vector.load %arg3[%c0_102, %c9_103, %c0_104] : memref<1x16x96xf32, #tpu.memory_space<vmem>>, vector<1x1x96xf32>
    %204 = vector.shape_cast %203 : vector<1x1x96xf32> to vector<96xf32>
    %205 = vector.shape_cast %204 : vector<96xf32> to vector<1x96xf32>
    %c9_105 = arith.constant 9 : index
    %c0_106 = arith.constant 0 : index
    %c0_107 = arith.constant 0 : index
    %206 = vector.load %arg4[%c9_105, %c0_106, %c0_107] : memref<16x16x96xf32, #tpu.memory_space<vmem>>, vector<1x16x96xf32>
    %207 = vector.shape_cast %206 : vector<1x16x96xf32> to vector<16x96xf32>
    %c9_108 = arith.constant 9 : index
    %c0_109 = arith.constant 0 : index
    %c0_110 = arith.constant 0 : index
    %208 = vector.load %arg5[%c9_108, %c0_109, %c0_110] : memref<16x16x96xf32, #tpu.memory_space<vmem>>, vector<1x16x96xf32>
    %209 = vector.shape_cast %208 : vector<1x16x96xf32> to vector<16x96xf32>
    %210 = vector.broadcast %202 : vector<1x96xf32> to vector<16x96xf32>
    %211 = arith.mulf %210, %207 : vector<16x96xf32>
    %212 = arith.addf %193, %211 : vector<16x96xf32>
    %213 = vector.broadcast %205 : vector<1x96xf32> to vector<16x96xf32>
    %214 = arith.mulf %213, %209 : vector<16x96xf32>
    %215 = arith.subf %212, %214 : vector<16x96xf32>
    %216 = vector.broadcast %202 : vector<1x96xf32> to vector<16x96xf32>
    %217 = arith.mulf %216, %209 : vector<16x96xf32>
    %218 = arith.addf %199, %217 : vector<16x96xf32>
    %219 = vector.broadcast %205 : vector<1x96xf32> to vector<16x96xf32>
    %220 = arith.mulf %219, %207 : vector<16x96xf32>
    %221 = arith.addf %218, %220 : vector<16x96xf32>
    %c0_111 = arith.constant 0 : index
    %c10 = arith.constant 10 : index
    %c0_112 = arith.constant 0 : index
    %222 = vector.load %arg2[%c0_111, %c10, %c0_112] : memref<1x16x96xf32, #tpu.memory_space<vmem>>, vector<1x1x96xf32>
    %223 = vector.shape_cast %222 : vector<1x1x96xf32> to vector<96xf32>
    %224 = vector.shape_cast %223 : vector<96xf32> to vector<1x96xf32>
    %c0_113 = arith.constant 0 : index
    %c10_114 = arith.constant 10 : index
    %c0_115 = arith.constant 0 : index
    %225 = vector.load %arg3[%c0_113, %c10_114, %c0_115] : memref<1x16x96xf32, #tpu.memory_space<vmem>>, vector<1x1x96xf32>
    %226 = vector.shape_cast %225 : vector<1x1x96xf32> to vector<96xf32>
    %227 = vector.shape_cast %226 : vector<96xf32> to vector<1x96xf32>
    %c10_116 = arith.constant 10 : index
    %c0_117 = arith.constant 0 : index
    %c0_118 = arith.constant 0 : index
    %228 = vector.load %arg4[%c10_116, %c0_117, %c0_118] : memref<16x16x96xf32, #tpu.memory_space<vmem>>, vector<1x16x96xf32>
    %229 = vector.shape_cast %228 : vector<1x16x96xf32> to vector<16x96xf32>
    %c10_119 = arith.constant 10 : index
    %c0_120 = arith.constant 0 : index
    %c0_121 = arith.constant 0 : index
    %230 = vector.load %arg5[%c10_119, %c0_120, %c0_121] : memref<16x16x96xf32, #tpu.memory_space<vmem>>, vector<1x16x96xf32>
    %231 = vector.shape_cast %230 : vector<1x16x96xf32> to vector<16x96xf32>
    %232 = vector.broadcast %224 : vector<1x96xf32> to vector<16x96xf32>
    %233 = arith.mulf %232, %229 : vector<16x96xf32>
    %234 = arith.addf %215, %233 : vector<16x96xf32>
    %235 = vector.broadcast %227 : vector<1x96xf32> to vector<16x96xf32>
    %236 = arith.mulf %235, %231 : vector<16x96xf32>
    %237 = arith.subf %234, %236 : vector<16x96xf32>
    %238 = vector.broadcast %224 : vector<1x96xf32> to vector<16x96xf32>
    %239 = arith.mulf %238, %231 : vector<16x96xf32>
    %240 = arith.addf %221, %239 : vector<16x96xf32>
    %241 = vector.broadcast %227 : vector<1x96xf32> to vector<16x96xf32>
    %242 = arith.mulf %241, %229 : vector<16x96xf32>
    %243 = arith.addf %240, %242 : vector<16x96xf32>
    %c0_122 = arith.constant 0 : index
    %c11 = arith.constant 11 : index
    %c0_123 = arith.constant 0 : index
    %244 = vector.load %arg2[%c0_122, %c11, %c0_123] : memref<1x16x96xf32, #tpu.memory_space<vmem>>, vector<1x1x96xf32>
    %245 = vector.shape_cast %244 : vector<1x1x96xf32> to vector<96xf32>
    %246 = vector.shape_cast %245 : vector<96xf32> to vector<1x96xf32>
    %c0_124 = arith.constant 0 : index
    %c11_125 = arith.constant 11 : index
    %c0_126 = arith.constant 0 : index
    %247 = vector.load %arg3[%c0_124, %c11_125, %c0_126] : memref<1x16x96xf32, #tpu.memory_space<vmem>>, vector<1x1x96xf32>
    %248 = vector.shape_cast %247 : vector<1x1x96xf32> to vector<96xf32>
    %249 = vector.shape_cast %248 : vector<96xf32> to vector<1x96xf32>
    %c11_127 = arith.constant 11 : index
    %c0_128 = arith.constant 0 : index
    %c0_129 = arith.constant 0 : index
    %250 = vector.load %arg4[%c11_127, %c0_128, %c0_129] : memref<16x16x96xf32, #tpu.memory_space<vmem>>, vector<1x16x96xf32>
    %251 = vector.shape_cast %250 : vector<1x16x96xf32> to vector<16x96xf32>
    %c11_130 = arith.constant 11 : index
    %c0_131 = arith.constant 0 : index
    %c0_132 = arith.constant 0 : index
    %252 = vector.load %arg5[%c11_130, %c0_131, %c0_132] : memref<16x16x96xf32, #tpu.memory_space<vmem>>, vector<1x16x96xf32>
    %253 = vector.shape_cast %252 : vector<1x16x96xf32> to vector<16x96xf32>
    %254 = vector.broadcast %246 : vector<1x96xf32> to vector<16x96xf32>
    %255 = arith.mulf %254, %251 : vector<16x96xf32>
    %256 = arith.addf %237, %255 : vector<16x96xf32>
    %257 = vector.broadcast %249 : vector<1x96xf32> to vector<16x96xf32>
    %258 = arith.mulf %257, %253 : vector<16x96xf32>
    %259 = arith.subf %256, %258 : vector<16x96xf32>
    %260 = vector.broadcast %246 : vector<1x96xf32> to vector<16x96xf32>
    %261 = arith.mulf %260, %253 : vector<16x96xf32>
    %262 = arith.addf %243, %261 : vector<16x96xf32>
    %263 = vector.broadcast %249 : vector<1x96xf32> to vector<16x96xf32>
    %264 = arith.mulf %263, %251 : vector<16x96xf32>
    %265 = arith.addf %262, %264 : vector<16x96xf32>
    %c0_133 = arith.constant 0 : index
    %c12 = arith.constant 12 : index
    %c0_134 = arith.constant 0 : index
    %266 = vector.load %arg2[%c0_133, %c12, %c0_134] : memref<1x16x96xf32, #tpu.memory_space<vmem>>, vector<1x1x96xf32>
    %267 = vector.shape_cast %266 : vector<1x1x96xf32> to vector<96xf32>
    %268 = vector.shape_cast %267 : vector<96xf32> to vector<1x96xf32>
    %c0_135 = arith.constant 0 : index
    %c12_136 = arith.constant 12 : index
    %c0_137 = arith.constant 0 : index
    %269 = vector.load %arg3[%c0_135, %c12_136, %c0_137] : memref<1x16x96xf32, #tpu.memory_space<vmem>>, vector<1x1x96xf32>
    %270 = vector.shape_cast %269 : vector<1x1x96xf32> to vector<96xf32>
    %271 = vector.shape_cast %270 : vector<96xf32> to vector<1x96xf32>
    %c12_138 = arith.constant 12 : index
    %c0_139 = arith.constant 0 : index
    %c0_140 = arith.constant 0 : index
    %272 = vector.load %arg4[%c12_138, %c0_139, %c0_140] : memref<16x16x96xf32, #tpu.memory_space<vmem>>, vector<1x16x96xf32>
    %273 = vector.shape_cast %272 : vector<1x16x96xf32> to vector<16x96xf32>
    %c12_141 = arith.constant 12 : index
    %c0_142 = arith.constant 0 : index
    %c0_143 = arith.constant 0 : index
    %274 = vector.load %arg5[%c12_141, %c0_142, %c0_143] : memref<16x16x96xf32, #tpu.memory_space<vmem>>, vector<1x16x96xf32>
    %275 = vector.shape_cast %274 : vector<1x16x96xf32> to vector<16x96xf32>
    %276 = vector.broadcast %268 : vector<1x96xf32> to vector<16x96xf32>
    %277 = arith.mulf %276, %273 : vector<16x96xf32>
    %278 = arith.addf %259, %277 : vector<16x96xf32>
    %279 = vector.broadcast %271 : vector<1x96xf32> to vector<16x96xf32>
    %280 = arith.mulf %279, %275 : vector<16x96xf32>
    %281 = arith.subf %278, %280 : vector<16x96xf32>
    %282 = vector.broadcast %268 : vector<1x96xf32> to vector<16x96xf32>
    %283 = arith.mulf %282, %275 : vector<16x96xf32>
    %284 = arith.addf %265, %283 : vector<16x96xf32>
    %285 = vector.broadcast %271 : vector<1x96xf32> to vector<16x96xf32>
    %286 = arith.mulf %285, %273 : vector<16x96xf32>
    %287 = arith.addf %284, %286 : vector<16x96xf32>
    %c0_144 = arith.constant 0 : index
    %c13 = arith.constant 13 : index
    %c0_145 = arith.constant 0 : index
    %288 = vector.load %arg2[%c0_144, %c13, %c0_145] : memref<1x16x96xf32, #tpu.memory_space<vmem>>, vector<1x1x96xf32>
    %289 = vector.shape_cast %288 : vector<1x1x96xf32> to vector<96xf32>
    %290 = vector.shape_cast %289 : vector<96xf32> to vector<1x96xf32>
    %c0_146 = arith.constant 0 : index
    %c13_147 = arith.constant 13 : index
    %c0_148 = arith.constant 0 : index
    %291 = vector.load %arg3[%c0_146, %c13_147, %c0_148] : memref<1x16x96xf32, #tpu.memory_space<vmem>>, vector<1x1x96xf32>
    %292 = vector.shape_cast %291 : vector<1x1x96xf32> to vector<96xf32>
    %293 = vector.shape_cast %292 : vector<96xf32> to vector<1x96xf32>
    %c13_149 = arith.constant 13 : index
    %c0_150 = arith.constant 0 : index
    %c0_151 = arith.constant 0 : index
    %294 = vector.load %arg4[%c13_149, %c0_150, %c0_151] : memref<16x16x96xf32, #tpu.memory_space<vmem>>, vector<1x16x96xf32>
    %295 = vector.shape_cast %294 : vector<1x16x96xf32> to vector<16x96xf32>
    %c13_152 = arith.constant 13 : index
    %c0_153 = arith.constant 0 : index
    %c0_154 = arith.constant 0 : index
    %296 = vector.load %arg5[%c13_152, %c0_153, %c0_154] : memref<16x16x96xf32, #tpu.memory_space<vmem>>, vector<1x16x96xf32>
    %297 = vector.shape_cast %296 : vector<1x16x96xf32> to vector<16x96xf32>
    %298 = vector.broadcast %290 : vector<1x96xf32> to vector<16x96xf32>
    %299 = arith.mulf %298, %295 : vector<16x96xf32>
    %300 = arith.addf %281, %299 : vector<16x96xf32>
    %301 = vector.broadcast %293 : vector<1x96xf32> to vector<16x96xf32>
    %302 = arith.mulf %301, %297 : vector<16x96xf32>
    %303 = arith.subf %300, %302 : vector<16x96xf32>
    %304 = vector.broadcast %290 : vector<1x96xf32> to vector<16x96xf32>
    %305 = arith.mulf %304, %297 : vector<16x96xf32>
    %306 = arith.addf %287, %305 : vector<16x96xf32>
    %307 = vector.broadcast %293 : vector<1x96xf32> to vector<16x96xf32>
    %308 = arith.mulf %307, %295 : vector<16x96xf32>
    %309 = arith.addf %306, %308 : vector<16x96xf32>
    %c0_155 = arith.constant 0 : index
    %c14 = arith.constant 14 : index
    %c0_156 = arith.constant 0 : index
    %310 = vector.load %arg2[%c0_155, %c14, %c0_156] : memref<1x16x96xf32, #tpu.memory_space<vmem>>, vector<1x1x96xf32>
    %311 = vector.shape_cast %310 : vector<1x1x96xf32> to vector<96xf32>
    %312 = vector.shape_cast %311 : vector<96xf32> to vector<1x96xf32>
    %c0_157 = arith.constant 0 : index
    %c14_158 = arith.constant 14 : index
    %c0_159 = arith.constant 0 : index
    %313 = vector.load %arg3[%c0_157, %c14_158, %c0_159] : memref<1x16x96xf32, #tpu.memory_space<vmem>>, vector<1x1x96xf32>
    %314 = vector.shape_cast %313 : vector<1x1x96xf32> to vector<96xf32>
    %315 = vector.shape_cast %314 : vector<96xf32> to vector<1x96xf32>
    %c14_160 = arith.constant 14 : index
    %c0_161 = arith.constant 0 : index
    %c0_162 = arith.constant 0 : index
    %316 = vector.load %arg4[%c14_160, %c0_161, %c0_162] : memref<16x16x96xf32, #tpu.memory_space<vmem>>, vector<1x16x96xf32>
    %317 = vector.shape_cast %316 : vector<1x16x96xf32> to vector<16x96xf32>
    %c14_163 = arith.constant 14 : index
    %c0_164 = arith.constant 0 : index
    %c0_165 = arith.constant 0 : index
    %318 = vector.load %arg5[%c14_163, %c0_164, %c0_165] : memref<16x16x96xf32, #tpu.memory_space<vmem>>, vector<1x16x96xf32>
    %319 = vector.shape_cast %318 : vector<1x16x96xf32> to vector<16x96xf32>
    %320 = vector.broadcast %312 : vector<1x96xf32> to vector<16x96xf32>
    %321 = arith.mulf %320, %317 : vector<16x96xf32>
    %322 = arith.addf %303, %321 : vector<16x96xf32>
    %323 = vector.broadcast %315 : vector<1x96xf32> to vector<16x96xf32>
    %324 = arith.mulf %323, %319 : vector<16x96xf32>
    %325 = arith.subf %322, %324 : vector<16x96xf32>
    %326 = vector.broadcast %312 : vector<1x96xf32> to vector<16x96xf32>
    %327 = arith.mulf %326, %319 : vector<16x96xf32>
    %328 = arith.addf %309, %327 : vector<16x96xf32>
    %329 = vector.broadcast %315 : vector<1x96xf32> to vector<16x96xf32>
    %330 = arith.mulf %329, %317 : vector<16x96xf32>
    %331 = arith.addf %328, %330 : vector<16x96xf32>
    %c0_166 = arith.constant 0 : index
    %c15 = arith.constant 15 : index
    %c0_167 = arith.constant 0 : index
    %332 = vector.load %arg2[%c0_166, %c15, %c0_167] : memref<1x16x96xf32, #tpu.memory_space<vmem>>, vector<1x1x96xf32>
    %333 = vector.shape_cast %332 : vector<1x1x96xf32> to vector<96xf32>
    %334 = vector.shape_cast %333 : vector<96xf32> to vector<1x96xf32>
    %c0_168 = arith.constant 0 : index
    %c15_169 = arith.constant 15 : index
    %c0_170 = arith.constant 0 : index
    %335 = vector.load %arg3[%c0_168, %c15_169, %c0_170] : memref<1x16x96xf32, #tpu.memory_space<vmem>>, vector<1x1x96xf32>
    %336 = vector.shape_cast %335 : vector<1x1x96xf32> to vector<96xf32>
    %337 = vector.shape_cast %336 : vector<96xf32> to vector<1x96xf32>
    %c15_171 = arith.constant 15 : index
    %c0_172 = arith.constant 0 : index
    %c0_173 = arith.constant 0 : index
    %338 = vector.load %arg4[%c15_171, %c0_172, %c0_173] : memref<16x16x96xf32, #tpu.memory_space<vmem>>, vector<1x16x96xf32>
    %339 = vector.shape_cast %338 : vector<1x16x96xf32> to vector<16x96xf32>
    %c15_174 = arith.constant 15 : index
    %c0_175 = arith.constant 0 : index
    %c0_176 = arith.constant 0 : index
    %340 = vector.load %arg5[%c15_174, %c0_175, %c0_176] : memref<16x16x96xf32, #tpu.memory_space<vmem>>, vector<1x16x96xf32>
    %341 = vector.shape_cast %340 : vector<1x16x96xf32> to vector<16x96xf32>
    %342 = vector.broadcast %334 : vector<1x96xf32> to vector<16x96xf32>
    %343 = arith.mulf %342, %339 : vector<16x96xf32>
    %344 = arith.addf %325, %343 : vector<16x96xf32>
    %345 = vector.broadcast %337 : vector<1x96xf32> to vector<16x96xf32>
    %346 = arith.mulf %345, %341 : vector<16x96xf32>
    %347 = arith.subf %344, %346 : vector<16x96xf32>
    %348 = vector.broadcast %334 : vector<1x96xf32> to vector<16x96xf32>
    %349 = arith.mulf %348, %341 : vector<16x96xf32>
    %350 = arith.addf %331, %349 : vector<16x96xf32>
    %351 = vector.broadcast %337 : vector<1x96xf32> to vector<16x96xf32>
    %352 = arith.mulf %351, %339 : vector<16x96xf32>
    %353 = arith.addf %350, %352 : vector<16x96xf32>
    %c0_177 = arith.constant 0 : index
    %c0_178 = arith.constant 0 : index
    %c0_179 = arith.constant 0 : index
    %354 = vector.load %arg6[%c0_177, %c0_178, %c0_179] : memref<1x16x96xf32, #tpu.memory_space<vmem>>, vector<1x16x96xf32>
    %355 = vector.shape_cast %354 : vector<1x16x96xf32> to vector<16x96xf32>
    %356 = vector.shape_cast %347 : vector<16x96xf32> to vector<1x16x96xf32>
    tpu.vector_store %arg6[%c0_177, %c0_178, %c0_179], %356 {strides = array<i32>} : memref<1x16x96xf32, #tpu.memory_space<vmem>>, vector<1x16x96xf32>,
    %c0_180 = arith.constant 0 : index
    %c0_181 = arith.constant 0 : index
    %c0_182 = arith.constant 0 : index
    %357 = vector.load %arg7[%c0_180, %c0_181, %c0_182] : memref<1x16x96xf32, #tpu.memory_space<vmem>>, vector<1x16x96xf32>
    %358 = vector.shape_cast %357 : vector<1x16x96xf32> to vector<16x96xf32>
    %359 = vector.shape_cast %353 : vector<16x96xf32> to vector<1x16x96xf32>
    tpu.vector_store %arg7[%c0_180, %c0_181, %c0_182], %359 {strides = array<i32>} : memref<1x16x96xf32, #tpu.memory_space<vmem>>, vector<1x16x96xf32>,
    return
  }
  func.func @transform_0(%arg0: i32, %arg1: i32) -> (i32, i32, i32) {
    %c0_i32 = arith.constant 0 : i32
    %c0_i32_0 = arith.constant 0 : i32
    return %arg1, %c0_i32, %arg0 : i32, i32, i32
  }
  func.func @transform_1(%arg0: i32, %arg1: i32) -> (i32, i32, i32) {
    %c0_i32 = arith.constant 0 : i32
    %c0_i32_0 = arith.constant 0 : i32
    return %arg1, %c0_i32, %arg0 : i32, i32, i32
  }
  func.func @transform_2(%arg0: i32, %arg1: i32) -> (i32, i32, i32) {
    %c0_i32 = arith.constant 0 : i32
    %c0_i32_0 = arith.constant 0 : i32
    %c0_i32_1 = arith.constant 0 : i32
    return %c0_i32, %c0_i32_0, %arg0 : i32, i32, i32
  }
  func.func @transform_3(%arg0: i32, %arg1: i32) -> (i32, i32, i32) {
    %c0_i32 = arith.constant 0 : i32
    %c0_i32_0 = arith.constant 0 : i32
    %c0_i32_1 = arith.constant 0 : i32
    return %c0_i32, %c0_i32_0, %arg0 : i32, i32, i32
  }
  func.func @transform_4(%arg0: i32, %arg1: i32) -> (i32, i32, i32) {
    %c0_i32 = arith.constant 0 : i32
    %c0_i32_0 = arith.constant 0 : i32
    return %arg1, %c0_i32, %arg0 : i32, i32, i32
  }
  func.func @transform_5(%arg0: i32, %arg1: i32) -> (i32, i32, i32) {
    %c0_i32 = arith.constant 0 : i32
    %c0_i32_0 = arith.constant 0 : i32
    return %arg1, %c0_i32, %arg0 : i32, i32, i32
  }
}

module attributes {stable_mosaic.version = 11 : i64} {
  func.func @_fno_epilogue_kernel(%arg0: i32, %arg1: memref<16x512xf32, #tpu.memory_space<vmem>>, %arg2: memref<16x512xf32, #tpu.memory_space<vmem>>, %arg3: memref<2x512xf32, #tpu.memory_space<vmem>>, %arg4: memref<16x16xf32, #tpu.memory_space<vmem>>, %arg5: memref<16x1xf32, #tpu.memory_space<vmem>>, %arg6: memref<16x16xf32, #tpu.memory_space<vmem>>, %arg7: memref<16x1xf32, #tpu.memory_space<vmem>>, %arg8: memref<16x16xf32, #tpu.memory_space<vmem>>, %arg9: memref<16x1xf32, #tpu.memory_space<vmem>>, %arg10: memref<16x2xf32, #tpu.memory_space<vmem>>, %arg11: memref<16x1xf32, #tpu.memory_space<vmem>>, %arg12: memref<16x512xf32, #tpu.memory_space<vmem>>) attributes {dimension_semantics = [#tpu.dimension_semantics<parallel>], iteration_bounds = array<i64: 3>, scalar_prefetch = 0 : i64, scratch_operands = 0 : i64, tpu.core_type = #tpu.core_type<tc>, window_params = [{transform_indices = @transform_0, window_bounds = array<i64: 16, 512>}, {transform_indices = @transform_1, window_bounds = array<i64: 16, 512>}, {transform_indices = @transform_2, window_bounds = array<i64: 2, 512>}, {pipeline_mode = #tpu.pipeline_mode<synchronous>, transform_indices = @transform_3, window_bounds = array<i64: 16, 16>}, {pipeline_mode = #tpu.pipeline_mode<synchronous>, transform_indices = @transform_4, window_bounds = array<i64: 16, 1>}, {pipeline_mode = #tpu.pipeline_mode<synchronous>, transform_indices = @transform_5, window_bounds = array<i64: 16, 16>}, {pipeline_mode = #tpu.pipeline_mode<synchronous>, transform_indices = @transform_6, window_bounds = array<i64: 16, 1>}, {pipeline_mode = #tpu.pipeline_mode<synchronous>, transform_indices = @transform_7, window_bounds = array<i64: 16, 16>}, {pipeline_mode = #tpu.pipeline_mode<synchronous>, transform_indices = @transform_8, window_bounds = array<i64: 16, 1>}, {pipeline_mode = #tpu.pipeline_mode<synchronous>, transform_indices = @transform_9, window_bounds = array<i64: 16, 2>}, {pipeline_mode = #tpu.pipeline_mode<synchronous>, transform_indices = @transform_10, window_bounds = array<i64: 16, 1>}, {transform_indices = @transform_11, window_bounds = array<i64: 16, 512>}]} {
    %c0 = arith.constant 0 : index
    %c0_0 = arith.constant 0 : index
    %0 = vector.load %arg4[%c0, %c0_0] : memref<16x16xf32, #tpu.memory_space<vmem>>, vector<16x16xf32>
    %c0_1 = arith.constant 0 : index
    %c0_2 = arith.constant 0 : index
    %1 = vector.load %arg1[%c0_1, %c0_2] : memref<16x512xf32, #tpu.memory_space<vmem>>, vector<16x512xf32>
    %cst = arith.constant dense<0.000000e+00> : vector<16x512xf32>
    %2 = tpu.matmul %0, %1, %cst {dimension_numbers = #tpu.dot_dimension_numbers<[1], [0], [0], [1], [0, 0, 1, 1], [], []>} : vector<16x16xf32>, vector<16x512xf32>, vector<16x512xf32> -> vector<16x512xf32>
    %c0_3 = arith.constant 0 : index
    %c0_4 = arith.constant 0 : index
    %3 = vector.load %arg5[%c0_3, %c0_4] : memref<16x1xf32, #tpu.memory_space<vmem>>, vector<16x1xf32>
    %4 = vector.broadcast %3 : vector<16x1xf32> to vector<16x512xf32>
    %5 = arith.addf %2, %4 : vector<16x512xf32>
    %cst_5 = arith.constant 5.000000e-01 : f32
    %6 = vector.broadcast %cst_5 : f32 to vector<16x512xf32>
    %7 = arith.mulf %6, %5 : vector<16x512xf32>
    %cst_6 = arith.constant 0.707106769 : f32
    %8 = vector.broadcast %cst_6 : f32 to vector<16x512xf32>
    %9 = arith.mulf %5, %8 : vector<16x512xf32>
    %10 = math.erf %9 : vector<16x512xf32>
    %cst_7 = arith.constant 1.000000e+00 : f32
    %11 = vector.broadcast %cst_7 : f32 to vector<16x512xf32>
    %12 = arith.addf %11, %10 : vector<16x512xf32>
    %13 = arith.mulf %7, %12 : vector<16x512xf32>
    %c0_8 = arith.constant 0 : index
    %c0_9 = arith.constant 0 : index
    %14 = vector.load %arg6[%c0_8, %c0_9] : memref<16x16xf32, #tpu.memory_space<vmem>>, vector<16x16xf32>
    %cst_10 = arith.constant dense<0.000000e+00> : vector<16x512xf32>
    %15 = tpu.matmul %14, %13, %cst_10 {dimension_numbers = #tpu.dot_dimension_numbers<[1], [0], [0], [1], [0, 0, 1, 1], [], []>} : vector<16x16xf32>, vector<16x512xf32>, vector<16x512xf32> -> vector<16x512xf32>
    %c0_11 = arith.constant 0 : index
    %c0_12 = arith.constant 0 : index
    %16 = vector.load %arg7[%c0_11, %c0_12] : memref<16x1xf32, #tpu.memory_space<vmem>>, vector<16x1xf32>
    %17 = vector.broadcast %16 : vector<16x1xf32> to vector<16x512xf32>
    %18 = arith.addf %15, %17 : vector<16x512xf32>
    %c0_13 = arith.constant 0 : index
    %c0_14 = arith.constant 0 : index
    %19 = vector.load %arg8[%c0_13, %c0_14] : memref<16x16xf32, #tpu.memory_space<vmem>>, vector<16x16xf32>
    %c0_15 = arith.constant 0 : index
    %c0_16 = arith.constant 0 : index
    %20 = vector.load %arg2[%c0_15, %c0_16] : memref<16x512xf32, #tpu.memory_space<vmem>>, vector<16x512xf32>
    %cst_17 = arith.constant dense<0.000000e+00> : vector<16x512xf32>
    %21 = tpu.matmul %19, %20, %cst_17 {dimension_numbers = #tpu.dot_dimension_numbers<[1], [0], [0], [1], [0, 0, 1, 1], [], []>} : vector<16x16xf32>, vector<16x512xf32>, vector<16x512xf32> -> vector<16x512xf32>
    %22 = arith.addf %18, %21 : vector<16x512xf32>
    %c0_18 = arith.constant 0 : index
    %c0_19 = arith.constant 0 : index
    %23 = vector.load %arg9[%c0_18, %c0_19] : memref<16x1xf32, #tpu.memory_space<vmem>>, vector<16x1xf32>
    %24 = vector.broadcast %23 : vector<16x1xf32> to vector<16x512xf32>
    %25 = arith.addf %22, %24 : vector<16x512xf32>
    %c0_20 = arith.constant 0 : index
    %c0_21 = arith.constant 0 : index
    %26 = vector.load %arg3[%c0_20, %c0_21] : memref<2x512xf32, #tpu.memory_space<vmem>>, vector<2x512xf32>
    %c0_22 = arith.constant 0 : index
    %c0_23 = arith.constant 0 : index
    %27 = vector.load %arg10[%c0_22, %c0_23] : memref<16x2xf32, #tpu.memory_space<vmem>>, vector<16x2xf32>
    %28 = vector.extract_strided_slice %27 {offsets = [0, 0], sizes = [16, 1], strides = [1, 1]} : vector<16x2xf32> to vector<16x1xf32>
    %29 = vector.extract_strided_slice %26 {offsets = [0, 0], sizes = [1, 512], strides = [1, 1]} : vector<2x512xf32> to vector<1x512xf32>
    %30 = vector.broadcast %28 : vector<16x1xf32> to vector<16x512xf32>
    %31 = vector.broadcast %29 : vector<1x512xf32> to vector<16x512xf32>
    %32 = arith.mulf %30, %31 : vector<16x512xf32>
    %33 = arith.addf %25, %32 : vector<16x512xf32>
    %34 = vector.extract_strided_slice %27 {offsets = [0, 1], sizes = [16, 1], strides = [1, 1]} : vector<16x2xf32> to vector<16x1xf32>
    %35 = vector.extract_strided_slice %26 {offsets = [1, 0], sizes = [1, 512], strides = [1, 1]} : vector<2x512xf32> to vector<1x512xf32>
    %36 = vector.broadcast %34 : vector<16x1xf32> to vector<16x512xf32>
    %37 = vector.broadcast %35 : vector<1x512xf32> to vector<16x512xf32>
    %38 = arith.mulf %36, %37 : vector<16x512xf32>
    %39 = arith.addf %33, %38 : vector<16x512xf32>
    %c0_24 = arith.constant 0 : index
    %c0_25 = arith.constant 0 : index
    %40 = vector.load %arg11[%c0_24, %c0_25] : memref<16x1xf32, #tpu.memory_space<vmem>>, vector<16x1xf32>
    %41 = vector.broadcast %40 : vector<16x1xf32> to vector<16x512xf32>
    %42 = arith.addf %39, %41 : vector<16x512xf32>
    %cst_26 = arith.constant 5.000000e-01 : f32
    %43 = vector.broadcast %cst_26 : f32 to vector<16x512xf32>
    %44 = arith.mulf %43, %42 : vector<16x512xf32>
    %cst_27 = arith.constant 0.707106769 : f32
    %45 = vector.broadcast %cst_27 : f32 to vector<16x512xf32>
    %46 = arith.mulf %42, %45 : vector<16x512xf32>
    %47 = math.erf %46 : vector<16x512xf32>
    %cst_28 = arith.constant 1.000000e+00 : f32
    %48 = vector.broadcast %cst_28 : f32 to vector<16x512xf32>
    %49 = arith.addf %48, %47 : vector<16x512xf32>
    %50 = arith.mulf %44, %49 : vector<16x512xf32>
    %c0_29 = arith.constant 0 : index
    %c0_30 = arith.constant 0 : index
    %51 = vector.load %arg12[%c0_29, %c0_30] : memref<16x512xf32, #tpu.memory_space<vmem>>, vector<16x512xf32>
    tpu.vector_store %arg12[%c0_29, %c0_30], %50 {strides = array<i32>} : memref<16x512xf32, #tpu.memory_space<vmem>>, vector<16x512xf32>,
    return
  }
  func.func @transform_0(%arg0: i32) -> (i32, i32) {
    %c0_i32 = arith.constant 0 : i32
    %c0_i32_0 = arith.constant 0 : i32
    return %c0_i32, %arg0 : i32, i32
  }
  func.func @transform_1(%arg0: i32) -> (i32, i32) {
    %c0_i32 = arith.constant 0 : i32
    %c0_i32_0 = arith.constant 0 : i32
    return %c0_i32, %arg0 : i32, i32
  }
  func.func @transform_2(%arg0: i32) -> (i32, i32) {
    %c0_i32 = arith.constant 0 : i32
    %c0_i32_0 = arith.constant 0 : i32
    return %c0_i32, %arg0 : i32, i32
  }
  func.func @transform_3(%arg0: i32) -> (i32, i32) {
    %c0_i32 = arith.constant 0 : i32
    %c0_i32_0 = arith.constant 0 : i32
    %c0_i32_1 = arith.constant 0 : i32
    return %c0_i32, %c0_i32_0 : i32, i32
  }
  func.func @transform_4(%arg0: i32) -> (i32, i32) {
    %c0_i32 = arith.constant 0 : i32
    %c0_i32_0 = arith.constant 0 : i32
    %c0_i32_1 = arith.constant 0 : i32
    return %c0_i32, %c0_i32_0 : i32, i32
  }
  func.func @transform_5(%arg0: i32) -> (i32, i32) {
    %c0_i32 = arith.constant 0 : i32
    %c0_i32_0 = arith.constant 0 : i32
    %c0_i32_1 = arith.constant 0 : i32
    return %c0_i32, %c0_i32_0 : i32, i32
  }
  func.func @transform_6(%arg0: i32) -> (i32, i32) {
    %c0_i32 = arith.constant 0 : i32
    %c0_i32_0 = arith.constant 0 : i32
    %c0_i32_1 = arith.constant 0 : i32
    return %c0_i32, %c0_i32_0 : i32, i32
  }
  func.func @transform_7(%arg0: i32) -> (i32, i32) {
    %c0_i32 = arith.constant 0 : i32
    %c0_i32_0 = arith.constant 0 : i32
    %c0_i32_1 = arith.constant 0 : i32
    return %c0_i32, %c0_i32_0 : i32, i32
  }
  func.func @transform_8(%arg0: i32) -> (i32, i32) {
    %c0_i32 = arith.constant 0 : i32
    %c0_i32_0 = arith.constant 0 : i32
    %c0_i32_1 = arith.constant 0 : i32
    return %c0_i32, %c0_i32_0 : i32, i32
  }
  func.func @transform_9(%arg0: i32) -> (i32, i32) {
    %c0_i32 = arith.constant 0 : i32
    %c0_i32_0 = arith.constant 0 : i32
    %c0_i32_1 = arith.constant 0 : i32
    return %c0_i32, %c0_i32_0 : i32, i32
  }
  func.func @transform_10(%arg0: i32) -> (i32, i32) {
    %c0_i32 = arith.constant 0 : i32
    %c0_i32_0 = arith.constant 0 : i32
    %c0_i32_1 = arith.constant 0 : i32
    return %c0_i32, %c0_i32_0 : i32, i32
  }
  func.func @transform_11(%arg0: i32) -> (i32, i32) {
    %c0_i32 = arith.constant 0 : i32
    %c0_i32_0 = arith.constant 0 : i32
    return %c0_i32, %arg0 : i32, i32
  }
}

module attributes {stable_mosaic.version = 11 : i64} {
  func.func @_fno_epilogue_kernel(%arg0: i32, %arg1: memref<16x512xf32, #tpu.memory_space<vmem>>, %arg2: memref<16x512xf32, #tpu.memory_space<vmem>>, %arg3: memref<2x512xf32, #tpu.memory_space<vmem>>, %arg4: memref<16x16xf32, #tpu.memory_space<vmem>>, %arg5: memref<16x1xf32, #tpu.memory_space<vmem>>, %arg6: memref<16x16xf32, #tpu.memory_space<vmem>>, %arg7: memref<16x1xf32, #tpu.memory_space<vmem>>, %arg8: memref<16x16xf32, #tpu.memory_space<vmem>>, %arg9: memref<16x1xf32, #tpu.memory_space<vmem>>, %arg10: memref<16x2xf32, #tpu.memory_space<vmem>>, %arg11: memref<16x1xf32, #tpu.memory_space<vmem>>, %arg12: memref<16x512xf32, #tpu.memory_space<vmem>>, %arg13: memref<16x512xf32, #tpu.memory_space<vmem>>) attributes {dimension_semantics = [#tpu.dimension_semantics<parallel>], iteration_bounds = array<i64: 3>, scalar_prefetch = 0 : i64, scratch_operands = 0 : i64, tpu.core_type = #tpu.core_type<tc>, window_params = [{transform_indices = @transform_0, window_bounds = array<i64: 16, 512>}, {transform_indices = @transform_1, window_bounds = array<i64: 16, 512>}, {transform_indices = @transform_2, window_bounds = array<i64: 2, 512>}, {pipeline_mode = #tpu.pipeline_mode<synchronous>, transform_indices = @transform_3, window_bounds = array<i64: 16, 16>}, {pipeline_mode = #tpu.pipeline_mode<synchronous>, transform_indices = @transform_4, window_bounds = array<i64: 16, 1>}, {pipeline_mode = #tpu.pipeline_mode<synchronous>, transform_indices = @transform_5, window_bounds = array<i64: 16, 16>}, {pipeline_mode = #tpu.pipeline_mode<synchronous>, transform_indices = @transform_6, window_bounds = array<i64: 16, 1>}, {pipeline_mode = #tpu.pipeline_mode<synchronous>, transform_indices = @transform_7, window_bounds = array<i64: 16, 16>}, {pipeline_mode = #tpu.pipeline_mode<synchronous>, transform_indices = @transform_8, window_bounds = array<i64: 16, 1>}, {pipeline_mode = #tpu.pipeline_mode<synchronous>, transform_indices = @transform_9, window_bounds = array<i64: 16, 2>}, {pipeline_mode = #tpu.pipeline_mode<synchronous>, transform_indices = @transform_10, window_bounds = array<i64: 16, 1>}, {transform_indices = @transform_11, window_bounds = array<i64: 16, 512>}, {transform_indices = @transform_12, window_bounds = array<i64: 16, 512>}]} {
    %c0 = arith.constant 0 : index
    %c0_0 = arith.constant 0 : index
    %0 = vector.load %arg4[%c0, %c0_0] : memref<16x16xf32, #tpu.memory_space<vmem>>, vector<16x16xf32>
    %c0_1 = arith.constant 0 : index
    %c0_2 = arith.constant 0 : index
    %1 = vector.load %arg1[%c0_1, %c0_2] : memref<16x512xf32, #tpu.memory_space<vmem>>, vector<16x512xf32>
    %cst = arith.constant dense<0.000000e+00> : vector<16x512xf32>
    %2 = tpu.matmul %0, %1, %cst {dimension_numbers = #tpu.dot_dimension_numbers<[1], [0], [0], [1], [0, 0, 1, 1], [], []>} : vector<16x16xf32>, vector<16x512xf32>, vector<16x512xf32> -> vector<16x512xf32>
    %c0_3 = arith.constant 0 : index
    %c0_4 = arith.constant 0 : index
    %3 = vector.load %arg5[%c0_3, %c0_4] : memref<16x1xf32, #tpu.memory_space<vmem>>, vector<16x1xf32>
    %4 = vector.broadcast %3 : vector<16x1xf32> to vector<16x512xf32>
    %5 = arith.addf %2, %4 : vector<16x512xf32>
    %cst_5 = arith.constant 5.000000e-01 : f32
    %6 = vector.broadcast %cst_5 : f32 to vector<16x512xf32>
    %7 = arith.mulf %6, %5 : vector<16x512xf32>
    %cst_6 = arith.constant 0.707106769 : f32
    %8 = vector.broadcast %cst_6 : f32 to vector<16x512xf32>
    %9 = arith.mulf %5, %8 : vector<16x512xf32>
    %10 = math.erf %9 : vector<16x512xf32>
    %cst_7 = arith.constant 1.000000e+00 : f32
    %11 = vector.broadcast %cst_7 : f32 to vector<16x512xf32>
    %12 = arith.addf %11, %10 : vector<16x512xf32>
    %13 = arith.mulf %7, %12 : vector<16x512xf32>
    %c0_8 = arith.constant 0 : index
    %c0_9 = arith.constant 0 : index
    %14 = vector.load %arg6[%c0_8, %c0_9] : memref<16x16xf32, #tpu.memory_space<vmem>>, vector<16x16xf32>
    %cst_10 = arith.constant dense<0.000000e+00> : vector<16x512xf32>
    %15 = tpu.matmul %14, %13, %cst_10 {dimension_numbers = #tpu.dot_dimension_numbers<[1], [0], [0], [1], [0, 0, 1, 1], [], []>} : vector<16x16xf32>, vector<16x512xf32>, vector<16x512xf32> -> vector<16x512xf32>
    %c0_11 = arith.constant 0 : index
    %c0_12 = arith.constant 0 : index
    %16 = vector.load %arg7[%c0_11, %c0_12] : memref<16x1xf32, #tpu.memory_space<vmem>>, vector<16x1xf32>
    %17 = vector.broadcast %16 : vector<16x1xf32> to vector<16x512xf32>
    %18 = arith.addf %15, %17 : vector<16x512xf32>
    %c0_13 = arith.constant 0 : index
    %c0_14 = arith.constant 0 : index
    %19 = vector.load %arg8[%c0_13, %c0_14] : memref<16x16xf32, #tpu.memory_space<vmem>>, vector<16x16xf32>
    %c0_15 = arith.constant 0 : index
    %c0_16 = arith.constant 0 : index
    %20 = vector.load %arg2[%c0_15, %c0_16] : memref<16x512xf32, #tpu.memory_space<vmem>>, vector<16x512xf32>
    %cst_17 = arith.constant dense<0.000000e+00> : vector<16x512xf32>
    %21 = tpu.matmul %19, %20, %cst_17 {dimension_numbers = #tpu.dot_dimension_numbers<[1], [0], [0], [1], [0, 0, 1, 1], [], []>} : vector<16x16xf32>, vector<16x512xf32>, vector<16x512xf32> -> vector<16x512xf32>
    %22 = arith.addf %18, %21 : vector<16x512xf32>
    %c0_18 = arith.constant 0 : index
    %c0_19 = arith.constant 0 : index
    %23 = vector.load %arg9[%c0_18, %c0_19] : memref<16x1xf32, #tpu.memory_space<vmem>>, vector<16x1xf32>
    %24 = vector.broadcast %23 : vector<16x1xf32> to vector<16x512xf32>
    %25 = arith.addf %22, %24 : vector<16x512xf32>
    %c0_20 = arith.constant 0 : index
    %c0_21 = arith.constant 0 : index
    %26 = vector.load %arg3[%c0_20, %c0_21] : memref<2x512xf32, #tpu.memory_space<vmem>>, vector<2x512xf32>
    %c0_22 = arith.constant 0 : index
    %c0_23 = arith.constant 0 : index
    %27 = vector.load %arg10[%c0_22, %c0_23] : memref<16x2xf32, #tpu.memory_space<vmem>>, vector<16x2xf32>
    %28 = vector.extract_strided_slice %27 {offsets = [0, 0], sizes = [16, 1], strides = [1, 1]} : vector<16x2xf32> to vector<16x1xf32>
    %29 = vector.extract_strided_slice %26 {offsets = [0, 0], sizes = [1, 512], strides = [1, 1]} : vector<2x512xf32> to vector<1x512xf32>
    %30 = vector.broadcast %28 : vector<16x1xf32> to vector<16x512xf32>
    %31 = vector.broadcast %29 : vector<1x512xf32> to vector<16x512xf32>
    %32 = arith.mulf %30, %31 : vector<16x512xf32>
    %33 = arith.addf %25, %32 : vector<16x512xf32>
    %34 = vector.extract_strided_slice %27 {offsets = [0, 1], sizes = [16, 1], strides = [1, 1]} : vector<16x2xf32> to vector<16x1xf32>
    %35 = vector.extract_strided_slice %26 {offsets = [1, 0], sizes = [1, 512], strides = [1, 1]} : vector<2x512xf32> to vector<1x512xf32>
    %36 = vector.broadcast %34 : vector<16x1xf32> to vector<16x512xf32>
    %37 = vector.broadcast %35 : vector<1x512xf32> to vector<16x512xf32>
    %38 = arith.mulf %36, %37 : vector<16x512xf32>
    %39 = arith.addf %33, %38 : vector<16x512xf32>
    %c0_24 = arith.constant 0 : index
    %c0_25 = arith.constant 0 : index
    %40 = vector.load %arg11[%c0_24, %c0_25] : memref<16x1xf32, #tpu.memory_space<vmem>>, vector<16x1xf32>
    %41 = vector.broadcast %40 : vector<16x1xf32> to vector<16x512xf32>
    %42 = arith.addf %39, %41 : vector<16x512xf32>
    %cst_26 = arith.constant 5.000000e-01 : f32
    %43 = vector.broadcast %cst_26 : f32 to vector<16x512xf32>
    %44 = arith.mulf %43, %42 : vector<16x512xf32>
    %cst_27 = arith.constant 0.707106769 : f32
    %45 = vector.broadcast %cst_27 : f32 to vector<16x512xf32>
    %46 = arith.mulf %42, %45 : vector<16x512xf32>
    %47 = math.erf %46 : vector<16x512xf32>
    %cst_28 = arith.constant 1.000000e+00 : f32
    %48 = vector.broadcast %cst_28 : f32 to vector<16x512xf32>
    %49 = arith.addf %48, %47 : vector<16x512xf32>
    %50 = arith.mulf %44, %49 : vector<16x512xf32>
    %c0_29 = arith.constant 0 : index
    %c0_30 = arith.constant 0 : index
    %51 = vector.load %arg12[%c0_29, %c0_30] : memref<16x512xf32, #tpu.memory_space<vmem>>, vector<16x512xf32>
    %52 = arith.addf %50, %51 : vector<16x512xf32>
    %c0_31 = arith.constant 0 : index
    %c0_32 = arith.constant 0 : index
    %53 = vector.load %arg13[%c0_31, %c0_32] : memref<16x512xf32, #tpu.memory_space<vmem>>, vector<16x512xf32>
    tpu.vector_store %arg13[%c0_31, %c0_32], %52 {strides = array<i32>} : memref<16x512xf32, #tpu.memory_space<vmem>>, vector<16x512xf32>,
    return
  }
  func.func @transform_0(%arg0: i32) -> (i32, i32) {
    %c0_i32 = arith.constant 0 : i32
    %c0_i32_0 = arith.constant 0 : i32
    return %c0_i32, %arg0 : i32, i32
  }
  func.func @transform_1(%arg0: i32) -> (i32, i32) {
    %c0_i32 = arith.constant 0 : i32
    %c0_i32_0 = arith.constant 0 : i32
    return %c0_i32, %arg0 : i32, i32
  }
  func.func @transform_2(%arg0: i32) -> (i32, i32) {
    %c0_i32 = arith.constant 0 : i32
    %c0_i32_0 = arith.constant 0 : i32
    return %c0_i32, %arg0 : i32, i32
  }
  func.func @transform_3(%arg0: i32) -> (i32, i32) {
    %c0_i32 = arith.constant 0 : i32
    %c0_i32_0 = arith.constant 0 : i32
    %c0_i32_1 = arith.constant 0 : i32
    return %c0_i32, %c0_i32_0 : i32, i32
  }
  func.func @transform_4(%arg0: i32) -> (i32, i32) {
    %c0_i32 = arith.constant 0 : i32
    %c0_i32_0 = arith.constant 0 : i32
    %c0_i32_1 = arith.constant 0 : i32
    return %c0_i32, %c0_i32_0 : i32, i32
  }
  func.func @transform_5(%arg0: i32) -> (i32, i32) {
    %c0_i32 = arith.constant 0 : i32
    %c0_i32_0 = arith.constant 0 : i32
    %c0_i32_1 = arith.constant 0 : i32
    return %c0_i32, %c0_i32_0 : i32, i32
  }
  func.func @transform_6(%arg0: i32) -> (i32, i32) {
    %c0_i32 = arith.constant 0 : i32
    %c0_i32_0 = arith.constant 0 : i32
    %c0_i32_1 = arith.constant 0 : i32
    return %c0_i32, %c0_i32_0 : i32, i32
  }
  func.func @transform_7(%arg0: i32) -> (i32, i32) {
    %c0_i32 = arith.constant 0 : i32
    %c0_i32_0 = arith.constant 0 : i32
    %c0_i32_1 = arith.constant 0 : i32
    return %c0_i32, %c0_i32_0 : i32, i32
  }
  func.func @transform_8(%arg0: i32) -> (i32, i32) {
    %c0_i32 = arith.constant 0 : i32
    %c0_i32_0 = arith.constant 0 : i32
    %c0_i32_1 = arith.constant 0 : i32
    return %c0_i32, %c0_i32_0 : i32, i32
  }
  func.func @transform_9(%arg0: i32) -> (i32, i32) {
    %c0_i32 = arith.constant 0 : i32
    %c0_i32_0 = arith.constant 0 : i32
    %c0_i32_1 = arith.constant 0 : i32
    return %c0_i32, %c0_i32_0 : i32, i32
  }
  func.func @transform_10(%arg0: i32) -> (i32, i32) {
    %c0_i32 = arith.constant 0 : i32
    %c0_i32_0 = arith.constant 0 : i32
    %c0_i32_1 = arith.constant 0 : i32
    return %c0_i32, %c0_i32_0 : i32, i32
  }
  func.func @transform_11(%arg0: i32) -> (i32, i32) {
    %c0_i32 = arith.constant 0 : i32
    %c0_i32_0 = arith.constant 0 : i32
    return %c0_i32, %arg0 : i32, i32
  }
  func.func @transform_12(%arg0: i32) -> (i32, i32) {
    %c0_i32 = arith.constant 0 : i32
    %c0_i32_0 = arith.constant 0 : i32
    return %c0_i32, %arg0 : i32, i32
  }
}

module attributes {stable_mosaic.version = 11 : i64} {
  func.func @_fno_epilogue_kernel(%arg0: i32, %arg1: memref<16x512xf32, #tpu.memory_space<vmem>>, %arg2: memref<16x512xf32, #tpu.memory_space<vmem>>, %arg3: memref<2x512xf32, #tpu.memory_space<vmem>>, %arg4: memref<16x16xf32, #tpu.memory_space<vmem>>, %arg5: memref<16x1xf32, #tpu.memory_space<vmem>>, %arg6: memref<16x16xf32, #tpu.memory_space<vmem>>, %arg7: memref<16x1xf32, #tpu.memory_space<vmem>>, %arg8: memref<16x16xf32, #tpu.memory_space<vmem>>, %arg9: memref<16x1xf32, #tpu.memory_space<vmem>>, %arg10: memref<16x2xf32, #tpu.memory_space<vmem>>, %arg11: memref<16x1xf32, #tpu.memory_space<vmem>>, %arg12: memref<16x512xf32, #tpu.memory_space<vmem>>, %arg13: memref<256x16xf32, #tpu.memory_space<vmem>>, %arg14: memref<256x1xf32, #tpu.memory_space<vmem>>, %arg15: memref<5x256xf32, #tpu.memory_space<vmem>>, %arg16: memref<5x1xf32, #tpu.memory_space<vmem>>, %arg17: memref<5x512xf32, #tpu.memory_space<vmem>>) attributes {dimension_semantics = [#tpu.dimension_semantics<parallel>], iteration_bounds = array<i64: 3>, scalar_prefetch = 0 : i64, scratch_operands = 0 : i64, tpu.core_type = #tpu.core_type<tc>, window_params = [{transform_indices = @transform_0, window_bounds = array<i64: 16, 512>}, {transform_indices = @transform_1, window_bounds = array<i64: 16, 512>}, {transform_indices = @transform_2, window_bounds = array<i64: 2, 512>}, {pipeline_mode = #tpu.pipeline_mode<synchronous>, transform_indices = @transform_3, window_bounds = array<i64: 16, 16>}, {pipeline_mode = #tpu.pipeline_mode<synchronous>, transform_indices = @transform_4, window_bounds = array<i64: 16, 1>}, {pipeline_mode = #tpu.pipeline_mode<synchronous>, transform_indices = @transform_5, window_bounds = array<i64: 16, 16>}, {pipeline_mode = #tpu.pipeline_mode<synchronous>, transform_indices = @transform_6, window_bounds = array<i64: 16, 1>}, {pipeline_mode = #tpu.pipeline_mode<synchronous>, transform_indices = @transform_7, window_bounds = array<i64: 16, 16>}, {pipeline_mode = #tpu.pipeline_mode<synchronous>, transform_indices = @transform_8, window_bounds = array<i64: 16, 1>}, {pipeline_mode = #tpu.pipeline_mode<synchronous>, transform_indices = @transform_9, window_bounds = array<i64: 16, 2>}, {pipeline_mode = #tpu.pipeline_mode<synchronous>, transform_indices = @transform_10, window_bounds = array<i64: 16, 1>}, {transform_indices = @transform_11, window_bounds = array<i64: 16, 512>}, {pipeline_mode = #tpu.pipeline_mode<synchronous>, transform_indices = @transform_12, window_bounds = array<i64: 256, 16>}, {pipeline_mode = #tpu.pipeline_mode<synchronous>, transform_indices = @transform_13, window_bounds = array<i64: 256, 1>}, {pipeline_mode = #tpu.pipeline_mode<synchronous>, transform_indices = @transform_14, window_bounds = array<i64: 5, 256>}, {pipeline_mode = #tpu.pipeline_mode<synchronous>, transform_indices = @transform_15, window_bounds = array<i64: 5, 1>}, {transform_indices = @transform_16, window_bounds = array<i64: 5, 512>}]} {
    %c0 = arith.constant 0 : index
    %c0_0 = arith.constant 0 : index
    %0 = vector.load %arg4[%c0, %c0_0] : memref<16x16xf32, #tpu.memory_space<vmem>>, vector<16x16xf32>
    %c0_1 = arith.constant 0 : index
    %c0_2 = arith.constant 0 : index
    %1 = vector.load %arg1[%c0_1, %c0_2] : memref<16x512xf32, #tpu.memory_space<vmem>>, vector<16x512xf32>
    %cst = arith.constant dense<0.000000e+00> : vector<16x512xf32>
    %2 = tpu.matmul %0, %1, %cst {dimension_numbers = #tpu.dot_dimension_numbers<[1], [0], [0], [1], [0, 0, 1, 1], [], []>} : vector<16x16xf32>, vector<16x512xf32>, vector<16x512xf32> -> vector<16x512xf32>
    %c0_3 = arith.constant 0 : index
    %c0_4 = arith.constant 0 : index
    %3 = vector.load %arg5[%c0_3, %c0_4] : memref<16x1xf32, #tpu.memory_space<vmem>>, vector<16x1xf32>
    %4 = vector.broadcast %3 : vector<16x1xf32> to vector<16x512xf32>
    %5 = arith.addf %2, %4 : vector<16x512xf32>
    %cst_5 = arith.constant 5.000000e-01 : f32
    %6 = vector.broadcast %cst_5 : f32 to vector<16x512xf32>
    %7 = arith.mulf %6, %5 : vector<16x512xf32>
    %cst_6 = arith.constant 0.707106769 : f32
    %8 = vector.broadcast %cst_6 : f32 to vector<16x512xf32>
    %9 = arith.mulf %5, %8 : vector<16x512xf32>
    %10 = math.erf %9 : vector<16x512xf32>
    %cst_7 = arith.constant 1.000000e+00 : f32
    %11 = vector.broadcast %cst_7 : f32 to vector<16x512xf32>
    %12 = arith.addf %11, %10 : vector<16x512xf32>
    %13 = arith.mulf %7, %12 : vector<16x512xf32>
    %c0_8 = arith.constant 0 : index
    %c0_9 = arith.constant 0 : index
    %14 = vector.load %arg6[%c0_8, %c0_9] : memref<16x16xf32, #tpu.memory_space<vmem>>, vector<16x16xf32>
    %cst_10 = arith.constant dense<0.000000e+00> : vector<16x512xf32>
    %15 = tpu.matmul %14, %13, %cst_10 {dimension_numbers = #tpu.dot_dimension_numbers<[1], [0], [0], [1], [0, 0, 1, 1], [], []>} : vector<16x16xf32>, vector<16x512xf32>, vector<16x512xf32> -> vector<16x512xf32>
    %c0_11 = arith.constant 0 : index
    %c0_12 = arith.constant 0 : index
    %16 = vector.load %arg7[%c0_11, %c0_12] : memref<16x1xf32, #tpu.memory_space<vmem>>, vector<16x1xf32>
    %17 = vector.broadcast %16 : vector<16x1xf32> to vector<16x512xf32>
    %18 = arith.addf %15, %17 : vector<16x512xf32>
    %c0_13 = arith.constant 0 : index
    %c0_14 = arith.constant 0 : index
    %19 = vector.load %arg8[%c0_13, %c0_14] : memref<16x16xf32, #tpu.memory_space<vmem>>, vector<16x16xf32>
    %c0_15 = arith.constant 0 : index
    %c0_16 = arith.constant 0 : index
    %20 = vector.load %arg2[%c0_15, %c0_16] : memref<16x512xf32, #tpu.memory_space<vmem>>, vector<16x512xf32>
    %cst_17 = arith.constant dense<0.000000e+00> : vector<16x512xf32>
    %21 = tpu.matmul %19, %20, %cst_17 {dimension_numbers = #tpu.dot_dimension_numbers<[1], [0], [0], [1], [0, 0, 1, 1], [], []>} : vector<16x16xf32>, vector<16x512xf32>, vector<16x512xf32> -> vector<16x512xf32>
    %22 = arith.addf %18, %21 : vector<16x512xf32>
    %c0_18 = arith.constant 0 : index
    %c0_19 = arith.constant 0 : index
    %23 = vector.load %arg9[%c0_18, %c0_19] : memref<16x1xf32, #tpu.memory_space<vmem>>, vector<16x1xf32>
    %24 = vector.broadcast %23 : vector<16x1xf32> to vector<16x512xf32>
    %25 = arith.addf %22, %24 : vector<16x512xf32>
    %c0_20 = arith.constant 0 : index
    %c0_21 = arith.constant 0 : index
    %26 = vector.load %arg3[%c0_20, %c0_21] : memref<2x512xf32, #tpu.memory_space<vmem>>, vector<2x512xf32>
    %c0_22 = arith.constant 0 : index
    %c0_23 = arith.constant 0 : index
    %27 = vector.load %arg10[%c0_22, %c0_23] : memref<16x2xf32, #tpu.memory_space<vmem>>, vector<16x2xf32>
    %28 = vector.extract_strided_slice %27 {offsets = [0, 0], sizes = [16, 1], strides = [1, 1]} : vector<16x2xf32> to vector<16x1xf32>
    %29 = vector.extract_strided_slice %26 {offsets = [0, 0], sizes = [1, 512], strides = [1, 1]} : vector<2x512xf32> to vector<1x512xf32>
    %30 = vector.broadcast %28 : vector<16x1xf32> to vector<16x512xf32>
    %31 = vector.broadcast %29 : vector<1x512xf32> to vector<16x512xf32>
    %32 = arith.mulf %30, %31 : vector<16x512xf32>
    %33 = arith.addf %25, %32 : vector<16x512xf32>
    %34 = vector.extract_strided_slice %27 {offsets = [0, 1], sizes = [16, 1], strides = [1, 1]} : vector<16x2xf32> to vector<16x1xf32>
    %35 = vector.extract_strided_slice %26 {offsets = [1, 0], sizes = [1, 512], strides = [1, 1]} : vector<2x512xf32> to vector<1x512xf32>
    %36 = vector.broadcast %34 : vector<16x1xf32> to vector<16x512xf32>
    %37 = vector.broadcast %35 : vector<1x512xf32> to vector<16x512xf32>
    %38 = arith.mulf %36, %37 : vector<16x512xf32>
    %39 = arith.addf %33, %38 : vector<16x512xf32>
    %c0_24 = arith.constant 0 : index
    %c0_25 = arith.constant 0 : index
    %40 = vector.load %arg11[%c0_24, %c0_25] : memref<16x1xf32, #tpu.memory_space<vmem>>, vector<16x1xf32>
    %41 = vector.broadcast %40 : vector<16x1xf32> to vector<16x512xf32>
    %42 = arith.addf %39, %41 : vector<16x512xf32>
    %cst_26 = arith.constant 5.000000e-01 : f32
    %43 = vector.broadcast %cst_26 : f32 to vector<16x512xf32>
    %44 = arith.mulf %43, %42 : vector<16x512xf32>
    %cst_27 = arith.constant 0.707106769 : f32
    %45 = vector.broadcast %cst_27 : f32 to vector<16x512xf32>
    %46 = arith.mulf %42, %45 : vector<16x512xf32>
    %47 = math.erf %46 : vector<16x512xf32>
    %cst_28 = arith.constant 1.000000e+00 : f32
    %48 = vector.broadcast %cst_28 : f32 to vector<16x512xf32>
    %49 = arith.addf %48, %47 : vector<16x512xf32>
    %50 = arith.mulf %44, %49 : vector<16x512xf32>
    %c0_29 = arith.constant 0 : index
    %c0_30 = arith.constant 0 : index
    %51 = vector.load %arg12[%c0_29, %c0_30] : memref<16x512xf32, #tpu.memory_space<vmem>>, vector<16x512xf32>
    %52 = arith.addf %50, %51 : vector<16x512xf32>
    %c0_31 = arith.constant 0 : index
    %c0_32 = arith.constant 0 : index
    %53 = vector.load %arg13[%c0_31, %c0_32] : memref<256x16xf32, #tpu.memory_space<vmem>>, vector<256x16xf32>
    %cst_33 = arith.constant dense<0.000000e+00> : vector<256x512xf32>
    %54 = tpu.matmul %53, %52, %cst_33 {dimension_numbers = #tpu.dot_dimension_numbers<[1], [0], [0], [1], [0, 0, 1, 1], [], []>} : vector<256x16xf32>, vector<16x512xf32>, vector<256x512xf32> -> vector<256x512xf32>
    %c0_34 = arith.constant 0 : index
    %c0_35 = arith.constant 0 : index
    %55 = vector.load %arg14[%c0_34, %c0_35] : memref<256x1xf32, #tpu.memory_space<vmem>>, vector<256x1xf32>
    %56 = vector.broadcast %55 : vector<256x1xf32> to vector<256x512xf32>
    %57 = arith.addf %54, %56 : vector<256x512xf32>
    %cst_36 = arith.constant 5.000000e-01 : f32
    %58 = vector.broadcast %cst_36 : f32 to vector<256x512xf32>
    %59 = arith.mulf %58, %57 : vector<256x512xf32>
    %cst_37 = arith.constant 0.707106769 : f32
    %60 = vector.broadcast %cst_37 : f32 to vector<256x512xf32>
    %61 = arith.mulf %57, %60 : vector<256x512xf32>
    %62 = math.erf %61 : vector<256x512xf32>
    %cst_38 = arith.constant 1.000000e+00 : f32
    %63 = vector.broadcast %cst_38 : f32 to vector<256x512xf32>
    %64 = arith.addf %63, %62 : vector<256x512xf32>
    %65 = arith.mulf %59, %64 : vector<256x512xf32>
    %c0_39 = arith.constant 0 : index
    %c0_40 = arith.constant 0 : index
    %66 = vector.load %arg15[%c0_39, %c0_40] : memref<5x256xf32, #tpu.memory_space<vmem>>, vector<5x256xf32>
    %cst_41 = arith.constant dense<0.000000e+00> : vector<5x512xf32>
    %67 = tpu.matmul %66, %65, %cst_41 {dimension_numbers = #tpu.dot_dimension_numbers<[1], [0], [0], [1], [0, 0, 1, 1], [], []>} : vector<5x256xf32>, vector<256x512xf32>, vector<5x512xf32> -> vector<5x512xf32>
    %c0_42 = arith.constant 0 : index
    %c0_43 = arith.constant 0 : index
    %68 = vector.load %arg16[%c0_42, %c0_43] : memref<5x1xf32, #tpu.memory_space<vmem>>, vector<5x1xf32>
    %69 = vector.broadcast %68 : vector<5x1xf32> to vector<5x512xf32>
    %70 = arith.addf %67, %69 : vector<5x512xf32>
    %c0_44 = arith.constant 0 : index
    %c0_45 = arith.constant 0 : index
    %71 = vector.load %arg17[%c0_44, %c0_45] : memref<5x512xf32, #tpu.memory_space<vmem>>, vector<5x512xf32>
    tpu.vector_store %arg17[%c0_44, %c0_45], %70 {strides = array<i32>} : memref<5x512xf32, #tpu.memory_space<vmem>>, vector<5x512xf32>,
    return
  }
  func.func @transform_0(%arg0: i32) -> (i32, i32) {
    %c0_i32 = arith.constant 0 : i32
    %c0_i32_0 = arith.constant 0 : i32
    return %c0_i32, %arg0 : i32, i32
  }
  func.func @transform_1(%arg0: i32) -> (i32, i32) {
    %c0_i32 = arith.constant 0 : i32
    %c0_i32_0 = arith.constant 0 : i32
    return %c0_i32, %arg0 : i32, i32
  }
  func.func @transform_2(%arg0: i32) -> (i32, i32) {
    %c0_i32 = arith.constant 0 : i32
    %c0_i32_0 = arith.constant 0 : i32
    return %c0_i32, %arg0 : i32, i32
  }
  func.func @transform_3(%arg0: i32) -> (i32, i32) {
    %c0_i32 = arith.constant 0 : i32
    %c0_i32_0 = arith.constant 0 : i32
    %c0_i32_1 = arith.constant 0 : i32
    return %c0_i32, %c0_i32_0 : i32, i32
  }
  func.func @transform_4(%arg0: i32) -> (i32, i32) {
    %c0_i32 = arith.constant 0 : i32
    %c0_i32_0 = arith.constant 0 : i32
    %c0_i32_1 = arith.constant 0 : i32
    return %c0_i32, %c0_i32_0 : i32, i32
  }
  func.func @transform_5(%arg0: i32) -> (i32, i32) {
    %c0_i32 = arith.constant 0 : i32
    %c0_i32_0 = arith.constant 0 : i32
    %c0_i32_1 = arith.constant 0 : i32
    return %c0_i32, %c0_i32_0 : i32, i32
  }
  func.func @transform_6(%arg0: i32) -> (i32, i32) {
    %c0_i32 = arith.constant 0 : i32
    %c0_i32_0 = arith.constant 0 : i32
    %c0_i32_1 = arith.constant 0 : i32
    return %c0_i32, %c0_i32_0 : i32, i32
  }
  func.func @transform_7(%arg0: i32) -> (i32, i32) {
    %c0_i32 = arith.constant 0 : i32
    %c0_i32_0 = arith.constant 0 : i32
    %c0_i32_1 = arith.constant 0 : i32
    return %c0_i32, %c0_i32_0 : i32, i32
  }
  func.func @transform_8(%arg0: i32) -> (i32, i32) {
    %c0_i32 = arith.constant 0 : i32
    %c0_i32_0 = arith.constant 0 : i32
    %c0_i32_1 = arith.constant 0 : i32
    return %c0_i32, %c0_i32_0 : i32, i32
  }
  func.func @transform_9(%arg0: i32) -> (i32, i32) {
    %c0_i32 = arith.constant 0 : i32
    %c0_i32_0 = arith.constant 0 : i32
    %c0_i32_1 = arith.constant 0 : i32
    return %c0_i32, %c0_i32_0 : i32, i32
  }
  func.func @transform_10(%arg0: i32) -> (i32, i32) {
    %c0_i32 = arith.constant 0 : i32
    %c0_i32_0 = arith.constant 0 : i32
    %c0_i32_1 = arith.constant 0 : i32
    return %c0_i32, %c0_i32_0 : i32, i32
  }
  func.func @transform_11(%arg0: i32) -> (i32, i32) {
    %c0_i32 = arith.constant 0 : i32
    %c0_i32_0 = arith.constant 0 : i32
    return %c0_i32, %arg0 : i32, i32
  }
  func.func @transform_12(%arg0: i32) -> (i32, i32) {
    %c0_i32 = arith.constant 0 : i32
    %c0_i32_0 = arith.constant 0 : i32
    %c0_i32_1 = arith.constant 0 : i32
    return %c0_i32, %c0_i32_0 : i32, i32
  }
  func.func @transform_13(%arg0: i32) -> (i32, i32) {
    %c0_i32 = arith.constant 0 : i32
    %c0_i32_0 = arith.constant 0 : i32
    %c0_i32_1 = arith.constant 0 : i32
    return %c0_i32, %c0_i32_0 : i32, i32
  }
  func.func @transform_14(%arg0: i32) -> (i32, i32) {
    %c0_i32 = arith.constant 0 : i32
    %c0_i32_0 = arith.constant 0 : i32
    %c0_i32_1 = arith.constant 0 : i32
    return %c0_i32, %c0_i32_0 : i32, i32
  }
  func.func @transform_15(%arg0: i32) -> (i32, i32) {
    %c0_i32 = arith.constant 0 : i32
    %c0_i32_0 = arith.constant 0 : i32
    %c0_i32_1 = arith.constant 0 : i32
    return %c0_i32, %c0_i32_0 : i32, i32
  }
  func.func @transform_16(%arg0: i32) -> (i32, i32) {
    %c0_i32 = arith.constant 0 : i32
    %c0_i32_0 = arith.constant 0 : i32
    return %c0_i32, %arg0 : i32, i32
  }
}

</mosaic_0001>

<llo_original>
// kernel: fno_multi_forward.13
$region0: #{fno_multi_forward.13}
  #allocation0 [shape = 'u32[]', space=smem, size = 0x4, offset = 0x4, fixed_abs, tag = 'smem constant byte address 0x4 - core index']
  #allocation1 [shape = 'u32[144,128]{1,0:T(1,128)}', space=vmem, size = 0x12000, scoped, tag = 'internal scratch']
  %s0 = inlined_call_operand.vmem [shape: f32[8,1536], index: 0, kind: input, shape index: {}]
  %s1 = inlined_call_operand.vmem [shape: f32[16,8], index: 1, kind: input, shape index: {}]
  %s2 = inlined_call_operand.vmem [shape: f32[16,1], index: 2, kind: input, shape index: {}]
  %s3 = inlined_call_operand.vmem [shape: f32[16,1536], index: 3, kind: output, shape index: {}]
  %s4 = sld [smem:[#allocation0]]
  $region64: #{fno_multi_forward.13} parent=0
    _
  %s6 = ssub.s32 1, %s4
  %s7 = scalar_select 0, %s6, %s4
  $region1: #{fno_multi_forward.13} parent=0
    #allocation2 [shape = 'u8[65536]{0}', space=vmem, size = 0x10000, scoped, tag = 'output window, operand 0']
    loop: start=0, step=1, limit=5
    $region2: #{fno_multi_forward.13} parent=1 // loop_pre_header
      _
    $region3: #{fno_multi_forward.13} parent=1 // loop_header
      %s9 = sphi 0, %s13
      %p10 = scmp.ge.s32.totalorder %s9, 5
      %s19 = sphi 0, %s21
      %s22 = sphi 0, %s19
      %s23 = sphi 0, %s22
      %s39 = sphi 0, %s23
      %s43 = sphi 0, %s43
      %s45 = sphi 0, %s43
      %s46 = sphi 0, %s45
      %s60 = sphi 0, %s46
      %s64 = sphi 0, %s64
      %s66 = sphi 0, %s64
      %s67 = sphi 0, %s66
      %s81 = sphi 0, %s67
      %s87 = sphi 0, %s89
      %s90 = sphi 0, %s87
      %s91 = sphi 0, %s90
      %s107 = sphi 0, %s91
    $region4: #{fno_multi_forward.13} parent=1 // loop_header_branch
      %12 = sbr.rel (%p10) target = $region8
    $region5: #{fno_multi_forward.13} parent=1 // loop_body
      %s14 = ssub.s32 %s9, 1
      %s15 = ssub.s32 %s9, 2
      %s16 = sadd.s32 %s9, 1
      %s17 = ssub.s32 %s9, %s16
      %p18 = scmp.eq.s32.totalorder %s17, 0
      %s20 = sadd.s32 %s19, 1
      %s21 = scalar_select %p18, %s19, %s20
      %p24 = pneg %p18
      %p25 = scmp.eq.s32.totalorder %s9, 2
      %p26 = por %p24, %p25
      %p27 = scmp.ne.s32.totalorder %s19, %s22
      %p28 = scmp.eq.s32.totalorder %s9, 0
      %p29 = por %p27, %p28
      %p30 = scmp.ne.s32.totalorder %s19, %s22
      %p31 = scmp.eq.s32.totalorder %s14, 2
      %p32 = por %p30, %p31
      %p33 = scmp.ne.s32.totalorder %s22, %s23
      %p34 = scmp.eq.s32.totalorder %s14, 0
      %p35 = por %p33, %p34
      %p36 = scmp.ne.s32.totalorder %s22, %s23
      %p37 = scmp.eq.s32.totalorder %s15, 2
      %p38 = por %p36, %p37
      %p40 = scmp.ne.s32.totalorder %s23, %s39
      %p41 = scmp.eq.s32.totalorder %s15, 0
      %p42 = por %p40, %p41
      %s44 = sadd.s32 %s43, 1
      %p47 = scmp.eq.s32.totalorder %s9, 2
      %p48 = scmp.ne.s32.totalorder %s43, %s45
      %p49 = scmp.eq.s32.totalorder %s9, 0
      %p50 = por %p48, %p49
      %p51 = scmp.ne.s32.totalorder %s43, %s45
      %p52 = scmp.eq.s32.totalorder %s14, 2
      %p53 = por %p51, %p52
      %p54 = scmp.ne.s32.totalorder %s45, %s46
      %p55 = scmp.eq.s32.totalorder %s14, 0
      %p56 = por %p54, %p55
      %p57 = scmp.ne.s32.totalorder %s45, %s46
      %p58 = scmp.eq.s32.totalorder %s15, 2
      %p59 = por %p57, %p58
      %p61 = scmp.ne.s32.totalorder %s46, %s60
      %p62 = scmp.eq.s32.totalorder %s15, 0
      %p63 = por %p61, %p62
      %s65 = sadd.s32 %s64, 1
      %p68 = scmp.eq.s32.totalorder %s9, 2
      %p69 = scmp.ne.s32.totalorder %s64, %s66
      %p70 = scmp.eq.s32.totalorder %s9, 0
      %p71 = por %p69, %p70
      %p72 = scmp.ne.s32.totalorder %s64, %s66
      %p73 = scmp.eq.s32.totalorder %s14, 2
      %p74 = por %p72, %p73
      %p75 = scmp.ne.s32.totalorder %s66, %s67
      %p76 = scmp.eq.s32.totalorder %s14, 0
      %p77 = por %p75, %p76
      %p78 = scmp.ne.s32.totalorder %s66, %s67
      %p79 = scmp.eq.s32.totalorder %s15, 2
      %p80 = por %p78, %p79
      %p82 = scmp.ne.s32.totalorder %s67, %s81
      %p83 = scmp.eq.s32.totalorder %s15, 0
      %p84 = por %p82, %p83
      %s85 = ssub.s32 %s9, %s16
      %p86 = scmp.eq.s32.totalorder %s85, 0
      %s88 = sadd.s32 %s87, 1
      %s89 = scalar_select %p86, %s87, %s88
      %p92 = pneg %p86
      %p93 = scmp.eq.s32.totalorder %s9, 2
      %p94 = por %p92, %p93
      %p95 = scmp.ne.s32.totalorder %s87, %s90
      %p96 = scmp.eq.s32.totalorder %s9, 0
      %p97 = por %p95, %p96
      %p98 = scmp.ne.s32.totalorder %s87, %s90
      %p99 = scmp.eq.s32.totalorder %s14, 2
      %p100 = por %p98, %p99
      %p101 = scmp.ne.s32.totalorder %s90, %s91
      %p102 = scmp.eq.s32.totalorder %s14, 0
      %p103 = por %p101, %p102
      %p104 = scmp.ne.s32.totalorder %s90, %s91
      %p105 = scmp.eq.s32.totalorder %s15, 2
      %p106 = por %p104, %p105
      %p108 = scmp.ne.s32.totalorder %s91, %s107
      %p109 = scmp.eq.s32.totalorder %s15, 0
      %p110 = por %p108, %p109
      %p111 = scmp.le.s32.totalorder 1, %s9
      %p112 = scmp.lt.s32.totalorder %s9, 4
      %p113 = pnand %p111, %p112
      %p114 = pneg %p113
      // Predicated region
      $region9: #{fno_multi_forward.13} parent=5 // pred_check
        _
      $region10: #{fno_multi_forward.13} parent=5 // pred_check_branch
        %116 = sbr.rel (%p113) target = $region12
      $region11: #{fno_multi_forward.13} parent=5 // pred_region
        %s117 = ssub.s32 %s9, 1
        // Predicated region
        $region13: #{fno_multi_forward.13} parent=11 // pred_check
          %p118 = pneg %p56
        $region14: #{fno_multi_forward.13} parent=11 // pred_check_branch
          %120 = sbr.rel (%p118) target = $region16
        $region15: #{fno_multi_forward.13} parent=11 // pred_region
          _
        $region16: #{fno_multi_forward.13} parent=11 // pred_fallthru
          _
        // Predicated region
        $region17: #{fno_multi_forward.13} parent=11 // pred_check
          %p121 = pneg %p77
        $region18: #{fno_multi_forward.13} parent=11 // pred_check_branch
          %123 = sbr.rel (%p121) target = $region20
        $region19: #{fno_multi_forward.13} parent=11 // pred_region
          _
        $region20: #{fno_multi_forward.13} parent=11 // pred_fallthru
          _
      $region12: #{fno_multi_forward.13} parent=5 // pred_fallthru
        _
      %p124 = scmp.lt.s32.totalorder %s9, 3
      // Predicated region
      $region21: #{fno_multi_forward.13} parent=5 // pred_check
        %p125 = pneg %p124
      $region22: #{fno_multi_forward.13} parent=5 // pred_check_branch
        %127 = sbr.rel (%p125) target = $region24
      $region23: #{fno_multi_forward.13} parent=5 // pred_region
        // Predicated region
        $region25: #{fno_multi_forward.13} parent=23 // pred_check
          %p128 = pneg %p29
        $region26: #{fno_multi_forward.13} parent=23 // pred_check_branch
          %130 = sbr.rel (%p128) target = $region28
        $region27: #{fno_multi_forward.13} parent=23 // pred_region
          %s131 = smul.u32 4, %s9
          %p132 = scmp.lt.s32.totalorder %s131, 11
          %s133 = scalar_select %p132, %s131, 11
          %s134 = smul.addr %s133, 8
          %s135 = scalar_lea.vmem %s0, %s134
          %s136 = smul.u32 4, %s9
        $region28: #{fno_multi_forward.13} parent=23 // pred_fallthru
          _
      $region24: #{fno_multi_forward.13} parent=5 // pred_fallthru
        _
      %p137 = scmp.le.s32.totalorder 1, %s9
      %p138 = scmp.lt.s32.totalorder %s9, 4
      %p139 = pnand %p137, %p138
      %p140 = pneg %p139
      // Predicated region
      $region29: #{fno_multi_forward.13} parent=5 // pred_check
        _
      $region30: #{fno_multi_forward.13} parent=5 // pred_check_branch
        %142 = sbr.rel (%p139) target = $region32
      $region31: #{fno_multi_forward.13} parent=5 // pred_region
        %s143 = ssub.s32 %s9, 1
        %s144 = smul.u32 4, %s14
        %p145 = scmp.lt.s32.totalorder %s144, 11
        %s146 = scalar_select %p145, %s144, 11
        %s147 = smul.addr %s146, 8
        %s148 = scalar_lea.vmem %s0, %s147
        %p149 = pneg %p35
        %p150 = pneg %p32
        %p151 = pneg %p56
        %p152 = pneg %p53
        %p153 = pneg %p77
        %p154 = pneg %p74
        %p155 = pneg %p103
        %p156 = pneg %p100
        %s157 = sand.u32 %s90, 1
        %s158 = sand.u32 %s90, 1
        %s159 = smul.addr %s158, 64
        %s160 = scalar_lea.vmem [#allocation2], %s159
        %s161 = smul.u32 4, %s14
        %p162 = scmp.lt.s32.totalorder %s161, 11
        %s163 = scalar_select %p162, %s161, 11
        %s164 = smul.addr %s163, 8
        %s165 = scalar_lea.vmem %s0, %s164
        %s166 = smul.u32 4, %s14
        %s167 = smul.u32 4, %s14
        %v168 = vld [vmem:[%s1] sm:$0xff]
        %v169 = vld [vmem:[%s1 + $0x8] sm:$0xff]
        %v170 = vld [vmem:[%s165] sm:$0xff]
        %v171 = vld [vmem:[%s165 + $0x8] sm:$0xff]
        %v172 = vld [vmem:[%s165 + $0x10] sm:$0xff]
        %v173 = vld [vmem:[%s165 + $0x18] sm:$0xff]
        %v174 = vld [vmem:[%s2] sm:$0xff]
        %v175 = vld [vmem:[%s2 + $0x8] sm:$0xff]
        %177 = vset.pattern.permute.xlu0 0
        %178 = vperm.xlu0 %177, %v174
        %v179 = vpop.permute.xlu0 %178
        %182 = vset.pattern.permute.xlu0 0
        %183 = vperm.xlu0 %182, %v175
        %v184 = vpop.permute.xlu0 %183
        %vm186 = vcmask 64512
        %v188 = vsel %vm186, %v168, 0
        %v191 = vsel %vm186, %v169, 0
        %193 = vmatprep.subr.mxu0 %v171
        %194 = vmatpush1.msra.mxu0 %v170
        %195 = vmatprep.subr.mxu0 0.0
        %196 = vmatpush1.msra.mxu0 0.0
        %197 = vmatprep.subr.mxu0 0.0
        %198 = vmatpush1.msra.mxu0 0.0
        %199 = vmatprep.subr.mxu0 0.0
        %200 = vmatpush1.msra.mxu0 0.0
        %201 = vmatprep.subr.mxu0 0.0
        %202 = vmatpush1.msra.mxu0 0.0
        %203 = vmatprep.subr.mxu0 0.0
        %204 = vmatpush1.msra.mxu0 0.0
        %205 = vmatprep.subr.mxu0 0.0
        %206 = vmatpush1.msra.mxu0 0.0
        %207 = vmatprep.subr.mxu0 0.0
        %208 = vmatpush1.msra.mxu0 0.0
        %209 = vmatprep.subr.mxu0 0.0
        %210 = vmatpush1.msra.mxu0 0.0
        %211 = vmatprep.subr.mxu0 0.0
        %212 = vmatpush1.msra.mxu0 0.0
        %213 = vmatprep.subr.mxu0 0.0
        %214 = vmatpush1.msra.mxu0 0.0
        %215 = vmatprep.subr.mxu0 0.0
        %216 = vmatpush1.msra.mxu0 0.0
        %217 = vmatprep.subr.mxu0 0.0
        %218 = vmatpush1.msra.mxu0 0.0
        %219 = vmatprep.subr.mxu0 0.0
        %220 = vmatpush1.msra.mxu0 0.0
        %221 = vmatprep.subr.mxu0 0.0
        %222 = vmatpush1.msra.mxu0 0.0
        %223 = vmatprep.subr.mxu0 0.0
        %224 = vmatpush1.msra.mxu0 0.0
        %225 = vmatprep.subr.mxu0 0.0
        %226 = vmatpush1.msra.mxu0 0.0
        %227 = vmatprep.subr.mxu0 0.0
        %228 = vmatpush1.msra.mxu0 0.0
        %229 = vmatprep.subr.mxu0 0.0
        %230 = vmatpush1.msra.mxu0 0.0
        %231 = vmatprep.subr.mxu0 0.0
        %232 = vmatpush1.msra.mxu0 0.0
        %233 = vmatprep.subr.mxu0 0.0
        %234 = vmatpush1.msra.mxu0 0.0
        %235 = vmatprep.subr.mxu0 0.0
        %236 = vmatpush1.msra.mxu0 0.0
        %237 = vmatprep.subr.mxu0 0.0
        %238 = vmatpush1.msra.mxu0 0.0
        %239 = vmatprep.subr.mxu0 0.0
        %240 = vmatpush1.msra.mxu0 0.0
        %241 = vmatprep.subr.mxu0 0.0
        %242 = vmatpush1.msra.mxu0 0.0
        %243 = vmatprep.subr.mxu0 0.0
        %244 = vmatpush1.msra.mxu0 0.0
        %245 = vmatprep.subr.mxu0 0.0
        %246 = vmatpush1.msra.mxu0 0.0
        %247 = vmatprep.subr.mxu0 0.0
        %248 = vmatpush1.msra.mxu0 0.0
        %249 = vmatprep.subr.mxu0 0.0
        %250 = vmatpush1.msra.mxu0 0.0
        %251 = vmatprep.subr.mxu0 0.0
        %252 = vmatpush1.msra.mxu0 0.0
        %253 = vmatprep.subr.mxu0 0.0
        %254 = vmatpush1.msra.mxu0 0.0
        %255 = vmatprep.subr.mxu0 0.0
        %256 = vmatpush1.msra.mxu0 0.0
        %257 = vmatprep.mubr.f32.mxu0 0.0
        %258 = vmatmul.mubr.f32.gmra.mrb[0].mxu0 %v188
        %v259 = vpop.f32.mrb[0].mxu0
        %v260 = vadd.f32 %v179, %v259
        %v261 = vpop.f32.mrb[0].mxu0
        %v262 = vadd.f32 %v179, %v261
        %263 = vmatprep.mubr.f32.mxu0 0.0
        %264 = vmatmul.mubr.f32.gmra.mrb[0].mxu0 %v191
        %v265 = vpop.f32.mrb[0].mxu0
        %v266 = vadd.f32 %v184, %v265
        %v267 = vpop.f32.mrb[0].mxu0
        %v268 = vadd.f32 %v184, %v267
        %269 = vdwg.mxu0
        %270 = vmatprep.subr.mxu0 %v173
        %271 = vmatpush1.msra.mxu0 %v172
        %272 = vmatprep.subr.mxu0 0.0
        %273 = vmatpush1.msra.mxu0 0.0
        %274 = vmatprep.subr.mxu0 0.0
        %275 = vmatpush1.msra.mxu0 0.0
        %276 = vmatprep.subr.mxu0 0.0
        %277 = vmatpush1.msra.mxu0 0.0
        %278 = vmatprep.subr.mxu0 0.0
        %279 = vmatpush1.msra.mxu0 0.0
        %280 = vmatprep.subr.mxu0 0.0
        %281 = vmatpush1.msra.mxu0 0.0
        %282 = vmatprep.subr.mxu0 0.0
        %283 = vmatpush1.msra.mxu0 0.0
        %284 = vmatprep.subr.mxu0 0.0
        %285 = vmatpush1.msra.mxu0 0.0
        %286 = vmatprep.subr.mxu0 0.0
        %287 = vmatpush1.msra.mxu0 0.0
        %288 = vmatprep.subr.mxu0 0.0
        %289 = vmatpush1.msra.mxu0 0.0
        %290 = vmatprep.subr.mxu0 0.0
        %291 = vmatpush1.msra.mxu0 0.0
        %292 = vmatprep.subr.mxu0 0.0
        %293 = vmatpush1.msra.mxu0 0.0
        %294 = vmatprep.subr.mxu0 0.0
        %295 = vmatpush1.msra.mxu0 0.0
        %296 = vmatprep.subr.mxu0 0.0
        %297 = vmatpush1.msra.mxu0 0.0
        %298 = vmatprep.subr.mxu0 0.0
        %299 = vmatpush1.msra.mxu0 0.0
        %300 = vmatprep.subr.mxu0 0.0
        %301 = vmatpush1.msra.mxu0 0.0
        %302 = vmatprep.subr.mxu0 0.0
        %303 = vmatpush1.msra.mxu0 0.0
        %304 = vmatprep.subr.mxu0 0.0
        %305 = vmatpush1.msra.mxu0 0.0
        %306 = vmatprep.subr.mxu0 0.0
        %307 = vmatpush1.msra.mxu0 0.0
        %308 = vmatprep.subr.mxu0 0.0
        %309 = vmatpush1.msra.mxu0 0.0
        %310 = vmatprep.subr.mxu0 0.0
        %311 = vmatpush1.msra.mxu0 0.0
        %312 = vmatprep.subr.mxu0 0.0
        %313 = vmatpush1.msra.mxu0 0.0
        %314 = vmatprep.subr.mxu0 0.0
        %315 = vmatpush1.msra.mxu0 0.0
        %316 = vmatprep.subr.mxu0 0.0
        %317 = vmatpush1.msra.mxu0 0.0
        %318 = vmatprep.subr.mxu0 0.0
        %319 = vmatpush1.msra.mxu0 0.0
        %320 = vmatprep.subr.mxu0 0.0
        %321 = vmatpush1.msra.mxu0 0.0
        %322 = vmatprep.subr.mxu0 0.0
        %323 = vmatpush1.msra.mxu0 0.0
        %324 = vmatprep.subr.mxu0 0.0
        %325 = vmatpush1.msra.mxu0 0.0
        %326 = vmatprep.subr.mxu0 0.0
        %327 = vmatpush1.msra.mxu0 0.0
        %328 = vmatprep.subr.mxu0 0.0
        %329 = vmatpush1.msra.mxu0 0.0
        %330 = vmatprep.subr.mxu0 0.0
        %331 = vmatpush1.msra.mxu0 0.0
        %332 = vmatprep.subr.mxu0 0.0
        %333 = vmatpush1.msra.mxu0 0.0
        %334 = vmatprep.mubr.f32.mxu0 0.0
        %335 = vmatmul.mubr.f32.gmra.mrb[0].mxu0 %v188
        %v336 = vpop.f32.mrb[0].mxu0
        %v337 = vadd.f32 %v179, %v336
        %v338 = vpop.f32.mrb[0].mxu0
        %v339 = vadd.f32 %v179, %v338
        %340 = vmatprep.mubr.f32.mxu0 0.0
        %341 = vmatmul.mubr.f32.gmra.mrb[0].mxu0 %v191
        %v342 = vpop.f32.mrb[0].mxu0
        %v343 = vadd.f32 %v184, %v342
        %v344 = vpop.f32.mrb[0].mxu0
        %v345 = vadd.f32 %v184, %v344
        %346 = vdwg.mxu0
        %347 = vst [vmem:[%s160] sm:$0xff] %v260
        %348 = vst [vmem:[%s160 + $0x8] sm:$0xff] %v262
        %349 = vst [vmem:[%s160 + $0x10] sm:$0xff] %v337
        %350 = vst [vmem:[%s160 + $0x18] sm:$0xff] %v339
        %351 = vst [vmem:[%s160 + $0x20] sm:$0xff] %v266
        %352 = vst [vmem:[%s160 + $0x28] sm:$0xff] %v268
        %353 = vst [vmem:[%s160 + $0x30] sm:$0xff] %v343
        %354 = vst [vmem:[%s160 + $0x38] sm:$0xff] %v345
        %s355 = sand.u32 %s90, 1
        %s356 = sand.u32 %s90, 1
        %s357 = smul.addr %s356, 64
        %s358 = scalar_lea.vmem [#allocation2], %s357
        // Predicated region
        $region33: #{fno_multi_forward.13} parent=31 // pred_check
          %p359 = pneg %p100
        $region34: #{fno_multi_forward.13} parent=31 // pred_check_branch
          %361 = sbr.rel (%p359) target = $region36
        $region35: #{fno_multi_forward.13} parent=31 // pred_region
          %s362 = smul.u32 4, %s14
          %s363 = smul.addr %s362, 8
          %s364 = scalar_lea.vmem %s3, %s363
          // Predicated region
          $region37: #{fno_multi_forward.13} parent=35 // pred_check
            _
          $region38: #{fno_multi_forward.13} parent=35 // pred_check_branch
            %366 = sbr.rel (0) target = $region40
          $region39: #{fno_multi_forward.13} parent=35 // pred_region
            // Predicated region
            $region41: #{fno_multi_forward.13} parent=39 // pred_check
              _
            $region42: #{fno_multi_forward.13} parent=39 // pred_check_branch
              %368 = sbr.rel (0) target = $region44
            $region43: #{fno_multi_forward.13} parent=39 // pred_region
              loop: start=0, step=1, limit=1
              $region45: #{fno_multi_forward.13} parent=43 // loop_pre_header
                _
              $region46: #{fno_multi_forward.13} parent=43 // loop_header
                %s370 = sphi 0, %s374
                %p371 = scmp.ge.s32.totalorder %s370, 1
                %s375 = sphi %s358, %s358
                %s376 = sphi %s364, %s364
              $region47: #{fno_multi_forward.13} parent=43 // loop_header_branch
                %373 = sbr.rel (%p371) target = $region51
              $region48: #{fno_multi_forward.13} parent=43 // loop_body
                %v377 = vld [vmem:[%s375] sm:$0xff]
                %378 = vst [vmem:[%s376] sm:$0xff] %v377
                %v379 = vld [vmem:[%s375 + $0x8] sm:$0xff]
                %380 = vst [vmem:[%s376 + $0x8] sm:$0xff] %v379
                %v381 = vld [vmem:[%s375 + $0x10] sm:$0xff]
                %382 = vst [vmem:[%s376 + $0x10] sm:$0xff] %v381
                %v383 = vld [vmem:[%s375 + $0x18] sm:$0xff]
                %384 = vst [vmem:[%s376 + $0x18] sm:$0xff] %v383
                %v385 = vld [vmem:[%s375 + $0x20] sm:$0xff]
                %386 = vst [vmem:[%s376 + $0x60] sm:$0xff] %v385
                %v387 = vld [vmem:[%s375 + $0x28] sm:$0xff]
                %388 = vst [vmem:[%s376 + $0x68] sm:$0xff] %v387
                %v389 = vld [vmem:[%s375 + $0x30] sm:$0xff]
                %390 = vst [vmem:[%s376 + $0x70] sm:$0xff] %v389
                %v391 = vld [vmem:[%s375 + $0x38] sm:$0xff]
                %392 = vst [vmem:[%s376 + $0x78] sm:$0xff] %v391
              $region49: #{fno_multi_forward.13} parent=43 // loop_footer
                %s374 = sadd.s32 1, %s370
              $region50: #{fno_multi_forward.13} parent=43 // loop_footer_branch
                %369 = sbr.rel target = $region46
              $region51: #{fno_multi_forward.13} parent=43 // loop_exit
                _
            $region44: #{fno_multi_forward.13} parent=39 // pred_fallthru
              _
            // Predicated region
            $region52: #{fno_multi_forward.13} parent=39 // pred_check
              _
            $region53: #{fno_multi_forward.13} parent=39 // pred_check_branch
              %394 = sbr.rel target = $region55
            $region54: #{fno_multi_forward.13} parent=39 // pred_region
              _
            $region55: #{fno_multi_forward.13} parent=39 // pred_fallthru
              _
          $region40: #{fno_multi_forward.13} parent=35 // pred_fallthru
            _
          %395 = vnop
        $region36: #{fno_multi_forward.13} parent=31 // pred_fallthru
          _
      $region32: #{fno_multi_forward.13} parent=5 // pred_fallthru
        _
      %p396 = scmp.le.s32.totalorder 2, %s9
      // Predicated region
      $region56: #{fno_multi_forward.13} parent=5 // pred_check
        %p397 = pneg %p396
      $region57: #{fno_multi_forward.13} parent=5 // pred_check_branch
        %399 = sbr.rel (%p397) target = $region59
      $region58: #{fno_multi_forward.13} parent=5 // pred_region
        %s400 = ssub.s32 %s9, 2
        // Predicated region
        $region60: #{fno_multi_forward.13} parent=58 // pred_check
          %p401 = pneg %p106
        $region61: #{fno_multi_forward.13} parent=58 // pred_check_branch
          %403 = sbr.rel (%p401) target = $region63
        $region62: #{fno_multi_forward.13} parent=58 // pred_region
          %s404 = sand.u32 %s91, 1
          %s405 = sand.u32 %s91, 1
          %s406 = smul.addr %s405, 64
          %s407 = scalar_lea.vmem [#allocation2], %s406
        $region63: #{fno_multi_forward.13} parent=58 // pred_fallthru
          _
      $region59: #{fno_multi_forward.13} parent=5 // pred_fallthru
        _
    $region6: #{fno_multi_forward.13} parent=1 // loop_footer
      %s13 = sadd.s32 1, %s9
    $region7: #{fno_multi_forward.13} parent=1 // loop_footer_branch
      %8 = sbr.rel target = $region3
    $region8: #{fno_multi_forward.13} parent=1 // loop_exit
      _

// kernel: fno_multi_forward.14
$region0: #{fno_multi_forward.14}
  #allocation0 [shape = 'u32[]', space=smem, size = 0x4, offset = 0x4, fixed_abs, tag = 'smem constant byte address 0x4 - core index']
  #allocation1 [shape = 'u32[144,128]{1,0:T(1,128)}', space=vmem, size = 0x12000, scoped, tag = 'internal scratch']
  %s0 = inlined_call_operand.vmem [shape: f32[2,16,96], index: 0, kind: input, shape index: {}]
  %s1 = inlined_call_operand.vmem [shape: f32[2,16,96], index: 1, kind: input, shape index: {}]
  %s2 = inlined_call_operand.vmem [shape: f32[16,16,96], index: 2, kind: input, shape index: {}]
  %s3 = inlined_call_operand.vmem [shape: f32[16,16,96], index: 3, kind: input, shape index: {}]
  %s4 = inlined_call_operand.vmem [shape: f32[2,16,96], index: 4, kind: output, shape index: {0}]
  %s5 = inlined_call_operand.vmem [shape: f32[2,16,96], index: 5, kind: output, shape index: {1}]
  %6 = xla_tuple %s4, %s5
  %s7 = sld [smem:[#allocation0]]
  $region57: #{fno_multi_forward.14} parent=0
    _
  %s9 = ssub.s32 1, %s7
  %s10 = scalar_select 0, %s9, %s7
  loop: start=0, step=1, limit=4
  $region2: #{fno_multi_forward.14} parent=0 // loop_pre_header
    _
  $region3: #{fno_multi_forward.14} parent=0 // loop_header
    %s12 = sphi 0, %s16
    %p13 = scmp.ge.s32.totalorder %s12, 4
    %s19 = sphi 0, %s31
    %s20 = sphi 0, %s27
    %s21 = sphi 0, %s19
    %s22 = sphi 0, %s20
    %s23 = sphi 0, %s21
    %s24 = sphi 0, %s22
    %s36 = sphi 0, %s38
    %s39 = sphi 0, %s36
    %s40 = sphi 0, %s39
    %s56 = sphi 0, %s40
    %s64 = sphi 0, %s66
    %s67 = sphi 0, %s64
    %s68 = sphi 0, %s67
    %s84 = sphi 0, %s68
    %s90 = sphi 0, %s92
    %s93 = sphi 0, %s90
    %s94 = sphi 0, %s93
    %s110 = sphi 0, %s94
    %s116 = sphi 0, %s118
    %s119 = sphi 0, %s116
    %s120 = sphi 0, %s119
    %s136 = sphi 0, %s120
    %s144 = sphi 0, %s146
    %s147 = sphi 0, %s144
    %s148 = sphi 0, %s147
    %s164 = sphi 0, %s148
    %s172 = sphi 0, %s174
    %s175 = sphi 0, %s172
    %s176 = sphi 0, %s175
    %s192 = sphi 0, %s176
  $region4: #{fno_multi_forward.14} parent=0 // loop_header_branch
    %15 = sbr.rel (%p13) target = $region8
  $region5: #{fno_multi_forward.14} parent=0 // loop_body
    %s17 = ssub.s32 %s12, 1
    %s18 = ssub.s32 %s12, 2
    %s25 = sadd.s32 1, %s20
    %p26 = scmp.ge.s32.totalorder %s25, 2
    %s27 = scalar_select %p26, 0, %s25
    %s28 = sadd.s32 1, %s19
    %s29 = scalar_select %p26, %s28, %s19
    %p30 = scmp.ge.s32.totalorder %s29, 1
    %s31 = scalar_select %p30, 0, %s29
    %s32 = ssub.s32 %s20, %s27
    %s33 = ssub.s32 %s19, %s31
    %s34 = sor.u32 %s32, %s33
    %p35 = scmp.eq.s32.totalorder %s34, 0
    %s37 = sadd.s32 %s36, 1
    %s38 = scalar_select %p35, %s36, %s37
    %p41 = pneg %p35
    %p42 = scmp.eq.s32.totalorder %s12, 1
    %p43 = por %p41, %p42
    %p44 = scmp.ne.s32.totalorder %s36, %s39
    %p45 = scmp.eq.s32.totalorder %s12, 0
    %p46 = por %p44, %p45
    %p47 = scmp.ne.s32.totalorder %s36, %s39
    %p48 = scmp.eq.s32.totalorder %s17, 1
    %p49 = por %p47, %p48
    %p50 = scmp.ne.s32.totalorder %s39, %s40
    %p51 = scmp.eq.s32.totalorder %s17, 0
    %p52 = por %p50, %p51
    %p53 = scmp.ne.s32.totalorder %s39, %s40
    %p54 = scmp.eq.s32.totalorder %s18, 1
    %p55 = por %p53, %p54
    %p57 = scmp.ne.s32.totalorder %s40, %s56
    %p58 = scmp.eq.s32.totalorder %s18, 0
    %p59 = por %p57, %p58
    %s60 = ssub.s32 %s20, %s27
    %s61 = ssub.s32 %s19, %s31
    %s62 = sor.u32 %s60, %s61
    %p63 = scmp.eq.s32.totalorder %s62, 0
    %s65 = sadd.s32 %s64, 1
    %s66 = scalar_select %p63, %s64, %s65
    %p69 = pneg %p63
    %p70 = scmp.eq.s32.totalorder %s12, 1
    %p71 = por %p69, %p70
    %p72 = scmp.ne.s32.totalorder %s64, %s67
    %p73 = scmp.eq.s32.totalorder %s12, 0
    %p74 = por %p72, %p73
    %p75 = scmp.ne.s32.totalorder %s64, %s67
    %p76 = scmp.eq.s32.totalorder %s17, 1
    %p77 = por %p75, %p76
    %p78 = scmp.ne.s32.totalorder %s67, %s68
    %p79 = scmp.eq.s32.totalorder %s17, 0
    %p80 = por %p78, %p79
    %p81 = scmp.ne.s32.totalorder %s67, %s68
    %p82 = scmp.eq.s32.totalorder %s18, 1
    %p83 = por %p81, %p82
    %p85 = scmp.ne.s32.totalorder %s68, %s84
    %p86 = scmp.eq.s32.totalorder %s18, 0
    %p87 = por %p85, %p86
    %s88 = ssub.s32 %s19, %s31
    %p89 = scmp.eq.s32.totalorder %s88, 0
    %s91 = sadd.s32 %s90, 1
    %s92 = scalar_select %p89, %s90, %s91
    %p95 = pneg %p89
    %p96 = scmp.eq.s32.totalorder %s12, 1
    %p97 = por %p95, %p96
    %p98 = scmp.ne.s32.totalorder %s90, %s93
    %p99 = scmp.eq.s32.totalorder %s12, 0
    %p100 = por %p98, %p99
    %p101 = scmp.ne.s32.totalorder %s90, %s93
    %p102 = scmp.eq.s32.totalorder %s17, 1
    %p103 = por %p101, %p102
    %p104 = scmp.ne.s32.totalorder %s93, %s94
    %p105 = scmp.eq.s32.totalorder %s17, 0
    %p106 = por %p104, %p105
    %p107 = scmp.ne.s32.totalorder %s93, %s94
    %p108 = scmp.eq.s32.totalorder %s18, 1
    %p109 = por %p107, %p108
    %p111 = scmp.ne.s32.totalorder %s94, %s110
    %p112 = scmp.eq.s32.totalorder %s18, 0
    %p113 = por %p111, %p112
    %s114 = ssub.s32 %s19, %s31
    %p115 = scmp.eq.s32.totalorder %s114, 0
    %s117 = sadd.s32 %s116, 1
    %s118 = scalar_select %p115, %s116, %s117
    %p121 = pneg %p115
    %p122 = scmp.eq.s32.totalorder %s12, 1
    %p123 = por %p121, %p122
    %p124 = scmp.ne.s32.totalorder %s116, %s119
    %p125 = scmp.eq.s32.totalorder %s12, 0
    %p126 = por %p124, %p125
    %p127 = scmp.ne.s32.totalorder %s116, %s119
    %p128 = scmp.eq.s32.totalorder %s17, 1
    %p129 = por %p127, %p128
    %p130 = scmp.ne.s32.totalorder %s119, %s120
    %p131 = scmp.eq.s32.totalorder %s17, 0
    %p132 = por %p130, %p131
    %p133 = scmp.ne.s32.totalorder %s119, %s120
    %p134 = scmp.eq.s32.totalorder %s18, 1
    %p135 = por %p133, %p134
    %p137 = scmp.ne.s32.totalorder %s120, %s136
    %p138 = scmp.eq.s32.totalorder %s18, 0
    %p139 = por %p137, %p138
    %s140 = ssub.s32 %s20, %s27
    %s141 = ssub.s32 %s19, %s31
    %s142 = sor.u32 %s140, %s141
    %p143 = scmp.eq.s32.totalorder %s142, 0
    %s145 = sadd.s32 %s144, 1
    %s146 = scalar_select %p143, %s144, %s145
    %p149 = pneg %p143
    %p150 = scmp.eq.s32.totalorder %s12, 1
    %p151 = por %p149, %p150
    %p152 = scmp.ne.s32.totalorder %s144, %s147
    %p153 = scmp.eq.s32.totalorder %s12, 0
    %p154 = por %p152, %p153
    %p155 = scmp.ne.s32.totalorder %s144, %s147
    %p156 = scmp.eq.s32.totalorder %s17, 1
    %p157 = por %p155, %p156
    %p158 = scmp.ne.s32.totalorder %s147, %s148
    %p159 = scmp.eq.s32.totalorder %s17, 0
    %p160 = por %p158, %p159
    %p161 = scmp.ne.s32.totalorder %s147, %s148
    %p162 = scmp.eq.s32.totalorder %s18, 1
    %p163 = por %p161, %p162
    %p165 = scmp.ne.s32.totalorder %s148, %s164
    %p166 = scmp.eq.s32.totalorder %s18, 0
    %p167 = por %p165, %p166
    %s168 = ssub.s32 %s20, %s27
    %s169 = ssub.s32 %s19, %s31
    %s170 = sor.u32 %s168, %s169
    %p171 = scmp.eq.s32.totalorder %s170, 0
    %s173 = sadd.s32 %s172, 1
    %s174 = scalar_select %p171, %s172, %s173
    %p177 = pneg %p171
    %p178 = scmp.eq.s32.totalorder %s12, 1
    %p179 = por %p177, %p178
    %p180 = scmp.ne.s32.totalorder %s172, %s175
    %p181 = scmp.eq.s32.totalorder %s12, 0
    %p182 = por %p180, %p181
    %p183 = scmp.ne.s32.totalorder %s172, %s175
    %p184 = scmp.eq.s32.totalorder %s17, 1
    %p185 = por %p183, %p184
    %p186 = scmp.ne.s32.totalorder %s175, %s176
    %p187 = scmp.eq.s32.totalorder %s17, 0
    %p188 = por %p186, %p187
    %p189 = scmp.ne.s32.totalorder %s175, %s176
    %p190 = scmp.eq.s32.totalorder %s18, 1
    %p191 = por %p189, %p190
    %p193 = scmp.ne.s32.totalorder %s176, %s192
    %p194 = scmp.eq.s32.totalorder %s18, 0
    %p195 = por %p193, %p194
    %p196 = scmp.le.s32.totalorder 1, %s12
    %p197 = scmp.lt.s32.totalorder %s12, 3
    %p198 = pnand %p196, %p197
    %p199 = pneg %p198
    // Predicated region
    $region9: #{fno_multi_forward.14} parent=5 // pred_check
      _
    $region10: #{fno_multi_forward.14} parent=5 // pred_check_branch
      %201 = sbr.rel (%p198) target = $region12
    $region11: #{fno_multi_forward.14} parent=5 // pred_region
      %s202 = ssub.s32 %s12, 1
      // Predicated region
      $region13: #{fno_multi_forward.14} parent=11 // pred_check
        %p203 = pneg %p106
      $region14: #{fno_multi_forward.14} parent=11 // pred_check_branch
        %205 = sbr.rel (%p203) target = $region16
      $region15: #{fno_multi_forward.14} parent=11 // pred_region
        %p206 = scmp.lt.s32.totalorder %s21, 0
        %s207 = scalar_select %p206, %s21, 0
        %s208 = smul.addr %s207, 8
        %s209 = scalar_lea.vmem %s2, %s208
      $region16: #{fno_multi_forward.14} parent=11 // pred_fallthru
        _
      // Predicated region
      $region17: #{fno_multi_forward.14} parent=11 // pred_check
        %p210 = pneg %p132
      $region18: #{fno_multi_forward.14} parent=11 // pred_check_branch
        %212 = sbr.rel (%p210) target = $region20
      $region19: #{fno_multi_forward.14} parent=11 // pred_region
        %p213 = scmp.lt.s32.totalorder %s21, 0
        %s214 = scalar_select %p213, %s21, 0
        %s215 = smul.addr %s214, 8
        %s216 = scalar_lea.vmem %s3, %s215
      $region20: #{fno_multi_forward.14} parent=11 // pred_fallthru
        _
    $region12: #{fno_multi_forward.14} parent=5 // pred_fallthru
      _
    %p217 = scmp.lt.s32.totalorder %s12, 2
    // Predicated region
    $region21: #{fno_multi_forward.14} parent=5 // pred_check
      %p218 = pneg %p217
    $region22: #{fno_multi_forward.14} parent=5 // pred_check_branch
      %220 = sbr.rel (%p218) target = $region24
    $region23: #{fno_multi_forward.14} parent=5 // pred_region
      // Predicated region
      $region25: #{fno_multi_forward.14} parent=23 // pred_check
        %p221 = pneg %p46
      $region26: #{fno_multi_forward.14} parent=23 // pred_check_branch
        %223 = sbr.rel (%p221) target = $region28
      $region27: #{fno_multi_forward.14} parent=23 // pred_region
        %p224 = scmp.lt.s32.totalorder %s20, 1
        %s225 = scalar_select %p224, %s20, 1
        %p226 = scmp.lt.s32.totalorder %s19, 0
        %s227 = scalar_select %p226, %s19, 0
        %s228 = smul.addr %s225, 2
        %s229 = sadd.s32 %s227, %s228
        %s230 = smul.addr %s229, 8
        %s231 = scalar_lea.vmem %s0, %s230
      $region28: #{fno_multi_forward.14} parent=23 // pred_fallthru
        _
      // Predicated region
      $region29: #{fno_multi_forward.14} parent=23 // pred_check
        %p232 = pneg %p74
      $region30: #{fno_multi_forward.14} parent=23 // pred_check_branch
        %234 = sbr.rel (%p232) target = $region32
      $region31: #{fno_multi_forward.14} parent=23 // pred_region
        %p235 = scmp.lt.s32.totalorder %s20, 1
        %s236 = scalar_select %p235, %s20, 1
        %p237 = scmp.lt.s32.totalorder %s19, 0
        %s238 = scalar_select %p237, %s19, 0
        %s239 = smul.addr %s236, 2
        %s240 = sadd.s32 %s238, %s239
        %s241 = smul.addr %s240, 8
        %s242 = scalar_lea.vmem %s1, %s241
      $region32: #{fno_multi_forward.14} parent=23 // pred_fallthru
        _
    $region24: #{fno_multi_forward.14} parent=5 // pred_fallthru
      _
    %p243 = scmp.le.s32.totalorder 1, %s12
    %p244 = scmp.lt.s32.totalorder %s12, 3
    %p245 = pnand %p243, %p244
    %p246 = pneg %p245
    // Predicated region
    $region33: #{fno_multi_forward.14} parent=5 // pred_check
      _
    $region34: #{fno_multi_forward.14} parent=5 // pred_check_branch
      %248 = sbr.rel (%p245) target = $region36
    $region35: #{fno_multi_forward.14} parent=5 // pred_region
      %s249 = ssub.s32 %s12, 1
      %p250 = scmp.lt.s32.totalorder %s22, 1
      %s251 = scalar_select %p250, %s22, 1
      %p252 = scmp.lt.s32.totalorder %s21, 0
      %s253 = scalar_select %p252, %s21, 0
      %s254 = smul.addr %s251, 2
      %s255 = sadd.s32 %s253, %s254
      %s256 = smul.addr %s255, 8
      %s257 = scalar_lea.vmem %s0, %s256
      %p258 = pneg %p52
      %p259 = pneg %p49
      %p260 = scmp.lt.s32.totalorder %s22, 1
      %s261 = scalar_select %p260, %s22, 1
      %p262 = scmp.lt.s32.totalorder %s21, 0
      %s263 = scalar_select %p262, %s21, 0
      %s264 = smul.addr %s261, 2
      %s265 = sadd.s32 %s263, %s264
      %s266 = smul.addr %s265, 8
      %s267 = scalar_lea.vmem %s1, %s266
      %p268 = pneg %p80
      %p269 = pneg %p77
      %p270 = scmp.lt.s32.totalorder %s21, 0
      %s271 = scalar_select %p270, %s21, 0
      %s272 = smul.addr %s271, 8
      %s273 = scalar_lea.vmem %s2, %s272
      %p274 = pneg %p106
      %p275 = pneg %p103
      %p276 = scmp.lt.s32.totalorder %s21, 0
      %s277 = scalar_select %p276, %s21, 0
      %s278 = smul.addr %s277, 8
      %s279 = scalar_lea.vmem %s3, %s278
      %p280 = pneg %p132
      %p281 = pneg %p129
      %p282 = pneg %p160
      %p283 = pneg %p157
      %p284 = scmp.lt.s32.totalorder %s22, 1
      %s285 = scalar_select %p284, %s22, 1
      %p286 = scmp.lt.s32.totalorder %s21, 0
      %s287 = scalar_select %p286, %s21, 0
      %s288 = smul.addr %s285, 2
      %s289 = sadd.s32 %s287, %s288
      %s290 = smul.addr %s289, 8
      %s291 = scalar_lea.vmem %s4, %s290
      %p292 = pneg %p188
      %p293 = pneg %p185
      %p294 = scmp.lt.s32.totalorder %s22, 1
      %s295 = scalar_select %p294, %s22, 1
      %p296 = scmp.lt.s32.totalorder %s21, 0
      %s297 = scalar_select %p296, %s21, 0
      %s298 = smul.addr %s295, 2
      %s299 = sadd.s32 %s297, %s298
      %s300 = smul.addr %s299, 8
      %s301 = scalar_lea.vmem %s5, %s300
      %p302 = scmp.lt.s32.totalorder %s22, 1
      %s303 = scalar_select %p302, %s22, 1
      %p304 = scmp.lt.s32.totalorder %s21, 0
      %s305 = scalar_select %p304, %s21, 0
      %s306 = smul.addr %s303, 2
      %s307 = sadd.s32 %s305, %s306
      %s308 = smul.addr %s307, 8
      %s309 = scalar_lea.vmem %s0, %s308
      %p310 = scmp.lt.s32.totalorder %s22, 1
      %s311 = scalar_select %p310, %s22, 1
      %p312 = scmp.lt.s32.totalorder %s21, 0
      %s313 = scalar_select %p312, %s21, 0
      %s314 = smul.addr %s311, 2
      %s315 = sadd.s32 %s313, %s314
      %s316 = smul.addr %s315, 8
      %s317 = scalar_lea.vmem %s1, %s316
      %p318 = scmp.lt.s32.totalorder %s21, 0
      %s319 = scalar_select %p318, %s21, 0
      %s320 = smul.addr %s319, 8
      %s321 = scalar_lea.vmem %s2, %s320
      %p322 = scmp.lt.s32.totalorder %s21, 0
      %s323 = scalar_select %p322, %s21, 0
      %s324 = smul.addr %s323, 8
      %s325 = scalar_lea.vmem %s3, %s324
      %p326 = scmp.lt.s32.totalorder %s22, 1
      %s327 = scalar_select %p326, %s22, 1
      %p328 = scmp.lt.s32.totalorder %s21, 0
      %s329 = scalar_select %p328, %s21, 0
      %s330 = smul.addr %s327, 2
      %s331 = sadd.s32 %s329, %s330
      %s332 = smul.addr %s331, 8
      %s333 = scalar_lea.vmem %s4, %s332
      %p334 = scmp.lt.s32.totalorder %s22, 1
      %s335 = scalar_select %p334, %s22, 1
      %p336 = scmp.lt.s32.totalorder %s21, 0
      %s337 = scalar_select %p336, %s21, 0
      %s338 = smul.addr %s335, 2
      %s339 = sadd.s32 %s337, %s338
      %s340 = smul.addr %s339, 8
      %s341 = scalar_lea.vmem %s5, %s340
      %v342 = vld [vmem:[%s309] sm:$0x1]
      %v343 = vld [vmem:[%s317] sm:$0x1]
      %v344 = vld [vmem:[%s321] sm:$0xff]
      %v345 = vld [vmem:[%s321 + $0x8] sm:$0xff]
      %v346 = vld [vmem:[%s325] sm:$0xff]
      %v347 = vld [vmem:[%s325 + $0x8] sm:$0xff]
      %v348 = vlaneseq
      %v349 = vshrl.u32 %v348, 7
      %v350 = vsub.s32 0, %v349
      %v351 = vrot.slane %v342, %v350
      %v352 = vmul.f32 %v351, %v344
      %v353 = vmul.f32 %v351, %v345
      %v354 = vadd.f32 %v352, 0.0
      %v355 = vadd.f32 %v353, 0.0
      %v356 = vlaneseq
      %v357 = vshrl.u32 %v356, 7
      %v358 = vsub.s32 0, %v357
      %v359 = vrot.slane %v343, %v358
      %v360 = vmul.f32 %v359, %v346
      %v361 = vmul.f32 %v359, %v347
      %v362 = vsub.f32 %v354, %v360
      %v363 = vsub.f32 %v355, %v361
      %v364 = vmul.f32 %v351, %v346
      %v365 = vmul.f32 %v351, %v347
      %v366 = vadd.f32 %v364, 0.0
      %v367 = vadd.f32 %v365, 0.0
      %v368 = vmul.f32 %v359, %v344
      %v369 = vmul.f32 %v359, %v345
      %v370 = vadd.f32 %v366, %v368
      %v371 = vadd.f32 %v367, %v369
      %v372 = vld [vmem:[%s309 + $0x1] sm:$0x1]
      %v373 = vld [vmem:[%s317 + $0x1] sm:$0x1]
      %s374 = scalar_lea.vmem %s321, 16
      %v375 = vld [vmem:[%s374] sm:$0xff]
      %v376 = vld [vmem:[%s374 + $0x8] sm:$0xff]
      %s377 = scalar_lea.vmem %s325, 16
      %v378 = vld [vmem:[%s377] sm:$0xff]
      %v379 = vld [vmem:[%s377 + $0x8] sm:$0xff]
      %v380 = vlaneseq
      %v381 = vshrl.u32 %v380, 7
      %v382 = vsub.s32 0, %v381
      %v383 = vrot.slane %v372, %v382
      %v384 = vmul.f32 %v383, %v375
      %v385 = vmul.f32 %v383, %v376
      %v386 = vadd.f32 %v362, %v384
      %v387 = vadd.f32 %v363, %v385
      %v388 = vlaneseq
      %v389 = vshrl.u32 %v388, 7
      %v390 = vsub.s32 0, %v389
      %v391 = vrot.slane %v373, %v390
      %v392 = vmul.f32 %v391, %v378
      %v393 = vmul.f32 %v391, %v379
      %v394 = vsub.f32 %v386, %v392
      %v395 = vsub.f32 %v387, %v393
      %v396 = vmul.f32 %v383, %v378
      %v397 = vmul.f32 %v383, %v379
      %v398 = vadd.f32 %v370, %v396
      %v399 = vadd.f32 %v371, %v397
      %v400 = vmul.f32 %v391, %v375
      %v401 = vmul.f32 %v391, %v376
      %v402 = vadd.f32 %v398, %v400
      %v403 = vadd.f32 %v399, %v401
      %v404 = vld [vmem:[%s309 + $0x2] sm:$0x1]
      %v405 = vld [vmem:[%s317 + $0x2] sm:$0x1]
      %s406 = scalar_lea.vmem %s321, 32
      %v407 = vld [vmem:[%s406] sm:$0xff]
      %v408 = vld [vmem:[%s406 + $0x8] sm:$0xff]
      %s409 = scalar_lea.vmem %s325, 32
      %v410 = vld [vmem:[%s409] sm:$0xff]
      %v411 = vld [vmem:[%s409 + $0x8] sm:$0xff]
      %v412 = vlaneseq
      %v413 = vshrl.u32 %v412, 7
      %v414 = vsub.s32 0, %v413
      %v415 = vrot.slane %v404, %v414
      %v416 = vmul.f32 %v415, %v407
      %v417 = vmul.f32 %v415, %v408
      %v418 = vadd.f32 %v394, %v416
      %v419 = vadd.f32 %v395, %v417
      %v420 = vlaneseq
      %v421 = vshrl.u32 %v420, 7
      %v422 = vsub.s32 0, %v421
      %v423 = vrot.slane %v405, %v422
      %v424 = vmul.f32 %v423, %v410
      %v425 = vmul.f32 %v423, %v411
      %v426 = vsub.f32 %v418, %v424
      %v427 = vsub.f32 %v419, %v425
      %v428 = vmul.f32 %v415, %v410
      %v429 = vmul.f32 %v415, %v411
      %v430 = vadd.f32 %v402, %v428
      %v431 = vadd.f32 %v403, %v429
      %v432 = vmul.f32 %v423, %v407
      %v433 = vmul.f32 %v423, %v408
      %v434 = vadd.f32 %v430, %v432
      %v435 = vadd.f32 %v431, %v433
      %v436 = vld [vmem:[%s309 + $0x3] sm:$0x1]
      %v437 = vld [vmem:[%s317 + $0x3] sm:$0x1]
      %s438 = scalar_lea.vmem %s321, 48
      %v439 = vld [vmem:[%s438] sm:$0xff]
      %v440 = vld [vmem:[%s438 + $0x8] sm:$0xff]
      %s441 = scalar_lea.vmem %s325, 48
      %v442 = vld [vmem:[%s441] sm:$0xff]
      %v443 = vld [vmem:[%s441 + $0x8] sm:$0xff]
      %v444 = vlaneseq
      %v445 = vshrl.u32 %v444, 7
      %v446 = vsub.s32 0, %v445
      %v447 = vrot.slane %v436, %v446
      %v448 = vmul.f32 %v447, %v439
      %v449 = vmul.f32 %v447, %v440
      %v450 = vadd.f32 %v426, %v448
      %v451 = vadd.f32 %v427, %v449
      %v452 = vlaneseq
      %v453 = vshrl.u32 %v452, 7
      %v454 = vsub.s32 0, %v453
      %v455 = vrot.slane %v437, %v454
      %v456 = vmul.f32 %v455, %v442
      %v457 = vmul.f32 %v455, %v443
      %v458 = vsub.f32 %v450, %v456
      %v459 = vsub.f32 %v451, %v457
      %v460 = vmul.f32 %v447, %v442
      %v461 = vmul.f32 %v447, %v443
      %v462 = vadd.f32 %v434, %v460
      %v463 = vadd.f32 %v435, %v461
      %v464 = vmul.f32 %v455, %v439
      %v465 = vmul.f32 %v455, %v440
      %v466 = vadd.f32 %v462, %v464
      %v467 = vadd.f32 %v463, %v465
      %v468 = vld [vmem:[%s309 + $0x4] sm:$0x1]
      %v469 = vld [vmem:[%s317 + $0x4] sm:$0x1]
      %s470 = scalar_lea.vmem %s321, 64
      %v471 = vld [vmem:[%s470] sm:$0xff]
      %v472 = vld [vmem:[%s470 + $0x8] sm:$0xff]
      %s473 = scalar_lea.vmem %s325, 64
      %v474 = vld [vmem:[%s473] sm:$0xff]
      %v475 = vld [vmem:[%s473 + $0x8] sm:$0xff]
      %v476 = vlaneseq
      %v477 = vshrl.u32 %v476, 7
      %v478 = vsub.s32 0, %v477
      %v479 = vrot.slane %v468, %v478
      %v480 = vmul.f32 %v479, %v471
      %v481 = vmul.f32 %v479, %v472
      %v482 = vadd.f32 %v458, %v480
      %v483 = vadd.f32 %v459, %v481
      %v484 = vlaneseq
      %v485 = vshrl.u32 %v484, 7
      %v486 = vsub.s32 0, %v485
      %v487 = vrot.slane %v469, %v486
      %v488 = vmul.f32 %v487, %v474
      %v489 = vmul.f32 %v487, %v475
      %v490 = vsub.f32 %v482, %v488
      %v491 = vsub.f32 %v483, %v489
      %v492 = vmul.f32 %v479, %v474
      %v493 = vmul.f32 %v479, %v475
      %v494 = vadd.f32 %v466, %v492
      %v495 = vadd.f32 %v467, %v493
      %v496 = vmul.f32 %v487, %v471
      %v497 = vmul.f32 %v487, %v472
      %v498 = vadd.f32 %v494, %v496
      %v499 = vadd.f32 %v495, %v497
      %v500 = vld [vmem:[%s309 + $0x5] sm:$0x1]
      %v501 = vld [vmem:[%s317 + $0x5] sm:$0x1]
      %s502 = scalar_lea.vmem %s321, 80
      %v503 = vld [vmem:[%s502] sm:$0xff]
      %v504 = vld [vmem:[%s502 + $0x8] sm:$0xff]
      %s505 = scalar_lea.vmem %s325, 80
      %v506 = vld [vmem:[%s505] sm:$0xff]
      %v507 = vld [vmem:[%s505 + $0x8] sm:$0xff]
      %v508 = vlaneseq
      %v509 = vshrl.u32 %v508, 7
      %v510 = vsub.s32 0, %v509
      %v511 = vrot.slane %v500, %v510
      %v512 = vmul.f32 %v511, %v503
      %v513 = vmul.f32 %v511, %v504
      %v514 = vadd.f32 %v490, %v512
      %v515 = vadd.f32 %v491, %v513
      %v516 = vlaneseq
      %v517 = vshrl.u32 %v516, 7
      %v518 = vsub.s32 0, %v517
      %v519 = vrot.slane %v501, %v518
      %v520 = vmul.f32 %v519, %v506
      %v521 = vmul.f32 %v519, %v507
      %v522 = vsub.f32 %v514, %v520
      %v523 = vsub.f32 %v515, %v521
      %v524 = vmul.f32 %v511, %v506
      %v525 = vmul.f32 %v511, %v507
      %v526 = vadd.f32 %v498, %v524
      %v527 = vadd.f32 %v499, %v525
      %v528 = vmul.f32 %v519, %v503
      %v529 = vmul.f32 %v519, %v504
      %v530 = vadd.f32 %v526, %v528
      %v531 = vadd.f32 %v527, %v529
      %v532 = vld [vmem:[%s309 + $0x6] sm:$0x1]
      %v533 = vld [vmem:[%s317 + $0x6] sm:$0x1]
      %s534 = scalar_lea.vmem %s321, 96
      %v535 = vld [vmem:[%s534] sm:$0xff]
      %v536 = vld [vmem:[%s534 + $0x8] sm:$0xff]
      %s537 = scalar_lea.vmem %s325, 96
      %v538 = vld [vmem:[%s537] sm:$0xff]
      %v539 = vld [vmem:[%s537 + $0x8] sm:$0xff]
      %v540 = vlaneseq
      %v541 = vshrl.u32 %v540, 7
      %v542 = vsub.s32 0, %v541
      %v543 = vrot.slane %v532, %v542
      %v544 = vmul.f32 %v543, %v535
      %v545 = vmul.f32 %v543, %v536
      %v546 = vadd.f32 %v522, %v544
      %v547 = vadd.f32 %v523, %v545
      %v548 = vlaneseq
      %v549 = vshrl.u32 %v548, 7
      %v550 = vsub.s32 0, %v549
      %v551 = vrot.slane %v533, %v550
      %v552 = vmul.f32 %v551, %v538
      %v553 = vmul.f32 %v551, %v539
      %v554 = vsub.f32 %v546, %v552
      %v555 = vsub.f32 %v547, %v553
      %v556 = vmul.f32 %v543, %v538
      %v557 = vmul.f32 %v543, %v539
      %v558 = vadd.f32 %v530, %v556
      %v559 = vadd.f32 %v531, %v557
      %v560 = vmul.f32 %v551, %v535
      %v561 = vmul.f32 %v551, %v536
      %v562 = vadd.f32 %v558, %v560
      %v563 = vadd.f32 %v559, %v561
      %v564 = vld [vmem:[%s309 + $0x7] sm:$0x1]
      %v565 = vld [vmem:[%s317 + $0x7] sm:$0x1]
      %s566 = scalar_lea.vmem %s321, 112
      %v567 = vld [vmem:[%s566] sm:$0xff]
      %v568 = vld [vmem:[%s566 + $0x8] sm:$0xff]
      %s569 = scalar_lea.vmem %s325, 112
      %v570 = vld [vmem:[%s569] sm:$0xff]
      %v571 = vld [vmem:[%s569 + $0x8] sm:$0xff]
      %v572 = vlaneseq
      %v573 = vshrl.u32 %v572, 7
      %v574 = vsub.s32 0, %v573
      %v575 = vrot.slane %v564, %v574
      %v576 = vmul.f32 %v575, %v567
      %v577 = vmul.f32 %v575, %v568
      %v578 = vadd.f32 %v554, %v576
      %v579 = vadd.f32 %v555, %v577
      %v580 = vlaneseq
      %v581 = vshrl.u32 %v580, 7
      %v582 = vsub.s32 0, %v581
      %v583 = vrot.slane %v565, %v582
      %v584 = vmul.f32 %v583, %v570
      %v585 = vmul.f32 %v583, %v571
      %v586 = vsub.f32 %v578, %v584
      %v587 = vsub.f32 %v579, %v585
      %v588 = vmul.f32 %v575, %v570
      %v589 = vmul.f32 %v575, %v571
      %v590 = vadd.f32 %v562, %v588
      %v591 = vadd.f32 %v563, %v589
      %v592 = vmul.f32 %v583, %v567
      %v593 = vmul.f32 %v583, %v568
      %v594 = vadd.f32 %v590, %v592
      %v595 = vadd.f32 %v591, %v593
      %v596 = vld [vmem:[%s309 + $0x8] sm:$0x1]
      %v597 = vld [vmem:[%s317 + $0x8] sm:$0x1]
      %s598 = scalar_lea.vmem %s321, 128
      %v599 = vld [vmem:[%s598] sm:$0xff]
      %v600 = vld [vmem:[%s598 + $0x8] sm:$0xff]
      %s601 = scalar_lea.vmem %s325, 128
      %v602 = vld [vmem:[%s601] sm:$0xff]
      %v603 = vld [vmem:[%s601 + $0x8] sm:$0xff]
      %v604 = vlaneseq
      %v605 = vshrl.u32 %v604, 7
      %v606 = vsub.s32 0, %v605
      %v607 = vrot.slane %v596, %v606
      %v608 = vmul.f32 %v607, %v599
      %v609 = vmul.f32 %v607, %v600
      %v610 = vadd.f32 %v586, %v608
      %v611 = vadd.f32 %v587, %v609
      %v612 = vlaneseq
      %v613 = vshrl.u32 %v612, 7
      %v614 = vsub.s32 0, %v613
      %v615 = vrot.slane %v597, %v614
      %v616 = vmul.f32 %v615, %v602
      %v617 = vmul.f32 %v615, %v603
      %v618 = vsub.f32 %v610, %v616
      %v619 = vsub.f32 %v611, %v617
      %v620 = vmul.f32 %v607, %v602
      %v621 = vmul.f32 %v607, %v603
      %v622 = vadd.f32 %v594, %v620
      %v623 = vadd.f32 %v595, %v621
      %v624 = vmul.f32 %v615, %v599
      %v625 = vmul.f32 %v615, %v600
      %v626 = vadd.f32 %v622, %v624
      %v627 = vadd.f32 %v623, %v625
      %v628 = vld [vmem:[%s309 + $0x9] sm:$0x1]
      %v629 = vld [vmem:[%s317 + $0x9] sm:$0x1]
      %s630 = scalar_lea.vmem %s321, 144
      %v631 = vld [vmem:[%s630] sm:$0xff]
      %v632 = vld [vmem:[%s630 + $0x8] sm:$0xff]
      %s633 = scalar_lea.vmem %s325, 144
      %v634 = vld [vmem:[%s633] sm:$0xff]
      %v635 = vld [vmem:[%s633 + $0x8] sm:$0xff]
      %v636 = vlaneseq
      %v637 = vshrl.u32 %v636, 7
      %v638 = vsub.s32 0, %v637
      %v639 = vrot.slane %v628, %v638
      %v640 = vmul.f32 %v639, %v631
      %v641 = vmul.f32 %v639, %v632
      %v642 = vadd.f32 %v618, %v640
      %v643 = vadd.f32 %v619, %v641
      %v644 = vlaneseq
      %v645 = vshrl.u32 %v644, 7
      %v646 = vsub.s32 0, %v645
      %v647 = vrot.slane %v629, %v646
      %v648 = vmul.f32 %v647, %v634
      %v649 = vmul.f32 %v647, %v635
      %v650 = vsub.f32 %v642, %v648
      %v651 = vsub.f32 %v643, %v649
      %v652 = vmul.f32 %v639, %v634
      %v653 = vmul.f32 %v639, %v635
      %v654 = vadd.f32 %v626, %v652
      %v655 = vadd.f32 %v627, %v653
      %v656 = vmul.f32 %v647, %v631
      %v657 = vmul.f32 %v647, %v632
      %v658 = vadd.f32 %v654, %v656
      %v659 = vadd.f32 %v655, %v657
      %v660 = vld [vmem:[%s309 + $0xa] sm:$0x1]
      %v661 = vld [vmem:[%s317 + $0xa] sm:$0x1]
      %s662 = scalar_lea.vmem %s321, 160
      %v663 = vld [vmem:[%s662] sm:$0xff]
      %v664 = vld [vmem:[%s662 + $0x8] sm:$0xff]
      %s665 = scalar_lea.vmem %s325, 160
      %v666 = vld [vmem:[%s665] sm:$0xff]
      %v667 = vld [vmem:[%s665 + $0x8] sm:$0xff]
      %v668 = vlaneseq
      %v669 = vshrl.u32 %v668, 7
      %v670 = vsub.s32 0, %v669
      %v671 = vrot.slane %v660, %v670
      %v672 = vmul.f32 %v671, %v663
      %v673 = vmul.f32 %v671, %v664
      %v674 = vadd.f32 %v650, %v672
      %v675 = vadd.f32 %v651, %v673
      %v676 = vlaneseq
      %v677 = vshrl.u32 %v676, 7
      %v678 = vsub.s32 0, %v677
      %v679 = vrot.slane %v661, %v678
      %v680 = vmul.f32 %v679, %v666
      %v681 = vmul.f32 %v679, %v667
      %v682 = vsub.f32 %v674, %v680
      %v683 = vsub.f32 %v675, %v681
      %v684 = vmul.f32 %v671, %v666
      %v685 = vmul.f32 %v671, %v667
      %v686 = vadd.f32 %v658, %v684
      %v687 = vadd.f32 %v659, %v685
      %v688 = vmul.f32 %v679, %v663
      %v689 = vmul.f32 %v679, %v664
      %v690 = vadd.f32 %v686, %v688
      %v691 = vadd.f32 %v687, %v689
      %v692 = vld [vmem:[%s309 + $0xb] sm:$0x1]
      %v693 = vld [vmem:[%s317 + $0xb] sm:$0x1]
      %s694 = scalar_lea.vmem %s321, 176
      %v695 = vld [vmem:[%s694] sm:$0xff]
      %v696 = vld [vmem:[%s694 + $0x8] sm:$0xff]
      %s697 = scalar_lea.vmem %s325, 176
      %v698 = vld [vmem:[%s697] sm:$0xff]
      %v699 = vld [vmem:[%s697 + $0x8] sm:$0xff]
      %v700 = vlaneseq
      %v701 = vshrl.u32 %v700, 7
      %v702 = vsub.s32 0, %v701
      %v703 = vrot.slane %v692, %v702
      %v704 = vmul.f32 %v703, %v695
      %v705 = vmul.f32 %v703, %v696
      %v706 = vadd.f32 %v682, %v704
      %v707 = vadd.f32 %v683, %v705
      %v708 = vlaneseq
      %v709 = vshrl.u32 %v708, 7
      %v710 = vsub.s32 0, %v709
      %v711 = vrot.slane %v693, %v710
      %v712 = vmul.f32 %v711, %v698
      %v713 = vmul.f32 %v711, %v699
      %v714 = vsub.f32 %v706, %v712
      %v715 = vsub.f32 %v707, %v713
      %v716 = vmul.f32 %v703, %v698
      %v717 = vmul.f32 %v703, %v699
      %v718 = vadd.f32 %v690, %v716
      %v719 = vadd.f32 %v691, %v717
      %v720 = vmul.f32 %v711, %v695
      %v721 = vmul.f32 %v711, %v696
      %v722 = vadd.f32 %v718, %v720
      %v723 = vadd.f32 %v719, %v721
      %v724 = vld [vmem:[%s309 + $0xc] sm:$0x1]
      %v725 = vld [vmem:[%s317 + $0xc] sm:$0x1]
      %s726 = scalar_lea.vmem %s321, 192
      %v727 = vld [vmem:[%s726] sm:$0xff]
      %v728 = vld [vmem:[%s726 + $0x8] sm:$0xff]
      %s729 = scalar_lea.vmem %s325, 192
      %v730 = vld [vmem:[%s729] sm:$0xff]
      %v731 = vld [vmem:[%s729 + $0x8] sm:$0xff]
      %v732 = vlaneseq
      %v733 = vshrl.u32 %v732, 7
      %v734 = vsub.s32 0, %v733
      %v735 = vrot.slane %v724, %v734
      %v736 = vmul.f32 %v735, %v727
      %v737 = vmul.f32 %v735, %v728
      %v738 = vadd.f32 %v714, %v736
      %v739 = vadd.f32 %v715, %v737
      %v740 = vlaneseq
      %v741 = vshrl.u32 %v740, 7
      %v742 = vsub.s32 0, %v741
      %v743 = vrot.slane %v725, %v742
      %v744 = vmul.f32 %v743, %v730
      %v745 = vmul.f32 %v743, %v731
      %v746 = vsub.f32 %v738, %v744
      %v747 = vsub.f32 %v739, %v745
      %v748 = vmul.f32 %v735, %v730
      %v749 = vmul.f32 %v735, %v731
      %v750 = vadd.f32 %v722, %v748
      %v751 = vadd.f32 %v723, %v749
      %v752 = vmul.f32 %v743, %v727
      %v753 = vmul.f32 %v743, %v728
      %v754 = vadd.f32 %v750, %v752
      %v755 = vadd.f32 %v751, %v753
      %v756 = vld [vmem:[%s309 + $0xd] sm:$0x1]
      %v757 = vld [vmem:[%s317 + $0xd] sm:$0x1]
      %s758 = scalar_lea.vmem %s321, 208
      %v759 = vld [vmem:[%s758] sm:$0xff]
      %v760 = vld [vmem:[%s758 + $0x8] sm:$0xff]
      %s761 = scalar_lea.vmem %s325, 208
      %v762 = vld [vmem:[%s761] sm:$0xff]
      %v763 = vld [vmem:[%s761 + $0x8] sm:$0xff]
      %v764 = vlaneseq
      %v765 = vshrl.u32 %v764, 7
      %v766 = vsub.s32 0, %v765
      %v767 = vrot.slane %v756, %v766
      %v768 = vmul.f32 %v767, %v759
      %v769 = vmul.f32 %v767, %v760
      %v770 = vadd.f32 %v746, %v768
      %v771 = vadd.f32 %v747, %v769
      %v772 = vlaneseq
      %v773 = vshrl.u32 %v772, 7
      %v774 = vsub.s32 0, %v773
      %v775 = vrot.slane %v757, %v774
      %v776 = vmul.f32 %v775, %v762
      %v777 = vmul.f32 %v775, %v763
      %v778 = vsub.f32 %v770, %v776
      %v779 = vsub.f32 %v771, %v777
      %v780 = vmul.f32 %v767, %v762
      %v781 = vmul.f32 %v767, %v763
      %v782 = vadd.f32 %v754, %v780
      %v783 = vadd.f32 %v755, %v781
      %v784 = vmul.f32 %v775, %v759
      %v785 = vmul.f32 %v775, %v760
      %v786 = vadd.f32 %v782, %v784
      %v787 = vadd.f32 %v783, %v785
      %v788 = vld [vmem:[%s309 + $0xe] sm:$0x1]
      %v789 = vld [vmem:[%s317 + $0xe] sm:$0x1]
      %s790 = scalar_lea.vmem %s321, 224
      %v791 = vld [vmem:[%s790] sm:$0xff]
      %v792 = vld [vmem:[%s790 + $0x8] sm:$0xff]
      %s793 = scalar_lea.vmem %s325, 224
      %v794 = vld [vmem:[%s793] sm:$0xff]
      %v795 = vld [vmem:[%s793 + $0x8] sm:$0xff]
      %v796 = vlaneseq
      %v797 = vshrl.u32 %v796, 7
      %v798 = vsub.s32 0, %v797
      %v799 = vrot.slane %v788, %v798
      %v800 = vmul.f32 %v799, %v791
      %v801 = vmul.f32 %v799, %v792
      %v802 = vadd.f32 %v778, %v800
      %v803 = vadd.f32 %v779, %v801
      %v804 = vlaneseq
      %v805 = vshrl.u32 %v804, 7
      %v806 = vsub.s32 0, %v805
      %v807 = vrot.slane %v789, %v806
      %v808 = vmul.f32 %v807, %v794
      %v809 = vmul.f32 %v807, %v795
      %v810 = vsub.f32 %v802, %v808
      %v811 = vsub.f32 %v803, %v809
      %v812 = vmul.f32 %v799, %v794
      %v813 = vmul.f32 %v799, %v795
      %v814 = vadd.f32 %v786, %v812
      %v815 = vadd.f32 %v787, %v813
      %v816 = vmul.f32 %v807, %v791
      %v817 = vmul.f32 %v807, %v792
      %v818 = vadd.f32 %v814, %v816
      %v819 = vadd.f32 %v815, %v817
      %v820 = vld [vmem:[%s309 + $0xf] sm:$0x1]
      %v821 = vld [vmem:[%s317 + $0xf] sm:$0x1]
      %s822 = scalar_lea.vmem %s321, 240
      %v823 = vld [vmem:[%s822] sm:$0xff]
      %v824 = vld [vmem:[%s822 + $0x8] sm:$0xff]
      %s825 = scalar_lea.vmem %s325, 240
      %v826 = vld [vmem:[%s825] sm:$0xff]
      %v827 = vld [vmem:[%s825 + $0x8] sm:$0xff]
      %v828 = vlaneseq
      %v829 = vshrl.u32 %v828, 7
      %v830 = vsub.s32 0, %v829
      %v831 = vrot.slane %v820, %v830
      %v832 = vmul.f32 %v831, %v823
      %v833 = vmul.f32 %v831, %v824
      %v834 = vadd.f32 %v810, %v832
      %v835 = vadd.f32 %v811, %v833
      %v836 = vlaneseq
      %v837 = vshrl.u32 %v836, 7
      %v838 = vsub.s32 0, %v837
      %v839 = vrot.slane %v821, %v838
      %v840 = vmul.f32 %v839, %v826
      %v841 = vmul.f32 %v839, %v827
      %v842 = vsub.f32 %v834, %v840
      %v843 = vsub.f32 %v835, %v841
      %v844 = vmul.f32 %v831, %v826
      %v845 = vmul.f32 %v831, %v827
      %v846 = vadd.f32 %v818, %v844
      %v847 = vadd.f32 %v819, %v845
      %v848 = vmul.f32 %v839, %v823
      %v849 = vmul.f32 %v839, %v824
      %v850 = vadd.f32 %v846, %v848
      %v851 = vadd.f32 %v847, %v849
      %vm852 = vcmask 785408
      %853 = vst.msk [vmem:[%s333] sm:$0xff] %vm852, %v842
      %854 = vst.msk [vmem:[%s333 + $0x8] sm:$0xff] %vm852, %v843
      %855 = vst.msk [vmem:[%s341] sm:$0xff] %vm852, %v850
      %856 = vst.msk [vmem:[%s341 + $0x8] sm:$0xff] %vm852, %v851
      %p857 = scmp.lt.s32.totalorder %s22, 1
      %s858 = scalar_select %p857, %s22, 1
      %p859 = scmp.lt.s32.totalorder %s21, 0
      %s860 = scalar_select %p859, %s21, 0
      %s861 = smul.addr %s858, 2
      %s862 = sadd.s32 %s860, %s861
      %s863 = smul.addr %s862, 8
      %s864 = scalar_lea.vmem %s4, %s863
      %p865 = scmp.lt.s32.totalorder %s22, 1
      %s866 = scalar_select %p865, %s22, 1
      %p867 = scmp.lt.s32.totalorder %s21, 0
      %s868 = scalar_select %p867, %s21, 0
      %s869 = smul.addr %s866, 2
      %s870 = sadd.s32 %s868, %s869
      %s871 = smul.addr %s870, 8
      %s872 = scalar_lea.vmem %s5, %s871
      // Predicated region
      $region37: #{fno_multi_forward.14} parent=35 // pred_check
        %p873 = pneg %p157
      $region38: #{fno_multi_forward.14} parent=35 // pred_check_branch
        %875 = sbr.rel (%p873) target = $region40
      $region39: #{fno_multi_forward.14} parent=35 // pred_region
        _
      $region40: #{fno_multi_forward.14} parent=35 // pred_fallthru
        _
      // Predicated region
      $region41: #{fno_multi_forward.14} parent=35 // pred_check
        %p876 = pneg %p185
      $region42: #{fno_multi_forward.14} parent=35 // pred_check_branch
        %878 = sbr.rel (%p876) target = $region44
      $region43: #{fno_multi_forward.14} parent=35 // pred_region
        _
      $region44: #{fno_multi_forward.14} parent=35 // pred_fallthru
        _
    $region36: #{fno_multi_forward.14} parent=5 // pred_fallthru
      _
    %p879 = scmp.le.s32.totalorder 2, %s12
    // Predicated region
    $region45: #{fno_multi_forward.14} parent=5 // pred_check
      %p880 = pneg %p879
    $region46: #{fno_multi_forward.14} parent=5 // pred_check_branch
      %882 = sbr.rel (%p880) target = $region48
    $region47: #{fno_multi_forward.14} parent=5 // pred_region
      %s883 = ssub.s32 %s12, 2
      // Predicated region
      $region49: #{fno_multi_forward.14} parent=47 // pred_check
        %p884 = pneg %p163
      $region50: #{fno_multi_forward.14} parent=47 // pred_check_branch
        %886 = sbr.rel (%p884) target = $region52
      $region51: #{fno_multi_forward.14} parent=47 // pred_region
        %p887 = scmp.lt.s32.totalorder %s24, 1
        %s888 = scalar_select %p887, %s24, 1
        %p889 = scmp.lt.s32.totalorder %s23, 0
        %s890 = scalar_select %p889, %s23, 0
        %s891 = smul.addr %s888, 2
        %s892 = sadd.s32 %s890, %s891
        %s893 = smul.addr %s892, 8
        %s894 = scalar_lea.vmem %s4, %s893
      $region52: #{fno_multi_forward.14} parent=47 // pred_fallthru
        _
      // Predicated region
      $region53: #{fno_multi_forward.14} parent=47 // pred_check
        %p895 = pneg %p191
      $region54: #{fno_multi_forward.14} parent=47 // pred_check_branch
        %897 = sbr.rel (%p895) target = $region56
      $region55: #{fno_multi_forward.14} parent=47 // pred_region
        %p898 = scmp.lt.s32.totalorder %s24, 1
        %s899 = scalar_select %p898, %s24, 1
        %p900 = scmp.lt.s32.totalorder %s23, 0
        %s901 = scalar_select %p900, %s23, 0
        %s902 = smul.addr %s899, 2
        %s903 = sadd.s32 %s901, %s902
        %s904 = smul.addr %s903, 8
        %s905 = scalar_lea.vmem %s5, %s904
      $region56: #{fno_multi_forward.14} parent=47 // pred_fallthru
        _
    $region48: #{fno_multi_forward.14} parent=5 // pred_fallthru
      _
  $region6: #{fno_multi_forward.14} parent=0 // loop_footer
    %s16 = sadd.s32 1, %s12
  $region7: #{fno_multi_forward.14} parent=0 // loop_footer_branch
    %11 = sbr.rel target = $region3
  $region8: #{fno_multi_forward.14} parent=0 // loop_exit
    _

// kernel: reverse.12
$region0: #{reverse.12}
  #allocation0 [shape = 's32[1]{0}', space=sflag, size = 0x4, scoped, tag = 'scoped memory for reverse.12']
  %s0 = inlined_call_operand.vmem [shape: f32[16,2,3,16,7], index: 0, kind: input, shape index: {}]
  %s1 = inlined_call_operand.vmem [shape: f32[16,2,3,16,7], index: 1, kind: output, shape index: {}]
  %s2 = scalar_lea.vmem %s0, 96
  %v3 = vld [vmem:[%s2] sm:$0xff]
  %4 = vst [vmem:[%s1] sm:$0xff] %v3
  %s5 = scalar_lea.vmem %s0, 432
  %v6 = vld [vmem:[%s5] sm:$0xff]
  %s7 = scalar_lea.vmem %s1, 336
  %8 = vst [vmem:[%s7] sm:$0xff] %v6
  %s9 = scalar_lea.vmem %s0, 208
  %v10 = vld [vmem:[%s9] sm:$0xff]
  %s11 = scalar_lea.vmem %s1, 112
  %12 = vst [vmem:[%s11] sm:$0xff] %v10
  %s13 = scalar_lea.vmem %s0, 544
  %v14 = vld [vmem:[%s13] sm:$0xff]
  %s15 = scalar_lea.vmem %s1, 448
  %16 = vst [vmem:[%s15] sm:$0xff] %v14
  %s17 = scalar_lea.vmem %s0, 320
  %v18 = vld [vmem:[%s17] sm:$0xff]
  %s19 = scalar_lea.vmem %s1, 224
  %20 = vst [vmem:[%s19] sm:$0xff] %v18
  %s21 = scalar_lea.vmem %s0, 656
  %v22 = vld [vmem:[%s21] sm:$0xff]
  %s23 = scalar_lea.vmem %s1, 560
  %24 = vst [vmem:[%s23] sm:$0xff] %v22
  %s25 = scalar_lea.vmem %s0, 80
  %v26 = vld [vmem:[%s25] sm:$0xff]
  %s27 = scalar_lea.vmem %s1, 16
  %28 = vst [vmem:[%s27] sm:$0xff] %v26
  %s29 = scalar_lea.vmem %s0, 416
  %v30 = vld [vmem:[%s29] sm:$0xff]
  %s31 = scalar_lea.vmem %s1, 352
  %32 = vst [vmem:[%s31] sm:$0xff] %v30
  %s33 = scalar_lea.vmem %s0, 192
  %v34 = vld [vmem:[%s33] sm:$0xff]
  %s35 = scalar_lea.vmem %s1, 128
  %36 = vst [vmem:[%s35] sm:$0xff] %v34
  %s37 = scalar_lea.vmem %s0, 528
  %v38 = vld [vmem:[%s37] sm:$0xff]
  %s39 = scalar_lea.vmem %s1, 464
  %40 = vst [vmem:[%s39] sm:$0xff] %v38
  %s41 = scalar_lea.vmem %s0, 304
  %v42 = vld [vmem:[%s41] sm:$0xff]
  %s43 = scalar_lea.vmem %s1, 240
  %44 = vst [vmem:[%s43] sm:$0xff] %v42
  %s45 = scalar_lea.vmem %s0, 640
  %v46 = vld [vmem:[%s45] sm:$0xff]
  %s47 = scalar_lea.vmem %s1, 576
  %48 = vst [vmem:[%s47] sm:$0xff] %v46
  %s49 = scalar_lea.vmem %s0, 64
  %v50 = vld [vmem:[%s49] sm:$0xff]
  %s51 = scalar_lea.vmem %s1, 32
  %52 = vst [vmem:[%s51] sm:$0xff] %v50
  %s53 = scalar_lea.vmem %s0, 400
  %v54 = vld [vmem:[%s53] sm:$0xff]
  %s55 = scalar_lea.vmem %s1, 368
  %56 = vst [vmem:[%s55] sm:$0xff] %v54
  %s57 = scalar_lea.vmem %s0, 176
  %v58 = vld [vmem:[%s57] sm:$0xff]
  %s59 = scalar_lea.vmem %s1, 144
  %60 = vst [vmem:[%s59] sm:$0xff] %v58
  %s61 = scalar_lea.vmem %s0, 512
  %v62 = vld [vmem:[%s61] sm:$0xff]
  %s63 = scalar_lea.vmem %s1, 480
  %64 = vst [vmem:[%s63] sm:$0xff] %v62
  %s65 = scalar_lea.vmem %s0, 288
  %v66 = vld [vmem:[%s65] sm:$0xff]
  %s67 = scalar_lea.vmem %s1, 256
  %68 = vst [vmem:[%s67] sm:$0xff] %v66
  %s69 = scalar_lea.vmem %s0, 624
  %v70 = vld [vmem:[%s69] sm:$0xff]
  %s71 = scalar_lea.vmem %s1, 592
  %72 = vst [vmem:[%s71] sm:$0xff] %v70
  %s73 = scalar_lea.vmem %s0, 48
  %v74 = vld [vmem:[%s73] sm:$0xff]
  %s75 = scalar_lea.vmem %s1, 48
  %76 = vst [vmem:[%s75] sm:$0xff] %v74
  %s77 = scalar_lea.vmem %s0, 384
  %v78 = vld [vmem:[%s77] sm:$0xff]
  %s79 = scalar_lea.vmem %s1, 384
  %80 = vst [vmem:[%s79] sm:$0xff] %v78
  %s81 = scalar_lea.vmem %s0, 160
  %v82 = vld [vmem:[%s81] sm:$0xff]
  %s83 = scalar_lea.vmem %s1, 160
  %84 = vst [vmem:[%s83] sm:$0xff] %v82
  %s85 = scalar_lea.vmem %s0, 496
  %v86 = vld [vmem:[%s85] sm:$0xff]
  %s87 = scalar_lea.vmem %s1, 496
  %88 = vst [vmem:[%s87] sm:$0xff] %v86
  %s89 = scalar_lea.vmem %s0, 272
  %v90 = vld [vmem:[%s89] sm:$0xff]
  %s91 = scalar_lea.vmem %s1, 272
  %92 = vst [vmem:[%s91] sm:$0xff] %v90
  %s93 = scalar_lea.vmem %s0, 608
  %v94 = vld [vmem:[%s93] sm:$0xff]
  %s95 = scalar_lea.vmem %s1, 608
  %96 = vst [vmem:[%s95] sm:$0xff] %v94
  %s97 = scalar_lea.vmem %s0, 32
  %v98 = vld [vmem:[%s97] sm:$0xff]
  %s99 = scalar_lea.vmem %s1, 64
  %100 = vst [vmem:[%s99] sm:$0xff] %v98
  %s101 = scalar_lea.vmem %s0, 368
  %v102 = vld [vmem:[%s101] sm:$0xff]
  %s103 = scalar_lea.vmem %s1, 400
  %104 = vst [vmem:[%s103] sm:$0xff] %v102
  %s105 = scalar_lea.vmem %s0, 144
  %v106 = vld [vmem:[%s105] sm:$0xff]
  %s107 = scalar_lea.vmem %s1, 176
  %108 = vst [vmem:[%s107] sm:$0xff] %v106
  %s109 = scalar_lea.vmem %s0, 480
  %v110 = vld [vmem:[%s109] sm:$0xff]
  %s111 = scalar_lea.vmem %s1, 512
  %112 = vst [vmem:[%s111] sm:$0xff] %v110
  %s113 = scalar_lea.vmem %s0, 256
  %v114 = vld [vmem:[%s113] sm:$0xff]
  %s115 = scalar_lea.vmem %s1, 288
  %116 = vst [vmem:[%s115] sm:$0xff] %v114
  %s117 = scalar_lea.vmem %s0, 592
  %v118 = vld [vmem:[%s117] sm:$0xff]
  %s119 = scalar_lea.vmem %s1, 624
  %120 = vst [vmem:[%s119] sm:$0xff] %v118
  %s121 = scalar_lea.vmem %s0, 16
  %v122 = vld [vmem:[%s121] sm:$0xff]
  %s123 = scalar_lea.vmem %s1, 80
  %124 = vst [vmem:[%s123] sm:$0xff] %v122
  %s125 = scalar_lea.vmem %s0, 352
  %v126 = vld [vmem:[%s125] sm:$0xff]
  %s127 = scalar_lea.vmem %s1, 416
  %128 = vst [vmem:[%s127] sm:$0xff] %v126
  %s129 = scalar_lea.vmem %s0, 128
  %v130 = vld [vmem:[%s129] sm:$0xff]
  %s131 = scalar_lea.vmem %s1, 192
  %132 = vst [vmem:[%s131] sm:$0xff] %v130
  %s133 = scalar_lea.vmem %s0, 464
  %v134 = vld [vmem:[%s133] sm:$0xff]
  %s135 = scalar_lea.vmem %s1, 528
  %136 = vst [vmem:[%s135] sm:$0xff] %v134
  %s137 = scalar_lea.vmem %s0, 240
  %v138 = vld [vmem:[%s137] sm:$0xff]
  %s139 = scalar_lea.vmem %s1, 304
  %140 = vst [vmem:[%s139] sm:$0xff] %v138
  %s141 = scalar_lea.vmem %s0, 576
  %v142 = vld [vmem:[%s141] sm:$0xff]
  %s143 = scalar_lea.vmem %s1, 640
  %144 = vst [vmem:[%s143] sm:$0xff] %v142
  %v145 = vld [vmem:[%s0] sm:$0xff]
  %s146 = scalar_lea.vmem %s1, 96
  %147 = vst [vmem:[%s146] sm:$0xff] %v145
  %s148 = scalar_lea.vmem %s0, 336
  %v149 = vld [vmem:[%s148] sm:$0xff]
  %s150 = scalar_lea.vmem %s1, 432
  %151 = vst [vmem:[%s150] sm:$0xff] %v149
  %s152 = scalar_lea.vmem %s0, 112
  %v153 = vld [vmem:[%s152] sm:$0xff]
  %s154 = scalar_lea.vmem %s1, 208
  %155 = vst [vmem:[%s154] sm:$0xff] %v153
  %s156 = scalar_lea.vmem %s0, 448
  %v157 = vld [vmem:[%s156] sm:$0xff]
  %s158 = scalar_lea.vmem %s1, 544
  %159 = vst [vmem:[%s158] sm:$0xff] %v157
  %s160 = scalar_lea.vmem %s0, 224
  %v161 = vld [vmem:[%s160] sm:$0xff]
  %s162 = scalar_lea.vmem %s1, 320
  %163 = vst [vmem:[%s162] sm:$0xff] %v161
  %s164 = scalar_lea.vmem %s0, 560
  %v165 = vld [vmem:[%s164] sm:$0xff]
  %s166 = scalar_lea.vmem %s1, 656
  %167 = vst [vmem:[%s166] sm:$0xff] %v165
  %s168 = scalar_lea.vmem %s0, 104
  %v169 = vld [vmem:[%s168] sm:$0xff]
  %s170 = scalar_lea.vmem %s1, 8
  %171 = vst [vmem:[%s170] sm:$0xff] %v169
  %s172 = scalar_lea.vmem %s0, 440
  %v173 = vld [vmem:[%s172] sm:$0xff]
  %s174 = scalar_lea.vmem %s1, 344
  %175 = vst [vmem:[%s174] sm:$0xff] %v173
  %s176 = scalar_lea.vmem %s0, 216
  %v177 = vld [vmem:[%s176] sm:$0xff]
  %s178 = scalar_lea.vmem %s1, 120
  %179 = vst [vmem:[%s178] sm:$0xff] %v177
  %s180 = scalar_lea.vmem %s0, 552
  %v181 = vld [vmem:[%s180] sm:$0xff]
  %s182 = scalar_lea.vmem %s1, 456
  %183 = vst [vmem:[%s182] sm:$0xff] %v181
  %s184 = scalar_lea.vmem %s0, 328
  %v185 = vld [vmem:[%s184] sm:$0xff]
  %s186 = scalar_lea.vmem %s1, 232
  %187 = vst [vmem:[%s186] sm:$0xff] %v185
  %s188 = scalar_lea.vmem %s0, 664
  %v189 = vld [vmem:[%s188] sm:$0xff]
  %s190 = scalar_lea.vmem %s1, 568
  %191 = vst [vmem:[%s190] sm:$0xff] %v189
  %s192 = scalar_lea.vmem %s0, 88
  %v193 = vld [vmem:[%s192] sm:$0xff]
  %s194 = scalar_lea.vmem %s1, 24
  %195 = vst [vmem:[%s194] sm:$0xff] %v193
  %s196 = scalar_lea.vmem %s0, 424
  %v197 = vld [vmem:[%s196] sm:$0xff]
  %s198 = scalar_lea.vmem %s1, 360
  %199 = vst [vmem:[%s198] sm:$0xff] %v197
  %s200 = scalar_lea.vmem %s0, 200
  %v201 = vld [vmem:[%s200] sm:$0xff]
  %s202 = scalar_lea.vmem %s1, 136
  %203 = vst [vmem:[%s202] sm:$0xff] %v201
  %s204 = scalar_lea.vmem %s0, 536
  %v205 = vld [vmem:[%s204] sm:$0xff]
  %s206 = scalar_lea.vmem %s1, 472
  %207 = vst [vmem:[%s206] sm:$0xff] %v205
  %s208 = scalar_lea.vmem %s0, 312
  %v209 = vld [vmem:[%s208] sm:$0xff]
  %s210 = scalar_lea.vmem %s1, 248
  %211 = vst [vmem:[%s210] sm:$0xff] %v209
  %s212 = scalar_lea.vmem %s0, 648
  %v213 = vld [vmem:[%s212] sm:$0xff]
  %s214 = scalar_lea.vmem %s1, 584
  %215 = vst [vmem:[%s214] sm:$0xff] %v213
  %s216 = scalar_lea.vmem %s0, 72
  %v217 = vld [vmem:[%s216] sm:$0xff]
  %s218 = scalar_lea.vmem %s1, 40
  %219 = vst [vmem:[%s218] sm:$0xff] %v217
  %s220 = scalar_lea.vmem %s0, 408
  %v221 = vld [vmem:[%s220] sm:$0xff]
  %s222 = scalar_lea.vmem %s1, 376
  %223 = vst [vmem:[%s222] sm:$0xff] %v221
  %s224 = scalar_lea.vmem %s0, 184
  %v225 = vld [vmem:[%s224] sm:$0xff]
  %s226 = scalar_lea.vmem %s1, 152
  %227 = vst [vmem:[%s226] sm:$0xff] %v225
  %s228 = scalar_lea.vmem %s0, 520
  %v229 = vld [vmem:[%s228] sm:$0xff]
  %s230 = scalar_lea.vmem %s1, 488
  %231 = vst [vmem:[%s230] sm:$0xff] %v229
  %s232 = scalar_lea.vmem %s0, 296
  %v233 = vld [vmem:[%s232] sm:$0xff]
  %s234 = scalar_lea.vmem %s1, 264
  %235 = vst [vmem:[%s234] sm:$0xff] %v233
  %s236 = scalar_lea.vmem %s0, 632
  %v237 = vld [vmem:[%s236] sm:$0xff]
  %s238 = scalar_lea.vmem %s1, 600
  %239 = vst [vmem:[%s238] sm:$0xff] %v237
  %s240 = scalar_lea.vmem %s0, 56
  %v241 = vld [vmem:[%s240] sm:$0xff]
  %s242 = scalar_lea.vmem %s1, 56
  %243 = vst [vmem:[%s242] sm:$0xff] %v241
  %s244 = scalar_lea.vmem %s0, 392
  %v245 = vld [vmem:[%s244] sm:$0xff]
  %s246 = scalar_lea.vmem %s1, 392
  %247 = vst [vmem:[%s246] sm:$0xff] %v245
  %s248 = scalar_lea.vmem %s0, 168
  %v249 = vld [vmem:[%s248] sm:$0xff]
  %s250 = scalar_lea.vmem %s1, 168
  %251 = vst [vmem:[%s250] sm:$0xff] %v249
  %s252 = scalar_lea.vmem %s0, 504
  %v253 = vld [vmem:[%s252] sm:$0xff]
  %s254 = scalar_lea.vmem %s1, 504
  %255 = vst [vmem:[%s254] sm:$0xff] %v253
  %s256 = scalar_lea.vmem %s0, 280
  %v257 = vld [vmem:[%s256] sm:$0xff]
  %s258 = scalar_lea.vmem %s1, 280
  %259 = vst [vmem:[%s258] sm:$0xff] %v257
  %s260 = scalar_lea.vmem %s0, 616
  %v261 = vld [vmem:[%s260] sm:$0xff]
  %s262 = scalar_lea.vmem %s1, 616
  %263 = vst [vmem:[%s262] sm:$0xff] %v261
  %s264 = scalar_lea.vmem %s0, 40
  %v265 = vld [vmem:[%s264] sm:$0xff]
  %s266 = scalar_lea.vmem %s1, 72
  %267 = vst [vmem:[%s266] sm:$0xff] %v265
  %s268 = scalar_lea.vmem %s0, 376
  %v269 = vld [vmem:[%s268] sm:$0xff]
  %s270 = scalar_lea.vmem %s1, 408
  %271 = vst [vmem:[%s270] sm:$0xff] %v269
  %s272 = scalar_lea.vmem %s0, 152
  %v273 = vld [vmem:[%s272] sm:$0xff]
  %s274 = scalar_lea.vmem %s1, 184
  %275 = vst [vmem:[%s274] sm:$0xff] %v273
  %s276 = scalar_lea.vmem %s0, 488
  %v277 = vld [vmem:[%s276] sm:$0xff]
  %s278 = scalar_lea.vmem %s1, 520
  %279 = vst [vmem:[%s278] sm:$0xff] %v277
  %s280 = scalar_lea.vmem %s0, 264
  %v281 = vld [vmem:[%s280] sm:$0xff]
  %s282 = scalar_lea.vmem %s1, 296
  %283 = vst [vmem:[%s282] sm:$0xff] %v281
  %s284 = scalar_lea.vmem %s0, 600
  %v285 = vld [vmem:[%s284] sm:$0xff]
  %s286 = scalar_lea.vmem %s1, 632
  %287 = vst [vmem:[%s286] sm:$0xff] %v285
  %s288 = scalar_lea.vmem %s0, 24
  %v289 = vld [vmem:[%s288] sm:$0xff]
  %s290 = scalar_lea.vmem %s1, 88
  %291 = vst [vmem:[%s290] sm:$0xff] %v289
  %s292 = scalar_lea.vmem %s0, 360
  %v293 = vld [vmem:[%s292] sm:$0xff]
  %s294 = scalar_lea.vmem %s1, 424
  %295 = vst [vmem:[%s294] sm:$0xff] %v293
  %s296 = scalar_lea.vmem %s0, 136
  %v297 = vld [vmem:[%s296] sm:$0xff]
  %s298 = scalar_lea.vmem %s1, 200
  %299 = vst [vmem:[%s298] sm:$0xff] %v297
  %s300 = scalar_lea.vmem %s0, 472
  %v301 = vld [vmem:[%s300] sm:$0xff]
  %s302 = scalar_lea.vmem %s1, 536
  %303 = vst [vmem:[%s302] sm:$0xff] %v301
  %s304 = scalar_lea.vmem %s0, 248
  %v305 = vld [vmem:[%s304] sm:$0xff]
  %s306 = scalar_lea.vmem %s1, 312
  %307 = vst [vmem:[%s306] sm:$0xff] %v305
  %s308 = scalar_lea.vmem %s0, 584
  %v309 = vld [vmem:[%s308] sm:$0xff]
  %s310 = scalar_lea.vmem %s1, 648
  %311 = vst [vmem:[%s310] sm:$0xff] %v309
  %s312 = scalar_lea.vmem %s0, 8
  %v313 = vld [vmem:[%s312] sm:$0xff]
  %s314 = scalar_lea.vmem %s1, 104
  %315 = vst [vmem:[%s314] sm:$0xff] %v313
  %s316 = scalar_lea.vmem %s0, 344
  %v317 = vld [vmem:[%s316] sm:$0xff]
  %s318 = scalar_lea.vmem %s1, 440
  %319 = vst [vmem:[%s318] sm:$0xff] %v317
  %s320 = scalar_lea.vmem %s0, 120
  %v321 = vld [vmem:[%s320] sm:$0xff]
  %s322 = scalar_lea.vmem %s1, 216
  %323 = vst [vmem:[%s322] sm:$0xff] %v321
  %s324 = scalar_lea.vmem %s0, 456
  %v325 = vld [vmem:[%s324] sm:$0xff]
  %s326 = scalar_lea.vmem %s1, 552
  %327 = vst [vmem:[%s326] sm:$0xff] %v325
  %s328 = scalar_lea.vmem %s0, 232
  %v329 = vld [vmem:[%s328] sm:$0xff]
  %s330 = scalar_lea.vmem %s1, 328
  %331 = vst [vmem:[%s330] sm:$0xff] %v329
  %s332 = scalar_lea.vmem %s0, 568
  %v333 = vld [vmem:[%s332] sm:$0xff]
  %s334 = scalar_lea.vmem %s1, 664
  %335 = vst [vmem:[%s334] sm:$0xff] %v333

// kernel: fno_multi_forward.15
$region0: #{fno_multi_forward.15}
  #allocation0 [shape = 'u32[]', space=smem, size = 0x4, offset = 0x4, fixed_abs, tag = 'smem constant byte address 0x4 - core index']
  #allocation1 [shape = 'u32[144,128]{1,0:T(1,128)}', space=vmem, size = 0x12000, scoped, tag = 'internal scratch']
  %s0 = inlined_call_operand.vmem [shape: f32[16,1536], index: 0, kind: input, shape index: {}]
  %s1 = inlined_call_operand.vmem [shape: f32[16,1536], index: 1, kind: input, shape index: {}]
  %s2 = inlined_call_operand.vmem [shape: f32[2,1536], index: 2, kind: input, shape index: {}]
  %s3 = inlined_call_operand.vmem [shape: f32[16,16], index: 3, kind: input, shape index: {}]
  %s4 = inlined_call_operand.vmem [shape: f32[16,1], index: 4, kind: input, shape index: {}]
  %s5 = inlined_call_operand.vmem [shape: f32[16,16], index: 5, kind: input, shape index: {}]
  %s6 = inlined_call_operand.vmem [shape: f32[16,1], index: 6, kind: input, shape index: {}]
  %s7 = inlined_call_operand.vmem [shape: f32[16,16], index: 7, kind: input, shape index: {}]
  %s8 = inlined_call_operand.vmem [shape: f32[16,1], index: 8, kind: input, shape index: {}]
  %s9 = inlined_call_operand.vmem [shape: f32[16,2], index: 9, kind: input, shape index: {}]
  %s10 = inlined_call_operand.vmem [shape: f32[16,1], index: 10, kind: input, shape index: {}]
  %s11 = inlined_call_operand.vmem [shape: f32[16,1536], index: 11, kind: output, shape index: {}]
  %s12 = sld [smem:[#allocation0]]
  $region142: #{fno_multi_forward.15} parent=0
    _
  %s14 = ssub.s32 1, %s12
  %s15 = scalar_select 0, %s14, %s12
  $region1: #{fno_multi_forward.15} parent=0
    #allocation2 [shape = 'u8[65536]{0}', space=vmem, size = 0x10000, scoped, tag = 'input window, operand 0']
    #allocation3 [shape = 'u8[65536]{0}', space=vmem, size = 0x10000, scoped, tag = 'input window, operand 1']
    #allocation4 [shape = 'u8[65536]{0}', space=vmem, size = 0x10000, scoped, tag = 'output window, operand 0']
    loop: start=0, step=1, limit=5
    $region2: #{fno_multi_forward.15} parent=1 // loop_pre_header
      _
    $region3: #{fno_multi_forward.15} parent=1 // loop_header
      %s17 = sphi 0, %s21
      %p18 = scmp.ge.s32.totalorder %s17, 5
      %s27 = sphi 0, %s29
      %s30 = sphi 0, %s27
      %s31 = sphi 0, %s30
      %s47 = sphi 0, %s31
      %s53 = sphi 0, %s55
      %s56 = sphi 0, %s53
      %s57 = sphi 0, %s56
      %s73 = sphi 0, %s57
      %s79 = sphi 0, %s81
      %s82 = sphi 0, %s79
      %s83 = sphi 0, %s82
      %s99 = sphi 0, %s83
      %s103 = sphi 0, %s103
      %s105 = sphi 0, %s103
      %s106 = sphi 0, %s105
      %s120 = sphi 0, %s106
      %s124 = sphi 0, %s124
      %s126 = sphi 0, %s124
      %s127 = sphi 0, %s126
      %s141 = sphi 0, %s127
      %s145 = sphi 0, %s145
      %s147 = sphi 0, %s145
      %s148 = sphi 0, %s147
      %s162 = sphi 0, %s148
      %s166 = sphi 0, %s166
      %s168 = sphi 0, %s166
      %s169 = sphi 0, %s168
      %s183 = sphi 0, %s169
      %s187 = sphi 0, %s187
      %s189 = sphi 0, %s187
      %s190 = sphi 0, %s189
      %s204 = sphi 0, %s190
      %s208 = sphi 0, %s208
      %s210 = sphi 0, %s208
      %s211 = sphi 0, %s210
      %s225 = sphi 0, %s211
      %s229 = sphi 0, %s229
      %s231 = sphi 0, %s229
      %s232 = sphi 0, %s231
      %s246 = sphi 0, %s232
      %s250 = sphi 0, %s250
      %s252 = sphi 0, %s250
      %s253 = sphi 0, %s252
      %s267 = sphi 0, %s253
      %s273 = sphi 0, %s275
      %s276 = sphi 0, %s273
      %s277 = sphi 0, %s276
      %s293 = sphi 0, %s277
    $region4: #{fno_multi_forward.15} parent=1 // loop_header_branch
      %20 = sbr.rel (%p18) target = $region8
    $region5: #{fno_multi_forward.15} parent=1 // loop_body
      %s22 = ssub.s32 %s17, 1
      %s23 = ssub.s32 %s17, 2
      %s24 = sadd.s32 %s17, 1
      %s25 = ssub.s32 %s17, %s24
      %p26 = scmp.eq.s32.totalorder %s25, 0
      %s28 = sadd.s32 %s27, 1
      %s29 = scalar_select %p26, %s27, %s28
      %p32 = pneg %p26
      %p33 = scmp.eq.s32.totalorder %s17, 2
      %p34 = por %p32, %p33
      %p35 = scmp.ne.s32.totalorder %s27, %s30
      %p36 = scmp.eq.s32.totalorder %s17, 0
      %p37 = por %p35, %p36
      %p38 = scmp.ne.s32.totalorder %s27, %s30
      %p39 = scmp.eq.s32.totalorder %s22, 2
      %p40 = por %p38, %p39
      %p41 = scmp.ne.s32.totalorder %s30, %s31
      %p42 = scmp.eq.s32.totalorder %s22, 0
      %p43 = por %p41, %p42
      %p44 = scmp.ne.s32.totalorder %s30, %s31
      %p45 = scmp.eq.s32.totalorder %s23, 2
      %p46 = por %p44, %p45
      %p48 = scmp.ne.s32.totalorder %s31, %s47
      %p49 = scmp.eq.s32.totalorder %s23, 0
      %p50 = por %p48, %p49
      %s51 = ssub.s32 %s17, %s24
      %p52 = scmp.eq.s32.totalorder %s51, 0
      %s54 = sadd.s32 %s53, 1
      %s55 = scalar_select %p52, %s53, %s54
      %p58 = pneg %p52
      %p59 = scmp.eq.s32.totalorder %s17, 2
      %p60 = por %p58, %p59
      %p61 = scmp.ne.s32.totalorder %s53, %s56
      %p62 = scmp.eq.s32.totalorder %s17, 0
      %p63 = por %p61, %p62
      %p64 = scmp.ne.s32.totalorder %s53, %s56
      %p65 = scmp.eq.s32.totalorder %s22, 2
      %p66 = por %p64, %p65
      %p67 = scmp.ne.s32.totalorder %s56, %s57
      %p68 = scmp.eq.s32.totalorder %s22, 0
      %p69 = por %p67, %p68
      %p70 = scmp.ne.s32.totalorder %s56, %s57
      %p71 = scmp.eq.s32.totalorder %s23, 2
      %p72 = por %p70, %p71
      %p74 = scmp.ne.s32.totalorder %s57, %s73
      %p75 = scmp.eq.s32.totalorder %s23, 0
      %p76 = por %p74, %p75
      %s77 = ssub.s32 %s17, %s24
      %p78 = scmp.eq.s32.totalorder %s77, 0
      %s80 = sadd.s32 %s79, 1
      %s81 = scalar_select %p78, %s79, %s80
      %p84 = pneg %p78
      %p85 = scmp.eq.s32.totalorder %s17, 2
      %p86 = por %p84, %p85
      %p87 = scmp.ne.s32.totalorder %s79, %s82
      %p88 = scmp.eq.s32.totalorder %s17, 0
      %p89 = por %p87, %p88
      %p90 = scmp.ne.s32.totalorder %s79, %s82
      %p91 = scmp.eq.s32.totalorder %s22, 2
      %p92 = por %p90, %p91
      %p93 = scmp.ne.s32.totalorder %s82, %s83
      %p94 = scmp.eq.s32.totalorder %s22, 0
      %p95 = por %p93, %p94
      %p96 = scmp.ne.s32.totalorder %s82, %s83
      %p97 = scmp.eq.s32.totalorder %s23, 2
      %p98 = por %p96, %p97
      %p100 = scmp.ne.s32.totalorder %s83, %s99
      %p101 = scmp.eq.s32.totalorder %s23, 0
      %p102 = por %p100, %p101
      %s104 = sadd.s32 %s103, 1
      %p107 = scmp.eq.s32.totalorder %s17, 2
      %p108 = scmp.ne.s32.totalorder %s103, %s105
      %p109 = scmp.eq.s32.totalorder %s17, 0
      %p110 = por %p108, %p109
      %p111 = scmp.ne.s32.totalorder %s103, %s105
      %p112 = scmp.eq.s32.totalorder %s22, 2
      %p113 = por %p111, %p112
      %p114 = scmp.ne.s32.totalorder %s105, %s106
      %p115 = scmp.eq.s32.totalorder %s22, 0
      %p116 = por %p114, %p115
      %p117 = scmp.ne.s32.totalorder %s105, %s106
      %p118 = scmp.eq.s32.totalorder %s23, 2
      %p119 = por %p117, %p118
      %p121 = scmp.ne.s32.totalorder %s106, %s120
      %p122 = scmp.eq.s32.totalorder %s23, 0
      %p123 = por %p121, %p122
      %s125 = sadd.s32 %s124, 1
      %p128 = scmp.eq.s32.totalorder %s17, 2
      %p129 = scmp.ne.s32.totalorder %s124, %s126
      %p130 = scmp.eq.s32.totalorder %s17, 0
      %p131 = por %p129, %p130
      %p132 = scmp.ne.s32.totalorder %s124, %s126
      %p133 = scmp.eq.s32.totalorder %s22, 2
      %p134 = por %p132, %p133
      %p135 = scmp.ne.s32.totalorder %s126, %s127
      %p136 = scmp.eq.s32.totalorder %s22, 0
      %p137 = por %p135, %p136
      %p138 = scmp.ne.s32.totalorder %s126, %s127
      %p139 = scmp.eq.s32.totalorder %s23, 2
      %p140 = por %p138, %p139
      %p142 = scmp.ne.s32.totalorder %s127, %s141
      %p143 = scmp.eq.s32.totalorder %s23, 0
      %p144 = por %p142, %p143
      %s146 = sadd.s32 %s145, 1
      %p149 = scmp.eq.s32.totalorder %s17, 2
      %p150 = scmp.ne.s32.totalorder %s145, %s147
      %p151 = scmp.eq.s32.totalorder %s17, 0
      %p152 = por %p150, %p151
      %p153 = scmp.ne.s32.totalorder %s145, %s147
      %p154 = scmp.eq.s32.totalorder %s22, 2
      %p155 = por %p153, %p154
      %p156 = scmp.ne.s32.totalorder %s147, %s148
      %p157 = scmp.eq.s32.totalorder %s22, 0
      %p158 = por %p156, %p157
      %p159 = scmp.ne.s32.totalorder %s147, %s148
      %p160 = scmp.eq.s32.totalorder %s23, 2
      %p161 = por %p159, %p160
      %p163 = scmp.ne.s32.totalorder %s148, %s162
      %p164 = scmp.eq.s32.totalorder %s23, 0
      %p165 = por %p163, %p164
      %s167 = sadd.s32 %s166, 1
      %p170 = scmp.eq.s32.totalorder %s17, 2
      %p171 = scmp.ne.s32.totalorder %s166, %s168
      %p172 = scmp.eq.s32.totalorder %s17, 0
      %p173 = por %p171, %p172
      %p174 = scmp.ne.s32.totalorder %s166, %s168
      %p175 = scmp.eq.s32.totalorder %s22, 2
      %p176 = por %p174, %p175
      %p177 = scmp.ne.s32.totalorder %s168, %s169
      %p178 = scmp.eq.s32.totalorder %s22, 0
      %p179 = por %p177, %p178
      %p180 = scmp.ne.s32.totalorder %s168, %s169
      %p181 = scmp.eq.s32.totalorder %s23, 2
      %p182 = por %p180, %p181
      %p184 = scmp.ne.s32.totalorder %s169, %s183
      %p185 = scmp.eq.s32.totalorder %s23, 0
      %p186 = por %p184, %p185
      %s188 = sadd.s32 %s187, 1
      %p191 = scmp.eq.s32.totalorder %s17, 2
      %p192 = scmp.ne.s32.totalorder %s187, %s189
      %p193 = scmp.eq.s32.totalorder %s17, 0
      %p194 = por %p192, %p193
      %p195 = scmp.ne.s32.totalorder %s187, %s189
      %p196 = scmp.eq.s32.totalorder %s22, 2
      %p197 = por %p195, %p196
      %p198 = scmp.ne.s32.totalorder %s189, %s190
      %p199 = scmp.eq.s32.totalorder %s22, 0
      %p200 = por %p198, %p199
      %p201 = scmp.ne.s32.totalorder %s189, %s190
      %p202 = scmp.eq.s32.totalorder %s23, 2
      %p203 = por %p201, %p202
      %p205 = scmp.ne.s32.totalorder %s190, %s204
      %p206 = scmp.eq.s32.totalorder %s23, 0
      %p207 = por %p205, %p206
      %s209 = sadd.s32 %s208, 1
      %p212 = scmp.eq.s32.totalorder %s17, 2
      %p213 = scmp.ne.s32.totalorder %s208, %s210
      %p214 = scmp.eq.s32.totalorder %s17, 0
      %p215 = por %p213, %p214
      %p216 = scmp.ne.s32.totalorder %s208, %s210
      %p217 = scmp.eq.s32.totalorder %s22, 2
      %p218 = por %p216, %p217
      %p219 = scmp.ne.s32.totalorder %s210, %s211
      %p220 = scmp.eq.s32.totalorder %s22, 0
      %p221 = por %p219, %p220
      %p222 = scmp.ne.s32.totalorder %s210, %s211
      %p223 = scmp.eq.s32.totalorder %s23, 2
      %p224 = por %p222, %p223
      %p226 = scmp.ne.s32.totalorder %s211, %s225
      %p227 = scmp.eq.s32.totalorder %s23, 0
      %p228 = por %p226, %p227
      %s230 = sadd.s32 %s229, 1
      %p233 = scmp.eq.s32.totalorder %s17, 2
      %p234 = scmp.ne.s32.totalorder %s229, %s231
      %p235 = scmp.eq.s32.totalorder %s17, 0
      %p236 = por %p234, %p235
      %p237 = scmp.ne.s32.totalorder %s229, %s231
      %p238 = scmp.eq.s32.totalorder %s22, 2
      %p239 = por %p237, %p238
      %p240 = scmp.ne.s32.totalorder %s231, %s232
      %p241 = scmp.eq.s32.totalorder %s22, 0
      %p242 = por %p240, %p241
      %p243 = scmp.ne.s32.totalorder %s231, %s232
      %p244 = scmp.eq.s32.totalorder %s23, 2
      %p245 = por %p243, %p244
      %p247 = scmp.ne.s32.totalorder %s232, %s246
      %p248 = scmp.eq.s32.totalorder %s23, 0
      %p249 = por %p247, %p248
      %s251 = sadd.s32 %s250, 1
      %p254 = scmp.eq.s32.totalorder %s17, 2
      %p255 = scmp.ne.s32.totalorder %s250, %s252
      %p256 = scmp.eq.s32.totalorder %s17, 0
      %p257 = por %p255, %p256
      %p258 = scmp.ne.s32.totalorder %s250, %s252
      %p259 = scmp.eq.s32.totalorder %s22, 2
      %p260 = por %p258, %p259
      %p261 = scmp.ne.s32.totalorder %s252, %s253
      %p262 = scmp.eq.s32.totalorder %s22, 0
      %p263 = por %p261, %p262
      %p264 = scmp.ne.s32.totalorder %s252, %s253
      %p265 = scmp.eq.s32.totalorder %s23, 2
      %p266 = por %p264, %p265
      %p268 = scmp.ne.s32.totalorder %s253, %s267
      %p269 = scmp.eq.s32.totalorder %s23, 0
      %p270 = por %p268, %p269
      %s271 = ssub.s32 %s17, %s24
      %p272 = scmp.eq.s32.totalorder %s271, 0
      %s274 = sadd.s32 %s273, 1
      %s275 = scalar_select %p272, %s273, %s274
      %p278 = pneg %p272
      %p279 = scmp.eq.s32.totalorder %s17, 2
      %p280 = por %p278, %p279
      %p281 = scmp.ne.s32.totalorder %s273, %s276
      %p282 = scmp.eq.s32.totalorder %s17, 0
      %p283 = por %p281, %p282
      %p284 = scmp.ne.s32.totalorder %s273, %s276
      %p285 = scmp.eq.s32.totalorder %s22, 2
      %p286 = por %p284, %p285
      %p287 = scmp.ne.s32.totalorder %s276, %s277
      %p288 = scmp.eq.s32.totalorder %s22, 0
      %p289 = por %p287, %p288
      %p290 = scmp.ne.s32.totalorder %s276, %s277
      %p291 = scmp.eq.s32.totalorder %s23, 2
      %p292 = por %p290, %p291
      %p294 = scmp.ne.s32.totalorder %s277, %s293
      %p295 = scmp.eq.s32.totalorder %s23, 0
      %p296 = por %p294, %p295
      %p297 = scmp.le.s32.totalorder 1, %s17
      %p298 = scmp.lt.s32.totalorder %s17, 4
      %p299 = pnand %p297, %p298
      %p300 = pneg %p299
      // Predicated region
      $region9: #{fno_multi_forward.15} parent=5 // pred_check
        _
      $region10: #{fno_multi_forward.15} parent=5 // pred_check_branch
        %302 = sbr.rel (%p299) target = $region12
      $region11: #{fno_multi_forward.15} parent=5 // pred_region
        %s303 = ssub.s32 %s17, 1
        // Predicated region
        $region13: #{fno_multi_forward.15} parent=11 // pred_check
          %p304 = pneg %p116
        $region14: #{fno_multi_forward.15} parent=11 // pred_check_branch
          %306 = sbr.rel (%p304) target = $region16
        $region15: #{fno_multi_forward.15} parent=11 // pred_region
          _
        $region16: #{fno_multi_forward.15} parent=11 // pred_fallthru
          _
        // Predicated region
        $region17: #{fno_multi_forward.15} parent=11 // pred_check
          %p307 = pneg %p137
        $region18: #{fno_multi_forward.15} parent=11 // pred_check_branch
          %309 = sbr.rel (%p307) target = $region20
        $region19: #{fno_multi_forward.15} parent=11 // pred_region
          _
        $region20: #{fno_multi_forward.15} parent=11 // pred_fallthru
          _
        // Predicated region
        $region21: #{fno_multi_forward.15} parent=11 // pred_check
          %p310 = pneg %p158
        $region22: #{fno_multi_forward.15} parent=11 // pred_check_branch
          %312 = sbr.rel (%p310) target = $region24
        $region23: #{fno_multi_forward.15} parent=11 // pred_region
          _
        $region24: #{fno_multi_forward.15} parent=11 // pred_fallthru
          _
        // Predicated region
        $region25: #{fno_multi_forward.15} parent=11 // pred_check
          %p313 = pneg %p179
        $region26: #{fno_multi_forward.15} parent=11 // pred_check_branch
          %315 = sbr.rel (%p313) target = $region28
        $region27: #{fno_multi_forward.15} parent=11 // pred_region
          _
        $region28: #{fno_multi_forward.15} parent=11 // pred_fallthru
          _
        // Predicated region
        $region29: #{fno_multi_forward.15} parent=11 // pred_check
          %p316 = pneg %p200
        $region30: #{fno_multi_forward.15} parent=11 // pred_check_branch
          %318 = sbr.rel (%p316) target = $region32
        $region31: #{fno_multi_forward.15} parent=11 // pred_region
          _
        $region32: #{fno_multi_forward.15} parent=11 // pred_fallthru
          _
        // Predicated region
        $region33: #{fno_multi_forward.15} parent=11 // pred_check
          %p319 = pneg %p221
        $region34: #{fno_multi_forward.15} parent=11 // pred_check_branch
          %321 = sbr.rel (%p319) target = $region36
        $region35: #{fno_multi_forward.15} parent=11 // pred_region
          _
        $region36: #{fno_multi_forward.15} parent=11 // pred_fallthru
          _
        // Predicated region
        $region37: #{fno_multi_forward.15} parent=11 // pred_check
          %p322 = pneg %p242
        $region38: #{fno_multi_forward.15} parent=11 // pred_check_branch
          %324 = sbr.rel (%p322) target = $region40
        $region39: #{fno_multi_forward.15} parent=11 // pred_region
          _
        $region40: #{fno_multi_forward.15} parent=11 // pred_fallthru
          _
        // Predicated region
        $region41: #{fno_multi_forward.15} parent=11 // pred_check
          %p325 = pneg %p263
        $region42: #{fno_multi_forward.15} parent=11 // pred_check_branch
          %327 = sbr.rel (%p325) target = $region44
        $region43: #{fno_multi_forward.15} parent=11 // pred_region
          _
        $region44: #{fno_multi_forward.15} parent=11 // pred_fallthru
          _
      $region12: #{fno_multi_forward.15} parent=5 // pred_fallthru
        _
      %p328 = scmp.lt.s32.totalorder %s17, 3
      // Predicated region
      $region45: #{fno_multi_forward.15} parent=5 // pred_check
        %p329 = pneg %p328
      $region46: #{fno_multi_forward.15} parent=5 // pred_check_branch
        %331 = sbr.rel (%p329) target = $region48
      $region47: #{fno_multi_forward.15} parent=5 // pred_region
        // Predicated region
        $region49: #{fno_multi_forward.15} parent=47 // pred_check
          %p332 = pneg %p37
        $region50: #{fno_multi_forward.15} parent=47 // pred_check_branch
          %334 = sbr.rel (%p332) target = $region52
        $region51: #{fno_multi_forward.15} parent=47 // pred_region
          %s335 = sand.u32 %s27, 1
          %s336 = sand.u32 %s27, 1
          %s337 = smul.addr %s336, 64
          %s338 = scalar_lea.vmem [#allocation2], %s337
          %s339 = smul.u32 4, %s17
          %s340 = smul.addr %s339, 8
          %s341 = scalar_lea.vmem %s0, %s340
          // Predicated region
          $region53: #{fno_multi_forward.15} parent=51 // pred_check
            _
          $region54: #{fno_multi_forward.15} parent=51 // pred_check_branch
            %343 = sbr.rel (0) target = $region56
          $region55: #{fno_multi_forward.15} parent=51 // pred_region
            // Predicated region
            $region57: #{fno_multi_forward.15} parent=55 // pred_check
              _
            $region58: #{fno_multi_forward.15} parent=55 // pred_check_branch
              %345 = sbr.rel (0) target = $region60
            $region59: #{fno_multi_forward.15} parent=55 // pred_region
              loop: start=0, step=1, limit=1
              $region61: #{fno_multi_forward.15} parent=59 // loop_pre_header
                _
              $region62: #{fno_multi_forward.15} parent=59 // loop_header
                %s347 = sphi 0, %s351
                %p348 = scmp.ge.s32.totalorder %s347, 1
                %s352 = sphi %s341, %s341
                %s353 = sphi %s338, %s338
              $region63: #{fno_multi_forward.15} parent=59 // loop_header_branch
                %350 = sbr.rel (%p348) target = $region67
              $region64: #{fno_multi_forward.15} parent=59 // loop_body
                %v354 = vld [vmem:[%s352] sm:$0xff]
                %355 = vst [vmem:[%s353] sm:$0xff] %v354
                %v356 = vld [vmem:[%s352 + $0x8] sm:$0xff]
                %357 = vst [vmem:[%s353 + $0x8] sm:$0xff] %v356
                %v358 = vld [vmem:[%s352 + $0x10] sm:$0xff]
                %359 = vst [vmem:[%s353 + $0x10] sm:$0xff] %v358
                %v360 = vld [vmem:[%s352 + $0x18] sm:$0xff]
                %361 = vst [vmem:[%s353 + $0x18] sm:$0xff] %v360
                %v362 = vld [vmem:[%s352 + $0x60] sm:$0xff]
                %363 = vst [vmem:[%s353 + $0x20] sm:$0xff] %v362
                %v364 = vld [vmem:[%s352 + $0x68] sm:$0xff]
                %365 = vst [vmem:[%s353 + $0x28] sm:$0xff] %v364
                %v366 = vld [vmem:[%s352 + $0x70] sm:$0xff]
                %367 = vst [vmem:[%s353 + $0x30] sm:$0xff] %v366
                %v368 = vld [vmem:[%s352 + $0x78] sm:$0xff]
                %369 = vst [vmem:[%s353 + $0x38] sm:$0xff] %v368
              $region65: #{fno_multi_forward.15} parent=59 // loop_footer
                %s351 = sadd.s32 1, %s347
              $region66: #{fno_multi_forward.15} parent=59 // loop_footer_branch
                %346 = sbr.rel target = $region62
              $region67: #{fno_multi_forward.15} parent=59 // loop_exit
                _
            $region60: #{fno_multi_forward.15} parent=55 // pred_fallthru
              _
            // Predicated region
            $region68: #{fno_multi_forward.15} parent=55 // pred_check
              _
            $region69: #{fno_multi_forward.15} parent=55 // pred_check_branch
              %371 = sbr.rel target = $region71
            $region70: #{fno_multi_forward.15} parent=55 // pred_region
              _
            $region71: #{fno_multi_forward.15} parent=55 // pred_fallthru
              _
          $region56: #{fno_multi_forward.15} parent=51 // pred_fallthru
            _
          %372 = vnop
        $region52: #{fno_multi_forward.15} parent=47 // pred_fallthru
          _
        // Predicated region
        $region72: #{fno_multi_forward.15} parent=47 // pred_check
          %p373 = pneg %p63
        $region73: #{fno_multi_forward.15} parent=47 // pred_check_branch
          %375 = sbr.rel (%p373) target = $region75
        $region74: #{fno_multi_forward.15} parent=47 // pred_region
          %s376 = sand.u32 %s53, 1
          %s377 = sand.u32 %s53, 1
          %s378 = smul.addr %s377, 64
          %s379 = scalar_lea.vmem [#allocation3], %s378
          %s380 = smul.u32 4, %s17
          %s381 = smul.addr %s380, 8
          %s382 = scalar_lea.vmem %s1, %s381
          // Predicated region
          $region76: #{fno_multi_forward.15} parent=74 // pred_check
            _
          $region77: #{fno_multi_forward.15} parent=74 // pred_check_branch
            %384 = sbr.rel (0) target = $region79
          $region78: #{fno_multi_forward.15} parent=74 // pred_region
            // Predicated region
            $region80: #{fno_multi_forward.15} parent=78 // pred_check
              _
            $region81: #{fno_multi_forward.15} parent=78 // pred_check_branch
              %386 = sbr.rel (0) target = $region83
            $region82: #{fno_multi_forward.15} parent=78 // pred_region
              loop: start=0, step=1, limit=1
              $region84: #{fno_multi_forward.15} parent=82 // loop_pre_header
                _
              $region85: #{fno_multi_forward.15} parent=82 // loop_header
                %s388 = sphi 0, %s392
                %p389 = scmp.ge.s32.totalorder %s388, 1
                %s393 = sphi %s382, %s382
                %s394 = sphi %s379, %s379
              $region86: #{fno_multi_forward.15} parent=82 // loop_header_branch
                %391 = sbr.rel (%p389) target = $region90
              $region87: #{fno_multi_forward.15} parent=82 // loop_body
                %v395 = vld [vmem:[%s393] sm:$0xff]
                %396 = vst [vmem:[%s394] sm:$0xff] %v395
                %v397 = vld [vmem:[%s393 + $0x8] sm:$0xff]
                %398 = vst [vmem:[%s394 + $0x8] sm:$0xff] %v397
                %v399 = vld [vmem:[%s393 + $0x10] sm:$0xff]
                %400 = vst [vmem:[%s394 + $0x10] sm:$0xff] %v399
                %v401 = vld [vmem:[%s393 + $0x18] sm:$0xff]
                %402 = vst [vmem:[%s394 + $0x18] sm:$0xff] %v401
                %v403 = vld [vmem:[%s393 + $0x60] sm:$0xff]
                %404 = vst [vmem:[%s394 + $0x20] sm:$0xff] %v403
                %v405 = vld [vmem:[%s393 + $0x68] sm:$0xff]
                %406 = vst [vmem:[%s394 + $0x28] sm:$0xff] %v405
                %v407 = vld [vmem:[%s393 + $0x70] sm:$0xff]
                %408 = vst [vmem:[%s394 + $0x30] sm:$0xff] %v407
                %v409 = vld [vmem:[%s393 + $0x78] sm:$0xff]
                %410 = vst [vmem:[%s394 + $0x38] sm:$0xff] %v409
              $region88: #{fno_multi_forward.15} parent=82 // loop_footer
                %s392 = sadd.s32 1, %s388
              $region89: #{fno_multi_forward.15} parent=82 // loop_footer_branch
                %387 = sbr.rel target = $region85
              $region90: #{fno_multi_forward.15} parent=82 // loop_exit
                _
            $region83: #{fno_multi_forward.15} parent=78 // pred_fallthru
              _
            // Predicated region
            $region91: #{fno_multi_forward.15} parent=78 // pred_check
              _
            $region92: #{fno_multi_forward.15} parent=78 // pred_check_branch
              %412 = sbr.rel target = $region94
            $region93: #{fno_multi_forward.15} parent=78 // pred_region
              _
            $region94: #{fno_multi_forward.15} parent=78 // pred_fallthru
              _
          $region79: #{fno_multi_forward.15} parent=74 // pred_fallthru
            _
          %413 = vnop
        $region75: #{fno_multi_forward.15} parent=47 // pred_fallthru
          _
        // Predicated region
        $region95: #{fno_multi_forward.15} parent=47 // pred_check
          %p414 = pneg %p89
        $region96: #{fno_multi_forward.15} parent=47 // pred_check_branch
          %416 = sbr.rel (%p414) target = $region98
        $region97: #{fno_multi_forward.15} parent=47 // pred_region
          %s417 = smul.u32 4, %s17
          %p418 = scmp.lt.s32.totalorder %s417, 11
          %s419 = scalar_select %p418, %s417, 11
          %s420 = smul.addr %s419, 2
          %s421 = scalar_lea.vmem %s2, %s420
          %s422 = smul.u32 4, %s17
        $region98: #{fno_multi_forward.15} parent=47 // pred_fallthru
          _
      $region48: #{fno_multi_forward.15} parent=5 // pred_fallthru
        _
      %p423 = scmp.le.s32.totalorder 1, %s17
      %p424 = scmp.lt.s32.totalorder %s17, 4
      %p425 = pnand %p423, %p424
      %p426 = pneg %p425
      // Predicated region
      $region99: #{fno_multi_forward.15} parent=5 // pred_check
        _
      $region100: #{fno_multi_forward.15} parent=5 // pred_check_branch
        %428 = sbr.rel (%p425) target = $region102
      $region101: #{fno_multi_forward.15} parent=5 // pred_region
        %s429 = ssub.s32 %s17, 1
        %s430 = sand.u32 %s30, 1
        %s431 = sand.u32 %s30, 1
        %s432 = smul.addr %s431, 64
        %s433 = scalar_lea.vmem [#allocation2], %s432
        // Predicated region
        $region103: #{fno_multi_forward.15} parent=101 // pred_check
          %p434 = pneg %p43
        $region104: #{fno_multi_forward.15} parent=101 // pred_check_branch
          %436 = sbr.rel (%p434) target = $region106
        $region105: #{fno_multi_forward.15} parent=101 // pred_region
          _
        $region106: #{fno_multi_forward.15} parent=101 // pred_fallthru
          _
        %s437 = sand.u32 %s56, 1
        %s438 = sand.u32 %s56, 1
        %s439 = smul.addr %s438, 64
        %s440 = scalar_lea.vmem [#allocation3], %s439
        // Predicated region
        $region107: #{fno_multi_forward.15} parent=101 // pred_check
          %p441 = pneg %p69
        $region108: #{fno_multi_forward.15} parent=101 // pred_check_branch
          %443 = sbr.rel (%p441) target = $region110
        $region109: #{fno_multi_forward.15} parent=101 // pred_region
          _
        $region110: #{fno_multi_forward.15} parent=101 // pred_fallthru
          _
        %s444 = sand.u32 %s30, 1
        %s445 = sand.u32 %s30, 1
        %s446 = smul.addr %s445, 64
        %s447 = scalar_lea.vmem [#allocation2], %s446
        %p448 = pneg %p43
        %p449 = pneg %p40
        %s450 = sand.u32 %s56, 1
        %s451 = sand.u32 %s56, 1
        %s452 = smul.addr %s451, 64
        %s453 = scalar_lea.vmem [#allocation3], %s452
        %p454 = pneg %p69
        %p455 = pneg %p66
        %s456 = smul.u32 4, %s22
        %p457 = scmp.lt.s32.totalorder %s456, 11
        %s458 = scalar_select %p457, %s456, 11
        %s459 = smul.addr %s458, 2
        %s460 = scalar_lea.vmem %s2, %s459
        %p461 = pneg %p95
        %p462 = pneg %p92
        %p463 = pneg %p116
        %p464 = pneg %p113
        %p465 = pneg %p137
        %p466 = pneg %p134
        %p467 = pneg %p158
        %p468 = pneg %p155
        %p469 = pneg %p179
        %p470 = pneg %p176
        %p471 = pneg %p200
        %p472 = pneg %p197
        %p473 = pneg %p221
        %p474 = pneg %p218
        %p475 = pneg %p242
        %p476 = pneg %p239
        %p477 = pneg %p263
        %p478 = pneg %p260
        %p479 = pneg %p289
        %p480 = pneg %p286
        %s481 = sand.u32 %s276, 1
        %s482 = sand.u32 %s276, 1
        %s483 = smul.addr %s482, 64
        %s484 = scalar_lea.vmem [#allocation4], %s483
        %s485 = smul.u32 4, %s22
        %s486 = smul.u32 4, %s22
        %s487 = smul.u32 4, %s22
        %p488 = scmp.lt.s32.totalorder %s487, 11
        %s489 = scalar_select %p488, %s487, 11
        %s490 = smul.addr %s489, 2
        %s491 = scalar_lea.vmem %s2, %s490
        %s492 = smul.u32 4, %s22
        %s493 = smul.u32 4, %s22
        %v494 = vld [vmem:[%s3] sm:$0xff]
        %v495 = vld [vmem:[%s3 + $0x8] sm:$0xff]
        %v496 = vld [vmem:[%s433] sm:$0xff]
        %v497 = vld [vmem:[%s433 + $0x8] sm:$0xff]
        %v498 = vld [vmem:[%s433 + $0x10] sm:$0xff]
        %v499 = vld [vmem:[%s433 + $0x18] sm:$0xff]
        %v500 = vld [vmem:[%s433 + $0x20] sm:$0xff]
        %v501 = vld [vmem:[%s433 + $0x28] sm:$0xff]
        %v502 = vld [vmem:[%s433 + $0x30] sm:$0xff]
        %v503 = vld [vmem:[%s433 + $0x38] sm:$0xff]
        %v504 = vld [vmem:[%s4] sm:$0xff]
        %v505 = vld [vmem:[%s4 + $0x8] sm:$0xff]
        %507 = vset.pattern.permute.xlu0 0
        %508 = vperm.xlu0 %507, %v504
        %v509 = vpop.permute.xlu0 %508
        %512 = vset.pattern.permute.xlu0 0
        %513 = vperm.xlu0 %512, %v505
        %v514 = vpop.permute.xlu0 %513
        %vm516 = vcmask 130048
        %v518 = vsel %vm516, %v494, 0
        %v521 = vsel %vm516, %v495, 0
        %523 = vmatprep.subr.mxu0 %v497
        %524 = vmatpush1.msra.mxu0 %v496
        %525 = vmatprep.subr.mxu0 %v501
        %526 = vmatpush1.msra.mxu0 %v500
        %527 = vmatprep.subr.mxu0 0.0
        %528 = vmatpush1.msra.mxu0 0.0
        %529 = vmatprep.subr.mxu0 0.0
        %530 = vmatpush1.msra.mxu0 0.0
        %531 = vmatprep.subr.mxu0 0.0
        %532 = vmatpush1.msra.mxu0 0.0
        %533 = vmatprep.subr.mxu0 0.0
        %534 = vmatpush1.msra.mxu0 0.0
        %535 = vmatprep.subr.mxu0 0.0
        %536 = vmatpush1.msra.mxu0 0.0
        %537 = vmatprep.subr.mxu0 0.0
        %538 = vmatpush1.msra.mxu0 0.0
        %539 = vmatprep.subr.mxu0 0.0
        %540 = vmatpush1.msra.mxu0 0.0
        %541 = vmatprep.subr.mxu0 0.0
        %542 = vmatpush1.msra.mxu0 0.0
        %543 = vmatprep.subr.mxu0 0.0
        %544 = vmatpush1.msra.mxu0 0.0
        %545 = vmatprep.subr.mxu0 0.0
        %546 = vmatpush1.msra.mxu0 0.0
        %547 = vmatprep.subr.mxu0 0.0
        %548 = vmatpush1.msra.mxu0 0.0
        %549 = vmatprep.subr.mxu0 0.0
        %550 = vmatpush1.msra.mxu0 0.0
        %551 = vmatprep.subr.mxu0 0.0
        %552 = vmatpush1.msra.mxu0 0.0
        %553 = vmatprep.subr.mxu0 0.0
        %554 = vmatpush1.msra.mxu0 0.0
        %555 = vmatprep.subr.mxu0 0.0
        %556 = vmatpush1.msra.mxu0 0.0
        %557 = vmatprep.subr.mxu0 0.0
        %558 = vmatpush1.msra.mxu0 0.0
        %559 = vmatprep.subr.mxu0 0.0
        %560 = vmatpush1.msra.mxu0 0.0
        %561 = vmatprep.subr.mxu0 0.0
        %562 = vmatpush1.msra.mxu0 0.0
        %563 = vmatprep.subr.mxu0 0.0
        %564 = vmatpush1.msra.mxu0 0.0
        %565 = vmatprep.subr.mxu0 0.0
        %566 = vmatpush1.msra.mxu0 0.0
        %567 = vmatprep.subr.mxu0 0.0
        %568 = vmatpush1.msra.mxu0 0.0
        %569 = vmatprep.subr.mxu0 0.0
        %570 = vmatpush1.msra.mxu0 0.0
        %571 = vmatprep.subr.mxu0 0.0
        %572 = vmatpush1.msra.mxu0 0.0
        %573 = vmatprep.subr.mxu0 0.0
        %574 = vmatpush1.msra.mxu0 0.0
        %575 = vmatprep.subr.mxu0 0.0
        %576 = vmatpush1.msra.mxu0 0.0
        %577 = vmatprep.subr.mxu0 0.0
        %578 = vmatpush1.msra.mxu0 0.0
        %579 = vmatprep.subr.mxu0 0.0
        %580 = vmatpush1.msra.mxu0 0.0
        %581 = vmatprep.subr.mxu0 0.0
        %582 = vmatpush1.msra.mxu0 0.0
        %583 = vmatprep.subr.mxu0 0.0
        %584 = vmatpush1.msra.mxu0 0.0
        %585 = vmatprep.subr.mxu0 0.0
        %586 = vmatpush1.msra.mxu0 0.0
        %587 = vmatprep.mubr.f32.mxu0 0.0
        %588 = vmatmul.mubr.f32.gmra.mrb[0].mxu0 %v518
        %v589 = vpop.f32.mrb[0].mxu0
        %v590 = vadd.f32 %v509, %v589
        %v591 = vpop.f32.mrb[0].mxu0
        %v592 = vadd.f32 %v509, %v591
        %593 = vmatprep.mubr.f32.mxu0 0.0
        %594 = vmatmul.mubr.f32.gmra.mrb[0].mxu0 %v521
        %v595 = vpop.f32.mrb[0].mxu0
        %v596 = vadd.f32 %v514, %v595
        %v597 = vpop.f32.mrb[0].mxu0
        %v598 = vadd.f32 %v514, %v597
        %599 = vdwg.mxu0
        %600 = vmatprep.subr.mxu0 %v499
        %601 = vmatpush1.msra.mxu0 %v498
        %602 = vmatprep.subr.mxu0 %v503
        %603 = vmatpush1.msra.mxu0 %v502
        %604 = vmatprep.subr.mxu0 0.0
        %605 = vmatpush1.msra.mxu0 0.0
        %606 = vmatprep.subr.mxu0 0.0
        %607 = vmatpush1.msra.mxu0 0.0
        %608 = vmatprep.subr.mxu0 0.0
        %609 = vmatpush1.msra.mxu0 0.0
        %610 = vmatprep.subr.mxu0 0.0
        %611 = vmatpush1.msra.mxu0 0.0
        %612 = vmatprep.subr.mxu0 0.0
        %613 = vmatpush1.msra.mxu0 0.0
        %614 = vmatprep.subr.mxu0 0.0
        %615 = vmatpush1.msra.mxu0 0.0
        %616 = vmatprep.subr.mxu0 0.0
        %617 = vmatpush1.msra.mxu0 0.0
        %618 = vmatprep.subr.mxu0 0.0
        %619 = vmatpush1.msra.mxu0 0.0
        %620 = vmatprep.subr.mxu0 0.0
        %621 = vmatpush1.msra.mxu0 0.0
        %622 = vmatprep.subr.mxu0 0.0
        %623 = vmatpush1.msra.mxu0 0.0
        %624 = vmatprep.subr.mxu0 0.0
        %625 = vmatpush1.msra.mxu0 0.0
        %626 = vmatprep.subr.mxu0 0.0
        %627 = vmatpush1.msra.mxu0 0.0
        %628 = vmatprep.subr.mxu0 0.0
        %629 = vmatpush1.msra.mxu0 0.0
        %630 = vmatprep.subr.mxu0 0.0
        %631 = vmatpush1.msra.mxu0 0.0
        %632 = vmatprep.subr.mxu0 0.0
        %633 = vmatpush1.msra.mxu0 0.0
        %634 = vmatprep.subr.mxu0 0.0
        %635 = vmatpush1.msra.mxu0 0.0
        %636 = vmatprep.subr.mxu0 0.0
        %637 = vmatpush1.msra.mxu0 0.0
        %638 = vmatprep.subr.mxu0 0.0
        %639 = vmatpush1.msra.mxu0 0.0
        %640 = vmatprep.subr.mxu0 0.0
        %641 = vmatpush1.msra.mxu0 0.0
        %642 = vmatprep.subr.mxu0 0.0
        %643 = vmatpush1.msra.mxu0 0.0
        %644 = vmatprep.subr.mxu0 0.0
        %645 = vmatpush1.msra.mxu0 0.0
        %646 = vmatprep.subr.mxu0 0.0
        %647 = vmatpush1.msra.mxu0 0.0
        %648 = vmatprep.subr.mxu0 0.0
        %649 = vmatpush1.msra.mxu0 0.0
        %650 = vmatprep.subr.mxu0 0.0
        %651 = vmatpush1.msra.mxu0 0.0
        %652 = vmatprep.subr.mxu0 0.0
        %653 = vmatpush1.msra.mxu0 0.0
        %654 = vmatprep.subr.mxu0 0.0
        %655 = vmatpush1.msra.mxu0 0.0
        %656 = vmatprep.subr.mxu0 0.0
        %657 = vmatpush1.msra.mxu0 0.0
        %658 = vmatprep.subr.mxu0 0.0
        %659 = vmatpush1.msra.mxu0 0.0
        %660 = vmatprep.subr.mxu0 0.0
        %661 = vmatpush1.msra.mxu0 0.0
        %662 = vmatprep.subr.mxu0 0.0
        %663 = vmatpush1.msra.mxu0 0.0
        %664 = vmatprep.mubr.f32.mxu0 0.0
        %665 = vmatmul.mubr.f32.gmra.mrb[0].mxu0 %v518
        %v666 = vpop.f32.mrb[0].mxu0
        %v667 = vadd.f32 %v509, %v666
        %v668 = vpop.f32.mrb[0].mxu0
        %v669 = vadd.f32 %v509, %v668
        %670 = vmatprep.mubr.f32.mxu0 0.0
        %671 = vmatmul.mubr.f32.gmra.mrb[0].mxu0 %v521
        %v672 = vpop.f32.mrb[0].mxu0
        %v673 = vadd.f32 %v514, %v672
        %v674 = vpop.f32.mrb[0].mxu0
        %v675 = vadd.f32 %v514, %v674
        %676 = vdwg.mxu0
        %v677 = vmul.f32 %v590, 0.5
        %v678 = vmul.f32 %v592, 0.5
        %v679 = vmul.f32 %v667, 0.5
        %v680 = vmul.f32 %v669, 0.5
        %v681 = vmul.f32 %v596, 0.5
        %v682 = vmul.f32 %v598, 0.5
        %v683 = vmul.f32 %v673, 0.5
        %v684 = vmul.f32 %v675, 0.5
        %v685 = vmul.f32 %v590, 0.70710677
        %v686 = vmul.f32 %v592, 0.70710677
        %v687 = vmul.f32 %v667, 0.70710677
        %v688 = vmul.f32 %v669, 0.70710677
        %v689 = vmul.f32 %v596, 0.70710677
        %v690 = vmul.f32 %v598, 0.70710677
        %v691 = vmul.f32 %v673, 0.70710677
        %v692 = vmul.f32 %v675, 0.70710677
        %v693 = verf.f32.pop %v685
        %v694 = verf.f32.pop %v686
        %v695 = verf.f32.pop %v687
        %v696 = verf.f32.pop %v688
        %v697 = verf.f32.pop %v689
        %v698 = verf.f32.pop %v690
        %v699 = verf.f32.pop %v691
        %v700 = verf.f32.pop %v692
        %v701 = vadd.f32 %v693, 1.0
        %v702 = vadd.f32 %v694, 1.0
        %v703 = vadd.f32 %v695, 1.0
        %v704 = vadd.f32 %v696, 1.0
        %v705 = vadd.f32 %v697, 1.0
        %v706 = vadd.f32 %v698, 1.0
        %v707 = vadd.f32 %v699, 1.0
        %v708 = vadd.f32 %v700, 1.0
        %v709 = vmul.f32 %v677, %v701
        %v710 = vmul.f32 %v678, %v702
        %v711 = vmul.f32 %v679, %v703
        %v712 = vmul.f32 %v680, %v704
        %v713 = vmul.f32 %v681, %v705
        %v714 = vmul.f32 %v682, %v706
        %v715 = vmul.f32 %v683, %v707
        %v716 = vmul.f32 %v684, %v708
        %v717 = vld [vmem:[%s5] sm:$0xff]
        %v718 = vld [vmem:[%s5 + $0x8] sm:$0xff]
        %v719 = vld [vmem:[%s6] sm:$0xff]
        %v720 = vld [vmem:[%s6 + $0x8] sm:$0xff]
        %722 = vset.pattern.permute.xlu0 0
        %723 = vperm.xlu0 %722, %v719
        %v724 = vpop.permute.xlu0 %723
        %727 = vset.pattern.permute.xlu0 0
        %728 = vperm.xlu0 %727, %v720
        %v729 = vpop.permute.xlu0 %728
        %v732 = vsel %vm516, %v717, 0
        %v735 = vsel %vm516, %v718, 0
        %737 = vmatprep.subr.mxu0 %v710
        %738 = vmatpush1.msra.mxu0 %v709
        %739 = vmatprep.subr.mxu0 %v714
        %740 = vmatpush1.msra.mxu0 %v713
        %741 = vmatprep.subr.mxu0 0.0
        %742 = vmatpush1.msra.mxu0 0.0
        %743 = vmatprep.subr.mxu0 0.0
        %744 = vmatpush1.msra.mxu0 0.0
        %745 = vmatprep.subr.mxu0 0.0
        %746 = vmatpush1.msra.mxu0 0.0
        %747 = vmatprep.subr.mxu0 0.0
        %748 = vmatpush1.msra.mxu0 0.0
        %749 = vmatprep.subr.mxu0 0.0
        %750 = vmatpush1.msra.mxu0 0.0
        %751 = vmatprep.subr.mxu0 0.0
        %752 = vmatpush1.msra.mxu0 0.0
        %753 = vmatprep.subr.mxu0 0.0
        %754 = vmatpush1.msra.mxu0 0.0
        %755 = vmatprep.subr.mxu0 0.0
        %756 = vmatpush1.msra.mxu0 0.0
        %757 = vmatprep.subr.mxu0 0.0
        %758 = vmatpush1.msra.mxu0 0.0
        %759 = vmatprep.subr.mxu0 0.0
        %760 = vmatpush1.msra.mxu0 0.0
        %761 = vmatprep.subr.mxu0 0.0
        %762 = vmatpush1.msra.mxu0 0.0
        %763 = vmatprep.subr.mxu0 0.0
        %764 = vmatpush1.msra.mxu0 0.0
        %765 = vmatprep.subr.mxu0 0.0
        %766 = vmatpush1.msra.mxu0 0.0
        %767 = vmatprep.subr.mxu0 0.0
        %768 = vmatpush1.msra.mxu0 0.0
        %769 = vmatprep.subr.mxu0 0.0
        %770 = vmatpush1.msra.mxu0 0.0
        %771 = vmatprep.subr.mxu0 0.0
        %772 = vmatpush1.msra.mxu0 0.0
        %773 = vmatprep.subr.mxu0 0.0
        %774 = vmatpush1.msra.mxu0 0.0
        %775 = vmatprep.subr.mxu0 0.0
        %776 = vmatpush1.msra.mxu0 0.0
        %777 = vmatprep.subr.mxu0 0.0
        %778 = vmatpush1.msra.mxu0 0.0
        %779 = vmatprep.subr.mxu0 0.0
        %780 = vmatpush1.msra.mxu0 0.0
        %781 = vmatprep.subr.mxu0 0.0
        %782 = vmatpush1.msra.mxu0 0.0
        %783 = vmatprep.subr.mxu0 0.0
        %784 = vmatpush1.msra.mxu0 0.0
        %785 = vmatprep.subr.mxu0 0.0
        %786 = vmatpush1.msra.mxu0 0.0
        %787 = vmatprep.subr.mxu0 0.0
        %788 = vmatpush1.msra.mxu0 0.0
        %789 = vmatprep.subr.mxu0 0.0
        %790 = vmatpush1.msra.mxu0 0.0
        %791 = vmatprep.subr.mxu0 0.0
        %792 = vmatpush1.msra.mxu0 0.0
        %793 = vmatprep.subr.mxu0 0.0
        %794 = vmatpush1.msra.mxu0 0.0
        %795 = vmatprep.subr.mxu0 0.0
        %796 = vmatpush1.msra.mxu0 0.0
        %797 = vmatprep.subr.mxu0 0.0
        %798 = vmatpush1.msra.mxu0 0.0
        %799 = vmatprep.subr.mxu0 0.0
        %800 = vmatpush1.msra.mxu0 0.0
        %801 = vmatprep.mubr.f32.mxu0 0.0
        %802 = vmatmul.mubr.f32.gmra.mrb[0].mxu0 %v732
        %v803 = vpop.f32.mrb[0].mxu0
        %v804 = vadd.f32 %v724, %v803
        %v805 = vpop.f32.mrb[0].mxu0
        %v806 = vadd.f32 %v724, %v805
        %807 = vmatprep.mubr.f32.mxu0 0.0
        %808 = vmatmul.mubr.f32.gmra.mrb[0].mxu0 %v735
        %v809 = vpop.f32.mrb[0].mxu0
        %v810 = vadd.f32 %v729, %v809
        %v811 = vpop.f32.mrb[0].mxu0
        %v812 = vadd.f32 %v729, %v811
        %813 = vdwg.mxu0
        %814 = vmatprep.subr.mxu0 %v712
        %815 = vmatpush1.msra.mxu0 %v711
        %816 = vmatprep.subr.mxu0 %v716
        %817 = vmatpush1.msra.mxu0 %v715
        %818 = vmatprep.subr.mxu0 0.0
        %819 = vmatpush1.msra.mxu0 0.0
        %820 = vmatprep.subr.mxu0 0.0
        %821 = vmatpush1.msra.mxu0 0.0
        %822 = vmatprep.subr.mxu0 0.0
        %823 = vmatpush1.msra.mxu0 0.0
        %824 = vmatprep.subr.mxu0 0.0
        %825 = vmatpush1.msra.mxu0 0.0
        %826 = vmatprep.subr.mxu0 0.0
        %827 = vmatpush1.msra.mxu0 0.0
        %828 = vmatprep.subr.mxu0 0.0
        %829 = vmatpush1.msra.mxu0 0.0
        %830 = vmatprep.subr.mxu0 0.0
        %831 = vmatpush1.msra.mxu0 0.0
        %832 = vmatprep.subr.mxu0 0.0
        %833 = vmatpush1.msra.mxu0 0.0
        %834 = vmatprep.subr.mxu0 0.0
        %835 = vmatpush1.msra.mxu0 0.0
        %836 = vmatprep.subr.mxu0 0.0
        %837 = vmatpush1.msra.mxu0 0.0
        %838 = vmatprep.subr.mxu0 0.0
        %839 = vmatpush1.msra.mxu0 0.0
        %840 = vmatprep.subr.mxu0 0.0
        %841 = vmatpush1.msra.mxu0 0.0
        %842 = vmatprep.subr.mxu0 0.0
        %843 = vmatpush1.msra.mxu0 0.0
        %844 = vmatprep.subr.mxu0 0.0
        %845 = vmatpush1.msra.mxu0 0.0
        %846 = vmatprep.subr.mxu0 0.0
        %847 = vmatpush1.msra.mxu0 0.0
        %848 = vmatprep.subr.mxu0 0.0
        %849 = vmatpush1.msra.mxu0 0.0
        %850 = vmatprep.subr.mxu0 0.0
        %851 = vmatpush1.msra.mxu0 0.0
        %852 = vmatprep.subr.mxu0 0.0
        %853 = vmatpush1.msra.mxu0 0.0
        %854 = vmatprep.subr.mxu0 0.0
        %855 = vmatpush1.msra.mxu0 0.0
        %856 = vmatprep.subr.mxu0 0.0
        %857 = vmatpush1.msra.mxu0 0.0
        %858 = vmatprep.subr.mxu0 0.0
        %859 = vmatpush1.msra.mxu0 0.0
        %860 = vmatprep.subr.mxu0 0.0
        %861 = vmatpush1.msra.mxu0 0.0
        %862 = vmatprep.subr.mxu0 0.0
        %863 = vmatpush1.msra.mxu0 0.0
        %864 = vmatprep.subr.mxu0 0.0
        %865 = vmatpush1.msra.mxu0 0.0
        %866 = vmatprep.subr.mxu0 0.0
        %867 = vmatpush1.msra.mxu0 0.0
        %868 = vmatprep.subr.mxu0 0.0
        %869 = vmatpush1.msra.mxu0 0.0
        %870 = vmatprep.subr.mxu0 0.0
        %871 = vmatpush1.msra.mxu0 0.0
        %872 = vmatprep.subr.mxu0 0.0
        %873 = vmatpush1.msra.mxu0 0.0
        %874 = vmatprep.subr.mxu0 0.0
        %875 = vmatpush1.msra.mxu0 0.0
        %876 = vmatprep.subr.mxu0 0.0
        %877 = vmatpush1.msra.mxu0 0.0
        %878 = vmatprep.mubr.f32.mxu0 0.0
        %879 = vmatmul.mubr.f32.gmra.mrb[0].mxu0 %v732
        %v880 = vpop.f32.mrb[0].mxu0
        %v881 = vadd.f32 %v724, %v880
        %v882 = vpop.f32.mrb[0].mxu0
        %v883 = vadd.f32 %v724, %v882
        %884 = vmatprep.mubr.f32.mxu0 0.0
        %885 = vmatmul.mubr.f32.gmra.mrb[0].mxu0 %v735
        %v886 = vpop.f32.mrb[0].mxu0
        %v887 = vadd.f32 %v729, %v886
        %v888 = vpop.f32.mrb[0].mxu0
        %v889 = vadd.f32 %v729, %v888
        %890 = vdwg.mxu0
        %v891 = vld [vmem:[%s7] sm:$0xff]
        %v892 = vld [vmem:[%s7 + $0x8] sm:$0xff]
        %v893 = vld [vmem:[%s440] sm:$0xff]
        %v894 = vld [vmem:[%s440 + $0x8] sm:$0xff]
        %v895 = vld [vmem:[%s440 + $0x10] sm:$0xff]
        %v896 = vld [vmem:[%s440 + $0x18] sm:$0xff]
        %v897 = vld [vmem:[%s440 + $0x20] sm:$0xff]
        %v898 = vld [vmem:[%s440 + $0x28] sm:$0xff]
        %v899 = vld [vmem:[%s440 + $0x30] sm:$0xff]
        %v900 = vld [vmem:[%s440 + $0x38] sm:$0xff]
        %v902 = vsel %vm516, %v891, 0
        %v905 = vsel %vm516, %v892, 0
        %907 = vmatprep.subr.mxu0 %v894
        %908 = vmatpush1.msra.mxu0 %v893
        %909 = vmatprep.subr.mxu0 %v898
        %910 = vmatpush1.msra.mxu0 %v897
        %911 = vmatprep.subr.mxu0 0.0
        %912 = vmatpush1.msra.mxu0 0.0
        %913 = vmatprep.subr.mxu0 0.0
        %914 = vmatpush1.msra.mxu0 0.0
        %915 = vmatprep.subr.mxu0 0.0
        %916 = vmatpush1.msra.mxu0 0.0
        %917 = vmatprep.subr.mxu0 0.0
        %918 = vmatpush1.msra.mxu0 0.0
        %919 = vmatprep.subr.mxu0 0.0
        %920 = vmatpush1.msra.mxu0 0.0
        %921 = vmatprep.subr.mxu0 0.0
        %922 = vmatpush1.msra.mxu0 0.0
        %923 = vmatprep.subr.mxu0 0.0
        %924 = vmatpush1.msra.mxu0 0.0
        %925 = vmatprep.subr.mxu0 0.0
        %926 = vmatpush1.msra.mxu0 0.0
        %927 = vmatprep.subr.mxu0 0.0
        %928 = vmatpush1.msra.mxu0 0.0
        %929 = vmatprep.subr.mxu0 0.0
        %930 = vmatpush1.msra.mxu0 0.0
        %931 = vmatprep.subr.mxu0 0.0
        %932 = vmatpush1.msra.mxu0 0.0
        %933 = vmatprep.subr.mxu0 0.0
        %934 = vmatpush1.msra.mxu0 0.0
        %935 = vmatprep.subr.mxu0 0.0
        %936 = vmatpush1.msra.mxu0 0.0
        %937 = vmatprep.subr.mxu0 0.0
        %938 = vmatpush1.msra.mxu0 0.0
        %939 = vmatprep.subr.mxu0 0.0
        %940 = vmatpush1.msra.mxu0 0.0
        %941 = vmatprep.subr.mxu0 0.0
        %942 = vmatpush1.msra.mxu0 0.0
        %943 = vmatprep.subr.mxu0 0.0
        %944 = vmatpush1.msra.mxu0 0.0
        %945 = vmatprep.subr.mxu0 0.0
        %946 = vmatpush1.msra.mxu0 0.0
        %947 = vmatprep.subr.mxu0 0.0
        %948 = vmatpush1.msra.mxu0 0.0
        %949 = vmatprep.subr.mxu0 0.0
        %950 = vmatpush1.msra.mxu0 0.0
        %951 = vmatprep.subr.mxu0 0.0
        %952 = vmatpush1.msra.mxu0 0.0
        %953 = vmatprep.subr.mxu0 0.0
        %954 = vmatpush1.msra.mxu0 0.0
        %955 = vmatprep.subr.mxu0 0.0
        %956 = vmatpush1.msra.mxu0 0.0
        %957 = vmatprep.subr.mxu0 0.0
        %958 = vmatpush1.msra.mxu0 0.0
        %959 = vmatprep.subr.mxu0 0.0
        %960 = vmatpush1.msra.mxu0 0.0
        %961 = vmatprep.subr.mxu0 0.0
        %962 = vmatpush1.msra.mxu0 0.0
        %963 = vmatprep.subr.mxu0 0.0
        %964 = vmatpush1.msra.mxu0 0.0
        %965 = vmatprep.subr.mxu0 0.0
        %966 = vmatpush1.msra.mxu0 0.0
        %967 = vmatprep.subr.mxu0 0.0
        %968 = vmatpush1.msra.mxu0 0.0
        %969 = vmatprep.subr.mxu0 0.0
        %970 = vmatpush1.msra.mxu0 0.0
        %971 = vmatprep.mubr.f32.mxu0 0.0
        %972 = vmatmul.mubr.f32.gmra.mrb[0].mxu0 %v902
        %v973 = vpop.f32.mrb[0].mxu0
        %v974 = vadd.f32 0.0, %v973
        %v975 = vpop.f32.mrb[0].mxu0
        %v976 = vadd.f32 0.0, %v975
        %977 = vmatprep.mubr.f32.mxu0 0.0
        %978 = vmatmul.mubr.f32.gmra.mrb[0].mxu0 %v905
        %v979 = vpop.f32.mrb[0].mxu0
        %v980 = vadd.f32 0.0, %v979
        %v981 = vpop.f32.mrb[0].mxu0
        %v982 = vadd.f32 0.0, %v981
        %983 = vdwg.mxu0
        %984 = vmatprep.subr.mxu0 %v896
        %985 = vmatpush1.msra.mxu0 %v895
        %986 = vmatprep.subr.mxu0 %v900
        %987 = vmatpush1.msra.mxu0 %v899
        %988 = vmatprep.subr.mxu0 0.0
        %989 = vmatpush1.msra.mxu0 0.0
        %990 = vmatprep.subr.mxu0 0.0
        %991 = vmatpush1.msra.mxu0 0.0
        %992 = vmatprep.subr.mxu0 0.0
        %993 = vmatpush1.msra.mxu0 0.0
        %994 = vmatprep.subr.mxu0 0.0
        %995 = vmatpush1.msra.mxu0 0.0
        %996 = vmatprep.subr.mxu0 0.0
        %997 = vmatpush1.msra.mxu0 0.0
        %998 = vmatprep.subr.mxu0 0.0
        %999 = vmatpush1.msra.mxu0 0.0
        %1000 = vmatprep.subr.mxu0 0.0
        %1001 = vmatpush1.msra.mxu0 0.0
        %1002 = vmatprep.subr.mxu0 0.0
        %1003 = vmatpush1.msra.mxu0 0.0
        %1004 = vmatprep.subr.mxu0 0.0
        %1005 = vmatpush1.msra.mxu0 0.0
        %1006 = vmatprep.subr.mxu0 0.0
        %1007 = vmatpush1.msra.mxu0 0.0
        %1008 = vmatprep.subr.mxu0 0.0
        %1009 = vmatpush1.msra.mxu0 0.0
        %1010 = vmatprep.subr.mxu0 0.0
        %1011 = vmatpush1.msra.mxu0 0.0
        %1012 = vmatprep.subr.mxu0 0.0
        %1013 = vmatpush1.msra.mxu0 0.0
        %1014 = vmatprep.subr.mxu0 0.0
        %1015 = vmatpush1.msra.mxu0 0.0
        %1016 = vmatprep.subr.mxu0 0.0
        %1017 = vmatpush1.msra.mxu0 0.0
        %1018 = vmatprep.subr.mxu0 0.0
        %1019 = vmatpush1.msra.mxu0 0.0
        %1020 = vmatprep.subr.mxu0 0.0
        %1021 = vmatpush1.msra.mxu0 0.0
        %1022 = vmatprep.subr.mxu0 0.0
        %1023 = vmatpush1.msra.mxu0 0.0
        %1024 = vmatprep.subr.mxu0 0.0
        %1025 = vmatpush1.msra.mxu0 0.0
        %1026 = vmatprep.subr.mxu0 0.0
        %1027 = vmatpush1.msra.mxu0 0.0
        %1028 = vmatprep.subr.mxu0 0.0
        %1029 = vmatpush1.msra.mxu0 0.0
        %1030 = vmatprep.subr.mxu0 0.0
        %1031 = vmatpush1.msra.mxu0 0.0
        %1032 = vmatprep.subr.mxu0 0.0
        %1033 = vmatpush1.msra.mxu0 0.0
        %1034 = vmatprep.subr.mxu0 0.0
        %1035 = vmatpush1.msra.mxu0 0.0
        %1036 = vmatprep.subr.mxu0 0.0
        %1037 = vmatpush1.msra.mxu0 0.0
        %1038 = vmatprep.subr.mxu0 0.0
        %1039 = vmatpush1.msra.mxu0 0.0
        %1040 = vmatprep.subr.mxu0 0.0
        %1041 = vmatpush1.msra.mxu0 0.0
        %1042 = vmatprep.subr.mxu0 0.0
        %1043 = vmatpush1.msra.mxu0 0.0
        %1044 = vmatprep.subr.mxu0 0.0
        %1045 = vmatpush1.msra.mxu0 0.0
        %1046 = vmatprep.subr.mxu0 0.0
        %1047 = vmatpush1.msra.mxu0 0.0
        %1048 = vmatprep.mubr.f32.mxu0 0.0
        %1049 = vmatmul.mubr.f32.gmra.mrb[0].mxu0 %v902
        %v1050 = vpop.f32.mrb[0].mxu0
        %v1051 = vadd.f32 0.0, %v1050
        %v1052 = vpop.f32.mrb[0].mxu0
        %v1053 = vadd.f32 0.0, %v1052
        %1054 = vmatprep.mubr.f32.mxu0 0.0
        %1055 = vmatmul.mubr.f32.gmra.mrb[0].mxu0 %v905
        %v1056 = vpop.f32.mrb[0].mxu0
        %v1057 = vadd.f32 0.0, %v1056
        %v1058 = vpop.f32.mrb[0].mxu0
        %v1059 = vadd.f32 0.0, %v1058
        %1060 = vdwg.mxu0
        %v1061 = vadd.f32 %v804, %v974
        %v1062 = vadd.f32 %v806, %v976
        %v1063 = vadd.f32 %v881, %v1051
        %v1064 = vadd.f32 %v883, %v1053
        %v1065 = vadd.f32 %v810, %v980
        %v1066 = vadd.f32 %v812, %v982
        %v1067 = vadd.f32 %v887, %v1057
        %v1068 = vadd.f32 %v889, %v1059
        %v1069 = vld [vmem:[%s8] sm:$0xff]
        %v1070 = vld [vmem:[%s8 + $0x8] sm:$0xff]
        %1072 = vset.pattern.permute.xlu0 0
        %1073 = vperm.xlu0 %1072, %v1069
        %v1074 = vpop.permute.xlu0 %1073
        %1077 = vset.pattern.permute.xlu0 0
        %1078 = vperm.xlu0 %1077, %v1070
        %v1079 = vpop.permute.xlu0 %1078
        %v1081 = vadd.f32 %v1061, %v1074
        %v1082 = vadd.f32 %v1062, %v1074
        %v1083 = vadd.f32 %v1063, %v1074
        %v1084 = vadd.f32 %v1064, %v1074
        %v1085 = vadd.f32 %v1065, %v1079
        %v1086 = vadd.f32 %v1066, %v1079
        %v1087 = vadd.f32 %v1067, %v1079
        %v1088 = vadd.f32 %v1068, %v1079
        %v1089 = vld [vmem:[%s491] sm:$0xff]
        %v1090 = vld [vmem:[%s9] sm:$0xff]
        %v1091 = vld [vmem:[%s9 + $0x8] sm:$0xff]
        %1093 = vset.pattern.permute.xlu0 0
        %1094 = vperm.xlu0 %1093, %v1090
        %v1095 = vpop.permute.xlu0 %1094
        %1098 = vset.pattern.permute.xlu0 0
        %1099 = vperm.xlu0 %1098, %v1091
        %v1100 = vpop.permute.xlu0 %1099
        %v1103 = vlaneseq
        %v1104 = vshrl.u32 %v1103, 7
        %v1105 = vsub.s32 0, %v1104
        %v1106 = vrot.slane %v1089, %v1105
        %v1107 = vlaneseq
        %v1108 = vshrl.u32 %v1107, 7
        %v1109 = vsub.s32 2, %v1108
        %v1110 = vrot.slane %v1089, %v1109
        %v1111 = vlaneseq
        %v1112 = vshrl.u32 %v1111, 7
        %v1113 = vsub.s32 4, %v1112
        %v1114 = vrot.slane %v1089, %v1113
        %v1115 = vlaneseq
        %v1116 = vshrl.u32 %v1115, 7
        %v1117 = vsub.s32 6, %v1116
        %v1118 = vrot.slane %v1089, %v1117
        %v1123 = vlaneseq
        %v1124 = vshrl.u32 %v1123, 7
        %v1125 = vsub.s32 0, %v1124
        %v1126 = vrot.slane %v1106, %v1125
        %v1127 = vlaneseq
        %v1128 = vshrl.u32 %v1127, 7
        %v1129 = vsub.s32 0, %v1128
        %v1130 = vrot.slane %v1110, %v1129
        %v1131 = vlaneseq
        %v1132 = vshrl.u32 %v1131, 7
        %v1133 = vsub.s32 0, %v1132
        %v1134 = vrot.slane %v1114, %v1133
        %v1135 = vlaneseq
        %v1136 = vshrl.u32 %v1135, 7
        %v1137 = vsub.s32 0, %v1136
        %v1138 = vrot.slane %v1118, %v1137
        %v1139 = vmul.f32 %v1095, %v1126
        %v1140 = vmul.f32 %v1095, %v1130
        %v1141 = vmul.f32 %v1095, %v1134
        %v1142 = vmul.f32 %v1095, %v1138
        %v1143 = vmul.f32 %v1100, %v1126
        %v1144 = vmul.f32 %v1100, %v1130
        %v1145 = vmul.f32 %v1100, %v1134
        %v1146 = vmul.f32 %v1100, %v1138
        %v1147 = vadd.f32 %v1081, %v1139
        %v1148 = vadd.f32 %v1082, %v1140
        %v1149 = vadd.f32 %v1083, %v1141
        %v1150 = vadd.f32 %v1084, %v1142
        %v1151 = vadd.f32 %v1085, %v1143
        %v1152 = vadd.f32 %v1086, %v1144
        %v1153 = vadd.f32 %v1087, %v1145
        %v1154 = vadd.f32 %v1088, %v1146
        %1155 = vset.pattern.permute.xlu0 1
        %1156 = vperm.xlu0 %1155, %v1090
        %v1157 = vpop.permute.xlu0 %1156
        %1159 = vset.pattern.permute.xlu0 1
        %1160 = vperm.xlu0 %1159, %v1091
        %v1161 = vpop.permute.xlu0 %1160
        %v1163 = vlaneseq
        %v1164 = vshrl.u32 %v1163, 7
        %v1165 = vsub.s32 1, %v1164
        %v1166 = vrot.slane %v1089, %v1165
        %v1167 = vlaneseq
        %v1168 = vshrl.u32 %v1167, 7
        %v1169 = vsub.s32 3, %v1168
        %v1170 = vrot.slane %v1089, %v1169
        %v1171 = vlaneseq
        %v1172 = vshrl.u32 %v1171, 7
        %v1173 = vsub.s32 5, %v1172
        %v1174 = vrot.slane %v1089, %v1173
        %v1175 = vlaneseq
        %v1176 = vshrl.u32 %v1175, 7
        %v1177 = vsub.s32 7, %v1176
        %v1178 = vrot.slane %v1089, %v1177
        %v1183 = vlaneseq
        %v1184 = vshrl.u32 %v1183, 7
        %v1185 = vsub.s32 1, %v1184
        %v1186 = vrot.slane %v1166, %v1185
        %v1187 = vlaneseq
        %v1188 = vshrl.u32 %v1187, 7
        %v1189 = vsub.s32 1, %v1188
        %v1190 = vrot.slane %v1170, %v1189
        %v1191 = vlaneseq
        %v1192 = vshrl.u32 %v1191, 7
        %v1193 = vsub.s32 1, %v1192
        %v1194 = vrot.slane %v1174, %v1193
        %v1195 = vlaneseq
        %v1196 = vshrl.u32 %v1195, 7
        %v1197 = vsub.s32 1, %v1196
        %v1198 = vrot.slane %v1178, %v1197
        %v1199 = vmul.f32 %v1157, %v1186
        %v1200 = vmul.f32 %v1157, %v1190
        %v1201 = vmul.f32 %v1157, %v1194
        %v1202 = vmul.f32 %v1157, %v1198
        %v1203 = vmul.f32 %v1161, %v1186
        %v1204 = vmul.f32 %v1161, %v1190
        %v1205 = vmul.f32 %v1161, %v1194
        %v1206 = vmul.f32 %v1161, %v1198
        %v1207 = vadd.f32 %v1147, %v1199
        %v1208 = vadd.f32 %v1148, %v1200
        %v1209 = vadd.f32 %v1149, %v1201
        %v1210 = vadd.f32 %v1150, %v1202
        %v1211 = vadd.f32 %v1151, %v1203
        %v1212 = vadd.f32 %v1152, %v1204
        %v1213 = vadd.f32 %v1153, %v1205
        %v1214 = vadd.f32 %v1154, %v1206
        %v1215 = vld [vmem:[%s10] sm:$0xff]
        %v1216 = vld [vmem:[%s10 + $0x8] sm:$0xff]
        %1218 = vset.pattern.permute.xlu0 0
        %1219 = vperm.xlu0 %1218, %v1215
        %v1220 = vpop.permute.xlu0 %1219
        %1223 = vset.pattern.permute.xlu0 0
        %1224 = vperm.xlu0 %1223, %v1216
        %v1225 = vpop.permute.xlu0 %1224
        %v1227 = vadd.f32 %v1207, %v1220
        %v1228 = vadd.f32 %v1208, %v1220
        %v1229 = vadd.f32 %v1209, %v1220
        %v1230 = vadd.f32 %v1210, %v1220
        %v1231 = vadd.f32 %v1211, %v1225
        %v1232 = vadd.f32 %v1212, %v1225
        %v1233 = vadd.f32 %v1213, %v1225
        %v1234 = vadd.f32 %v1214, %v1225
        %v1235 = vmul.f32 %v1227, 0.5
        %v1236 = vmul.f32 %v1228, 0.5
        %v1237 = vmul.f32 %v1229, 0.5
        %v1238 = vmul.f32 %v1230, 0.5
        %v1239 = vmul.f32 %v1231, 0.5
        %v1240 = vmul.f32 %v1232, 0.5
        %v1241 = vmul.f32 %v1233, 0.5
        %v1242 = vmul.f32 %v1234, 0.5
        %v1243 = vmul.f32 %v1227, 0.70710677
        %v1244 = vmul.f32 %v1228, 0.70710677
        %v1245 = vmul.f32 %v1229, 0.70710677
        %v1246 = vmul.f32 %v1230, 0.70710677
        %v1247 = vmul.f32 %v1231, 0.70710677
        %v1248 = vmul.f32 %v1232, 0.70710677
        %v1249 = vmul.f32 %v1233, 0.70710677
        %v1250 = vmul.f32 %v1234, 0.70710677
        %v1251 = verf.f32.pop %v1243
        %v1252 = verf.f32.pop %v1244
        %v1253 = verf.f32.pop %v1245
        %v1254 = verf.f32.pop %v1246
        %v1255 = verf.f32.pop %v1247
        %v1256 = verf.f32.pop %v1248
        %v1257 = verf.f32.pop %v1249
        %v1258 = verf.f32.pop %v1250
        %v1259 = vadd.f32 %v1251, 1.0
        %v1260 = vadd.f32 %v1252, 1.0
        %v1261 = vadd.f32 %v1253, 1.0
        %v1262 = vadd.f32 %v1254, 1.0
        %v1263 = vadd.f32 %v1255, 1.0
        %v1264 = vadd.f32 %v1256, 1.0
        %v1265 = vadd.f32 %v1257, 1.0
        %v1266 = vadd.f32 %v1258, 1.0
        %v1267 = vmul.f32 %v1235, %v1259
        %v1268 = vmul.f32 %v1236, %v1260
        %v1269 = vmul.f32 %v1237, %v1261
        %v1270 = vmul.f32 %v1238, %v1262
        %v1271 = vmul.f32 %v1239, %v1263
        %v1272 = vmul.f32 %v1240, %v1264
        %v1273 = vmul.f32 %v1241, %v1265
        %v1274 = vmul.f32 %v1242, %v1266
        %1275 = vst [vmem:[%s484] sm:$0xff] %v1267
        %1276 = vst [vmem:[%s484 + $0x8] sm:$0xff] %v1268
        %1277 = vst [vmem:[%s484 + $0x10] sm:$0xff] %v1269
        %1278 = vst [vmem:[%s484 + $0x18] sm:$0xff] %v1270
        %1279 = vst [vmem:[%s484 + $0x20] sm:$0xff] %v1271
        %1280 = vst [vmem:[%s484 + $0x28] sm:$0xff] %v1272
        %1281 = vst [vmem:[%s484 + $0x30] sm:$0xff] %v1273
        %1282 = vst [vmem:[%s484 + $0x38] sm:$0xff] %v1274
        %s1283 = sand.u32 %s276, 1
        %s1284 = sand.u32 %s276, 1
        %s1285 = smul.addr %s1284, 64
        %s1286 = scalar_lea.vmem [#allocation4], %s1285
        // Predicated region
        $region111: #{fno_multi_forward.15} parent=101 // pred_check
          %p1287 = pneg %p286
        $region112: #{fno_multi_forward.15} parent=101 // pred_check_branch
          %1289 = sbr.rel (%p1287) target = $region114
        $region113: #{fno_multi_forward.15} parent=101 // pred_region
          %s1290 = smul.u32 4, %s22
          %s1291 = smul.addr %s1290, 8
          %s1292 = scalar_lea.vmem %s11, %s1291
          // Predicated region
          $region115: #{fno_multi_forward.15} parent=113 // pred_check
            _
          $region116: #{fno_multi_forward.15} parent=113 // pred_check_branch
            %1294 = sbr.rel (0) target = $region118
          $region117: #{fno_multi_forward.15} parent=113 // pred_region
            // Predicated region
            $region119: #{fno_multi_forward.15} parent=117 // pred_check
              _
            $region120: #{fno_multi_forward.15} parent=117 // pred_check_branch
              %1296 = sbr.rel (0) target = $region122
            $region121: #{fno_multi_forward.15} parent=117 // pred_region
              loop: start=0, step=1, limit=1
              $region123: #{fno_multi_forward.15} parent=121 // loop_pre_header
                _
              $region124: #{fno_multi_forward.15} parent=121 // loop_header
                %s1298 = sphi 0, %s1302
                %p1299 = scmp.ge.s32.totalorder %s1298, 1
                %s1303 = sphi %s1286, %s1286
                %s1304 = sphi %s1292, %s1292
              $region125: #{fno_multi_forward.15} parent=121 // loop_header_branch
                %1301 = sbr.rel (%p1299) target = $region129
              $region126: #{fno_multi_forward.15} parent=121 // loop_body
                %v1305 = vld [vmem:[%s1303] sm:$0xff]
                %1306 = vst [vmem:[%s1304] sm:$0xff] %v1305
                %v1307 = vld [vmem:[%s1303 + $0x8] sm:$0xff]
                %1308 = vst [vmem:[%s1304 + $0x8] sm:$0xff] %v1307
                %v1309 = vld [vmem:[%s1303 + $0x10] sm:$0xff]
                %1310 = vst [vmem:[%s1304 + $0x10] sm:$0xff] %v1309
                %v1311 = vld [vmem:[%s1303 + $0x18] sm:$0xff]
                %1312 = vst [vmem:[%s1304 + $0x18] sm:$0xff] %v1311
                %v1313 = vld [vmem:[%s1303 + $0x20] sm:$0xff]
                %1314 = vst [vmem:[%s1304 + $0x60] sm:$0xff] %v1313
                %v1315 = vld [vmem:[%s1303 + $0x28] sm:$0xff]
                %1316 = vst [vmem:[%s1304 + $0x68] sm:$0xff] %v1315
                %v1317 = vld [vmem:[%s1303 + $0x30] sm:$0xff]
                %1318 = vst [vmem:[%s1304 + $0x70] sm:$0xff] %v1317
                %v1319 = vld [vmem:[%s1303 + $0x38] sm:$0xff]
                %1320 = vst [vmem:[%s1304 + $0x78] sm:$0xff] %v1319
              $region127: #{fno_multi_forward.15} parent=121 // loop_footer
                %s1302 = sadd.s32 1, %s1298
              $region128: #{fno_multi_forward.15} parent=121 // loop_footer_branch
                %1297 = sbr.rel target = $region124
              $region129: #{fno_multi_forward.15} parent=121 // loop_exit
                _
            $region122: #{fno_multi_forward.15} parent=117 // pred_fallthru
              _
            // Predicated region
            $region130: #{fno_multi_forward.15} parent=117 // pred_check
              _
            $region131: #{fno_multi_forward.15} parent=117 // pred_check_branch
              %1322 = sbr.rel target = $region133
            $region132: #{fno_multi_forward.15} parent=117 // pred_region
              _
            $region133: #{fno_multi_forward.15} parent=117 // pred_fallthru
              _
          $region118: #{fno_multi_forward.15} parent=113 // pred_fallthru
            _
          %1323 = vnop
        $region114: #{fno_multi_forward.15} parent=101 // pred_fallthru
          _
      $region102: #{fno_multi_forward.15} parent=5 // pred_fallthru
        _
      %p1324 = scmp.le.s32.totalorder 2, %s17
      // Predicated region
      $region134: #{fno_multi_forward.15} parent=5 // pred_check
        %p1325 = pneg %p1324
      $region135: #{fno_multi_forward.15} parent=5 // pred_check_branch
        %1327 = sbr.rel (%p1325) target = $region137
      $region136: #{fno_multi_forward.15} parent=5 // pred_region
        %s1328 = ssub.s32 %s17, 2
        // Predicated region
        $region138: #{fno_multi_forward.15} parent=136 // pred_check
          %p1329 = pneg %p292
        $region139: #{fno_multi_forward.15} parent=136 // pred_check_branch
          %1331 = sbr.rel (%p1329) target = $region141
        $region140: #{fno_multi_forward.15} parent=136 // pred_region
          %s1332 = sand.u32 %s277, 1
          %s1333 = sand.u32 %s277, 1
          %s1334 = smul.addr %s1333, 64
          %s1335 = scalar_lea.vmem [#allocation4], %s1334
        $region141: #{fno_multi_forward.15} parent=136 // pred_fallthru
          _
      $region137: #{fno_multi_forward.15} parent=5 // pred_fallthru
        _
    $region6: #{fno_multi_forward.15} parent=1 // loop_footer
      %s21 = sadd.s32 1, %s17
    $region7: #{fno_multi_forward.15} parent=1 // loop_footer_branch
      %16 = sbr.rel target = $region3
    $region8: #{fno_multi_forward.15} parent=1 // loop_exit
      _

// kernel: fno_multi_forward.19
$region0: #{fno_multi_forward.19}
  #allocation0 [shape = 'u32[]', space=smem, size = 0x4, offset = 0x4, fixed_abs, tag = 'smem constant byte address 0x4 - core index']
  #allocation1 [shape = 'u32[144,128]{1,0:T(1,128)}', space=vmem, size = 0x12000, scoped, tag = 'internal scratch']
  %s0 = inlined_call_operand.vmem [shape: f32[16,1536], index: 0, kind: input, shape index: {}]
  %s1 = inlined_call_operand.vmem [shape: f32[16,1536], index: 1, kind: input, shape index: {}]
  %s2 = inlined_call_operand.vmem [shape: f32[2,1536], index: 2, kind: input, shape index: {}]
  %s3 = inlined_call_operand.vmem [shape: f32[16,16], index: 3, kind: input, shape index: {}]
  %s4 = inlined_call_operand.vmem [shape: f32[16,1], index: 4, kind: input, shape index: {}]
  %s5 = inlined_call_operand.vmem [shape: f32[16,16], index: 5, kind: input, shape index: {}]
  %s6 = inlined_call_operand.vmem [shape: f32[16,1], index: 6, kind: input, shape index: {}]
  %s7 = inlined_call_operand.vmem [shape: f32[16,16], index: 7, kind: input, shape index: {}]
  %s8 = inlined_call_operand.vmem [shape: f32[16,1], index: 8, kind: input, shape index: {}]
  %s9 = inlined_call_operand.vmem [shape: f32[16,2], index: 9, kind: input, shape index: {}]
  %s10 = inlined_call_operand.vmem [shape: f32[16,1], index: 10, kind: input, shape index: {}]
  %s11 = inlined_call_operand.vmem [shape: f32[16,1536], index: 11, kind: input, shape index: {}]
  %s12 = inlined_call_operand.vmem [shape: f32[16,1536], index: 12, kind: output, shape index: {}]
  %s13 = sld [smem:[#allocation0]]
  $region169: #{fno_multi_forward.19} parent=0
    _
  %s15 = ssub.s32 1, %s13
  %s16 = scalar_select 0, %s15, %s13
  $region1: #{fno_multi_forward.19} parent=0
    #allocation2 [shape = 'u8[65536]{0}', space=vmem, size = 0x10000, scoped, tag = 'input window, operand 0']
    #allocation3 [shape = 'u8[65536]{0}', space=vmem, size = 0x10000, scoped, tag = 'input window, operand 1']
    #allocation4 [shape = 'u8[65536]{0}', space=vmem, size = 0x10000, scoped, tag = 'input window, operand 11']
    #allocation5 [shape = 'u8[65536]{0}', space=vmem, size = 0x10000, scoped, tag = 'output window, operand 0']
    loop: start=0, step=1, limit=5
    $region2: #{fno_multi_forward.19} parent=1 // loop_pre_header
      _
    $region3: #{fno_multi_forward.19} parent=1 // loop_header
      %s18 = sphi 0, %s22
      %p19 = scmp.ge.s32.totalorder %s18, 5
      %s28 = sphi 0, %s30
      %s31 = sphi 0, %s28
      %s32 = sphi 0, %s31
      %s48 = sphi 0, %s32
      %s54 = sphi 0, %s56
      %s57 = sphi 0, %s54
      %s58 = sphi 0, %s57
      %s74 = sphi 0, %s58
      %s80 = sphi 0, %s82
      %s83 = sphi 0, %s80
      %s84 = sphi 0, %s83
      %s100 = sphi 0, %s84
      %s104 = sphi 0, %s104
      %s106 = sphi 0, %s104
      %s107 = sphi 0, %s106
      %s121 = sphi 0, %s107
      %s125 = sphi 0, %s125
      %s127 = sphi 0, %s125
      %s128 = sphi 0, %s127
      %s142 = sphi 0, %s128
      %s146 = sphi 0, %s146
      %s148 = sphi 0, %s146
      %s149 = sphi 0, %s148
      %s163 = sphi 0, %s149
      %s167 = sphi 0, %s167
      %s169 = sphi 0, %s167
      %s170 = sphi 0, %s169
      %s184 = sphi 0, %s170
      %s188 = sphi 0, %s188
      %s190 = sphi 0, %s188
      %s191 = sphi 0, %s190
      %s205 = sphi 0, %s191
      %s209 = sphi 0, %s209
      %s211 = sphi 0, %s209
      %s212 = sphi 0, %s211
      %s226 = sphi 0, %s212
      %s230 = sphi 0, %s230
      %s232 = sphi 0, %s230
      %s233 = sphi 0, %s232
      %s247 = sphi 0, %s233
      %s251 = sphi 0, %s251
      %s253 = sphi 0, %s251
      %s254 = sphi 0, %s253
      %s268 = sphi 0, %s254
      %s274 = sphi 0, %s276
      %s277 = sphi 0, %s274
      %s278 = sphi 0, %s277
      %s294 = sphi 0, %s278
      %s300 = sphi 0, %s302
      %s303 = sphi 0, %s300
      %s304 = sphi 0, %s303
      %s320 = sphi 0, %s304
    $region4: #{fno_multi_forward.19} parent=1 // loop_header_branch
      %21 = sbr.rel (%p19) target = $region8
    $region5: #{fno_multi_forward.19} parent=1 // loop_body
      %s23 = ssub.s32 %s18, 1
      %s24 = ssub.s32 %s18, 2
      %s25 = sadd.s32 %s18, 1
      %s26 = ssub.s32 %s18, %s25
      %p27 = scmp.eq.s32.totalorder %s26, 0
      %s29 = sadd.s32 %s28, 1
      %s30 = scalar_select %p27, %s28, %s29
      %p33 = pneg %p27
      %p34 = scmp.eq.s32.totalorder %s18, 2
      %p35 = por %p33, %p34
      %p36 = scmp.ne.s32.totalorder %s28, %s31
      %p37 = scmp.eq.s32.totalorder %s18, 0
      %p38 = por %p36, %p37
      %p39 = scmp.ne.s32.totalorder %s28, %s31
      %p40 = scmp.eq.s32.totalorder %s23, 2
      %p41 = por %p39, %p40
      %p42 = scmp.ne.s32.totalorder %s31, %s32
      %p43 = scmp.eq.s32.totalorder %s23, 0
      %p44 = por %p42, %p43
      %p45 = scmp.ne.s32.totalorder %s31, %s32
      %p46 = scmp.eq.s32.totalorder %s24, 2
      %p47 = por %p45, %p46
      %p49 = scmp.ne.s32.totalorder %s32, %s48
      %p50 = scmp.eq.s32.totalorder %s24, 0
      %p51 = por %p49, %p50
      %s52 = ssub.s32 %s18, %s25
      %p53 = scmp.eq.s32.totalorder %s52, 0
      %s55 = sadd.s32 %s54, 1
      %s56 = scalar_select %p53, %s54, %s55
      %p59 = pneg %p53
      %p60 = scmp.eq.s32.totalorder %s18, 2
      %p61 = por %p59, %p60
      %p62 = scmp.ne.s32.totalorder %s54, %s57
      %p63 = scmp.eq.s32.totalorder %s18, 0
      %p64 = por %p62, %p63
      %p65 = scmp.ne.s32.totalorder %s54, %s57
      %p66 = scmp.eq.s32.totalorder %s23, 2
      %p67 = por %p65, %p66
      %p68 = scmp.ne.s32.totalorder %s57, %s58
      %p69 = scmp.eq.s32.totalorder %s23, 0
      %p70 = por %p68, %p69
      %p71 = scmp.ne.s32.totalorder %s57, %s58
      %p72 = scmp.eq.s32.totalorder %s24, 2
      %p73 = por %p71, %p72
      %p75 = scmp.ne.s32.totalorder %s58, %s74
      %p76 = scmp.eq.s32.totalorder %s24, 0
      %p77 = por %p75, %p76
      %s78 = ssub.s32 %s18, %s25
      %p79 = scmp.eq.s32.totalorder %s78, 0
      %s81 = sadd.s32 %s80, 1
      %s82 = scalar_select %p79, %s80, %s81
      %p85 = pneg %p79
      %p86 = scmp.eq.s32.totalorder %s18, 2
      %p87 = por %p85, %p86
      %p88 = scmp.ne.s32.totalorder %s80, %s83
      %p89 = scmp.eq.s32.totalorder %s18, 0
      %p90 = por %p88, %p89
      %p91 = scmp.ne.s32.totalorder %s80, %s83
      %p92 = scmp.eq.s32.totalorder %s23, 2
      %p93 = por %p91, %p92
      %p94 = scmp.ne.s32.totalorder %s83, %s84
      %p95 = scmp.eq.s32.totalorder %s23, 0
      %p96 = por %p94, %p95
      %p97 = scmp.ne.s32.totalorder %s83, %s84
      %p98 = scmp.eq.s32.totalorder %s24, 2
      %p99 = por %p97, %p98
      %p101 = scmp.ne.s32.totalorder %s84, %s100
      %p102 = scmp.eq.s32.totalorder %s24, 0
      %p103 = por %p101, %p102
      %s105 = sadd.s32 %s104, 1
      %p108 = scmp.eq.s32.totalorder %s18, 2
      %p109 = scmp.ne.s32.totalorder %s104, %s106
      %p110 = scmp.eq.s32.totalorder %s18, 0
      %p111 = por %p109, %p110
      %p112 = scmp.ne.s32.totalorder %s104, %s106
      %p113 = scmp.eq.s32.totalorder %s23, 2
      %p114 = por %p112, %p113
      %p115 = scmp.ne.s32.totalorder %s106, %s107
      %p116 = scmp.eq.s32.totalorder %s23, 0
      %p117 = por %p115, %p116
      %p118 = scmp.ne.s32.totalorder %s106, %s107
      %p119 = scmp.eq.s32.totalorder %s24, 2
      %p120 = por %p118, %p119
      %p122 = scmp.ne.s32.totalorder %s107, %s121
      %p123 = scmp.eq.s32.totalorder %s24, 0
      %p124 = por %p122, %p123
      %s126 = sadd.s32 %s125, 1
      %p129 = scmp.eq.s32.totalorder %s18, 2
      %p130 = scmp.ne.s32.totalorder %s125, %s127
      %p131 = scmp.eq.s32.totalorder %s18, 0
      %p132 = por %p130, %p131
      %p133 = scmp.ne.s32.totalorder %s125, %s127
      %p134 = scmp.eq.s32.totalorder %s23, 2
      %p135 = por %p133, %p134
      %p136 = scmp.ne.s32.totalorder %s127, %s128
      %p137 = scmp.eq.s32.totalorder %s23, 0
      %p138 = por %p136, %p137
      %p139 = scmp.ne.s32.totalorder %s127, %s128
      %p140 = scmp.eq.s32.totalorder %s24, 2
      %p141 = por %p139, %p140
      %p143 = scmp.ne.s32.totalorder %s128, %s142
      %p144 = scmp.eq.s32.totalorder %s24, 0
      %p145 = por %p143, %p144
      %s147 = sadd.s32 %s146, 1
      %p150 = scmp.eq.s32.totalorder %s18, 2
      %p151 = scmp.ne.s32.totalorder %s146, %s148
      %p152 = scmp.eq.s32.totalorder %s18, 0
      %p153 = por %p151, %p152
      %p154 = scmp.ne.s32.totalorder %s146, %s148
      %p155 = scmp.eq.s32.totalorder %s23, 2
      %p156 = por %p154, %p155
      %p157 = scmp.ne.s32.totalorder %s148, %s149
      %p158 = scmp.eq.s32.totalorder %s23, 0
      %p159 = por %p157, %p158
      %p160 = scmp.ne.s32.totalorder %s148, %s149
      %p161 = scmp.eq.s32.totalorder %s24, 2
      %p162 = por %p160, %p161
      %p164 = scmp.ne.s32.totalorder %s149, %s163
      %p165 = scmp.eq.s32.totalorder %s24, 0
      %p166 = por %p164, %p165
      %s168 = sadd.s32 %s167, 1
      %p171 = scmp.eq.s32.totalorder %s18, 2
      %p172 = scmp.ne.s32.totalorder %s167, %s169
      %p173 = scmp.eq.s32.totalorder %s18, 0
      %p174 = por %p172, %p173
      %p175 = scmp.ne.s32.totalorder %s167, %s169
      %p176 = scmp.eq.s32.totalorder %s23, 2
      %p177 = por %p175, %p176
      %p178 = scmp.ne.s32.totalorder %s169, %s170
      %p179 = scmp.eq.s32.totalorder %s23, 0
      %p180 = por %p178, %p179
      %p181 = scmp.ne.s32.totalorder %s169, %s170
      %p182 = scmp.eq.s32.totalorder %s24, 2
      %p183 = por %p181, %p182
      %p185 = scmp.ne.s32.totalorder %s170, %s184
      %p186 = scmp.eq.s32.totalorder %s24, 0
      %p187 = por %p185, %p186
      %s189 = sadd.s32 %s188, 1
      %p192 = scmp.eq.s32.totalorder %s18, 2
      %p193 = scmp.ne.s32.totalorder %s188, %s190
      %p194 = scmp.eq.s32.totalorder %s18, 0
      %p195 = por %p193, %p194
      %p196 = scmp.ne.s32.totalorder %s188, %s190
      %p197 = scmp.eq.s32.totalorder %s23, 2
      %p198 = por %p196, %p197
      %p199 = scmp.ne.s32.totalorder %s190, %s191
      %p200 = scmp.eq.s32.totalorder %s23, 0
      %p201 = por %p199, %p200
      %p202 = scmp.ne.s32.totalorder %s190, %s191
      %p203 = scmp.eq.s32.totalorder %s24, 2
      %p204 = por %p202, %p203
      %p206 = scmp.ne.s32.totalorder %s191, %s205
      %p207 = scmp.eq.s32.totalorder %s24, 0
      %p208 = por %p206, %p207
      %s210 = sadd.s32 %s209, 1
      %p213 = scmp.eq.s32.totalorder %s18, 2
      %p214 = scmp.ne.s32.totalorder %s209, %s211
      %p215 = scmp.eq.s32.totalorder %s18, 0
      %p216 = por %p214, %p215
      %p217 = scmp.ne.s32.totalorder %s209, %s211
      %p218 = scmp.eq.s32.totalorder %s23, 2
      %p219 = por %p217, %p218
      %p220 = scmp.ne.s32.totalorder %s211, %s212
      %p221 = scmp.eq.s32.totalorder %s23, 0
      %p222 = por %p220, %p221
      %p223 = scmp.ne.s32.totalorder %s211, %s212
      %p224 = scmp.eq.s32.totalorder %s24, 2
      %p225 = por %p223, %p224
      %p227 = scmp.ne.s32.totalorder %s212, %s226
      %p228 = scmp.eq.s32.totalorder %s24, 0
      %p229 = por %p227, %p228
      %s231 = sadd.s32 %s230, 1
      %p234 = scmp.eq.s32.totalorder %s18, 2
      %p235 = scmp.ne.s32.totalorder %s230, %s232
      %p236 = scmp.eq.s32.totalorder %s18, 0
      %p237 = por %p235, %p236
      %p238 = scmp.ne.s32.totalorder %s230, %s232
      %p239 = scmp.eq.s32.totalorder %s23, 2
      %p240 = por %p238, %p239
      %p241 = scmp.ne.s32.totalorder %s232, %s233
      %p242 = scmp.eq.s32.totalorder %s23, 0
      %p243 = por %p241, %p242
      %p244 = scmp.ne.s32.totalorder %s232, %s233
      %p245 = scmp.eq.s32.totalorder %s24, 2
      %p246 = por %p244, %p245
      %p248 = scmp.ne.s32.totalorder %s233, %s247
      %p249 = scmp.eq.s32.totalorder %s24, 0
      %p250 = por %p248, %p249
      %s252 = sadd.s32 %s251, 1
      %p255 = scmp.eq.s32.totalorder %s18, 2
      %p256 = scmp.ne.s32.totalorder %s251, %s253
      %p257 = scmp.eq.s32.totalorder %s18, 0
      %p258 = por %p256, %p257
      %p259 = scmp.ne.s32.totalorder %s251, %s253
      %p260 = scmp.eq.s32.totalorder %s23, 2
      %p261 = por %p259, %p260
      %p262 = scmp.ne.s32.totalorder %s253, %s254
      %p263 = scmp.eq.s32.totalorder %s23, 0
      %p264 = por %p262, %p263
      %p265 = scmp.ne.s32.totalorder %s253, %s254
      %p266 = scmp.eq.s32.totalorder %s24, 2
      %p267 = por %p265, %p266
      %p269 = scmp.ne.s32.totalorder %s254, %s268
      %p270 = scmp.eq.s32.totalorder %s24, 0
      %p271 = por %p269, %p270
      %s272 = ssub.s32 %s18, %s25
      %p273 = scmp.eq.s32.totalorder %s272, 0
      %s275 = sadd.s32 %s274, 1
      %s276 = scalar_select %p273, %s274, %s275
      %p279 = pneg %p273
      %p280 = scmp.eq.s32.totalorder %s18, 2
      %p281 = por %p279, %p280
      %p282 = scmp.ne.s32.totalorder %s274, %s277
      %p283 = scmp.eq.s32.totalorder %s18, 0
      %p284 = por %p282, %p283
      %p285 = scmp.ne.s32.totalorder %s274, %s277
      %p286 = scmp.eq.s32.totalorder %s23, 2
      %p287 = por %p285, %p286
      %p288 = scmp.ne.s32.totalorder %s277, %s278
      %p289 = scmp.eq.s32.totalorder %s23, 0
      %p290 = por %p288, %p289
      %p291 = scmp.ne.s32.totalorder %s277, %s278
      %p292 = scmp.eq.s32.totalorder %s24, 2
      %p293 = por %p291, %p292
      %p295 = scmp.ne.s32.totalorder %s278, %s294
      %p296 = scmp.eq.s32.totalorder %s24, 0
      %p297 = por %p295, %p296
      %s298 = ssub.s32 %s18, %s25
      %p299 = scmp.eq.s32.totalorder %s298, 0
      %s301 = sadd.s32 %s300, 1
      %s302 = scalar_select %p299, %s300, %s301
      %p305 = pneg %p299
      %p306 = scmp.eq.s32.totalorder %s18, 2
      %p307 = por %p305, %p306
      %p308 = scmp.ne.s32.totalorder %s300, %s303
      %p309 = scmp.eq.s32.totalorder %s18, 0
      %p310 = por %p308, %p309
      %p311 = scmp.ne.s32.totalorder %s300, %s303
      %p312 = scmp.eq.s32.totalorder %s23, 2
      %p313 = por %p311, %p312
      %p314 = scmp.ne.s32.totalorder %s303, %s304
      %p315 = scmp.eq.s32.totalorder %s23, 0
      %p316 = por %p314, %p315
      %p317 = scmp.ne.s32.totalorder %s303, %s304
      %p318 = scmp.eq.s32.totalorder %s24, 2
      %p319 = por %p317, %p318
      %p321 = scmp.ne.s32.totalorder %s304, %s320
      %p322 = scmp.eq.s32.totalorder %s24, 0
      %p323 = por %p321, %p322
      %p324 = scmp.le.s32.totalorder 1, %s18
      %p325 = scmp.lt.s32.totalorder %s18, 4
      %p326 = pnand %p324, %p325
      %p327 = pneg %p326
      // Predicated region
      $region9: #{fno_multi_forward.19} parent=5 // pred_check
        _
      $region10: #{fno_multi_forward.19} parent=5 // pred_check_branch
        %329 = sbr.rel (%p326) target = $region12
      $region11: #{fno_multi_forward.19} parent=5 // pred_region
        %s330 = ssub.s32 %s18, 1
        // Predicated region
        $region13: #{fno_multi_forward.19} parent=11 // pred_check
          %p331 = pneg %p117
        $region14: #{fno_multi_forward.19} parent=11 // pred_check_branch
          %333 = sbr.rel (%p331) target = $region16
        $region15: #{fno_multi_forward.19} parent=11 // pred_region
          _
        $region16: #{fno_multi_forward.19} parent=11 // pred_fallthru
          _
        // Predicated region
        $region17: #{fno_multi_forward.19} parent=11 // pred_check
          %p334 = pneg %p138
        $region18: #{fno_multi_forward.19} parent=11 // pred_check_branch
          %336 = sbr.rel (%p334) target = $region20
        $region19: #{fno_multi_forward.19} parent=11 // pred_region
          _
        $region20: #{fno_multi_forward.19} parent=11 // pred_fallthru
          _
        // Predicated region
        $region21: #{fno_multi_forward.19} parent=11 // pred_check
          %p337 = pneg %p159
        $region22: #{fno_multi_forward.19} parent=11 // pred_check_branch
          %339 = sbr.rel (%p337) target = $region24
        $region23: #{fno_multi_forward.19} parent=11 // pred_region
          _
        $region24: #{fno_multi_forward.19} parent=11 // pred_fallthru
          _
        // Predicated region
        $region25: #{fno_multi_forward.19} parent=11 // pred_check
          %p340 = pneg %p180
        $region26: #{fno_multi_forward.19} parent=11 // pred_check_branch
          %342 = sbr.rel (%p340) target = $region28
        $region27: #{fno_multi_forward.19} parent=11 // pred_region
          _
        $region28: #{fno_multi_forward.19} parent=11 // pred_fallthru
          _
        // Predicated region
        $region29: #{fno_multi_forward.19} parent=11 // pred_check
          %p343 = pneg %p201
        $region30: #{fno_multi_forward.19} parent=11 // pred_check_branch
          %345 = sbr.rel (%p343) target = $region32
        $region31: #{fno_multi_forward.19} parent=11 // pred_region
          _
        $region32: #{fno_multi_forward.19} parent=11 // pred_fallthru
          _
        // Predicated region
        $region33: #{fno_multi_forward.19} parent=11 // pred_check
          %p346 = pneg %p222
        $region34: #{fno_multi_forward.19} parent=11 // pred_check_branch
          %348 = sbr.rel (%p346) target = $region36
        $region35: #{fno_multi_forward.19} parent=11 // pred_region
          _
        $region36: #{fno_multi_forward.19} parent=11 // pred_fallthru
          _
        // Predicated region
        $region37: #{fno_multi_forward.19} parent=11 // pred_check
          %p349 = pneg %p243
        $region38: #{fno_multi_forward.19} parent=11 // pred_check_branch
          %351 = sbr.rel (%p349) target = $region40
        $region39: #{fno_multi_forward.19} parent=11 // pred_region
          _
        $region40: #{fno_multi_forward.19} parent=11 // pred_fallthru
          _
        // Predicated region
        $region41: #{fno_multi_forward.19} parent=11 // pred_check
          %p352 = pneg %p264
        $region42: #{fno_multi_forward.19} parent=11 // pred_check_branch
          %354 = sbr.rel (%p352) target = $region44
        $region43: #{fno_multi_forward.19} parent=11 // pred_region
          _
        $region44: #{fno_multi_forward.19} parent=11 // pred_fallthru
          _
      $region12: #{fno_multi_forward.19} parent=5 // pred_fallthru
        _
      %p355 = scmp.lt.s32.totalorder %s18, 3
      // Predicated region
      $region45: #{fno_multi_forward.19} parent=5 // pred_check
        %p356 = pneg %p355
      $region46: #{fno_multi_forward.19} parent=5 // pred_check_branch
        %358 = sbr.rel (%p356) target = $region48
      $region47: #{fno_multi_forward.19} parent=5 // pred_region
        // Predicated region
        $region49: #{fno_multi_forward.19} parent=47 // pred_check
          %p359 = pneg %p38
        $region50: #{fno_multi_forward.19} parent=47 // pred_check_branch
          %361 = sbr.rel (%p359) target = $region52
        $region51: #{fno_multi_forward.19} parent=47 // pred_region
          %s362 = sand.u32 %s28, 1
          %s363 = sand.u32 %s28, 1
          %s364 = smul.addr %s363, 64
          %s365 = scalar_lea.vmem [#allocation2], %s364
          %s366 = smul.u32 4, %s18
          %s367 = smul.addr %s366, 8
          %s368 = scalar_lea.vmem %s0, %s367
          // Predicated region
          $region53: #{fno_multi_forward.19} parent=51 // pred_check
            _
          $region54: #{fno_multi_forward.19} parent=51 // pred_check_branch
            %370 = sbr.rel (0) target = $region56
          $region55: #{fno_multi_forward.19} parent=51 // pred_region
            // Predicated region
            $region57: #{fno_multi_forward.19} parent=55 // pred_check
              _
            $region58: #{fno_multi_forward.19} parent=55 // pred_check_branch
              %372 = sbr.rel (0) target = $region60
            $region59: #{fno_multi_forward.19} parent=55 // pred_region
              loop: start=0, step=1, limit=1
              $region61: #{fno_multi_forward.19} parent=59 // loop_pre_header
                _
              $region62: #{fno_multi_forward.19} parent=59 // loop_header
                %s374 = sphi 0, %s378
                %p375 = scmp.ge.s32.totalorder %s374, 1
                %s379 = sphi %s368, %s368
                %s380 = sphi %s365, %s365
              $region63: #{fno_multi_forward.19} parent=59 // loop_header_branch
                %377 = sbr.rel (%p375) target = $region67
              $region64: #{fno_multi_forward.19} parent=59 // loop_body
                %v381 = vld [vmem:[%s379] sm:$0xff]
                %382 = vst [vmem:[%s380] sm:$0xff] %v381
                %v383 = vld [vmem:[%s379 + $0x8] sm:$0xff]
                %384 = vst [vmem:[%s380 + $0x8] sm:$0xff] %v383
                %v385 = vld [vmem:[%s379 + $0x10] sm:$0xff]
                %386 = vst [vmem:[%s380 + $0x10] sm:$0xff] %v385
                %v387 = vld [vmem:[%s379 + $0x18] sm:$0xff]
                %388 = vst [vmem:[%s380 + $0x18] sm:$0xff] %v387
                %v389 = vld [vmem:[%s379 + $0x60] sm:$0xff]
                %390 = vst [vmem:[%s380 + $0x20] sm:$0xff] %v389
                %v391 = vld [vmem:[%s379 + $0x68] sm:$0xff]
                %392 = vst [vmem:[%s380 + $0x28] sm:$0xff] %v391
                %v393 = vld [vmem:[%s379 + $0x70] sm:$0xff]
                %394 = vst [vmem:[%s380 + $0x30] sm:$0xff] %v393
                %v395 = vld [vmem:[%s379 + $0x78] sm:$0xff]
                %396 = vst [vmem:[%s380 + $0x38] sm:$0xff] %v395
              $region65: #{fno_multi_forward.19} parent=59 // loop_footer
                %s378 = sadd.s32 1, %s374
              $region66: #{fno_multi_forward.19} parent=59 // loop_footer_branch
                %373 = sbr.rel target = $region62
              $region67: #{fno_multi_forward.19} parent=59 // loop_exit
                _
            $region60: #{fno_multi_forward.19} parent=55 // pred_fallthru
              _
            // Predicated region
            $region68: #{fno_multi_forward.19} parent=55 // pred_check
              _
            $region69: #{fno_multi_forward.19} parent=55 // pred_check_branch
              %398 = sbr.rel target = $region71
            $region70: #{fno_multi_forward.19} parent=55 // pred_region
              _
            $region71: #{fno_multi_forward.19} parent=55 // pred_fallthru
              _
          $region56: #{fno_multi_forward.19} parent=51 // pred_fallthru
            _
          %399 = vnop
        $region52: #{fno_multi_forward.19} parent=47 // pred_fallthru
          _
        // Predicated region
        $region72: #{fno_multi_forward.19} parent=47 // pred_check
          %p400 = pneg %p64
        $region73: #{fno_multi_forward.19} parent=47 // pred_check_branch
          %402 = sbr.rel (%p400) target = $region75
        $region74: #{fno_multi_forward.19} parent=47 // pred_region
          %s403 = sand.u32 %s54, 1
          %s404 = sand.u32 %s54, 1
          %s405 = smul.addr %s404, 64
          %s406 = scalar_lea.vmem [#allocation3], %s405
          %s407 = smul.u32 4, %s18
          %s408 = smul.addr %s407, 8
          %s409 = scalar_lea.vmem %s1, %s408
          // Predicated region
          $region76: #{fno_multi_forward.19} parent=74 // pred_check
            _
          $region77: #{fno_multi_forward.19} parent=74 // pred_check_branch
            %411 = sbr.rel (0) target = $region79
          $region78: #{fno_multi_forward.19} parent=74 // pred_region
            // Predicated region
            $region80: #{fno_multi_forward.19} parent=78 // pred_check
              _
            $region81: #{fno_multi_forward.19} parent=78 // pred_check_branch
              %413 = sbr.rel (0) target = $region83
            $region82: #{fno_multi_forward.19} parent=78 // pred_region
              loop: start=0, step=1, limit=1
              $region84: #{fno_multi_forward.19} parent=82 // loop_pre_header
                _
              $region85: #{fno_multi_forward.19} parent=82 // loop_header
                %s415 = sphi 0, %s419
                %p416 = scmp.ge.s32.totalorder %s415, 1
                %s420 = sphi %s409, %s409
                %s421 = sphi %s406, %s406
              $region86: #{fno_multi_forward.19} parent=82 // loop_header_branch
                %418 = sbr.rel (%p416) target = $region90
              $region87: #{fno_multi_forward.19} parent=82 // loop_body
                %v422 = vld [vmem:[%s420] sm:$0xff]
                %423 = vst [vmem:[%s421] sm:$0xff] %v422
                %v424 = vld [vmem:[%s420 + $0x8] sm:$0xff]
                %425 = vst [vmem:[%s421 + $0x8] sm:$0xff] %v424
                %v426 = vld [vmem:[%s420 + $0x10] sm:$0xff]
                %427 = vst [vmem:[%s421 + $0x10] sm:$0xff] %v426
                %v428 = vld [vmem:[%s420 + $0x18] sm:$0xff]
                %429 = vst [vmem:[%s421 + $0x18] sm:$0xff] %v428
                %v430 = vld [vmem:[%s420 + $0x60] sm:$0xff]
                %431 = vst [vmem:[%s421 + $0x20] sm:$0xff] %v430
                %v432 = vld [vmem:[%s420 + $0x68] sm:$0xff]
                %433 = vst [vmem:[%s421 + $0x28] sm:$0xff] %v432
                %v434 = vld [vmem:[%s420 + $0x70] sm:$0xff]
                %435 = vst [vmem:[%s421 + $0x30] sm:$0xff] %v434
                %v436 = vld [vmem:[%s420 + $0x78] sm:$0xff]
                %437 = vst [vmem:[%s421 + $0x38] sm:$0xff] %v436
              $region88: #{fno_multi_forward.19} parent=82 // loop_footer
                %s419 = sadd.s32 1, %s415
              $region89: #{fno_multi_forward.19} parent=82 // loop_footer_branch
                %414 = sbr.rel target = $region85
              $region90: #{fno_multi_forward.19} parent=82 // loop_exit
                _
            $region83: #{fno_multi_forward.19} parent=78 // pred_fallthru
              _
            // Predicated region
            $region91: #{fno_multi_forward.19} parent=78 // pred_check
              _
            $region92: #{fno_multi_forward.19} parent=78 // pred_check_branch
              %439 = sbr.rel target = $region94
            $region93: #{fno_multi_forward.19} parent=78 // pred_region
              _
            $region94: #{fno_multi_forward.19} parent=78 // pred_fallthru
              _
          $region79: #{fno_multi_forward.19} parent=74 // pred_fallthru
            _
          %440 = vnop
        $region75: #{fno_multi_forward.19} parent=47 // pred_fallthru
          _
        // Predicated region
        $region95: #{fno_multi_forward.19} parent=47 // pred_check
          %p441 = pneg %p90
        $region96: #{fno_multi_forward.19} parent=47 // pred_check_branch
          %443 = sbr.rel (%p441) target = $region98
        $region97: #{fno_multi_forward.19} parent=47 // pred_region
          %s444 = smul.u32 4, %s18
          %p445 = scmp.lt.s32.totalorder %s444, 11
          %s446 = scalar_select %p445, %s444, 11
          %s447 = smul.addr %s446, 2
          %s448 = scalar_lea.vmem %s2, %s447
          %s449 = smul.u32 4, %s18
        $region98: #{fno_multi_forward.19} parent=47 // pred_fallthru
          _
        // Predicated region
        $region99: #{fno_multi_forward.19} parent=47 // pred_check
          %p450 = pneg %p284
        $region100: #{fno_multi_forward.19} parent=47 // pred_check_branch
          %452 = sbr.rel (%p450) target = $region102
        $region101: #{fno_multi_forward.19} parent=47 // pred_region
          %s453 = sand.u32 %s274, 1
          %s454 = sand.u32 %s274, 1
          %s455 = smul.addr %s454, 64
          %s456 = scalar_lea.vmem [#allocation4], %s455
          %s457 = smul.u32 4, %s18
          %s458 = smul.addr %s457, 8
          %s459 = scalar_lea.vmem %s11, %s458
          // Predicated region
          $region103: #{fno_multi_forward.19} parent=101 // pred_check
            _
          $region104: #{fno_multi_forward.19} parent=101 // pred_check_branch
            %461 = sbr.rel (0) target = $region106
          $region105: #{fno_multi_forward.19} parent=101 // pred_region
            // Predicated region
            $region107: #{fno_multi_forward.19} parent=105 // pred_check
              _
            $region108: #{fno_multi_forward.19} parent=105 // pred_check_branch
              %463 = sbr.rel (0) target = $region110
            $region109: #{fno_multi_forward.19} parent=105 // pred_region
              loop: start=0, step=1, limit=1
              $region111: #{fno_multi_forward.19} parent=109 // loop_pre_header
                _
              $region112: #{fno_multi_forward.19} parent=109 // loop_header
                %s465 = sphi 0, %s469
                %p466 = scmp.ge.s32.totalorder %s465, 1
                %s470 = sphi %s459, %s459
                %s471 = sphi %s456, %s456
              $region113: #{fno_multi_forward.19} parent=109 // loop_header_branch
                %468 = sbr.rel (%p466) target = $region117
              $region114: #{fno_multi_forward.19} parent=109 // loop_body
                %v472 = vld [vmem:[%s470] sm:$0xff]
                %473 = vst [vmem:[%s471] sm:$0xff] %v472
                %v474 = vld [vmem:[%s470 + $0x8] sm:$0xff]
                %475 = vst [vmem:[%s471 + $0x8] sm:$0xff] %v474
                %v476 = vld [vmem:[%s470 + $0x10] sm:$0xff]
                %477 = vst [vmem:[%s471 + $0x10] sm:$0xff] %v476
                %v478 = vld [vmem:[%s470 + $0x18] sm:$0xff]
                %479 = vst [vmem:[%s471 + $0x18] sm:$0xff] %v478
                %v480 = vld [vmem:[%s470 + $0x60] sm:$0xff]
                %481 = vst [vmem:[%s471 + $0x20] sm:$0xff] %v480
                %v482 = vld [vmem:[%s470 + $0x68] sm:$0xff]
                %483 = vst [vmem:[%s471 + $0x28] sm:$0xff] %v482
                %v484 = vld [vmem:[%s470 + $0x70] sm:$0xff]
                %485 = vst [vmem:[%s471 + $0x30] sm:$0xff] %v484
                %v486 = vld [vmem:[%s470 + $0x78] sm:$0xff]
                %487 = vst [vmem:[%s471 + $0x38] sm:$0xff] %v486
              $region115: #{fno_multi_forward.19} parent=109 // loop_footer
                %s469 = sadd.s32 1, %s465
              $region116: #{fno_multi_forward.19} parent=109 // loop_footer_branch
                %464 = sbr.rel target = $region112
              $region117: #{fno_multi_forward.19} parent=109 // loop_exit
                _
            $region110: #{fno_multi_forward.19} parent=105 // pred_fallthru
              _
            // Predicated region
            $region118: #{fno_multi_forward.19} parent=105 // pred_check
              _
            $region119: #{fno_multi_forward.19} parent=105 // pred_check_branch
              %489 = sbr.rel target = $region121
            $region120: #{fno_multi_forward.19} parent=105 // pred_region
              _
            $region121: #{fno_multi_forward.19} parent=105 // pred_fallthru
              _
          $region106: #{fno_multi_forward.19} parent=101 // pred_fallthru
            _
          %490 = vnop
        $region102: #{fno_multi_forward.19} parent=47 // pred_fallthru
          _
      $region48: #{fno_multi_forward.19} parent=5 // pred_fallthru
        _
      %p491 = scmp.le.s32.totalorder 1, %s18
      %p492 = scmp.lt.s32.totalorder %s18, 4
      %p493 = pnand %p491, %p492
      %p494 = pneg %p493
      // Predicated region
      $region122: #{fno_multi_forward.19} parent=5 // pred_check
        _
      $region123: #{fno_multi_forward.19} parent=5 // pred_check_branch
        %496 = sbr.rel (%p493) target = $region125
      $region124: #{fno_multi_forward.19} parent=5 // pred_region
        %s497 = ssub.s32 %s18, 1
        %s498 = sand.u32 %s31, 1
        %s499 = sand.u32 %s31, 1
        %s500 = smul.addr %s499, 64
        %s501 = scalar_lea.vmem [#allocation2], %s500
        // Predicated region
        $region126: #{fno_multi_forward.19} parent=124 // pred_check
          %p502 = pneg %p44
        $region127: #{fno_multi_forward.19} parent=124 // pred_check_branch
          %504 = sbr.rel (%p502) target = $region129
        $region128: #{fno_multi_forward.19} parent=124 // pred_region
          _
        $region129: #{fno_multi_forward.19} parent=124 // pred_fallthru
          _
        %s505 = sand.u32 %s57, 1
        %s506 = sand.u32 %s57, 1
        %s507 = smul.addr %s506, 64
        %s508 = scalar_lea.vmem [#allocation3], %s507
        // Predicated region
        $region130: #{fno_multi_forward.19} parent=124 // pred_check
          %p509 = pneg %p70
        $region131: #{fno_multi_forward.19} parent=124 // pred_check_branch
          %511 = sbr.rel (%p509) target = $region133
        $region132: #{fno_multi_forward.19} parent=124 // pred_region
          _
        $region133: #{fno_multi_forward.19} parent=124 // pred_fallthru
          _
        %s512 = sand.u32 %s277, 1
        %s513 = sand.u32 %s277, 1
        %s514 = smul.addr %s513, 64
        %s515 = scalar_lea.vmem [#allocation4], %s514
        // Predicated region
        $region134: #{fno_multi_forward.19} parent=124 // pred_check
          %p516 = pneg %p290
        $region135: #{fno_multi_forward.19} parent=124 // pred_check_branch
          %518 = sbr.rel (%p516) target = $region137
        $region136: #{fno_multi_forward.19} parent=124 // pred_region
          _
        $region137: #{fno_multi_forward.19} parent=124 // pred_fallthru
          _
        %s519 = sand.u32 %s31, 1
        %s520 = sand.u32 %s31, 1
        %s521 = smul.addr %s520, 64
        %s522 = scalar_lea.vmem [#allocation2], %s521
        %p523 = pneg %p44
        %p524 = pneg %p41
        %s525 = sand.u32 %s57, 1
        %s526 = sand.u32 %s57, 1
        %s527 = smul.addr %s526, 64
        %s528 = scalar_lea.vmem [#allocation3], %s527
        %p529 = pneg %p70
        %p530 = pneg %p67
        %s531 = smul.u32 4, %s23
        %p532 = scmp.lt.s32.totalorder %s531, 11
        %s533 = scalar_select %p532, %s531, 11
        %s534 = smul.addr %s533, 2
        %s535 = scalar_lea.vmem %s2, %s534
        %p536 = pneg %p96
        %p537 = pneg %p93
        %p538 = pneg %p117
        %p539 = pneg %p114
        %p540 = pneg %p138
        %p541 = pneg %p135
        %p542 = pneg %p159
        %p543 = pneg %p156
        %p544 = pneg %p180
        %p545 = pneg %p177
        %p546 = pneg %p201
        %p547 = pneg %p198
        %p548 = pneg %p222
        %p549 = pneg %p219
        %p550 = pneg %p243
        %p551 = pneg %p240
        %p552 = pneg %p264
        %p553 = pneg %p261
        %s554 = sand.u32 %s277, 1
        %s555 = sand.u32 %s277, 1
        %s556 = smul.addr %s555, 64
        %s557 = scalar_lea.vmem [#allocation4], %s556
        %p558 = pneg %p290
        %p559 = pneg %p287
        %p560 = pneg %p316
        %p561 = pneg %p313
        %s562 = sand.u32 %s303, 1
        %s563 = sand.u32 %s303, 1
        %s564 = smul.addr %s563, 64
        %s565 = scalar_lea.vmem [#allocation5], %s564
        %s566 = smul.u32 4, %s23
        %s567 = smul.u32 4, %s23
        %s568 = smul.u32 4, %s23
        %p569 = scmp.lt.s32.totalorder %s568, 11
        %s570 = scalar_select %p569, %s568, 11
        %s571 = smul.addr %s570, 2
        %s572 = scalar_lea.vmem %s2, %s571
        %s573 = smul.u32 4, %s23
        %s574 = smul.u32 4, %s23
        %s575 = smul.u32 4, %s23
        %v576 = vld [vmem:[%s3] sm:$0xff]
        %v577 = vld [vmem:[%s3 + $0x8] sm:$0xff]
        %v578 = vld [vmem:[%s501] sm:$0xff]
        %v579 = vld [vmem:[%s501 + $0x8] sm:$0xff]
        %v580 = vld [vmem:[%s501 + $0x10] sm:$0xff]
        %v581 = vld [vmem:[%s501 + $0x18] sm:$0xff]
        %v582 = vld [vmem:[%s501 + $0x20] sm:$0xff]
        %v583 = vld [vmem:[%s501 + $0x28] sm:$0xff]
        %v584 = vld [vmem:[%s501 + $0x30] sm:$0xff]
        %v585 = vld [vmem:[%s501 + $0x38] sm:$0xff]
        %v586 = vld [vmem:[%s4] sm:$0xff]
        %v587 = vld [vmem:[%s4 + $0x8] sm:$0xff]
        %589 = vset.pattern.permute.xlu0 0
        %590 = vperm.xlu0 %589, %v586
        %v591 = vpop.permute.xlu0 %590
        %594 = vset.pattern.permute.xlu0 0
        %595 = vperm.xlu0 %594, %v587
        %v596 = vpop.permute.xlu0 %595
        %vm598 = vcmask 130048
        %v600 = vsel %vm598, %v576, 0
        %v603 = vsel %vm598, %v577, 0
        %605 = vmatprep.subr.mxu0 %v579
        %606 = vmatpush1.msra.mxu0 %v578
        %607 = vmatprep.subr.mxu0 %v583
        %608 = vmatpush1.msra.mxu0 %v582
        %609 = vmatprep.subr.mxu0 0.0
        %610 = vmatpush1.msra.mxu0 0.0
        %611 = vmatprep.subr.mxu0 0.0
        %612 = vmatpush1.msra.mxu0 0.0
        %613 = vmatprep.subr.mxu0 0.0
        %614 = vmatpush1.msra.mxu0 0.0
        %615 = vmatprep.subr.mxu0 0.0
        %616 = vmatpush1.msra.mxu0 0.0
        %617 = vmatprep.subr.mxu0 0.0
        %618 = vmatpush1.msra.mxu0 0.0
        %619 = vmatprep.subr.mxu0 0.0
        %620 = vmatpush1.msra.mxu0 0.0
        %621 = vmatprep.subr.mxu0 0.0
        %622 = vmatpush1.msra.mxu0 0.0
        %623 = vmatprep.subr.mxu0 0.0
        %624 = vmatpush1.msra.mxu0 0.0
        %625 = vmatprep.subr.mxu0 0.0
        %626 = vmatpush1.msra.mxu0 0.0
        %627 = vmatprep.subr.mxu0 0.0
        %628 = vmatpush1.msra.mxu0 0.0
        %629 = vmatprep.subr.mxu0 0.0
        %630 = vmatpush1.msra.mxu0 0.0
        %631 = vmatprep.subr.mxu0 0.0
        %632 = vmatpush1.msra.mxu0 0.0
        %633 = vmatprep.subr.mxu0 0.0
        %634 = vmatpush1.msra.mxu0 0.0
        %635 = vmatprep.subr.mxu0 0.0
        %636 = vmatpush1.msra.mxu0 0.0
        %637 = vmatprep.subr.mxu0 0.0
        %638 = vmatpush1.msra.mxu0 0.0
        %639 = vmatprep.subr.mxu0 0.0
        %640 = vmatpush1.msra.mxu0 0.0
        %641 = vmatprep.subr.mxu0 0.0
        %642 = vmatpush1.msra.mxu0 0.0
        %643 = vmatprep.subr.mxu0 0.0
        %644 = vmatpush1.msra.mxu0 0.0
        %645 = vmatprep.subr.mxu0 0.0
        %646 = vmatpush1.msra.mxu0 0.0
        %647 = vmatprep.subr.mxu0 0.0
        %648 = vmatpush1.msra.mxu0 0.0
        %649 = vmatprep.subr.mxu0 0.0
        %650 = vmatpush1.msra.mxu0 0.0
        %651 = vmatprep.subr.mxu0 0.0
        %652 = vmatpush1.msra.mxu0 0.0
        %653 = vmatprep.subr.mxu0 0.0
        %654 = vmatpush1.msra.mxu0 0.0
        %655 = vmatprep.subr.mxu0 0.0
        %656 = vmatpush1.msra.mxu0 0.0
        %657 = vmatprep.subr.mxu0 0.0
        %658 = vmatpush1.msra.mxu0 0.0
        %659 = vmatprep.subr.mxu0 0.0
        %660 = vmatpush1.msra.mxu0 0.0
        %661 = vmatprep.subr.mxu0 0.0
        %662 = vmatpush1.msra.mxu0 0.0
        %663 = vmatprep.subr.mxu0 0.0
        %664 = vmatpush1.msra.mxu0 0.0
        %665 = vmatprep.subr.mxu0 0.0
        %666 = vmatpush1.msra.mxu0 0.0
        %667 = vmatprep.subr.mxu0 0.0
        %668 = vmatpush1.msra.mxu0 0.0
        %669 = vmatprep.mubr.f32.mxu0 0.0
        %670 = vmatmul.mubr.f32.gmra.mrb[0].mxu0 %v600
        %v671 = vpop.f32.mrb[0].mxu0
        %v672 = vadd.f32 %v591, %v671
        %v673 = vpop.f32.mrb[0].mxu0
        %v674 = vadd.f32 %v591, %v673
        %675 = vmatprep.mubr.f32.mxu0 0.0
        %676 = vmatmul.mubr.f32.gmra.mrb[0].mxu0 %v603
        %v677 = vpop.f32.mrb[0].mxu0
        %v678 = vadd.f32 %v596, %v677
        %v679 = vpop.f32.mrb[0].mxu0
        %v680 = vadd.f32 %v596, %v679
        %681 = vdwg.mxu0
        %682 = vmatprep.subr.mxu0 %v581
        %683 = vmatpush1.msra.mxu0 %v580
        %684 = vmatprep.subr.mxu0 %v585
        %685 = vmatpush1.msra.mxu0 %v584
        %686 = vmatprep.subr.mxu0 0.0
        %687 = vmatpush1.msra.mxu0 0.0
        %688 = vmatprep.subr.mxu0 0.0
        %689 = vmatpush1.msra.mxu0 0.0
        %690 = vmatprep.subr.mxu0 0.0
        %691 = vmatpush1.msra.mxu0 0.0
        %692 = vmatprep.subr.mxu0 0.0
        %693 = vmatpush1.msra.mxu0 0.0
        %694 = vmatprep.subr.mxu0 0.0
        %695 = vmatpush1.msra.mxu0 0.0
        %696 = vmatprep.subr.mxu0 0.0
        %697 = vmatpush1.msra.mxu0 0.0
        %698 = vmatprep.subr.mxu0 0.0
        %699 = vmatpush1.msra.mxu0 0.0
        %700 = vmatprep.subr.mxu0 0.0
        %701 = vmatpush1.msra.mxu0 0.0
        %702 = vmatprep.subr.mxu0 0.0
        %703 = vmatpush1.msra.mxu0 0.0
        %704 = vmatprep.subr.mxu0 0.0
        %705 = vmatpush1.msra.mxu0 0.0
        %706 = vmatprep.subr.mxu0 0.0
        %707 = vmatpush1.msra.mxu0 0.0
        %708 = vmatprep.subr.mxu0 0.0
        %709 = vmatpush1.msra.mxu0 0.0
        %710 = vmatprep.subr.mxu0 0.0
        %711 = vmatpush1.msra.mxu0 0.0
        %712 = vmatprep.subr.mxu0 0.0
        %713 = vmatpush1.msra.mxu0 0.0
        %714 = vmatprep.subr.mxu0 0.0
        %715 = vmatpush1.msra.mxu0 0.0
        %716 = vmatprep.subr.mxu0 0.0
        %717 = vmatpush1.msra.mxu0 0.0
        %718 = vmatprep.subr.mxu0 0.0
        %719 = vmatpush1.msra.mxu0 0.0
        %720 = vmatprep.subr.mxu0 0.0
        %721 = vmatpush1.msra.mxu0 0.0
        %722 = vmatprep.subr.mxu0 0.0
        %723 = vmatpush1.msra.mxu0 0.0
        %724 = vmatprep.subr.mxu0 0.0
        %725 = vmatpush1.msra.mxu0 0.0
        %726 = vmatprep.subr.mxu0 0.0
        %727 = vmatpush1.msra.mxu0 0.0
        %728 = vmatprep.subr.mxu0 0.0
        %729 = vmatpush1.msra.mxu0 0.0
        %730 = vmatprep.subr.mxu0 0.0
        %731 = vmatpush1.msra.mxu0 0.0
        %732 = vmatprep.subr.mxu0 0.0
        %733 = vmatpush1.msra.mxu0 0.0
        %734 = vmatprep.subr.mxu0 0.0
        %735 = vmatpush1.msra.mxu0 0.0
        %736 = vmatprep.subr.mxu0 0.0
        %737 = vmatpush1.msra.mxu0 0.0
        %738 = vmatprep.subr.mxu0 0.0
        %739 = vmatpush1.msra.mxu0 0.0
        %740 = vmatprep.subr.mxu0 0.0
        %741 = vmatpush1.msra.mxu0 0.0
        %742 = vmatprep.subr.mxu0 0.0
        %743 = vmatpush1.msra.mxu0 0.0
        %744 = vmatprep.subr.mxu0 0.0
        %745 = vmatpush1.msra.mxu0 0.0
        %746 = vmatprep.mubr.f32.mxu0 0.0
        %747 = vmatmul.mubr.f32.gmra.mrb[0].mxu0 %v600
        %v748 = vpop.f32.mrb[0].mxu0
        %v749 = vadd.f32 %v591, %v748
        %v750 = vpop.f32.mrb[0].mxu0
        %v751 = vadd.f32 %v591, %v750
        %752 = vmatprep.mubr.f32.mxu0 0.0
        %753 = vmatmul.mubr.f32.gmra.mrb[0].mxu0 %v603
        %v754 = vpop.f32.mrb[0].mxu0
        %v755 = vadd.f32 %v596, %v754
        %v756 = vpop.f32.mrb[0].mxu0
        %v757 = vadd.f32 %v596, %v756
        %758 = vdwg.mxu0
        %v759 = vmul.f32 %v672, 0.5
        %v760 = vmul.f32 %v674, 0.5
        %v761 = vmul.f32 %v749, 0.5
        %v762 = vmul.f32 %v751, 0.5
        %v763 = vmul.f32 %v678, 0.5
        %v764 = vmul.f32 %v680, 0.5
        %v765 = vmul.f32 %v755, 0.5
        %v766 = vmul.f32 %v757, 0.5
        %v767 = vmul.f32 %v672, 0.70710677
        %v768 = vmul.f32 %v674, 0.70710677
        %v769 = vmul.f32 %v749, 0.70710677
        %v770 = vmul.f32 %v751, 0.70710677
        %v771 = vmul.f32 %v678, 0.70710677
        %v772 = vmul.f32 %v680, 0.70710677
        %v773 = vmul.f32 %v755, 0.70710677
        %v774 = vmul.f32 %v757, 0.70710677
        %v775 = verf.f32.pop %v767
        %v776 = verf.f32.pop %v768
        %v777 = verf.f32.pop %v769
        %v778 = verf.f32.pop %v770
        %v779 = verf.f32.pop %v771
        %v780 = verf.f32.pop %v772
        %v781 = verf.f32.pop %v773
        %v782 = verf.f32.pop %v774
        %v783 = vadd.f32 %v775, 1.0
        %v784 = vadd.f32 %v776, 1.0
        %v785 = vadd.f32 %v777, 1.0
        %v786 = vadd.f32 %v778, 1.0
        %v787 = vadd.f32 %v779, 1.0
        %v788 = vadd.f32 %v780, 1.0
        %v789 = vadd.f32 %v781, 1.0
        %v790 = vadd.f32 %v782, 1.0
        %v791 = vmul.f32 %v759, %v783
        %v792 = vmul.f32 %v760, %v784
        %v793 = vmul.f32 %v761, %v785
        %v794 = vmul.f32 %v762, %v786
        %v795 = vmul.f32 %v763, %v787
        %v796 = vmul.f32 %v764, %v788
        %v797 = vmul.f32 %v765, %v789
        %v798 = vmul.f32 %v766, %v790
        %v799 = vld [vmem:[%s5] sm:$0xff]
        %v800 = vld [vmem:[%s5 + $0x8] sm:$0xff]
        %v801 = vld [vmem:[%s6] sm:$0xff]
        %v802 = vld [vmem:[%s6 + $0x8] sm:$0xff]
        %804 = vset.pattern.permute.xlu0 0
        %805 = vperm.xlu0 %804, %v801
        %v806 = vpop.permute.xlu0 %805
        %809 = vset.pattern.permute.xlu0 0
        %810 = vperm.xlu0 %809, %v802
        %v811 = vpop.permute.xlu0 %810
        %v814 = vsel %vm598, %v799, 0
        %v817 = vsel %vm598, %v800, 0
        %819 = vmatprep.subr.mxu0 %v792
        %820 = vmatpush1.msra.mxu0 %v791
        %821 = vmatprep.subr.mxu0 %v796
        %822 = vmatpush1.msra.mxu0 %v795
        %823 = vmatprep.subr.mxu0 0.0
        %824 = vmatpush1.msra.mxu0 0.0
        %825 = vmatprep.subr.mxu0 0.0
        %826 = vmatpush1.msra.mxu0 0.0
        %827 = vmatprep.subr.mxu0 0.0
        %828 = vmatpush1.msra.mxu0 0.0
        %829 = vmatprep.subr.mxu0 0.0
        %830 = vmatpush1.msra.mxu0 0.0
        %831 = vmatprep.subr.mxu0 0.0
        %832 = vmatpush1.msra.mxu0 0.0
        %833 = vmatprep.subr.mxu0 0.0
        %834 = vmatpush1.msra.mxu0 0.0
        %835 = vmatprep.subr.mxu0 0.0
        %836 = vmatpush1.msra.mxu0 0.0
        %837 = vmatprep.subr.mxu0 0.0
        %838 = vmatpush1.msra.mxu0 0.0
        %839 = vmatprep.subr.mxu0 0.0
        %840 = vmatpush1.msra.mxu0 0.0
        %841 = vmatprep.subr.mxu0 0.0
        %842 = vmatpush1.msra.mxu0 0.0
        %843 = vmatprep.subr.mxu0 0.0
        %844 = vmatpush1.msra.mxu0 0.0
        %845 = vmatprep.subr.mxu0 0.0
        %846 = vmatpush1.msra.mxu0 0.0
        %847 = vmatprep.subr.mxu0 0.0
        %848 = vmatpush1.msra.mxu0 0.0
        %849 = vmatprep.subr.mxu0 0.0
        %850 = vmatpush1.msra.mxu0 0.0
        %851 = vmatprep.subr.mxu0 0.0
        %852 = vmatpush1.msra.mxu0 0.0
        %853 = vmatprep.subr.mxu0 0.0
        %854 = vmatpush1.msra.mxu0 0.0
        %855 = vmatprep.subr.mxu0 0.0
        %856 = vmatpush1.msra.mxu0 0.0
        %857 = vmatprep.subr.mxu0 0.0
        %858 = vmatpush1.msra.mxu0 0.0
        %859 = vmatprep.subr.mxu0 0.0
        %860 = vmatpush1.msra.mxu0 0.0
        %861 = vmatprep.subr.mxu0 0.0
        %862 = vmatpush1.msra.mxu0 0.0
        %863 = vmatprep.subr.mxu0 0.0
        %864 = vmatpush1.msra.mxu0 0.0
        %865 = vmatprep.subr.mxu0 0.0
        %866 = vmatpush1.msra.mxu0 0.0
        %867 = vmatprep.subr.mxu0 0.0
        %868 = vmatpush1.msra.mxu0 0.0
        %869 = vmatprep.subr.mxu0 0.0
        %870 = vmatpush1.msra.mxu0 0.0
        %871 = vmatprep.subr.mxu0 0.0
        %872 = vmatpush1.msra.mxu0 0.0
        %873 = vmatprep.subr.mxu0 0.0
        %874 = vmatpush1.msra.mxu0 0.0
        %875 = vmatprep.subr.mxu0 0.0
        %876 = vmatpush1.msra.mxu0 0.0
        %877 = vmatprep.subr.mxu0 0.0
        %878 = vmatpush1.msra.mxu0 0.0
        %879 = vmatprep.subr.mxu0 0.0
        %880 = vmatpush1.msra.mxu0 0.0
        %881 = vmatprep.subr.mxu0 0.0
        %882 = vmatpush1.msra.mxu0 0.0
        %883 = vmatprep.mubr.f32.mxu0 0.0
        %884 = vmatmul.mubr.f32.gmra.mrb[0].mxu0 %v814
        %v885 = vpop.f32.mrb[0].mxu0
        %v886 = vadd.f32 %v806, %v885
        %v887 = vpop.f32.mrb[0].mxu0
        %v888 = vadd.f32 %v806, %v887
        %889 = vmatprep.mubr.f32.mxu0 0.0
        %890 = vmatmul.mubr.f32.gmra.mrb[0].mxu0 %v817
        %v891 = vpop.f32.mrb[0].mxu0
        %v892 = vadd.f32 %v811, %v891
        %v893 = vpop.f32.mrb[0].mxu0
        %v894 = vadd.f32 %v811, %v893
        %895 = vdwg.mxu0
        %896 = vmatprep.subr.mxu0 %v794
        %897 = vmatpush1.msra.mxu0 %v793
        %898 = vmatprep.subr.mxu0 %v798
        %899 = vmatpush1.msra.mxu0 %v797
        %900 = vmatprep.subr.mxu0 0.0
        %901 = vmatpush1.msra.mxu0 0.0
        %902 = vmatprep.subr.mxu0 0.0
        %903 = vmatpush1.msra.mxu0 0.0
        %904 = vmatprep.subr.mxu0 0.0
        %905 = vmatpush1.msra.mxu0 0.0
        %906 = vmatprep.subr.mxu0 0.0
        %907 = vmatpush1.msra.mxu0 0.0
        %908 = vmatprep.subr.mxu0 0.0
        %909 = vmatpush1.msra.mxu0 0.0
        %910 = vmatprep.subr.mxu0 0.0
        %911 = vmatpush1.msra.mxu0 0.0
        %912 = vmatprep.subr.mxu0 0.0
        %913 = vmatpush1.msra.mxu0 0.0
        %914 = vmatprep.subr.mxu0 0.0
        %915 = vmatpush1.msra.mxu0 0.0
        %916 = vmatprep.subr.mxu0 0.0
        %917 = vmatpush1.msra.mxu0 0.0
        %918 = vmatprep.subr.mxu0 0.0
        %919 = vmatpush1.msra.mxu0 0.0
        %920 = vmatprep.subr.mxu0 0.0
        %921 = vmatpush1.msra.mxu0 0.0
        %922 = vmatprep.subr.mxu0 0.0
        %923 = vmatpush1.msra.mxu0 0.0
        %924 = vmatprep.subr.mxu0 0.0
        %925 = vmatpush1.msra.mxu0 0.0
        %926 = vmatprep.subr.mxu0 0.0
        %927 = vmatpush1.msra.mxu0 0.0
        %928 = vmatprep.subr.mxu0 0.0
        %929 = vmatpush1.msra.mxu0 0.0
        %930 = vmatprep.subr.mxu0 0.0
        %931 = vmatpush1.msra.mxu0 0.0
        %932 = vmatprep.subr.mxu0 0.0
        %933 = vmatpush1.msra.mxu0 0.0
        %934 = vmatprep.subr.mxu0 0.0
        %935 = vmatpush1.msra.mxu0 0.0
        %936 = vmatprep.subr.mxu0 0.0
        %937 = vmatpush1.msra.mxu0 0.0
        %938 = vmatprep.subr.mxu0 0.0
        %939 = vmatpush1.msra.mxu0 0.0
        %940 = vmatprep.subr.mxu0 0.0
        %941 = vmatpush1.msra.mxu0 0.0
        %942 = vmatprep.subr.mxu0 0.0
        %943 = vmatpush1.msra.mxu0 0.0
        %944 = vmatprep.subr.mxu0 0.0
        %945 = vmatpush1.msra.mxu0 0.0
        %946 = vmatprep.subr.mxu0 0.0
        %947 = vmatpush1.msra.mxu0 0.0
        %948 = vmatprep.subr.mxu0 0.0
        %949 = vmatpush1.msra.mxu0 0.0
        %950 = vmatprep.subr.mxu0 0.0
        %951 = vmatpush1.msra.mxu0 0.0
        %952 = vmatprep.subr.mxu0 0.0
        %953 = vmatpush1.msra.mxu0 0.0
        %954 = vmatprep.subr.mxu0 0.0
        %955 = vmatpush1.msra.mxu0 0.0
        %956 = vmatprep.subr.mxu0 0.0
        %957 = vmatpush1.msra.mxu0 0.0
        %958 = vmatprep.subr.mxu0 0.0
        %959 = vmatpush1.msra.mxu0 0.0
        %960 = vmatprep.mubr.f32.mxu0 0.0
        %961 = vmatmul.mubr.f32.gmra.mrb[0].mxu0 %v814
        %v962 = vpop.f32.mrb[0].mxu0
        %v963 = vadd.f32 %v806, %v962
        %v964 = vpop.f32.mrb[0].mxu0
        %v965 = vadd.f32 %v806, %v964
        %966 = vmatprep.mubr.f32.mxu0 0.0
        %967 = vmatmul.mubr.f32.gmra.mrb[0].mxu0 %v817
        %v968 = vpop.f32.mrb[0].mxu0
        %v969 = vadd.f32 %v811, %v968
        %v970 = vpop.f32.mrb[0].mxu0
        %v971 = vadd.f32 %v811, %v970
        %972 = vdwg.mxu0
        %v973 = vld [vmem:[%s7] sm:$0xff]
        %v974 = vld [vmem:[%s7 + $0x8] sm:$0xff]
        %v975 = vld [vmem:[%s508] sm:$0xff]
        %v976 = vld [vmem:[%s508 + $0x8] sm:$0xff]
        %v977 = vld [vmem:[%s508 + $0x10] sm:$0xff]
        %v978 = vld [vmem:[%s508 + $0x18] sm:$0xff]
        %v979 = vld [vmem:[%s508 + $0x20] sm:$0xff]
        %v980 = vld [vmem:[%s508 + $0x28] sm:$0xff]
        %v981 = vld [vmem:[%s508 + $0x30] sm:$0xff]
        %v982 = vld [vmem:[%s508 + $0x38] sm:$0xff]
        %v984 = vsel %vm598, %v973, 0
        %v987 = vsel %vm598, %v974, 0
        %989 = vmatprep.subr.mxu0 %v976
        %990 = vmatpush1.msra.mxu0 %v975
        %991 = vmatprep.subr.mxu0 %v980
        %992 = vmatpush1.msra.mxu0 %v979
        %993 = vmatprep.subr.mxu0 0.0
        %994 = vmatpush1.msra.mxu0 0.0
        %995 = vmatprep.subr.mxu0 0.0
        %996 = vmatpush1.msra.mxu0 0.0
        %997 = vmatprep.subr.mxu0 0.0
        %998 = vmatpush1.msra.mxu0 0.0
        %999 = vmatprep.subr.mxu0 0.0
        %1000 = vmatpush1.msra.mxu0 0.0
        %1001 = vmatprep.subr.mxu0 0.0
        %1002 = vmatpush1.msra.mxu0 0.0
        %1003 = vmatprep.subr.mxu0 0.0
        %1004 = vmatpush1.msra.mxu0 0.0
        %1005 = vmatprep.subr.mxu0 0.0
        %1006 = vmatpush1.msra.mxu0 0.0
        %1007 = vmatprep.subr.mxu0 0.0
        %1008 = vmatpush1.msra.mxu0 0.0
        %1009 = vmatprep.subr.mxu0 0.0
        %1010 = vmatpush1.msra.mxu0 0.0
        %1011 = vmatprep.subr.mxu0 0.0
        %1012 = vmatpush1.msra.mxu0 0.0
        %1013 = vmatprep.subr.mxu0 0.0
        %1014 = vmatpush1.msra.mxu0 0.0
        %1015 = vmatprep.subr.mxu0 0.0
        %1016 = vmatpush1.msra.mxu0 0.0
        %1017 = vmatprep.subr.mxu0 0.0
        %1018 = vmatpush1.msra.mxu0 0.0
        %1019 = vmatprep.subr.mxu0 0.0
        %1020 = vmatpush1.msra.mxu0 0.0
        %1021 = vmatprep.subr.mxu0 0.0
        %1022 = vmatpush1.msra.mxu0 0.0
        %1023 = vmatprep.subr.mxu0 0.0
        %1024 = vmatpush1.msra.mxu0 0.0
        %1025 = vmatprep.subr.mxu0 0.0
        %1026 = vmatpush1.msra.mxu0 0.0
        %1027 = vmatprep.subr.mxu0 0.0
        %1028 = vmatpush1.msra.mxu0 0.0
        %1029 = vmatprep.subr.mxu0 0.0
        %1030 = vmatpush1.msra.mxu0 0.0
        %1031 = vmatprep.subr.mxu0 0.0
        %1032 = vmatpush1.msra.mxu0 0.0
        %1033 = vmatprep.subr.mxu0 0.0
        %1034 = vmatpush1.msra.mxu0 0.0
        %1035 = vmatprep.subr.mxu0 0.0
        %1036 = vmatpush1.msra.mxu0 0.0
        %1037 = vmatprep.subr.mxu0 0.0
        %1038 = vmatpush1.msra.mxu0 0.0
        %1039 = vmatprep.subr.mxu0 0.0
        %1040 = vmatpush1.msra.mxu0 0.0
        %1041 = vmatprep.subr.mxu0 0.0
        %1042 = vmatpush1.msra.mxu0 0.0
        %1043 = vmatprep.subr.mxu0 0.0
        %1044 = vmatpush1.msra.mxu0 0.0
        %1045 = vmatprep.subr.mxu0 0.0
        %1046 = vmatpush1.msra.mxu0 0.0
        %1047 = vmatprep.subr.mxu0 0.0
        %1048 = vmatpush1.msra.mxu0 0.0
        %1049 = vmatprep.subr.mxu0 0.0
        %1050 = vmatpush1.msra.mxu0 0.0
        %1051 = vmatprep.subr.mxu0 0.0
        %1052 = vmatpush1.msra.mxu0 0.0
        %1053 = vmatprep.mubr.f32.mxu0 0.0
        %1054 = vmatmul.mubr.f32.gmra.mrb[0].mxu0 %v984
        %v1055 = vpop.f32.mrb[0].mxu0
        %v1056 = vadd.f32 0.0, %v1055
        %v1057 = vpop.f32.mrb[0].mxu0
        %v1058 = vadd.f32 0.0, %v1057
        %1059 = vmatprep.mubr.f32.mxu0 0.0
        %1060 = vmatmul.mubr.f32.gmra.mrb[0].mxu0 %v987
        %v1061 = vpop.f32.mrb[0].mxu0
        %v1062 = vadd.f32 0.0, %v1061
        %v1063 = vpop.f32.mrb[0].mxu0
        %v1064 = vadd.f32 0.0, %v1063
        %1065 = vdwg.mxu0
        %1066 = vmatprep.subr.mxu0 %v978
        %1067 = vmatpush1.msra.mxu0 %v977
        %1068 = vmatprep.subr.mxu0 %v982
        %1069 = vmatpush1.msra.mxu0 %v981
        %1070 = vmatprep.subr.mxu0 0.0
        %1071 = vmatpush1.msra.mxu0 0.0
        %1072 = vmatprep.subr.mxu0 0.0
        %1073 = vmatpush1.msra.mxu0 0.0
        %1074 = vmatprep.subr.mxu0 0.0
        %1075 = vmatpush1.msra.mxu0 0.0
        %1076 = vmatprep.subr.mxu0 0.0
        %1077 = vmatpush1.msra.mxu0 0.0
        %1078 = vmatprep.subr.mxu0 0.0
        %1079 = vmatpush1.msra.mxu0 0.0
        %1080 = vmatprep.subr.mxu0 0.0
        %1081 = vmatpush1.msra.mxu0 0.0
        %1082 = vmatprep.subr.mxu0 0.0
        %1083 = vmatpush1.msra.mxu0 0.0
        %1084 = vmatprep.subr.mxu0 0.0
        %1085 = vmatpush1.msra.mxu0 0.0
        %1086 = vmatprep.subr.mxu0 0.0
        %1087 = vmatpush1.msra.mxu0 0.0
        %1088 = vmatprep.subr.mxu0 0.0
        %1089 = vmatpush1.msra.mxu0 0.0
        %1090 = vmatprep.subr.mxu0 0.0
        %1091 = vmatpush1.msra.mxu0 0.0
        %1092 = vmatprep.subr.mxu0 0.0
        %1093 = vmatpush1.msra.mxu0 0.0
        %1094 = vmatprep.subr.mxu0 0.0
        %1095 = vmatpush1.msra.mxu0 0.0
        %1096 = vmatprep.subr.mxu0 0.0
        %1097 = vmatpush1.msra.mxu0 0.0
        %1098 = vmatprep.subr.mxu0 0.0
        %1099 = vmatpush1.msra.mxu0 0.0
        %1100 = vmatprep.subr.mxu0 0.0
        %1101 = vmatpush1.msra.mxu0 0.0
        %1102 = vmatprep.subr.mxu0 0.0
        %1103 = vmatpush1.msra.mxu0 0.0
        %1104 = vmatprep.subr.mxu0 0.0
        %1105 = vmatpush1.msra.mxu0 0.0
        %1106 = vmatprep.subr.mxu0 0.0
        %1107 = vmatpush1.msra.mxu0 0.0
        %1108 = vmatprep.subr.mxu0 0.0
        %1109 = vmatpush1.msra.mxu0 0.0
        %1110 = vmatprep.subr.mxu0 0.0
        %1111 = vmatpush1.msra.mxu0 0.0
        %1112 = vmatprep.subr.mxu0 0.0
        %1113 = vmatpush1.msra.mxu0 0.0
        %1114 = vmatprep.subr.mxu0 0.0
        %1115 = vmatpush1.msra.mxu0 0.0
        %1116 = vmatprep.subr.mxu0 0.0
        %1117 = vmatpush1.msra.mxu0 0.0
        %1118 = vmatprep.subr.mxu0 0.0
        %1119 = vmatpush1.msra.mxu0 0.0
        %1120 = vmatprep.subr.mxu0 0.0
        %1121 = vmatpush1.msra.mxu0 0.0
        %1122 = vmatprep.subr.mxu0 0.0
        %1123 = vmatpush1.msra.mxu0 0.0
        %1124 = vmatprep.subr.mxu0 0.0
        %1125 = vmatpush1.msra.mxu0 0.0
        %1126 = vmatprep.subr.mxu0 0.0
        %1127 = vmatpush1.msra.mxu0 0.0
        %1128 = vmatprep.subr.mxu0 0.0
        %1129 = vmatpush1.msra.mxu0 0.0
        %1130 = vmatprep.mubr.f32.mxu0 0.0
        %1131 = vmatmul.mubr.f32.gmra.mrb[0].mxu0 %v984
        %v1132 = vpop.f32.mrb[0].mxu0
        %v1133 = vadd.f32 0.0, %v1132
        %v1134 = vpop.f32.mrb[0].mxu0
        %v1135 = vadd.f32 0.0, %v1134
        %1136 = vmatprep.mubr.f32.mxu0 0.0
        %1137 = vmatmul.mubr.f32.gmra.mrb[0].mxu0 %v987
        %v1138 = vpop.f32.mrb[0].mxu0
        %v1139 = vadd.f32 0.0, %v1138
        %v1140 = vpop.f32.mrb[0].mxu0
        %v1141 = vadd.f32 0.0, %v1140
        %1142 = vdwg.mxu0
        %v1143 = vadd.f32 %v886, %v1056
        %v1144 = vadd.f32 %v888, %v1058
        %v1145 = vadd.f32 %v963, %v1133
        %v1146 = vadd.f32 %v965, %v1135
        %v1147 = vadd.f32 %v892, %v1062
        %v1148 = vadd.f32 %v894, %v1064
        %v1149 = vadd.f32 %v969, %v1139
        %v1150 = vadd.f32 %v971, %v1141
        %v1151 = vld [vmem:[%s8] sm:$0xff]
        %v1152 = vld [vmem:[%s8 + $0x8] sm:$0xff]
        %1154 = vset.pattern.permute.xlu0 0
        %1155 = vperm.xlu0 %1154, %v1151
        %v1156 = vpop.permute.xlu0 %1155
        %1159 = vset.pattern.permute.xlu0 0
        %1160 = vperm.xlu0 %1159, %v1152
        %v1161 = vpop.permute.xlu0 %1160
        %v1163 = vadd.f32 %v1143, %v1156
        %v1164 = vadd.f32 %v1144, %v1156
        %v1165 = vadd.f32 %v1145, %v1156
        %v1166 = vadd.f32 %v1146, %v1156
        %v1167 = vadd.f32 %v1147, %v1161
        %v1168 = vadd.f32 %v1148, %v1161
        %v1169 = vadd.f32 %v1149, %v1161
        %v1170 = vadd.f32 %v1150, %v1161
        %v1171 = vld [vmem:[%s572] sm:$0xff]
        %v1172 = vld [vmem:[%s9] sm:$0xff]
        %v1173 = vld [vmem:[%s9 + $0x8] sm:$0xff]
        %1175 = vset.pattern.permute.xlu0 0
        %1176 = vperm.xlu0 %1175, %v1172
        %v1177 = vpop.permute.xlu0 %1176
        %1180 = vset.pattern.permute.xlu0 0
        %1181 = vperm.xlu0 %1180, %v1173
        %v1182 = vpop.permute.xlu0 %1181
        %v1185 = vlaneseq
        %v1186 = vshrl.u32 %v1185, 7
        %v1187 = vsub.s32 0, %v1186
        %v1188 = vrot.slane %v1171, %v1187
        %v1189 = vlaneseq
        %v1190 = vshrl.u32 %v1189, 7
        %v1191 = vsub.s32 2, %v1190
        %v1192 = vrot.slane %v1171, %v1191
        %v1193 = vlaneseq
        %v1194 = vshrl.u32 %v1193, 7
        %v1195 = vsub.s32 4, %v1194
        %v1196 = vrot.slane %v1171, %v1195
        %v1197 = vlaneseq
        %v1198 = vshrl.u32 %v1197, 7
        %v1199 = vsub.s32 6, %v1198
        %v1200 = vrot.slane %v1171, %v1199
        %v1205 = vlaneseq
        %v1206 = vshrl.u32 %v1205, 7
        %v1207 = vsub.s32 0, %v1206
        %v1208 = vrot.slane %v1188, %v1207
        %v1209 = vlaneseq
        %v1210 = vshrl.u32 %v1209, 7
        %v1211 = vsub.s32 0, %v1210
        %v1212 = vrot.slane %v1192, %v1211
        %v1213 = vlaneseq
        %v1214 = vshrl.u32 %v1213, 7
        %v1215 = vsub.s32 0, %v1214
        %v1216 = vrot.slane %v1196, %v1215
        %v1217 = vlaneseq
        %v1218 = vshrl.u32 %v1217, 7
        %v1219 = vsub.s32 0, %v1218
        %v1220 = vrot.slane %v1200, %v1219
        %v1221 = vmul.f32 %v1177, %v1208
        %v1222 = vmul.f32 %v1177, %v1212
        %v1223 = vmul.f32 %v1177, %v1216
        %v1224 = vmul.f32 %v1177, %v1220
        %v1225 = vmul.f32 %v1182, %v1208
        %v1226 = vmul.f32 %v1182, %v1212
        %v1227 = vmul.f32 %v1182, %v1216
        %v1228 = vmul.f32 %v1182, %v1220
        %v1229 = vadd.f32 %v1163, %v1221
        %v1230 = vadd.f32 %v1164, %v1222
        %v1231 = vadd.f32 %v1165, %v1223
        %v1232 = vadd.f32 %v1166, %v1224
        %v1233 = vadd.f32 %v1167, %v1225
        %v1234 = vadd.f32 %v1168, %v1226
        %v1235 = vadd.f32 %v1169, %v1227
        %v1236 = vadd.f32 %v1170, %v1228
        %1237 = vset.pattern.permute.xlu0 1
        %1238 = vperm.xlu0 %1237, %v1172
        %v1239 = vpop.permute.xlu0 %1238
        %1241 = vset.pattern.permute.xlu0 1
        %1242 = vperm.xlu0 %1241, %v1173
        %v1243 = vpop.permute.xlu0 %1242
        %v1245 = vlaneseq
        %v1246 = vshrl.u32 %v1245, 7
        %v1247 = vsub.s32 1, %v1246
        %v1248 = vrot.slane %v1171, %v1247
        %v1249 = vlaneseq
        %v1250 = vshrl.u32 %v1249, 7
        %v1251 = vsub.s32 3, %v1250
        %v1252 = vrot.slane %v1171, %v1251
        %v1253 = vlaneseq
        %v1254 = vshrl.u32 %v1253, 7
        %v1255 = vsub.s32 5, %v1254
        %v1256 = vrot.slane %v1171, %v1255
        %v1257 = vlaneseq
        %v1258 = vshrl.u32 %v1257, 7
        %v1259 = vsub.s32 7, %v1258
        %v1260 = vrot.slane %v1171, %v1259
        %v1265 = vlaneseq
        %v1266 = vshrl.u32 %v1265, 7
        %v1267 = vsub.s32 1, %v1266
        %v1268 = vrot.slane %v1248, %v1267
        %v1269 = vlaneseq
        %v1270 = vshrl.u32 %v1269, 7
        %v1271 = vsub.s32 1, %v1270
        %v1272 = vrot.slane %v1252, %v1271
        %v1273 = vlaneseq
        %v1274 = vshrl.u32 %v1273, 7
        %v1275 = vsub.s32 1, %v1274
        %v1276 = vrot.slane %v1256, %v1275
        %v1277 = vlaneseq
        %v1278 = vshrl.u32 %v1277, 7
        %v1279 = vsub.s32 1, %v1278
        %v1280 = vrot.slane %v1260, %v1279
        %v1281 = vmul.f32 %v1239, %v1268
        %v1282 = vmul.f32 %v1239, %v1272
        %v1283 = vmul.f32 %v1239, %v1276
        %v1284 = vmul.f32 %v1239, %v1280
        %v1285 = vmul.f32 %v1243, %v1268
        %v1286 = vmul.f32 %v1243, %v1272
        %v1287 = vmul.f32 %v1243, %v1276
        %v1288 = vmul.f32 %v1243, %v1280
        %v1289 = vadd.f32 %v1229, %v1281
        %v1290 = vadd.f32 %v1230, %v1282
        %v1291 = vadd.f32 %v1231, %v1283
        %v1292 = vadd.f32 %v1232, %v1284
        %v1293 = vadd.f32 %v1233, %v1285
        %v1294 = vadd.f32 %v1234, %v1286
        %v1295 = vadd.f32 %v1235, %v1287
        %v1296 = vadd.f32 %v1236, %v1288
        %v1297 = vld [vmem:[%s10] sm:$0xff]
        %v1298 = vld [vmem:[%s10 + $0x8] sm:$0xff]
        %1300 = vset.pattern.permute.xlu0 0
        %1301 = vperm.xlu0 %1300, %v1297
        %v1302 = vpop.permute.xlu0 %1301
        %1305 = vset.pattern.permute.xlu0 0
        %1306 = vperm.xlu0 %1305, %v1298
        %v1307 = vpop.permute.xlu0 %1306
        %v1309 = vadd.f32 %v1289, %v1302
        %v1310 = vadd.f32 %v1290, %v1302
        %v1311 = vadd.f32 %v1291, %v1302
        %v1312 = vadd.f32 %v1292, %v1302
        %v1313 = vadd.f32 %v1293, %v1307
        %v1314 = vadd.f32 %v1294, %v1307
        %v1315 = vadd.f32 %v1295, %v1307
        %v1316 = vadd.f32 %v1296, %v1307
        %v1317 = vmul.f32 %v1309, 0.5
        %v1318 = vmul.f32 %v1310, 0.5
        %v1319 = vmul.f32 %v1311, 0.5
        %v1320 = vmul.f32 %v1312, 0.5
        %v1321 = vmul.f32 %v1313, 0.5
        %v1322 = vmul.f32 %v1314, 0.5
        %v1323 = vmul.f32 %v1315, 0.5
        %v1324 = vmul.f32 %v1316, 0.5
        %v1325 = vmul.f32 %v1309, 0.70710677
        %v1326 = vmul.f32 %v1310, 0.70710677
        %v1327 = vmul.f32 %v1311, 0.70710677
        %v1328 = vmul.f32 %v1312, 0.70710677
        %v1329 = vmul.f32 %v1313, 0.70710677
        %v1330 = vmul.f32 %v1314, 0.70710677
        %v1331 = vmul.f32 %v1315, 0.70710677
        %v1332 = vmul.f32 %v1316, 0.70710677
        %v1333 = verf.f32.pop %v1325
        %v1334 = verf.f32.pop %v1326
        %v1335 = verf.f32.pop %v1327
        %v1336 = verf.f32.pop %v1328
        %v1337 = verf.f32.pop %v1329
        %v1338 = verf.f32.pop %v1330
        %v1339 = verf.f32.pop %v1331
        %v1340 = verf.f32.pop %v1332
        %v1341 = vadd.f32 %v1333, 1.0
        %v1342 = vadd.f32 %v1334, 1.0
        %v1343 = vadd.f32 %v1335, 1.0
        %v1344 = vadd.f32 %v1336, 1.0
        %v1345 = vadd.f32 %v1337, 1.0
        %v1346 = vadd.f32 %v1338, 1.0
        %v1347 = vadd.f32 %v1339, 1.0
        %v1348 = vadd.f32 %v1340, 1.0
        %v1349 = vmul.f32 %v1317, %v1341
        %v1350 = vmul.f32 %v1318, %v1342
        %v1351 = vmul.f32 %v1319, %v1343
        %v1352 = vmul.f32 %v1320, %v1344
        %v1353 = vmul.f32 %v1321, %v1345
        %v1354 = vmul.f32 %v1322, %v1346
        %v1355 = vmul.f32 %v1323, %v1347
        %v1356 = vmul.f32 %v1324, %v1348
        %v1357 = vld [vmem:[%s515] sm:$0xff]
        %v1358 = vld [vmem:[%s515 + $0x8] sm:$0xff]
        %v1359 = vld [vmem:[%s515 + $0x10] sm:$0xff]
        %v1360 = vld [vmem:[%s515 + $0x18] sm:$0xff]
        %v1361 = vld [vmem:[%s515 + $0x20] sm:$0xff]
        %v1362 = vld [vmem:[%s515 + $0x28] sm:$0xff]
        %v1363 = vld [vmem:[%s515 + $0x30] sm:$0xff]
        %v1364 = vld [vmem:[%s515 + $0x38] sm:$0xff]
        %v1365 = vadd.f32 %v1349, %v1357
        %v1366 = vadd.f32 %v1350, %v1358
        %v1367 = vadd.f32 %v1351, %v1359
        %v1368 = vadd.f32 %v1352, %v1360
        %v1369 = vadd.f32 %v1353, %v1361
        %v1370 = vadd.f32 %v1354, %v1362
        %v1371 = vadd.f32 %v1355, %v1363
        %v1372 = vadd.f32 %v1356, %v1364
        %1373 = vst [vmem:[%s565] sm:$0xff] %v1365
        %1374 = vst [vmem:[%s565 + $0x8] sm:$0xff] %v1366
        %1375 = vst [vmem:[%s565 + $0x10] sm:$0xff] %v1367
        %1376 = vst [vmem:[%s565 + $0x18] sm:$0xff] %v1368
        %1377 = vst [vmem:[%s565 + $0x20] sm:$0xff] %v1369
        %1378 = vst [vmem:[%s565 + $0x28] sm:$0xff] %v1370
        %1379 = vst [vmem:[%s565 + $0x30] sm:$0xff] %v1371
        %1380 = vst [vmem:[%s565 + $0x38] sm:$0xff] %v1372
        %s1381 = sand.u32 %s303, 1
        %s1382 = sand.u32 %s303, 1
        %s1383 = smul.addr %s1382, 64
        %s1384 = scalar_lea.vmem [#allocation5], %s1383
        // Predicated region
        $region138: #{fno_multi_forward.19} parent=124 // pred_check
          %p1385 = pneg %p313
        $region139: #{fno_multi_forward.19} parent=124 // pred_check_branch
          %1387 = sbr.rel (%p1385) target = $region141
        $region140: #{fno_multi_forward.19} parent=124 // pred_region
          %s1388 = smul.u32 4, %s23
          %s1389 = smul.addr %s1388, 8
          %s1390 = scalar_lea.vmem %s12, %s1389
          // Predicated region
          $region142: #{fno_multi_forward.19} parent=140 // pred_check
            _
          $region143: #{fno_multi_forward.19} parent=140 // pred_check_branch
            %1392 = sbr.rel (0) target = $region145
          $region144: #{fno_multi_forward.19} parent=140 // pred_region
            // Predicated region
            $region146: #{fno_multi_forward.19} parent=144 // pred_check
              _
            $region147: #{fno_multi_forward.19} parent=144 // pred_check_branch
              %1394 = sbr.rel (0) target = $region149
            $region148: #{fno_multi_forward.19} parent=144 // pred_region
              loop: start=0, step=1, limit=1
              $region150: #{fno_multi_forward.19} parent=148 // loop_pre_header
                _
              $region151: #{fno_multi_forward.19} parent=148 // loop_header
                %s1396 = sphi 0, %s1400
                %p1397 = scmp.ge.s32.totalorder %s1396, 1
                %s1401 = sphi %s1384, %s1384
                %s1402 = sphi %s1390, %s1390
              $region152: #{fno_multi_forward.19} parent=148 // loop_header_branch
                %1399 = sbr.rel (%p1397) target = $region156
              $region153: #{fno_multi_forward.19} parent=148 // loop_body
                %v1403 = vld [vmem:[%s1401] sm:$0xff]
                %1404 = vst [vmem:[%s1402] sm:$0xff] %v1403
                %v1405 = vld [vmem:[%s1401 + $0x8] sm:$0xff]
                %1406 = vst [vmem:[%s1402 + $0x8] sm:$0xff] %v1405
                %v1407 = vld [vmem:[%s1401 + $0x10] sm:$0xff]
                %1408 = vst [vmem:[%s1402 + $0x10] sm:$0xff] %v1407
                %v1409 = vld [vmem:[%s1401 + $0x18] sm:$0xff]
                %1410 = vst [vmem:[%s1402 + $0x18] sm:$0xff] %v1409
                %v1411 = vld [vmem:[%s1401 + $0x20] sm:$0xff]
                %1412 = vst [vmem:[%s1402 + $0x60] sm:$0xff] %v1411
                %v1413 = vld [vmem:[%s1401 + $0x28] sm:$0xff]
                %1414 = vst [vmem:[%s1402 + $0x68] sm:$0xff] %v1413
                %v1415 = vld [vmem:[%s1401 + $0x30] sm:$0xff]
                %1416 = vst [vmem:[%s1402 + $0x70] sm:$0xff] %v1415
                %v1417 = vld [vmem:[%s1401 + $0x38] sm:$0xff]
                %1418 = vst [vmem:[%s1402 + $0x78] sm:$0xff] %v1417
              $region154: #{fno_multi_forward.19} parent=148 // loop_footer
                %s1400 = sadd.s32 1, %s1396
              $region155: #{fno_multi_forward.19} parent=148 // loop_footer_branch
                %1395 = sbr.rel target = $region151
              $region156: #{fno_multi_forward.19} parent=148 // loop_exit
                _
            $region149: #{fno_multi_forward.19} parent=144 // pred_fallthru
              _
            // Predicated region
            $region157: #{fno_multi_forward.19} parent=144 // pred_check
              _
            $region158: #{fno_multi_forward.19} parent=144 // pred_check_branch
              %1420 = sbr.rel target = $region160
            $region159: #{fno_multi_forward.19} parent=144 // pred_region
              _
            $region160: #{fno_multi_forward.19} parent=144 // pred_fallthru
              _
          $region145: #{fno_multi_forward.19} parent=140 // pred_fallthru
            _
          %1421 = vnop
        $region141: #{fno_multi_forward.19} parent=124 // pred_fallthru
          _
      $region125: #{fno_multi_forward.19} parent=5 // pred_fallthru
        _
      %p1422 = scmp.le.s32.totalorder 2, %s18
      // Predicated region
      $region161: #{fno_multi_forward.19} parent=5 // pred_check
        %p1423 = pneg %p1422
      $region162: #{fno_multi_forward.19} parent=5 // pred_check_branch
        %1425 = sbr.rel (%p1423) target = $region164
      $region163: #{fno_multi_forward.19} parent=5 // pred_region
        %s1426 = ssub.s32 %s18, 2
        // Predicated region
        $region165: #{fno_multi_forward.19} parent=163 // pred_check
          %p1427 = pneg %p319
        $region166: #{fno_multi_forward.19} parent=163 // pred_check_branch
          %1429 = sbr.rel (%p1427) target = $region168
        $region167: #{fno_multi_forward.19} parent=163 // pred_region
          %s1430 = sand.u32 %s304, 1
          %s1431 = sand.u32 %s304, 1
          %s1432 = smul.addr %s1431, 64
          %s1433 = scalar_lea.vmem [#allocation5], %s1432
        $region168: #{fno_multi_forward.19} parent=163 // pred_fallthru
          _
      $region164: #{fno_multi_forward.19} parent=5 // pred_fallthru
        _
    $region6: #{fno_multi_forward.19} parent=1 // loop_footer
      %s22 = sadd.s32 1, %s18
    $region7: #{fno_multi_forward.19} parent=1 // loop_footer_branch
      %17 = sbr.rel target = $region3
    $region8: #{fno_multi_forward.19} parent=1 // loop_exit
      _

// kernel: fno_multi_forward.25
$region0: #{fno_multi_forward.25}
  #allocation0 [shape = 'u32[]', space=smem, size = 0x4, offset = 0x4, fixed_abs, tag = 'smem constant byte address 0x4 - core index']
  #allocation1 [shape = 'u32[144,128]{1,0:T(1,128)}', space=vmem, size = 0x12000, scoped, tag = 'internal scratch']
  %s0 = inlined_call_operand.vmem [shape: f32[16,1536], index: 0, kind: input, shape index: {}]
  %s1 = inlined_call_operand.vmem [shape: f32[16,1536], index: 1, kind: input, shape index: {}]
  %s2 = inlined_call_operand.vmem [shape: f32[2,1536], index: 2, kind: input, shape index: {}]
  %s3 = inlined_call_operand.vmem [shape: f32[16,16], index: 3, kind: input, shape index: {}]
  %s4 = inlined_call_operand.vmem [shape: f32[16,1], index: 4, kind: input, shape index: {}]
  %s5 = inlined_call_operand.vmem [shape: f32[16,16], index: 5, kind: input, shape index: {}]
  %s6 = inlined_call_operand.vmem [shape: f32[16,1], index: 6, kind: input, shape index: {}]
  %s7 = inlined_call_operand.vmem [shape: f32[16,16], index: 7, kind: input, shape index: {}]
  %s8 = inlined_call_operand.vmem [shape: f32[16,1], index: 8, kind: input, shape index: {}]
  %s9 = inlined_call_operand.vmem [shape: f32[16,2], index: 9, kind: input, shape index: {}]
  %s10 = inlined_call_operand.vmem [shape: f32[16,1], index: 10, kind: input, shape index: {}]
  %s11 = inlined_call_operand.vmem [shape: f32[16,1536], index: 11, kind: input, shape index: {}]
  %s12 = inlined_call_operand.vmem [shape: f32[256,16], index: 12, kind: input, shape index: {}]
  %s13 = inlined_call_operand.vmem [shape: f32[256,1], index: 13, kind: input, shape index: {}]
  %s14 = inlined_call_operand.vmem [shape: f32[5,256], index: 14, kind: input, shape index: {}]
  %s15 = inlined_call_operand.vmem [shape: f32[5,1], index: 15, kind: input, shape index: {}]
  %s16 = inlined_call_operand.vmem [shape: f32[5,1536], index: 16, kind: output, shape index: {}]
  %s17 = sld [smem:[#allocation0]]
  $region166: #{fno_multi_forward.25} parent=0
    _
  %s19 = ssub.s32 1, %s17
  %s20 = scalar_select 0, %s19, %s17
  $region1: #{fno_multi_forward.25} parent=0
    #allocation2 [shape = 'u8[65536]{0}', space=vmem, size = 0x10000, scoped, tag = 'input window, operand 0']
    #allocation3 [shape = 'u8[65536]{0}', space=vmem, size = 0x10000, scoped, tag = 'input window, operand 1']
    #allocation4 [shape = 'u8[65536]{0}', space=vmem, size = 0x10000, scoped, tag = 'input window, operand 11']
    loop: start=0, step=1, limit=5
    $region2: #{fno_multi_forward.25} parent=1 // loop_pre_header
      _
    $region3: #{fno_multi_forward.25} parent=1 // loop_header
      %s22 = sphi 0, %s26
      %p23 = scmp.ge.s32.totalorder %s22, 5
      %s32 = sphi 0, %s34
      %s35 = sphi 0, %s32
      %s36 = sphi 0, %s35
      %s52 = sphi 0, %s36
      %s58 = sphi 0, %s60
      %s61 = sphi 0, %s58
      %s62 = sphi 0, %s61
      %s78 = sphi 0, %s62
      %s84 = sphi 0, %s86
      %s87 = sphi 0, %s84
      %s88 = sphi 0, %s87
      %s104 = sphi 0, %s88
      %s108 = sphi 0, %s108
      %s110 = sphi 0, %s108
      %s111 = sphi 0, %s110
      %s125 = sphi 0, %s111
      %s129 = sphi 0, %s129
      %s131 = sphi 0, %s129
      %s132 = sphi 0, %s131
      %s146 = sphi 0, %s132
      %s150 = sphi 0, %s150
      %s152 = sphi 0, %s150
      %s153 = sphi 0, %s152
      %s167 = sphi 0, %s153
      %s171 = sphi 0, %s171
      %s173 = sphi 0, %s171
      %s174 = sphi 0, %s173
      %s188 = sphi 0, %s174
      %s192 = sphi 0, %s192
      %s194 = sphi 0, %s192
      %s195 = sphi 0, %s194
      %s209 = sphi 0, %s195
      %s213 = sphi 0, %s213
      %s215 = sphi 0, %s213
      %s216 = sphi 0, %s215
      %s230 = sphi 0, %s216
      %s234 = sphi 0, %s234
      %s236 = sphi 0, %s234
      %s237 = sphi 0, %s236
      %s251 = sphi 0, %s237
      %s255 = sphi 0, %s255
      %s257 = sphi 0, %s255
      %s258 = sphi 0, %s257
      %s272 = sphi 0, %s258
      %s278 = sphi 0, %s280
      %s281 = sphi 0, %s278
      %s282 = sphi 0, %s281
      %s298 = sphi 0, %s282
      %s302 = sphi 0, %s302
      %s304 = sphi 0, %s302
      %s305 = sphi 0, %s304
      %s319 = sphi 0, %s305
      %s323 = sphi 0, %s323
      %s325 = sphi 0, %s323
      %s326 = sphi 0, %s325
      %s340 = sphi 0, %s326
      %s344 = sphi 0, %s344
      %s346 = sphi 0, %s344
      %s347 = sphi 0, %s346
      %s361 = sphi 0, %s347
      %s365 = sphi 0, %s365
      %s367 = sphi 0, %s365
      %s368 = sphi 0, %s367
      %s382 = sphi 0, %s368
      %s388 = sphi 0, %s390
      %s391 = sphi 0, %s388
      %s392 = sphi 0, %s391
      %s408 = sphi 0, %s392
    $region4: #{fno_multi_forward.25} parent=1 // loop_header_branch
      %25 = sbr.rel (%p23) target = $region8
    $region5: #{fno_multi_forward.25} parent=1 // loop_body
      %s27 = ssub.s32 %s22, 1
      %s28 = ssub.s32 %s22, 2
      %s29 = sadd.s32 %s22, 1
      %s30 = ssub.s32 %s22, %s29
      %p31 = scmp.eq.s32.totalorder %s30, 0
      %s33 = sadd.s32 %s32, 1
      %s34 = scalar_select %p31, %s32, %s33
      %p37 = pneg %p31
      %p38 = scmp.eq.s32.totalorder %s22, 2
      %p39 = por %p37, %p38
      %p40 = scmp.ne.s32.totalorder %s32, %s35
      %p41 = scmp.eq.s32.totalorder %s22, 0
      %p42 = por %p40, %p41
      %p43 = scmp.ne.s32.totalorder %s32, %s35
      %p44 = scmp.eq.s32.totalorder %s27, 2
      %p45 = por %p43, %p44
      %p46 = scmp.ne.s32.totalorder %s35, %s36
      %p47 = scmp.eq.s32.totalorder %s27, 0
      %p48 = por %p46, %p47
      %p49 = scmp.ne.s32.totalorder %s35, %s36
      %p50 = scmp.eq.s32.totalorder %s28, 2
      %p51 = por %p49, %p50
      %p53 = scmp.ne.s32.totalorder %s36, %s52
      %p54 = scmp.eq.s32.totalorder %s28, 0
      %p55 = por %p53, %p54
      %s56 = ssub.s32 %s22, %s29
      %p57 = scmp.eq.s32.totalorder %s56, 0
      %s59 = sadd.s32 %s58, 1
      %s60 = scalar_select %p57, %s58, %s59
      %p63 = pneg %p57
      %p64 = scmp.eq.s32.totalorder %s22, 2
      %p65 = por %p63, %p64
      %p66 = scmp.ne.s32.totalorder %s58, %s61
      %p67 = scmp.eq.s32.totalorder %s22, 0
      %p68 = por %p66, %p67
      %p69 = scmp.ne.s32.totalorder %s58, %s61
      %p70 = scmp.eq.s32.totalorder %s27, 2
      %p71 = por %p69, %p70
      %p72 = scmp.ne.s32.totalorder %s61, %s62
      %p73 = scmp.eq.s32.totalorder %s27, 0
      %p74 = por %p72, %p73
      %p75 = scmp.ne.s32.totalorder %s61, %s62
      %p76 = scmp.eq.s32.totalorder %s28, 2
      %p77 = por %p75, %p76
      %p79 = scmp.ne.s32.totalorder %s62, %s78
      %p80 = scmp.eq.s32.totalorder %s28, 0
      %p81 = por %p79, %p80
      %s82 = ssub.s32 %s22, %s29
      %p83 = scmp.eq.s32.totalorder %s82, 0
      %s85 = sadd.s32 %s84, 1
      %s86 = scalar_select %p83, %s84, %s85
      %p89 = pneg %p83
      %p90 = scmp.eq.s32.totalorder %s22, 2
      %p91 = por %p89, %p90
      %p92 = scmp.ne.s32.totalorder %s84, %s87
      %p93 = scmp.eq.s32.totalorder %s22, 0
      %p94 = por %p92, %p93
      %p95 = scmp.ne.s32.totalorder %s84, %s87
      %p96 = scmp.eq.s32.totalorder %s27, 2
      %p97 = por %p95, %p96
      %p98 = scmp.ne.s32.totalorder %s87, %s88
      %p99 = scmp.eq.s32.totalorder %s27, 0
      %p100 = por %p98, %p99
      %p101 = scmp.ne.s32.totalorder %s87, %s88
      %p102 = scmp.eq.s32.totalorder %s28, 2
      %p103 = por %p101, %p102
      %p105 = scmp.ne.s32.totalorder %s88, %s104
      %p106 = scmp.eq.s32.totalorder %s28, 0
      %p107 = por %p105, %p106
      %s109 = sadd.s32 %s108, 1
      %p112 = scmp.eq.s32.totalorder %s22, 2
      %p113 = scmp.ne.s32.totalorder %s108, %s110
      %p114 = scmp.eq.s32.totalorder %s22, 0
      %p115 = por %p113, %p114
      %p116 = scmp.ne.s32.totalorder %s108, %s110
      %p117 = scmp.eq.s32.totalorder %s27, 2
      %p118 = por %p116, %p117
      %p119 = scmp.ne.s32.totalorder %s110, %s111
      %p120 = scmp.eq.s32.totalorder %s27, 0
      %p121 = por %p119, %p120
      %p122 = scmp.ne.s32.totalorder %s110, %s111
      %p123 = scmp.eq.s32.totalorder %s28, 2
      %p124 = por %p122, %p123
      %p126 = scmp.ne.s32.totalorder %s111, %s125
      %p127 = scmp.eq.s32.totalorder %s28, 0
      %p128 = por %p126, %p127
      %s130 = sadd.s32 %s129, 1
      %p133 = scmp.eq.s32.totalorder %s22, 2
      %p134 = scmp.ne.s32.totalorder %s129, %s131
      %p135 = scmp.eq.s32.totalorder %s22, 0
      %p136 = por %p134, %p135
      %p137 = scmp.ne.s32.totalorder %s129, %s131
      %p138 = scmp.eq.s32.totalorder %s27, 2
      %p139 = por %p137, %p138
      %p140 = scmp.ne.s32.totalorder %s131, %s132
      %p141 = scmp.eq.s32.totalorder %s27, 0
      %p142 = por %p140, %p141
      %p143 = scmp.ne.s32.totalorder %s131, %s132
      %p144 = scmp.eq.s32.totalorder %s28, 2
      %p145 = por %p143, %p144
      %p147 = scmp.ne.s32.totalorder %s132, %s146
      %p148 = scmp.eq.s32.totalorder %s28, 0
      %p149 = por %p147, %p148
      %s151 = sadd.s32 %s150, 1
      %p154 = scmp.eq.s32.totalorder %s22, 2
      %p155 = scmp.ne.s32.totalorder %s150, %s152
      %p156 = scmp.eq.s32.totalorder %s22, 0
      %p157 = por %p155, %p156
      %p158 = scmp.ne.s32.totalorder %s150, %s152
      %p159 = scmp.eq.s32.totalorder %s27, 2
      %p160 = por %p158, %p159
      %p161 = scmp.ne.s32.totalorder %s152, %s153
      %p162 = scmp.eq.s32.totalorder %s27, 0
      %p163 = por %p161, %p162
      %p164 = scmp.ne.s32.totalorder %s152, %s153
      %p165 = scmp.eq.s32.totalorder %s28, 2
      %p166 = por %p164, %p165
      %p168 = scmp.ne.s32.totalorder %s153, %s167
      %p169 = scmp.eq.s32.totalorder %s28, 0
      %p170 = por %p168, %p169
      %s172 = sadd.s32 %s171, 1
      %p175 = scmp.eq.s32.totalorder %s22, 2
      %p176 = scmp.ne.s32.totalorder %s171, %s173
      %p177 = scmp.eq.s32.totalorder %s22, 0
      %p178 = por %p176, %p177
      %p179 = scmp.ne.s32.totalorder %s171, %s173
      %p180 = scmp.eq.s32.totalorder %s27, 2
      %p181 = por %p179, %p180
      %p182 = scmp.ne.s32.totalorder %s173, %s174
      %p183 = scmp.eq.s32.totalorder %s27, 0
      %p184 = por %p182, %p183
      %p185 = scmp.ne.s32.totalorder %s173, %s174
      %p186 = scmp.eq.s32.totalorder %s28, 2
      %p187 = por %p185, %p186
      %p189 = scmp.ne.s32.totalorder %s174, %s188
      %p190 = scmp.eq.s32.totalorder %s28, 0
      %p191 = por %p189, %p190
      %s193 = sadd.s32 %s192, 1
      %p196 = scmp.eq.s32.totalorder %s22, 2
      %p197 = scmp.ne.s32.totalorder %s192, %s194
      %p198 = scmp.eq.s32.totalorder %s22, 0
      %p199 = por %p197, %p198
      %p200 = scmp.ne.s32.totalorder %s192, %s194
      %p201 = scmp.eq.s32.totalorder %s27, 2
      %p202 = por %p200, %p201
      %p203 = scmp.ne.s32.totalorder %s194, %s195
      %p204 = scmp.eq.s32.totalorder %s27, 0
      %p205 = por %p203, %p204
      %p206 = scmp.ne.s32.totalorder %s194, %s195
      %p207 = scmp.eq.s32.totalorder %s28, 2
      %p208 = por %p206, %p207
      %p210 = scmp.ne.s32.totalorder %s195, %s209
      %p211 = scmp.eq.s32.totalorder %s28, 0
      %p212 = por %p210, %p211
      %s214 = sadd.s32 %s213, 1
      %p217 = scmp.eq.s32.totalorder %s22, 2
      %p218 = scmp.ne.s32.totalorder %s213, %s215
      %p219 = scmp.eq.s32.totalorder %s22, 0
      %p220 = por %p218, %p219
      %p221 = scmp.ne.s32.totalorder %s213, %s215
      %p222 = scmp.eq.s32.totalorder %s27, 2
      %p223 = por %p221, %p222
      %p224 = scmp.ne.s32.totalorder %s215, %s216
      %p225 = scmp.eq.s32.totalorder %s27, 0
      %p226 = por %p224, %p225
      %p227 = scmp.ne.s32.totalorder %s215, %s216
      %p228 = scmp.eq.s32.totalorder %s28, 2
      %p229 = por %p227, %p228
      %p231 = scmp.ne.s32.totalorder %s216, %s230
      %p232 = scmp.eq.s32.totalorder %s28, 0
      %p233 = por %p231, %p232
      %s235 = sadd.s32 %s234, 1
      %p238 = scmp.eq.s32.totalorder %s22, 2
      %p239 = scmp.ne.s32.totalorder %s234, %s236
      %p240 = scmp.eq.s32.totalorder %s22, 0
      %p241 = por %p239, %p240
      %p242 = scmp.ne.s32.totalorder %s234, %s236
      %p243 = scmp.eq.s32.totalorder %s27, 2
      %p244 = por %p242, %p243
      %p245 = scmp.ne.s32.totalorder %s236, %s237
      %p246 = scmp.eq.s32.totalorder %s27, 0
      %p247 = por %p245, %p246
      %p248 = scmp.ne.s32.totalorder %s236, %s237
      %p249 = scmp.eq.s32.totalorder %s28, 2
      %p250 = por %p248, %p249
      %p252 = scmp.ne.s32.totalorder %s237, %s251
      %p253 = scmp.eq.s32.totalorder %s28, 0
      %p254 = por %p252, %p253
      %s256 = sadd.s32 %s255, 1
      %p259 = scmp.eq.s32.totalorder %s22, 2
      %p260 = scmp.ne.s32.totalorder %s255, %s257
      %p261 = scmp.eq.s32.totalorder %s22, 0
      %p262 = por %p260, %p261
      %p263 = scmp.ne.s32.totalorder %s255, %s257
      %p264 = scmp.eq.s32.totalorder %s27, 2
      %p265 = por %p263, %p264
      %p266 = scmp.ne.s32.totalorder %s257, %s258
      %p267 = scmp.eq.s32.totalorder %s27, 0
      %p268 = por %p266, %p267
      %p269 = scmp.ne.s32.totalorder %s257, %s258
      %p270 = scmp.eq.s32.totalorder %s28, 2
      %p271 = por %p269, %p270
      %p273 = scmp.ne.s32.totalorder %s258, %s272
      %p274 = scmp.eq.s32.totalorder %s28, 0
      %p275 = por %p273, %p274
      %s276 = ssub.s32 %s22, %s29
      %p277 = scmp.eq.s32.totalorder %s276, 0
      %s279 = sadd.s32 %s278, 1
      %s280 = scalar_select %p277, %s278, %s279
      %p283 = pneg %p277
      %p284 = scmp.eq.s32.totalorder %s22, 2
      %p285 = por %p283, %p284
      %p286 = scmp.ne.s32.totalorder %s278, %s281
      %p287 = scmp.eq.s32.totalorder %s22, 0
      %p288 = por %p286, %p287
      %p289 = scmp.ne.s32.totalorder %s278, %s281
      %p290 = scmp.eq.s32.totalorder %s27, 2
      %p291 = por %p289, %p290
      %p292 = scmp.ne.s32.totalorder %s281, %s282
      %p293 = scmp.eq.s32.totalorder %s27, 0
      %p294 = por %p292, %p293
      %p295 = scmp.ne.s32.totalorder %s281, %s282
      %p296 = scmp.eq.s32.totalorder %s28, 2
      %p297 = por %p295, %p296
      %p299 = scmp.ne.s32.totalorder %s282, %s298
      %p300 = scmp.eq.s32.totalorder %s28, 0
      %p301 = por %p299, %p300
      %s303 = sadd.s32 %s302, 1
      %p306 = scmp.eq.s32.totalorder %s22, 2
      %p307 = scmp.ne.s32.totalorder %s302, %s304
      %p308 = scmp.eq.s32.totalorder %s22, 0
      %p309 = por %p307, %p308
      %p310 = scmp.ne.s32.totalorder %s302, %s304
      %p311 = scmp.eq.s32.totalorder %s27, 2
      %p312 = por %p310, %p311
      %p313 = scmp.ne.s32.totalorder %s304, %s305
      %p314 = scmp.eq.s32.totalorder %s27, 0
      %p315 = por %p313, %p314
      %p316 = scmp.ne.s32.totalorder %s304, %s305
      %p317 = scmp.eq.s32.totalorder %s28, 2
      %p318 = por %p316, %p317
      %p320 = scmp.ne.s32.totalorder %s305, %s319
      %p321 = scmp.eq.s32.totalorder %s28, 0
      %p322 = por %p320, %p321
      %s324 = sadd.s32 %s323, 1
      %p327 = scmp.eq.s32.totalorder %s22, 2
      %p328 = scmp.ne.s32.totalorder %s323, %s325
      %p329 = scmp.eq.s32.totalorder %s22, 0
      %p330 = por %p328, %p329
      %p331 = scmp.ne.s32.totalorder %s323, %s325
      %p332 = scmp.eq.s32.totalorder %s27, 2
      %p333 = por %p331, %p332
      %p334 = scmp.ne.s32.totalorder %s325, %s326
      %p335 = scmp.eq.s32.totalorder %s27, 0
      %p336 = por %p334, %p335
      %p337 = scmp.ne.s32.totalorder %s325, %s326
      %p338 = scmp.eq.s32.totalorder %s28, 2
      %p339 = por %p337, %p338
      %p341 = scmp.ne.s32.totalorder %s326, %s340
      %p342 = scmp.eq.s32.totalorder %s28, 0
      %p343 = por %p341, %p342
      %s345 = sadd.s32 %s344, 1
      %p348 = scmp.eq.s32.totalorder %s22, 2
      %p349 = scmp.ne.s32.totalorder %s344, %s346
      %p350 = scmp.eq.s32.totalorder %s22, 0
      %p351 = por %p349, %p350
      %p352 = scmp.ne.s32.totalorder %s344, %s346
      %p353 = scmp.eq.s32.totalorder %s27, 2
      %p354 = por %p352, %p353
      %p355 = scmp.ne.s32.totalorder %s346, %s347
      %p356 = scmp.eq.s32.totalorder %s27, 0
      %p357 = por %p355, %p356
      %p358 = scmp.ne.s32.totalorder %s346, %s347
      %p359 = scmp.eq.s32.totalorder %s28, 2
      %p360 = por %p358, %p359
      %p362 = scmp.ne.s32.totalorder %s347, %s361
      %p363 = scmp.eq.s32.totalorder %s28, 0
      %p364 = por %p362, %p363
      %s366 = sadd.s32 %s365, 1
      %p369 = scmp.eq.s32.totalorder %s22, 2
      %p370 = scmp.ne.s32.totalorder %s365, %s367
      %p371 = scmp.eq.s32.totalorder %s22, 0
      %p372 = por %p370, %p371
      %p373 = scmp.ne.s32.totalorder %s365, %s367
      %p374 = scmp.eq.s32.totalorder %s27, 2
      %p375 = por %p373, %p374
      %p376 = scmp.ne.s32.totalorder %s367, %s368
      %p377 = scmp.eq.s32.totalorder %s27, 0
      %p378 = por %p376, %p377
      %p379 = scmp.ne.s32.totalorder %s367, %s368
      %p380 = scmp.eq.s32.totalorder %s28, 2
      %p381 = por %p379, %p380
      %p383 = scmp.ne.s32.totalorder %s368, %s382
      %p384 = scmp.eq.s32.totalorder %s28, 0
      %p385 = por %p383, %p384
      %s386 = ssub.s32 %s22, %s29
      %p387 = scmp.eq.s32.totalorder %s386, 0
      %s389 = sadd.s32 %s388, 1
      %s390 = scalar_select %p387, %s388, %s389
      %p393 = pneg %p387
      %p394 = scmp.eq.s32.totalorder %s22, 2
      %p395 = por %p393, %p394
      %p396 = scmp.ne.s32.totalorder %s388, %s391
      %p397 = scmp.eq.s32.totalorder %s22, 0
      %p398 = por %p396, %p397
      %p399 = scmp.ne.s32.totalorder %s388, %s391
      %p400 = scmp.eq.s32.totalorder %s27, 2
      %p401 = por %p399, %p400
      %p402 = scmp.ne.s32.totalorder %s391, %s392
      %p403 = scmp.eq.s32.totalorder %s27, 0
      %p404 = por %p402, %p403
      %p405 = scmp.ne.s32.totalorder %s391, %s392
      %p406 = scmp.eq.s32.totalorder %s28, 2
      %p407 = por %p405, %p406
      %p409 = scmp.ne.s32.totalorder %s392, %s408
      %p410 = scmp.eq.s32.totalorder %s28, 0
      %p411 = por %p409, %p410
      %p412 = scmp.le.s32.totalorder 1, %s22
      %p413 = scmp.lt.s32.totalorder %s22, 4
      %p414 = pnand %p412, %p413
      %p415 = pneg %p414
      // Predicated region
      $region9: #{fno_multi_forward.25} parent=5 // pred_check
        _
      $region10: #{fno_multi_forward.25} parent=5 // pred_check_branch
        %417 = sbr.rel (%p414) target = $region12
      $region11: #{fno_multi_forward.25} parent=5 // pred_region
        %s418 = ssub.s32 %s22, 1
        // Predicated region
        $region13: #{fno_multi_forward.25} parent=11 // pred_check
          %p419 = pneg %p121
        $region14: #{fno_multi_forward.25} parent=11 // pred_check_branch
          %421 = sbr.rel (%p419) target = $region16
        $region15: #{fno_multi_forward.25} parent=11 // pred_region
          _
        $region16: #{fno_multi_forward.25} parent=11 // pred_fallthru
          _
        // Predicated region
        $region17: #{fno_multi_forward.25} parent=11 // pred_check
          %p422 = pneg %p142
        $region18: #{fno_multi_forward.25} parent=11 // pred_check_branch
          %424 = sbr.rel (%p422) target = $region20
        $region19: #{fno_multi_forward.25} parent=11 // pred_region
          _
        $region20: #{fno_multi_forward.25} parent=11 // pred_fallthru
          _
        // Predicated region
        $region21: #{fno_multi_forward.25} parent=11 // pred_check
          %p425 = pneg %p163
        $region22: #{fno_multi_forward.25} parent=11 // pred_check_branch
          %427 = sbr.rel (%p425) target = $region24
        $region23: #{fno_multi_forward.25} parent=11 // pred_region
          _
        $region24: #{fno_multi_forward.25} parent=11 // pred_fallthru
          _
        // Predicated region
        $region25: #{fno_multi_forward.25} parent=11 // pred_check
          %p428 = pneg %p184
        $region26: #{fno_multi_forward.25} parent=11 // pred_check_branch
          %430 = sbr.rel (%p428) target = $region28
        $region27: #{fno_multi_forward.25} parent=11 // pred_region
          _
        $region28: #{fno_multi_forward.25} parent=11 // pred_fallthru
          _
        // Predicated region
        $region29: #{fno_multi_forward.25} parent=11 // pred_check
          %p431 = pneg %p205
        $region30: #{fno_multi_forward.25} parent=11 // pred_check_branch
          %433 = sbr.rel (%p431) target = $region32
        $region31: #{fno_multi_forward.25} parent=11 // pred_region
          _
        $region32: #{fno_multi_forward.25} parent=11 // pred_fallthru
          _
        // Predicated region
        $region33: #{fno_multi_forward.25} parent=11 // pred_check
          %p434 = pneg %p226
        $region34: #{fno_multi_forward.25} parent=11 // pred_check_branch
          %436 = sbr.rel (%p434) target = $region36
        $region35: #{fno_multi_forward.25} parent=11 // pred_region
          _
        $region36: #{fno_multi_forward.25} parent=11 // pred_fallthru
          _
        // Predicated region
        $region37: #{fno_multi_forward.25} parent=11 // pred_check
          %p437 = pneg %p247
        $region38: #{fno_multi_forward.25} parent=11 // pred_check_branch
          %439 = sbr.rel (%p437) target = $region40
        $region39: #{fno_multi_forward.25} parent=11 // pred_region
          _
        $region40: #{fno_multi_forward.25} parent=11 // pred_fallthru
          _
        // Predicated region
        $region41: #{fno_multi_forward.25} parent=11 // pred_check
          %p440 = pneg %p268
        $region42: #{fno_multi_forward.25} parent=11 // pred_check_branch
          %442 = sbr.rel (%p440) target = $region44
        $region43: #{fno_multi_forward.25} parent=11 // pred_region
          _
        $region44: #{fno_multi_forward.25} parent=11 // pred_fallthru
          _
        // Predicated region
        $region45: #{fno_multi_forward.25} parent=11 // pred_check
          %p443 = pneg %p315
        $region46: #{fno_multi_forward.25} parent=11 // pred_check_branch
          %445 = sbr.rel (%p443) target = $region48
        $region47: #{fno_multi_forward.25} parent=11 // pred_region
          _
        $region48: #{fno_multi_forward.25} parent=11 // pred_fallthru
          _
        // Predicated region
        $region49: #{fno_multi_forward.25} parent=11 // pred_check
          %p446 = pneg %p336
        $region50: #{fno_multi_forward.25} parent=11 // pred_check_branch
          %448 = sbr.rel (%p446) target = $region52
        $region51: #{fno_multi_forward.25} parent=11 // pred_region
          _
        $region52: #{fno_multi_forward.25} parent=11 // pred_fallthru
          _
        // Predicated region
        $region53: #{fno_multi_forward.25} parent=11 // pred_check
          %p449 = pneg %p357
        $region54: #{fno_multi_forward.25} parent=11 // pred_check_branch
          %451 = sbr.rel (%p449) target = $region56
        $region55: #{fno_multi_forward.25} parent=11 // pred_region
          _
        $region56: #{fno_multi_forward.25} parent=11 // pred_fallthru
          _
        // Predicated region
        $region57: #{fno_multi_forward.25} parent=11 // pred_check
          %p452 = pneg %p378
        $region58: #{fno_multi_forward.25} parent=11 // pred_check_branch
          %454 = sbr.rel (%p452) target = $region60
        $region59: #{fno_multi_forward.25} parent=11 // pred_region
          _
        $region60: #{fno_multi_forward.25} parent=11 // pred_fallthru
          _
      $region12: #{fno_multi_forward.25} parent=5 // pred_fallthru
        _
      %p455 = scmp.lt.s32.totalorder %s22, 3
      // Predicated region
      $region61: #{fno_multi_forward.25} parent=5 // pred_check
        %p456 = pneg %p455
      $region62: #{fno_multi_forward.25} parent=5 // pred_check_branch
        %458 = sbr.rel (%p456) target = $region64
      $region63: #{fno_multi_forward.25} parent=5 // pred_region
        // Predicated region
        $region65: #{fno_multi_forward.25} parent=63 // pred_check
          %p459 = pneg %p42
        $region66: #{fno_multi_forward.25} parent=63 // pred_check_branch
          %461 = sbr.rel (%p459) target = $region68
        $region67: #{fno_multi_forward.25} parent=63 // pred_region
          %s462 = sand.u32 %s32, 1
          %s463 = sand.u32 %s32, 1
          %s464 = smul.addr %s463, 64
          %s465 = scalar_lea.vmem [#allocation2], %s464
          %s466 = smul.u32 4, %s22
          %s467 = smul.addr %s466, 8
          %s468 = scalar_lea.vmem %s0, %s467
          // Predicated region
          $region69: #{fno_multi_forward.25} parent=67 // pred_check
            _
          $region70: #{fno_multi_forward.25} parent=67 // pred_check_branch
            %470 = sbr.rel (0) target = $region72
          $region71: #{fno_multi_forward.25} parent=67 // pred_region
            // Predicated region
            $region73: #{fno_multi_forward.25} parent=71 // pred_check
              _
            $region74: #{fno_multi_forward.25} parent=71 // pred_check_branch
              %472 = sbr.rel (0) target = $region76
            $region75: #{fno_multi_forward.25} parent=71 // pred_region
              loop: start=0, step=1, limit=1
              $region77: #{fno_multi_forward.25} parent=75 // loop_pre_header
                _
              $region78: #{fno_multi_forward.25} parent=75 // loop_header
                %s474 = sphi 0, %s478
                %p475 = scmp.ge.s32.totalorder %s474, 1
                %s479 = sphi %s468, %s468
                %s480 = sphi %s465, %s465
              $region79: #{fno_multi_forward.25} parent=75 // loop_header_branch
                %477 = sbr.rel (%p475) target = $region83
              $region80: #{fno_multi_forward.25} parent=75 // loop_body
                %v481 = vld [vmem:[%s479] sm:$0xff]
                %482 = vst [vmem:[%s480] sm:$0xff] %v481
                %v483 = vld [vmem:[%s479 + $0x8] sm:$0xff]
                %484 = vst [vmem:[%s480 + $0x8] sm:$0xff] %v483
                %v485 = vld [vmem:[%s479 + $0x10] sm:$0xff]
                %486 = vst [vmem:[%s480 + $0x10] sm:$0xff] %v485
                %v487 = vld [vmem:[%s479 + $0x18] sm:$0xff]
                %488 = vst [vmem:[%s480 + $0x18] sm:$0xff] %v487
                %v489 = vld [vmem:[%s479 + $0x60] sm:$0xff]
                %490 = vst [vmem:[%s480 + $0x20] sm:$0xff] %v489
                %v491 = vld [vmem:[%s479 + $0x68] sm:$0xff]
                %492 = vst [vmem:[%s480 + $0x28] sm:$0xff] %v491
                %v493 = vld [vmem:[%s479 + $0x70] sm:$0xff]
                %494 = vst [vmem:[%s480 + $0x30] sm:$0xff] %v493
                %v495 = vld [vmem:[%s479 + $0x78] sm:$0xff]
                %496 = vst [vmem:[%s480 + $0x38] sm:$0xff] %v495
              $region81: #{fno_multi_forward.25} parent=75 // loop_footer
                %s478 = sadd.s32 1, %s474
              $region82: #{fno_multi_forward.25} parent=75 // loop_footer_branch
                %473 = sbr.rel target = $region78
              $region83: #{fno_multi_forward.25} parent=75 // loop_exit
                _
            $region76: #{fno_multi_forward.25} parent=71 // pred_fallthru
              _
            // Predicated region
            $region84: #{fno_multi_forward.25} parent=71 // pred_check
              _
            $region85: #{fno_multi_forward.25} parent=71 // pred_check_branch
              %498 = sbr.rel target = $region87
            $region86: #{fno_multi_forward.25} parent=71 // pred_region
              _
            $region87: #{fno_multi_forward.25} parent=71 // pred_fallthru
              _
          $region72: #{fno_multi_forward.25} parent=67 // pred_fallthru
            _
          %499 = vnop
        $region68: #{fno_multi_forward.25} parent=63 // pred_fallthru
          _
        // Predicated region
        $region88: #{fno_multi_forward.25} parent=63 // pred_check
          %p500 = pneg %p68
        $region89: #{fno_multi_forward.25} parent=63 // pred_check_branch
          %502 = sbr.rel (%p500) target = $region91
        $region90: #{fno_multi_forward.25} parent=63 // pred_region
          %s503 = sand.u32 %s58, 1
          %s504 = sand.u32 %s58, 1
          %s505 = smul.addr %s504, 64
          %s506 = scalar_lea.vmem [#allocation3], %s505
          %s507 = smul.u32 4, %s22
          %s508 = smul.addr %s507, 8
          %s509 = scalar_lea.vmem %s1, %s508
          // Predicated region
          $region92: #{fno_multi_forward.25} parent=90 // pred_check
            _
          $region93: #{fno_multi_forward.25} parent=90 // pred_check_branch
            %511 = sbr.rel (0) target = $region95
          $region94: #{fno_multi_forward.25} parent=90 // pred_region
            // Predicated region
            $region96: #{fno_multi_forward.25} parent=94 // pred_check
              _
            $region97: #{fno_multi_forward.25} parent=94 // pred_check_branch
              %513 = sbr.rel (0) target = $region99
            $region98: #{fno_multi_forward.25} parent=94 // pred_region
              loop: start=0, step=1, limit=1
              $region100: #{fno_multi_forward.25} parent=98 // loop_pre_header
                _
              $region101: #{fno_multi_forward.25} parent=98 // loop_header
                %s515 = sphi 0, %s519
                %p516 = scmp.ge.s32.totalorder %s515, 1
                %s520 = sphi %s509, %s509
                %s521 = sphi %s506, %s506
              $region102: #{fno_multi_forward.25} parent=98 // loop_header_branch
                %518 = sbr.rel (%p516) target = $region106
              $region103: #{fno_multi_forward.25} parent=98 // loop_body
                %v522 = vld [vmem:[%s520] sm:$0xff]
                %523 = vst [vmem:[%s521] sm:$0xff] %v522
                %v524 = vld [vmem:[%s520 + $0x8] sm:$0xff]
                %525 = vst [vmem:[%s521 + $0x8] sm:$0xff] %v524
                %v526 = vld [vmem:[%s520 + $0x10] sm:$0xff]
                %527 = vst [vmem:[%s521 + $0x10] sm:$0xff] %v526
                %v528 = vld [vmem:[%s520 + $0x18] sm:$0xff]
                %529 = vst [vmem:[%s521 + $0x18] sm:$0xff] %v528
                %v530 = vld [vmem:[%s520 + $0x60] sm:$0xff]
                %531 = vst [vmem:[%s521 + $0x20] sm:$0xff] %v530
                %v532 = vld [vmem:[%s520 + $0x68] sm:$0xff]
                %533 = vst [vmem:[%s521 + $0x28] sm:$0xff] %v532
                %v534 = vld [vmem:[%s520 + $0x70] sm:$0xff]
                %535 = vst [vmem:[%s521 + $0x30] sm:$0xff] %v534
                %v536 = vld [vmem:[%s520 + $0x78] sm:$0xff]
                %537 = vst [vmem:[%s521 + $0x38] sm:$0xff] %v536
              $region104: #{fno_multi_forward.25} parent=98 // loop_footer
                %s519 = sadd.s32 1, %s515
              $region105: #{fno_multi_forward.25} parent=98 // loop_footer_branch
                %514 = sbr.rel target = $region101
              $region106: #{fno_multi_forward.25} parent=98 // loop_exit
                _
            $region99: #{fno_multi_forward.25} parent=94 // pred_fallthru
              _
            // Predicated region
            $region107: #{fno_multi_forward.25} parent=94 // pred_check
              _
            $region108: #{fno_multi_forward.25} parent=94 // pred_check_branch
              %539 = sbr.rel target = $region110
            $region109: #{fno_multi_forward.25} parent=94 // pred_region
              _
            $region110: #{fno_multi_forward.25} parent=94 // pred_fallthru
              _
          $region95: #{fno_multi_forward.25} parent=90 // pred_fallthru
            _
          %540 = vnop
        $region91: #{fno_multi_forward.25} parent=63 // pred_fallthru
          _
        // Predicated region
        $region111: #{fno_multi_forward.25} parent=63 // pred_check
          %p541 = pneg %p94
        $region112: #{fno_multi_forward.25} parent=63 // pred_check_branch
          %543 = sbr.rel (%p541) target = $region114
        $region113: #{fno_multi_forward.25} parent=63 // pred_region
          %s544 = smul.u32 4, %s22
          %p545 = scmp.lt.s32.totalorder %s544, 11
          %s546 = scalar_select %p545, %s544, 11
          %s547 = smul.addr %s546, 2
          %s548 = scalar_lea.vmem %s2, %s547
          %s549 = smul.u32 4, %s22
        $region114: #{fno_multi_forward.25} parent=63 // pred_fallthru
          _
        // Predicated region
        $region115: #{fno_multi_forward.25} parent=63 // pred_check
          %p550 = pneg %p288
        $region116: #{fno_multi_forward.25} parent=63 // pred_check_branch
          %552 = sbr.rel (%p550) target = $region118
        $region117: #{fno_multi_forward.25} parent=63 // pred_region
          %s553 = sand.u32 %s278, 1
          %s554 = sand.u32 %s278, 1
          %s555 = smul.addr %s554, 64
          %s556 = scalar_lea.vmem [#allocation4], %s555
          %s557 = smul.u32 4, %s22
          %s558 = smul.addr %s557, 8
          %s559 = scalar_lea.vmem %s11, %s558
          // Predicated region
          $region119: #{fno_multi_forward.25} parent=117 // pred_check
            _
          $region120: #{fno_multi_forward.25} parent=117 // pred_check_branch
            %561 = sbr.rel (0) target = $region122
          $region121: #{fno_multi_forward.25} parent=117 // pred_region
            // Predicated region
            $region123: #{fno_multi_forward.25} parent=121 // pred_check
              _
            $region124: #{fno_multi_forward.25} parent=121 // pred_check_branch
              %563 = sbr.rel (0) target = $region126
            $region125: #{fno_multi_forward.25} parent=121 // pred_region
              loop: start=0, step=1, limit=1
              $region127: #{fno_multi_forward.25} parent=125 // loop_pre_header
                _
              $region128: #{fno_multi_forward.25} parent=125 // loop_header
                %s565 = sphi 0, %s569
                %p566 = scmp.ge.s32.totalorder %s565, 1
                %s570 = sphi %s559, %s559
                %s571 = sphi %s556, %s556
              $region129: #{fno_multi_forward.25} parent=125 // loop_header_branch
                %568 = sbr.rel (%p566) target = $region133
              $region130: #{fno_multi_forward.25} parent=125 // loop_body
                %v572 = vld [vmem:[%s570] sm:$0xff]
                %573 = vst [vmem:[%s571] sm:$0xff] %v572
                %v574 = vld [vmem:[%s570 + $0x8] sm:$0xff]
                %575 = vst [vmem:[%s571 + $0x8] sm:$0xff] %v574
                %v576 = vld [vmem:[%s570 + $0x10] sm:$0xff]
                %577 = vst [vmem:[%s571 + $0x10] sm:$0xff] %v576
                %v578 = vld [vmem:[%s570 + $0x18] sm:$0xff]
                %579 = vst [vmem:[%s571 + $0x18] sm:$0xff] %v578
                %v580 = vld [vmem:[%s570 + $0x60] sm:$0xff]
                %581 = vst [vmem:[%s571 + $0x20] sm:$0xff] %v580
                %v582 = vld [vmem:[%s570 + $0x68] sm:$0xff]
                %583 = vst [vmem:[%s571 + $0x28] sm:$0xff] %v582
                %v584 = vld [vmem:[%s570 + $0x70] sm:$0xff]
                %585 = vst [vmem:[%s571 + $0x30] sm:$0xff] %v584
                %v586 = vld [vmem:[%s570 + $0x78] sm:$0xff]
                %587 = vst [vmem:[%s571 + $0x38] sm:$0xff] %v586
              $region131: #{fno_multi_forward.25} parent=125 // loop_footer
                %s569 = sadd.s32 1, %s565
              $region132: #{fno_multi_forward.25} parent=125 // loop_footer_branch
                %564 = sbr.rel target = $region128
              $region133: #{fno_multi_forward.25} parent=125 // loop_exit
                _
            $region126: #{fno_multi_forward.25} parent=121 // pred_fallthru
              _
            // Predicated region
            $region134: #{fno_multi_forward.25} parent=121 // pred_check
              _
            $region135: #{fno_multi_forward.25} parent=121 // pred_check_branch
              %589 = sbr.rel target = $region137
            $region136: #{fno_multi_forward.25} parent=121 // pred_region
              _
            $region137: #{fno_multi_forward.25} parent=121 // pred_fallthru
              _
          $region122: #{fno_multi_forward.25} parent=117 // pred_fallthru
            _
          %590 = vnop
        $region118: #{fno_multi_forward.25} parent=63 // pred_fallthru
          _
      $region64: #{fno_multi_forward.25} parent=5 // pred_fallthru
        _
      %p591 = scmp.le.s32.totalorder 1, %s22
      %p592 = scmp.lt.s32.totalorder %s22, 4
      %p593 = pnand %p591, %p592
      %p594 = pneg %p593
      // Predicated region
      $region138: #{fno_multi_forward.25} parent=5 // pred_check
        _
      $region139: #{fno_multi_forward.25} parent=5 // pred_check_branch
        %596 = sbr.rel (%p593) target = $region141
      $region140: #{fno_multi_forward.25} parent=5 // pred_region
        %s597 = ssub.s32 %s22, 1
        %s598 = sand.u32 %s35, 1
        %s599 = sand.u32 %s35, 1
        %s600 = smul.addr %s599, 64
        %s601 = scalar_lea.vmem [#allocation2], %s600
        // Predicated region
        $region142: #{fno_multi_forward.25} parent=140 // pred_check
          %p602 = pneg %p48
        $region143: #{fno_multi_forward.25} parent=140 // pred_check_branch
          %604 = sbr.rel (%p602) target = $region145
        $region144: #{fno_multi_forward.25} parent=140 // pred_region
          _
        $region145: #{fno_multi_forward.25} parent=140 // pred_fallthru
          _
        %s605 = sand.u32 %s61, 1
        %s606 = sand.u32 %s61, 1
        %s607 = smul.addr %s606, 64
        %s608 = scalar_lea.vmem [#allocation3], %s607
        // Predicated region
        $region146: #{fno_multi_forward.25} parent=140 // pred_check
          %p609 = pneg %p74
        $region147: #{fno_multi_forward.25} parent=140 // pred_check_branch
          %611 = sbr.rel (%p609) target = $region149
        $region148: #{fno_multi_forward.25} parent=140 // pred_region
          _
        $region149: #{fno_multi_forward.25} parent=140 // pred_fallthru
          _
        %s612 = sand.u32 %s281, 1
        %s613 = sand.u32 %s281, 1
        %s614 = smul.addr %s613, 64
        %s615 = scalar_lea.vmem [#allocation4], %s614
        // Predicated region
        $region150: #{fno_multi_forward.25} parent=140 // pred_check
          %p616 = pneg %p294
        $region151: #{fno_multi_forward.25} parent=140 // pred_check_branch
          %618 = sbr.rel (%p616) target = $region153
        $region152: #{fno_multi_forward.25} parent=140 // pred_region
          _
        $region153: #{fno_multi_forward.25} parent=140 // pred_fallthru
          _
        %s619 = sand.u32 %s35, 1
        %s620 = sand.u32 %s35, 1
        %s621 = smul.addr %s620, 64
        %s622 = scalar_lea.vmem [#allocation2], %s621
        %p623 = pneg %p48
        %p624 = pneg %p45
        %s625 = sand.u32 %s61, 1
        %s626 = sand.u32 %s61, 1
        %s627 = smul.addr %s626, 64
        %s628 = scalar_lea.vmem [#allocation3], %s627
        %p629 = pneg %p74
        %p630 = pneg %p71
        %s631 = smul.u32 4, %s27
        %p632 = scmp.lt.s32.totalorder %s631, 11
        %s633 = scalar_select %p632, %s631, 11
        %s634 = smul.addr %s633, 2
        %s635 = scalar_lea.vmem %s2, %s634
        %p636 = pneg %p100
        %p637 = pneg %p97
        %p638 = pneg %p121
        %p639 = pneg %p118
        %p640 = pneg %p142
        %p641 = pneg %p139
        %p642 = pneg %p163
        %p643 = pneg %p160
        %p644 = pneg %p184
        %p645 = pneg %p181
        %p646 = pneg %p205
        %p647 = pneg %p202
        %p648 = pneg %p226
        %p649 = pneg %p223
        %p650 = pneg %p247
        %p651 = pneg %p244
        %p652 = pneg %p268
        %p653 = pneg %p265
        %s654 = sand.u32 %s281, 1
        %s655 = sand.u32 %s281, 1
        %s656 = smul.addr %s655, 64
        %s657 = scalar_lea.vmem [#allocation4], %s656
        %p658 = pneg %p294
        %p659 = pneg %p291
        %p660 = pneg %p315
        %p661 = pneg %p312
        %p662 = pneg %p336
        %p663 = pneg %p333
        %p664 = pneg %p357
        %p665 = pneg %p354
        %p666 = pneg %p378
        %p667 = pneg %p375
        %p668 = pneg %p404
        %p669 = pneg %p401
        %s670 = smul.u32 4, %s27
        %p671 = scmp.lt.s32.totalorder %s670, 11
        %s672 = scalar_select %p671, %s670, 11
        %s673 = smul.addr %s672, 8
        %s674 = scalar_lea.vmem %s16, %s673
        %s675 = smul.u32 4, %s27
        %s676 = smul.u32 4, %s27
        %s677 = smul.u32 4, %s27
        %p678 = scmp.lt.s32.totalorder %s677, 11
        %s679 = scalar_select %p678, %s677, 11
        %s680 = smul.addr %s679, 2
        %s681 = scalar_lea.vmem %s2, %s680
        %s682 = smul.u32 4, %s27
        %s683 = smul.u32 4, %s27
        %s684 = smul.u32 4, %s27
        %p685 = scmp.lt.s32.totalorder %s684, 11
        %s686 = scalar_select %p685, %s684, 11
        %s687 = smul.addr %s686, 8
        %s688 = scalar_lea.vmem %s16, %s687
        %s689 = smul.u32 4, %s27
        %v690 = vld [vmem:[%s3] sm:$0xff]
        %v691 = vld [vmem:[%s3 + $0x8] sm:$0xff]
        %v692 = vld [vmem:[%s601] sm:$0xff]
        %v693 = vld [vmem:[%s601 + $0x8] sm:$0xff]
        %v694 = vld [vmem:[%s601 + $0x10] sm:$0xff]
        %v695 = vld [vmem:[%s601 + $0x18] sm:$0xff]
        %v696 = vld [vmem:[%s601 + $0x20] sm:$0xff]
        %v697 = vld [vmem:[%s601 + $0x28] sm:$0xff]
        %v698 = vld [vmem:[%s601 + $0x30] sm:$0xff]
        %v699 = vld [vmem:[%s601 + $0x38] sm:$0xff]
        %v700 = vld [vmem:[%s4] sm:$0xff]
        %v701 = vld [vmem:[%s4 + $0x8] sm:$0xff]
        %703 = vset.pattern.permute.xlu0 0
        %704 = vperm.xlu0 %703, %v700
        %v705 = vpop.permute.xlu0 %704
        %708 = vset.pattern.permute.xlu0 0
        %709 = vperm.xlu0 %708, %v701
        %v710 = vpop.permute.xlu0 %709
        %vm712 = vcmask 130048
        %v714 = vsel %vm712, %v690, 0
        %v717 = vsel %vm712, %v691, 0
        %719 = vmatprep.subr.mxu0 %v693
        %720 = vmatpush1.msra.mxu0 %v692
        %721 = vmatprep.subr.mxu0 %v697
        %722 = vmatpush1.msra.mxu0 %v696
        %723 = vmatprep.subr.mxu0 0.0
        %724 = vmatpush1.msra.mxu0 0.0
        %725 = vmatprep.subr.mxu0 0.0
        %726 = vmatpush1.msra.mxu0 0.0
        %727 = vmatprep.subr.mxu0 0.0
        %728 = vmatpush1.msra.mxu0 0.0
        %729 = vmatprep.subr.mxu0 0.0
        %730 = vmatpush1.msra.mxu0 0.0
        %731 = vmatprep.subr.mxu0 0.0
        %732 = vmatpush1.msra.mxu0 0.0
        %733 = vmatprep.subr.mxu0 0.0
        %734 = vmatpush1.msra.mxu0 0.0
        %735 = vmatprep.subr.mxu0 0.0
        %736 = vmatpush1.msra.mxu0 0.0
        %737 = vmatprep.subr.mxu0 0.0
        %738 = vmatpush1.msra.mxu0 0.0
        %739 = vmatprep.subr.mxu0 0.0
        %740 = vmatpush1.msra.mxu0 0.0
        %741 = vmatprep.subr.mxu0 0.0
        %742 = vmatpush1.msra.mxu0 0.0
        %743 = vmatprep.subr.mxu0 0.0
        %744 = vmatpush1.msra.mxu0 0.0
        %745 = vmatprep.subr.mxu0 0.0
        %746 = vmatpush1.msra.mxu0 0.0
        %747 = vmatprep.subr.mxu0 0.0
        %748 = vmatpush1.msra.mxu0 0.0
        %749 = vmatprep.subr.mxu0 0.0
        %750 = vmatpush1.msra.mxu0 0.0
        %751 = vmatprep.subr.mxu0 0.0
        %752 = vmatpush1.msra.mxu0 0.0
        %753 = vmatprep.subr.mxu0 0.0
        %754 = vmatpush1.msra.mxu0 0.0
        %755 = vmatprep.subr.mxu0 0.0
        %756 = vmatpush1.msra.mxu0 0.0
        %757 = vmatprep.subr.mxu0 0.0
        %758 = vmatpush1.msra.mxu0 0.0
        %759 = vmatprep.subr.mxu0 0.0
        %760 = vmatpush1.msra.mxu0 0.0
        %761 = vmatprep.subr.mxu0 0.0
        %762 = vmatpush1.msra.mxu0 0.0
        %763 = vmatprep.subr.mxu0 0.0
        %764 = vmatpush1.msra.mxu0 0.0
        %765 = vmatprep.subr.mxu0 0.0
        %766 = vmatpush1.msra.mxu0 0.0
        %767 = vmatprep.subr.mxu0 0.0
        %768 = vmatpush1.msra.mxu0 0.0
        %769 = vmatprep.subr.mxu0 0.0
        %770 = vmatpush1.msra.mxu0 0.0
        %771 = vmatprep.subr.mxu0 0.0
        %772 = vmatpush1.msra.mxu0 0.0
        %773 = vmatprep.subr.mxu0 0.0
        %774 = vmatpush1.msra.mxu0 0.0
        %775 = vmatprep.subr.mxu0 0.0
        %776 = vmatpush1.msra.mxu0 0.0
        %777 = vmatprep.subr.mxu0 0.0
        %778 = vmatpush1.msra.mxu0 0.0
        %779 = vmatprep.subr.mxu0 0.0
        %780 = vmatpush1.msra.mxu0 0.0
        %781 = vmatprep.subr.mxu0 0.0
        %782 = vmatpush1.msra.mxu0 0.0
        %783 = vmatprep.mubr.f32.mxu0 0.0
        %784 = vmatmul.mubr.f32.gmra.mrb[0].mxu0 %v714
        %v785 = vpop.f32.mrb[0].mxu0
        %v786 = vadd.f32 %v705, %v785
        %v787 = vpop.f32.mrb[0].mxu0
        %v788 = vadd.f32 %v705, %v787
        %789 = vmatprep.mubr.f32.mxu0 0.0
        %790 = vmatmul.mubr.f32.gmra.mrb[0].mxu0 %v717
        %v791 = vpop.f32.mrb[0].mxu0
        %v792 = vadd.f32 %v710, %v791
        %v793 = vpop.f32.mrb[0].mxu0
        %v794 = vadd.f32 %v710, %v793
        %795 = vdwg.mxu0
        %796 = vmatprep.subr.mxu0 %v695
        %797 = vmatpush1.msra.mxu0 %v694
        %798 = vmatprep.subr.mxu0 %v699
        %799 = vmatpush1.msra.mxu0 %v698
        %800 = vmatprep.subr.mxu0 0.0
        %801 = vmatpush1.msra.mxu0 0.0
        %802 = vmatprep.subr.mxu0 0.0
        %803 = vmatpush1.msra.mxu0 0.0
        %804 = vmatprep.subr.mxu0 0.0
        %805 = vmatpush1.msra.mxu0 0.0
        %806 = vmatprep.subr.mxu0 0.0
        %807 = vmatpush1.msra.mxu0 0.0
        %808 = vmatprep.subr.mxu0 0.0
        %809 = vmatpush1.msra.mxu0 0.0
        %810 = vmatprep.subr.mxu0 0.0
        %811 = vmatpush1.msra.mxu0 0.0
        %812 = vmatprep.subr.mxu0 0.0
        %813 = vmatpush1.msra.mxu0 0.0
        %814 = vmatprep.subr.mxu0 0.0
        %815 = vmatpush1.msra.mxu0 0.0
        %816 = vmatprep.subr.mxu0 0.0
        %817 = vmatpush1.msra.mxu0 0.0
        %818 = vmatprep.subr.mxu0 0.0
        %819 = vmatpush1.msra.mxu0 0.0
        %820 = vmatprep.subr.mxu0 0.0
        %821 = vmatpush1.msra.mxu0 0.0
        %822 = vmatprep.subr.mxu0 0.0
        %823 = vmatpush1.msra.mxu0 0.0
        %824 = vmatprep.subr.mxu0 0.0
        %825 = vmatpush1.msra.mxu0 0.0
        %826 = vmatprep.subr.mxu0 0.0
        %827 = vmatpush1.msra.mxu0 0.0
        %828 = vmatprep.subr.mxu0 0.0
        %829 = vmatpush1.msra.mxu0 0.0
        %830 = vmatprep.subr.mxu0 0.0
        %831 = vmatpush1.msra.mxu0 0.0
        %832 = vmatprep.subr.mxu0 0.0
        %833 = vmatpush1.msra.mxu0 0.0
        %834 = vmatprep.subr.mxu0 0.0
        %835 = vmatpush1.msra.mxu0 0.0
        %836 = vmatprep.subr.mxu0 0.0
        %837 = vmatpush1.msra.mxu0 0.0
        %838 = vmatprep.subr.mxu0 0.0
        %839 = vmatpush1.msra.mxu0 0.0
        %840 = vmatprep.subr.mxu0 0.0
        %841 = vmatpush1.msra.mxu0 0.0
        %842 = vmatprep.subr.mxu0 0.0
        %843 = vmatpush1.msra.mxu0 0.0
        %844 = vmatprep.subr.mxu0 0.0
        %845 = vmatpush1.msra.mxu0 0.0
        %846 = vmatprep.subr.mxu0 0.0
        %847 = vmatpush1.msra.mxu0 0.0
        %848 = vmatprep.subr.mxu0 0.0
        %849 = vmatpush1.msra.mxu0 0.0
        %850 = vmatprep.subr.mxu0 0.0
        %851 = vmatpush1.msra.mxu0 0.0
        %852 = vmatprep.subr.mxu0 0.0
        %853 = vmatpush1.msra.mxu0 0.0
        %854 = vmatprep.subr.mxu0 0.0
        %855 = vmatpush1.msra.mxu0 0.0
        %856 = vmatprep.subr.mxu0 0.0
        %857 = vmatpush1.msra.mxu0 0.0
        %858 = vmatprep.subr.mxu0 0.0
        %859 = vmatpush1.msra.mxu0 0.0
        %860 = vmatprep.mubr.f32.mxu0 0.0
        %861 = vmatmul.mubr.f32.gmra.mrb[0].mxu0 %v714
        %v862 = vpop.f32.mrb[0].mxu0
        %v863 = vadd.f32 %v705, %v862
        %v864 = vpop.f32.mrb[0].mxu0
        %v865 = vadd.f32 %v705, %v864
        %866 = vmatprep.mubr.f32.mxu0 0.0
        %867 = vmatmul.mubr.f32.gmra.mrb[0].mxu0 %v717
        %v868 = vpop.f32.mrb[0].mxu0
        %v869 = vadd.f32 %v710, %v868
        %v870 = vpop.f32.mrb[0].mxu0
        %v871 = vadd.f32 %v710, %v870
        %872 = vdwg.mxu0
        %v873 = vmul.f32 %v786, 0.5
        %v874 = vmul.f32 %v788, 0.5
        %v875 = vmul.f32 %v863, 0.5
        %v876 = vmul.f32 %v865, 0.5
        %v877 = vmul.f32 %v792, 0.5
        %v878 = vmul.f32 %v794, 0.5
        %v879 = vmul.f32 %v869, 0.5
        %v880 = vmul.f32 %v871, 0.5
        %v881 = vmul.f32 %v786, 0.70710677
        %v882 = vmul.f32 %v788, 0.70710677
        %v883 = vmul.f32 %v863, 0.70710677
        %v884 = vmul.f32 %v865, 0.70710677
        %v885 = vmul.f32 %v792, 0.70710677
        %v886 = vmul.f32 %v794, 0.70710677
        %v887 = vmul.f32 %v869, 0.70710677
        %v888 = vmul.f32 %v871, 0.70710677
        %v889 = verf.f32.pop %v881
        %v890 = verf.f32.pop %v882
        %v891 = verf.f32.pop %v883
        %v892 = verf.f32.pop %v884
        %v893 = verf.f32.pop %v885
        %v894 = verf.f32.pop %v886
        %v895 = verf.f32.pop %v887
        %v896 = verf.f32.pop %v888
        %v897 = vadd.f32 %v889, 1.0
        %v898 = vadd.f32 %v890, 1.0
        %v899 = vadd.f32 %v891, 1.0
        %v900 = vadd.f32 %v892, 1.0
        %v901 = vadd.f32 %v893, 1.0
        %v902 = vadd.f32 %v894, 1.0
        %v903 = vadd.f32 %v895, 1.0
        %v904 = vadd.f32 %v896, 1.0
        %v905 = vmul.f32 %v873, %v897
        %v906 = vmul.f32 %v874, %v898
        %v907 = vmul.f32 %v875, %v899
        %v908 = vmul.f32 %v876, %v900
        %v909 = vmul.f32 %v877, %v901
        %v910 = vmul.f32 %v878, %v902
        %v911 = vmul.f32 %v879, %v903
        %v912 = vmul.f32 %v880, %v904
        %v913 = vld [vmem:[%s5] sm:$0xff]
        %v914 = vld [vmem:[%s5 + $0x8] sm:$0xff]
        %v915 = vld [vmem:[%s6] sm:$0xff]
        %v916 = vld [vmem:[%s6 + $0x8] sm:$0xff]
        %918 = vset.pattern.permute.xlu0 0
        %919 = vperm.xlu0 %918, %v915
        %v920 = vpop.permute.xlu0 %919
        %923 = vset.pattern.permute.xlu0 0
        %924 = vperm.xlu0 %923, %v916
        %v925 = vpop.permute.xlu0 %924
        %v928 = vsel %vm712, %v913, 0
        %v931 = vsel %vm712, %v914, 0
        %933 = vmatprep.subr.mxu0 %v906
        %934 = vmatpush1.msra.mxu0 %v905
        %935 = vmatprep.subr.mxu0 %v910
        %936 = vmatpush1.msra.mxu0 %v909
        %937 = vmatprep.subr.mxu0 0.0
        %938 = vmatpush1.msra.mxu0 0.0
        %939 = vmatprep.subr.mxu0 0.0
        %940 = vmatpush1.msra.mxu0 0.0
        %941 = vmatprep.subr.mxu0 0.0
        %942 = vmatpush1.msra.mxu0 0.0
        %943 = vmatprep.subr.mxu0 0.0
        %944 = vmatpush1.msra.mxu0 0.0
        %945 = vmatprep.subr.mxu0 0.0
        %946 = vmatpush1.msra.mxu0 0.0
        %947 = vmatprep.subr.mxu0 0.0
        %948 = vmatpush1.msra.mxu0 0.0
        %949 = vmatprep.subr.mxu0 0.0
        %950 = vmatpush1.msra.mxu0 0.0
        %951 = vmatprep.subr.mxu0 0.0
        %952 = vmatpush1.msra.mxu0 0.0
        %953 = vmatprep.subr.mxu0 0.0
        %954 = vmatpush1.msra.mxu0 0.0
        %955 = vmatprep.subr.mxu0 0.0
        %956 = vmatpush1.msra.mxu0 0.0
        %957 = vmatprep.subr.mxu0 0.0
        %958 = vmatpush1.msra.mxu0 0.0
        %959 = vmatprep.subr.mxu0 0.0
        %960 = vmatpush1.msra.mxu0 0.0
        %961 = vmatprep.subr.mxu0 0.0
        %962 = vmatpush1.msra.mxu0 0.0
        %963 = vmatprep.subr.mxu0 0.0
        %964 = vmatpush1.msra.mxu0 0.0
        %965 = vmatprep.subr.mxu0 0.0
        %966 = vmatpush1.msra.mxu0 0.0
        %967 = vmatprep.subr.mxu0 0.0
        %968 = vmatpush1.msra.mxu0 0.0
        %969 = vmatprep.subr.mxu0 0.0
        %970 = vmatpush1.msra.mxu0 0.0
        %971 = vmatprep.subr.mxu0 0.0
        %972 = vmatpush1.msra.mxu0 0.0
        %973 = vmatprep.subr.mxu0 0.0
        %974 = vmatpush1.msra.mxu0 0.0
        %975 = vmatprep.subr.mxu0 0.0
        %976 = vmatpush1.msra.mxu0 0.0
        %977 = vmatprep.subr.mxu0 0.0
        %978 = vmatpush1.msra.mxu0 0.0
        %979 = vmatprep.subr.mxu0 0.0
        %980 = vmatpush1.msra.mxu0 0.0
        %981 = vmatprep.subr.mxu0 0.0
        %982 = vmatpush1.msra.mxu0 0.0
        %983 = vmatprep.subr.mxu0 0.0
        %984 = vmatpush1.msra.mxu0 0.0
        %985 = vmatprep.subr.mxu0 0.0
        %986 = vmatpush1.msra.mxu0 0.0
        %987 = vmatprep.subr.mxu0 0.0
        %988 = vmatpush1.msra.mxu0 0.0
        %989 = vmatprep.subr.mxu0 0.0
        %990 = vmatpush1.msra.mxu0 0.0
        %991 = vmatprep.subr.mxu0 0.0
        %992 = vmatpush1.msra.mxu0 0.0
        %993 = vmatprep.subr.mxu0 0.0
        %994 = vmatpush1.msra.mxu0 0.0
        %995 = vmatprep.subr.mxu0 0.0
        %996 = vmatpush1.msra.mxu0 0.0
        %997 = vmatprep.mubr.f32.mxu0 0.0
        %998 = vmatmul.mubr.f32.gmra.mrb[0].mxu0 %v928
        %v999 = vpop.f32.mrb[0].mxu0
        %v1000 = vadd.f32 %v920, %v999
        %v1001 = vpop.f32.mrb[0].mxu0
        %v1002 = vadd.f32 %v920, %v1001
        %1003 = vmatprep.mubr.f32.mxu0 0.0
        %1004 = vmatmul.mubr.f32.gmra.mrb[0].mxu0 %v931
        %v1005 = vpop.f32.mrb[0].mxu0
        %v1006 = vadd.f32 %v925, %v1005
        %v1007 = vpop.f32.mrb[0].mxu0
        %v1008 = vadd.f32 %v925, %v1007
        %1009 = vdwg.mxu0
        %1010 = vmatprep.subr.mxu0 %v908
        %1011 = vmatpush1.msra.mxu0 %v907
        %1012 = vmatprep.subr.mxu0 %v912
        %1013 = vmatpush1.msra.mxu0 %v911
        %1014 = vmatprep.subr.mxu0 0.0
        %1015 = vmatpush1.msra.mxu0 0.0
        %1016 = vmatprep.subr.mxu0 0.0
        %1017 = vmatpush1.msra.mxu0 0.0
        %1018 = vmatprep.subr.mxu0 0.0
        %1019 = vmatpush1.msra.mxu0 0.0
        %1020 = vmatprep.subr.mxu0 0.0
        %1021 = vmatpush1.msra.mxu0 0.0
        %1022 = vmatprep.subr.mxu0 0.0
        %1023 = vmatpush1.msra.mxu0 0.0
        %1024 = vmatprep.subr.mxu0 0.0
        %1025 = vmatpush1.msra.mxu0 0.0
        %1026 = vmatprep.subr.mxu0 0.0
        %1027 = vmatpush1.msra.mxu0 0.0
        %1028 = vmatprep.subr.mxu0 0.0
        %1029 = vmatpush1.msra.mxu0 0.0
        %1030 = vmatprep.subr.mxu0 0.0
        %1031 = vmatpush1.msra.mxu0 0.0
        %1032 = vmatprep.subr.mxu0 0.0
        %1033 = vmatpush1.msra.mxu0 0.0
        %1034 = vmatprep.subr.mxu0 0.0
        %1035 = vmatpush1.msra.mxu0 0.0
        %1036 = vmatprep.subr.mxu0 0.0
        %1037 = vmatpush1.msra.mxu0 0.0
        %1038 = vmatprep.subr.mxu0 0.0
        %1039 = vmatpush1.msra.mxu0 0.0
        %1040 = vmatprep.subr.mxu0 0.0
        %1041 = vmatpush1.msra.mxu0 0.0
        %1042 = vmatprep.subr.mxu0 0.0
        %1043 = vmatpush1.msra.mxu0 0.0
        %1044 = vmatprep.subr.mxu0 0.0
        %1045 = vmatpush1.msra.mxu0 0.0
        %1046 = vmatprep.subr.mxu0 0.0
        %1047 = vmatpush1.msra.mxu0 0.0
        %1048 = vmatprep.subr.mxu0 0.0
        %1049 = vmatpush1.msra.mxu0 0.0
        %1050 = vmatprep.subr.mxu0 0.0
        %1051 = vmatpush1.msra.mxu0 0.0
        %1052 = vmatprep.subr.mxu0 0.0
        %1053 = vmatpush1.msra.mxu0 0.0
        %1054 = vmatprep.subr.mxu0 0.0
        %1055 = vmatpush1.msra.mxu0 0.0
        %1056 = vmatprep.subr.mxu0 0.0
        %1057 = vmatpush1.msra.mxu0 0.0
        %1058 = vmatprep.subr.mxu0 0.0
        %1059 = vmatpush1.msra.mxu0 0.0
        %1060 = vmatprep.subr.mxu0 0.0
        %1061 = vmatpush1.msra.mxu0 0.0
        %1062 = vmatprep.subr.mxu0 0.0
        %1063 = vmatpush1.msra.mxu0 0.0
        %1064 = vmatprep.subr.mxu0 0.0
        %1065 = vmatpush1.msra.mxu0 0.0
        %1066 = vmatprep.subr.mxu0 0.0
        %1067 = vmatpush1.msra.mxu0 0.0
        %1068 = vmatprep.subr.mxu0 0.0
        %1069 = vmatpush1.msra.mxu0 0.0
        %1070 = vmatprep.subr.mxu0 0.0
        %1071 = vmatpush1.msra.mxu0 0.0
        %1072 = vmatprep.subr.mxu0 0.0
        %1073 = vmatpush1.msra.mxu0 0.0
        %1074 = vmatprep.mubr.f32.mxu0 0.0
        %1075 = vmatmul.mubr.f32.gmra.mrb[0].mxu0 %v928
        %v1076 = vpop.f32.mrb[0].mxu0
        %v1077 = vadd.f32 %v920, %v1076
        %v1078 = vpop.f32.mrb[0].mxu0
        %v1079 = vadd.f32 %v920, %v1078
        %1080 = vmatprep.mubr.f32.mxu0 0.0
        %1081 = vmatmul.mubr.f32.gmra.mrb[0].mxu0 %v931
        %v1082 = vpop.f32.mrb[0].mxu0
        %v1083 = vadd.f32 %v925, %v1082
        %v1084 = vpop.f32.mrb[0].mxu0
        %v1085 = vadd.f32 %v925, %v1084
        %1086 = vdwg.mxu0
        %v1087 = vld [vmem:[%s7] sm:$0xff]
        %v1088 = vld [vmem:[%s7 + $0x8] sm:$0xff]
        %v1089 = vld [vmem:[%s608] sm:$0xff]
        %v1090 = vld [vmem:[%s608 + $0x8] sm:$0xff]
        %v1091 = vld [vmem:[%s608 + $0x10] sm:$0xff]
        %v1092 = vld [vmem:[%s608 + $0x18] sm:$0xff]
        %v1093 = vld [vmem:[%s608 + $0x20] sm:$0xff]
        %v1094 = vld [vmem:[%s608 + $0x28] sm:$0xff]
        %v1095 = vld [vmem:[%s608 + $0x30] sm:$0xff]
        %v1096 = vld [vmem:[%s608 + $0x38] sm:$0xff]
        %v1098 = vsel %vm712, %v1087, 0
        %v1101 = vsel %vm712, %v1088, 0
        %1103 = vmatprep.subr.mxu0 %v1090
        %1104 = vmatpush1.msra.mxu0 %v1089
        %1105 = vmatprep.subr.mxu0 %v1094
        %1106 = vmatpush1.msra.mxu0 %v1093
        %1107 = vmatprep.subr.mxu0 0.0
        %1108 = vmatpush1.msra.mxu0 0.0
        %1109 = vmatprep.subr.mxu0 0.0
        %1110 = vmatpush1.msra.mxu0 0.0
        %1111 = vmatprep.subr.mxu0 0.0
        %1112 = vmatpush1.msra.mxu0 0.0
        %1113 = vmatprep.subr.mxu0 0.0
        %1114 = vmatpush1.msra.mxu0 0.0
        %1115 = vmatprep.subr.mxu0 0.0
        %1116 = vmatpush1.msra.mxu0 0.0
        %1117 = vmatprep.subr.mxu0 0.0
        %1118 = vmatpush1.msra.mxu0 0.0
        %1119 = vmatprep.subr.mxu0 0.0
        %1120 = vmatpush1.msra.mxu0 0.0
        %1121 = vmatprep.subr.mxu0 0.0
        %1122 = vmatpush1.msra.mxu0 0.0
        %1123 = vmatprep.subr.mxu0 0.0
        %1124 = vmatpush1.msra.mxu0 0.0
        %1125 = vmatprep.subr.mxu0 0.0
        %1126 = vmatpush1.msra.mxu0 0.0
        %1127 = vmatprep.subr.mxu0 0.0
        %1128 = vmatpush1.msra.mxu0 0.0
        %1129 = vmatprep.subr.mxu0 0.0
        %1130 = vmatpush1.msra.mxu0 0.0
        %1131 = vmatprep.subr.mxu0 0.0
        %1132 = vmatpush1.msra.mxu0 0.0
        %1133 = vmatprep.subr.mxu0 0.0
        %1134 = vmatpush1.msra.mxu0 0.0
        %1135 = vmatprep.subr.mxu0 0.0
        %1136 = vmatpush1.msra.mxu0 0.0
        %1137 = vmatprep.subr.mxu0 0.0
        %1138 = vmatpush1.msra.mxu0 0.0
        %1139 = vmatprep.subr.mxu0 0.0
        %1140 = vmatpush1.msra.mxu0 0.0
        %1141 = vmatprep.subr.mxu0 0.0
        %1142 = vmatpush1.msra.mxu0 0.0
        %1143 = vmatprep.subr.mxu0 0.0
        %1144 = vmatpush1.msra.mxu0 0.0
        %1145 = vmatprep.subr.mxu0 0.0
        %1146 = vmatpush1.msra.mxu0 0.0
        %1147 = vmatprep.subr.mxu0 0.0
        %1148 = vmatpush1.msra.mxu0 0.0
        %1149 = vmatprep.subr.mxu0 0.0
        %1150 = vmatpush1.msra.mxu0 0.0
        %1151 = vmatprep.subr.mxu0 0.0
        %1152 = vmatpush1.msra.mxu0 0.0
        %1153 = vmatprep.subr.mxu0 0.0
        %1154 = vmatpush1.msra.mxu0 0.0
        %1155 = vmatprep.subr.mxu0 0.0
        %1156 = vmatpush1.msra.mxu0 0.0
        %1157 = vmatprep.subr.mxu0 0.0
        %1158 = vmatpush1.msra.mxu0 0.0
        %1159 = vmatprep.subr.mxu0 0.0
        %1160 = vmatpush1.msra.mxu0 0.0
        %1161 = vmatprep.subr.mxu0 0.0
        %1162 = vmatpush1.msra.mxu0 0.0
        %1163 = vmatprep.subr.mxu0 0.0
        %1164 = vmatpush1.msra.mxu0 0.0
        %1165 = vmatprep.subr.mxu0 0.0
        %1166 = vmatpush1.msra.mxu0 0.0
        %1167 = vmatprep.mubr.f32.mxu0 0.0
        %1168 = vmatmul.mubr.f32.gmra.mrb[0].mxu0 %v1098
        %v1169 = vpop.f32.mrb[0].mxu0
        %v1170 = vadd.f32 0.0, %v1169
        %v1171 = vpop.f32.mrb[0].mxu0
        %v1172 = vadd.f32 0.0, %v1171
        %1173 = vmatprep.mubr.f32.mxu0 0.0
        %1174 = vmatmul.mubr.f32.gmra.mrb[0].mxu0 %v1101
        %v1175 = vpop.f32.mrb[0].mxu0
        %v1176 = vadd.f32 0.0, %v1175
        %v1177 = vpop.f32.mrb[0].mxu0
        %v1178 = vadd.f32 0.0, %v1177
        %1179 = vdwg.mxu0
        %1180 = vmatprep.subr.mxu0 %v1092
        %1181 = vmatpush1.msra.mxu0 %v1091
        %1182 = vmatprep.subr.mxu0 %v1096
        %1183 = vmatpush1.msra.mxu0 %v1095
        %1184 = vmatprep.subr.mxu0 0.0
        %1185 = vmatpush1.msra.mxu0 0.0
        %1186 = vmatprep.subr.mxu0 0.0
        %1187 = vmatpush1.msra.mxu0 0.0
        %1188 = vmatprep.subr.mxu0 0.0
        %1189 = vmatpush1.msra.mxu0 0.0
        %1190 = vmatprep.subr.mxu0 0.0
        %1191 = vmatpush1.msra.mxu0 0.0
        %1192 = vmatprep.subr.mxu0 0.0
        %1193 = vmatpush1.msra.mxu0 0.0
        %1194 = vmatprep.subr.mxu0 0.0
        %1195 = vmatpush1.msra.mxu0 0.0
        %1196 = vmatprep.subr.mxu0 0.0
        %1197 = vmatpush1.msra.mxu0 0.0
        %1198 = vmatprep.subr.mxu0 0.0
        %1199 = vmatpush1.msra.mxu0 0.0
        %1200 = vmatprep.subr.mxu0 0.0
        %1201 = vmatpush1.msra.mxu0 0.0
        %1202 = vmatprep.subr.mxu0 0.0
        %1203 = vmatpush1.msra.mxu0 0.0
        %1204 = vmatprep.subr.mxu0 0.0
        %1205 = vmatpush1.msra.mxu0 0.0
        %1206 = vmatprep.subr.mxu0 0.0
        %1207 = vmatpush1.msra.mxu0 0.0
        %1208 = vmatprep.subr.mxu0 0.0
        %1209 = vmatpush1.msra.mxu0 0.0
        %1210 = vmatprep.subr.mxu0 0.0
        %1211 = vmatpush1.msra.mxu0 0.0
        %1212 = vmatprep.subr.mxu0 0.0
        %1213 = vmatpush1.msra.mxu0 0.0
        %1214 = vmatprep.subr.mxu0 0.0
        %1215 = vmatpush1.msra.mxu0 0.0
        %1216 = vmatprep.subr.mxu0 0.0
        %1217 = vmatpush1.msra.mxu0 0.0
        %1218 = vmatprep.subr.mxu0 0.0
        %1219 = vmatpush1.msra.mxu0 0.0
        %1220 = vmatprep.subr.mxu0 0.0
        %1221 = vmatpush1.msra.mxu0 0.0
        %1222 = vmatprep.subr.mxu0 0.0
        %1223 = vmatpush1.msra.mxu0 0.0
        %1224 = vmatprep.subr.mxu0 0.0
        %1225 = vmatpush1.msra.mxu0 0.0
        %1226 = vmatprep.subr.mxu0 0.0
        %1227 = vmatpush1.msra.mxu0 0.0
        %1228 = vmatprep.subr.mxu0 0.0
        %1229 = vmatpush1.msra.mxu0 0.0
        %1230 = vmatprep.subr.mxu0 0.0
        %1231 = vmatpush1.msra.mxu0 0.0
        %1232 = vmatprep.subr.mxu0 0.0
        %1233 = vmatpush1.msra.mxu0 0.0
        %1234 = vmatprep.subr.mxu0 0.0
        %1235 = vmatpush1.msra.mxu0 0.0
        %1236 = vmatprep.subr.mxu0 0.0
        %1237 = vmatpush1.msra.mxu0 0.0
        %1238 = vmatprep.subr.mxu0 0.0
        %1239 = vmatpush1.msra.mxu0 0.0
        %1240 = vmatprep.subr.mxu0 0.0
        %1241 = vmatpush1.msra.mxu0 0.0
        %1242 = vmatprep.subr.mxu0 0.0
        %1243 = vmatpush1.msra.mxu0 0.0
        %1244 = vmatprep.mubr.f32.mxu0 0.0
        %1245 = vmatmul.mubr.f32.gmra.mrb[0].mxu0 %v1098
        %v1246 = vpop.f32.mrb[0].mxu0
        %v1247 = vadd.f32 0.0, %v1246
        %v1248 = vpop.f32.mrb[0].mxu0
        %v1249 = vadd.f32 0.0, %v1248
        %1250 = vmatprep.mubr.f32.mxu0 0.0
        %1251 = vmatmul.mubr.f32.gmra.mrb[0].mxu0 %v1101
        %v1252 = vpop.f32.mrb[0].mxu0
        %v1253 = vadd.f32 0.0, %v1252
        %v1254 = vpop.f32.mrb[0].mxu0
        %v1255 = vadd.f32 0.0, %v1254
        %1256 = vdwg.mxu0
        %v1257 = vadd.f32 %v1000, %v1170
        %v1258 = vadd.f32 %v1002, %v1172
        %v1259 = vadd.f32 %v1077, %v1247
        %v1260 = vadd.f32 %v1079, %v1249
        %v1261 = vadd.f32 %v1006, %v1176
        %v1262 = vadd.f32 %v1008, %v1178
        %v1263 = vadd.f32 %v1083, %v1253
        %v1264 = vadd.f32 %v1085, %v1255
        %v1265 = vld [vmem:[%s8] sm:$0xff]
        %v1266 = vld [vmem:[%s8 + $0x8] sm:$0xff]
        %1268 = vset.pattern.permute.xlu0 0
        %1269 = vperm.xlu0 %1268, %v1265
        %v1270 = vpop.permute.xlu0 %1269
        %1273 = vset.pattern.permute.xlu0 0
        %1274 = vperm.xlu0 %1273, %v1266
        %v1275 = vpop.permute.xlu0 %1274
        %v1277 = vadd.f32 %v1257, %v1270
        %v1278 = vadd.f32 %v1258, %v1270
        %v1279 = vadd.f32 %v1259, %v1270
        %v1280 = vadd.f32 %v1260, %v1270
        %v1281 = vadd.f32 %v1261, %v1275
        %v1282 = vadd.f32 %v1262, %v1275
        %v1283 = vadd.f32 %v1263, %v1275
        %v1284 = vadd.f32 %v1264, %v1275
        %v1285 = vld [vmem:[%s681] sm:$0xff]
        %v1286 = vld [vmem:[%s9] sm:$0xff]
        %v1287 = vld [vmem:[%s9 + $0x8] sm:$0xff]
        %1289 = vset.pattern.permute.xlu0 0
        %1290 = vperm.xlu0 %1289, %v1286
        %v1291 = vpop.permute.xlu0 %1290
        %1294 = vset.pattern.permute.xlu0 0
        %1295 = vperm.xlu0 %1294, %v1287
        %v1296 = vpop.permute.xlu0 %1295
        %v1299 = vlaneseq
        %v1300 = vshrl.u32 %v1299, 7
        %v1301 = vsub.s32 0, %v1300
        %v1302 = vrot.slane %v1285, %v1301
        %v1303 = vlaneseq
        %v1304 = vshrl.u32 %v1303, 7
        %v1305 = vsub.s32 2, %v1304
        %v1306 = vrot.slane %v1285, %v1305
        %v1307 = vlaneseq
        %v1308 = vshrl.u32 %v1307, 7
        %v1309 = vsub.s32 4, %v1308
        %v1310 = vrot.slane %v1285, %v1309
        %v1311 = vlaneseq
        %v1312 = vshrl.u32 %v1311, 7
        %v1313 = vsub.s32 6, %v1312
        %v1314 = vrot.slane %v1285, %v1313
        %v1319 = vlaneseq
        %v1320 = vshrl.u32 %v1319, 7
        %v1321 = vsub.s32 0, %v1320
        %v1322 = vrot.slane %v1302, %v1321
        %v1323 = vlaneseq
        %v1324 = vshrl.u32 %v1323, 7
        %v1325 = vsub.s32 0, %v1324
        %v1326 = vrot.slane %v1306, %v1325
        %v1327 = vlaneseq
        %v1328 = vshrl.u32 %v1327, 7
        %v1329 = vsub.s32 0, %v1328
        %v1330 = vrot.slane %v1310, %v1329
        %v1331 = vlaneseq
        %v1332 = vshrl.u32 %v1331, 7
        %v1333 = vsub.s32 0, %v1332
        %v1334 = vrot.slane %v1314, %v1333
        %v1335 = vmul.f32 %v1291, %v1322
        %v1336 = vmul.f32 %v1291, %v1326
        %v1337 = vmul.f32 %v1291, %v1330
        %v1338 = vmul.f32 %v1291, %v1334
        %v1339 = vmul.f32 %v1296, %v1322
        %v1340 = vmul.f32 %v1296, %v1326
        %v1341 = vmul.f32 %v1296, %v1330
        %v1342 = vmul.f32 %v1296, %v1334
        %v1343 = vadd.f32 %v1277, %v1335
        %v1344 = vadd.f32 %v1278, %v1336
        %v1345 = vadd.f32 %v1279, %v1337
        %v1346 = vadd.f32 %v1280, %v1338
        %v1347 = vadd.f32 %v1281, %v1339
        %v1348 = vadd.f32 %v1282, %v1340
        %v1349 = vadd.f32 %v1283, %v1341
        %v1350 = vadd.f32 %v1284, %v1342
        %1351 = vset.pattern.permute.xlu0 1
        %1352 = vperm.xlu0 %1351, %v1286
        %v1353 = vpop.permute.xlu0 %1352
        %1355 = vset.pattern.permute.xlu0 1
        %1356 = vperm.xlu0 %1355, %v1287
        %v1357 = vpop.permute.xlu0 %1356
        %v1359 = vlaneseq
        %v1360 = vshrl.u32 %v1359, 7
        %v1361 = vsub.s32 1, %v1360
        %v1362 = vrot.slane %v1285, %v1361
        %v1363 = vlaneseq
        %v1364 = vshrl.u32 %v1363, 7
        %v1365 = vsub.s32 3, %v1364
        %v1366 = vrot.slane %v1285, %v1365
        %v1367 = vlaneseq
        %v1368 = vshrl.u32 %v1367, 7
        %v1369 = vsub.s32 5, %v1368
        %v1370 = vrot.slane %v1285, %v1369
        %v1371 = vlaneseq
        %v1372 = vshrl.u32 %v1371, 7
        %v1373 = vsub.s32 7, %v1372
        %v1374 = vrot.slane %v1285, %v1373
        %v1379 = vlaneseq
        %v1380 = vshrl.u32 %v1379, 7
        %v1381 = vsub.s32 1, %v1380
        %v1382 = vrot.slane %v1362, %v1381
        %v1383 = vlaneseq
        %v1384 = vshrl.u32 %v1383, 7
        %v1385 = vsub.s32 1, %v1384
        %v1386 = vrot.slane %v1366, %v1385
        %v1387 = vlaneseq
        %v1388 = vshrl.u32 %v1387, 7
        %v1389 = vsub.s32 1, %v1388
        %v1390 = vrot.slane %v1370, %v1389
        %v1391 = vlaneseq
        %v1392 = vshrl.u32 %v1391, 7
        %v1393 = vsub.s32 1, %v1392
        %v1394 = vrot.slane %v1374, %v1393
        %v1395 = vmul.f32 %v1353, %v1382
        %v1396 = vmul.f32 %v1353, %v1386
        %v1397 = vmul.f32 %v1353, %v1390
        %v1398 = vmul.f32 %v1353, %v1394
        %v1399 = vmul.f32 %v1357, %v1382
        %v1400 = vmul.f32 %v1357, %v1386
        %v1401 = vmul.f32 %v1357, %v1390
        %v1402 = vmul.f32 %v1357, %v1394
        %v1403 = vadd.f32 %v1343, %v1395
        %v1404 = vadd.f32 %v1344, %v1396
        %v1405 = vadd.f32 %v1345, %v1397
        %v1406 = vadd.f32 %v1346, %v1398
        %v1407 = vadd.f32 %v1347, %v1399
        %v1408 = vadd.f32 %v1348, %v1400
        %v1409 = vadd.f32 %v1349, %v1401
        %v1410 = vadd.f32 %v1350, %v1402
        %v1411 = vld [vmem:[%s10] sm:$0xff]
        %v1412 = vld [vmem:[%s10 + $0x8] sm:$0xff]
        %1414 = vset.pattern.permute.xlu0 0
        %1415 = vperm.xlu0 %1414, %v1411
        %v1416 = vpop.permute.xlu0 %1415
        %1419 = vset.pattern.permute.xlu0 0
        %1420 = vperm.xlu0 %1419, %v1412
        %v1421 = vpop.permute.xlu0 %1420
        %v1423 = vadd.f32 %v1403, %v1416
        %v1424 = vadd.f32 %v1404, %v1416
        %v1425 = vadd.f32 %v1405, %v1416
        %v1426 = vadd.f32 %v1406, %v1416
        %v1427 = vadd.f32 %v1407, %v1421
        %v1428 = vadd.f32 %v1408, %v1421
        %v1429 = vadd.f32 %v1409, %v1421
        %v1430 = vadd.f32 %v1410, %v1421
        %v1431 = vmul.f32 %v1423, 0.5
        %v1432 = vmul.f32 %v1424, 0.5
        %v1433 = vmul.f32 %v1425, 0.5
        %v1434 = vmul.f32 %v1426, 0.5
        %v1435 = vmul.f32 %v1427, 0.5
        %v1436 = vmul.f32 %v1428, 0.5
        %v1437 = vmul.f32 %v1429, 0.5
        %v1438 = vmul.f32 %v1430, 0.5
        %v1439 = vmul.f32 %v1423, 0.70710677
        %v1440 = vmul.f32 %v1424, 0.70710677
        %v1441 = vmul.f32 %v1425, 0.70710677
        %v1442 = vmul.f32 %v1426, 0.70710677
        %v1443 = vmul.f32 %v1427, 0.70710677
        %v1444 = vmul.f32 %v1428, 0.70710677
        %v1445 = vmul.f32 %v1429, 0.70710677
        %v1446 = vmul.f32 %v1430, 0.70710677
        %v1447 = verf.f32.pop %v1439
        %v1448 = verf.f32.pop %v1440
        %v1449 = verf.f32.pop %v1441
        %v1450 = verf.f32.pop %v1442
        %v1451 = verf.f32.pop %v1443
        %v1452 = verf.f32.pop %v1444
        %v1453 = verf.f32.pop %v1445
        %v1454 = verf.f32.pop %v1446
        %v1455 = vadd.f32 %v1447, 1.0
        %v1456 = vadd.f32 %v1448, 1.0
        %v1457 = vadd.f32 %v1449, 1.0
        %v1458 = vadd.f32 %v1450, 1.0
        %v1459 = vadd.f32 %v1451, 1.0
        %v1460 = vadd.f32 %v1452, 1.0
        %v1461 = vadd.f32 %v1453, 1.0
        %v1462 = vadd.f32 %v1454, 1.0
        %v1463 = vmul.f32 %v1431, %v1455
        %v1464 = vmul.f32 %v1432, %v1456
        %v1465 = vmul.f32 %v1433, %v1457
        %v1466 = vmul.f32 %v1434, %v1458
        %v1467 = vmul.f32 %v1435, %v1459
        %v1468 = vmul.f32 %v1436, %v1460
        %v1469 = vmul.f32 %v1437, %v1461
        %v1470 = vmul.f32 %v1438, %v1462
        %v1471 = vld [vmem:[%s615] sm:$0xff]
        %v1472 = vld [vmem:[%s615 + $0x8] sm:$0xff]
        %v1473 = vld [vmem:[%s615 + $0x10] sm:$0xff]
        %v1474 = vld [vmem:[%s615 + $0x18] sm:$0xff]
        %v1475 = vld [vmem:[%s615 + $0x20] sm:$0xff]
        %v1476 = vld [vmem:[%s615 + $0x28] sm:$0xff]
        %v1477 = vld [vmem:[%s615 + $0x30] sm:$0xff]
        %v1478 = vld [vmem:[%s615 + $0x38] sm:$0xff]
        %v1479 = vadd.f32 %v1463, %v1471
        %v1480 = vadd.f32 %v1464, %v1472
        %v1481 = vadd.f32 %v1465, %v1473
        %v1482 = vadd.f32 %v1466, %v1474
        %v1483 = vadd.f32 %v1467, %v1475
        %v1484 = vadd.f32 %v1468, %v1476
        %v1485 = vadd.f32 %v1469, %v1477
        %v1486 = vadd.f32 %v1470, %v1478
        %v1487 = vld [vmem:[%s12] sm:$0xff]
        %v1488 = vld [vmem:[%s12 + $0x8] sm:$0xff]
        %v1489 = vld [vmem:[%s12 + $0x10] sm:$0xff]
        %v1490 = vld [vmem:[%s12 + $0x18] sm:$0xff]
        %v1491 = vld [vmem:[%s12 + $0x20] sm:$0xff]
        %v1492 = vld [vmem:[%s12 + $0x28] sm:$0xff]
        %v1493 = vld [vmem:[%s12 + $0x30] sm:$0xff]
        %v1494 = vld [vmem:[%s12 + $0x38] sm:$0xff]
        %v1495 = vld [vmem:[%s12 + $0x40] sm:$0xff]
        %v1496 = vld [vmem:[%s12 + $0x48] sm:$0xff]
        %v1497 = vld [vmem:[%s12 + $0x50] sm:$0xff]
        %v1498 = vld [vmem:[%s12 + $0x58] sm:$0xff]
        %v1499 = vld [vmem:[%s12 + $0x60] sm:$0xff]
        %v1500 = vld [vmem:[%s12 + $0x68] sm:$0xff]
        %v1501 = vld [vmem:[%s12 + $0x70] sm:$0xff]
        %v1502 = vld [vmem:[%s12 + $0x78] sm:$0xff]
        %v1503 = vld [vmem:[%s12 + $0x80] sm:$0xff]
        %v1504 = vld [vmem:[%s12 + $0x88] sm:$0xff]
        %v1505 = vld [vmem:[%s12 + $0x90] sm:$0xff]
        %v1506 = vld [vmem:[%s12 + $0x98] sm:$0xff]
        %v1507 = vld [vmem:[%s12 + $0xa0] sm:$0xff]
        %v1508 = vld [vmem:[%s12 + $0xa8] sm:$0xff]
        %v1509 = vld [vmem:[%s12 + $0xb0] sm:$0xff]
        %v1510 = vld [vmem:[%s12 + $0xb8] sm:$0xff]
        %v1511 = vld [vmem:[%s12 + $0xc0] sm:$0xff]
        %v1512 = vld [vmem:[%s12 + $0xc8] sm:$0xff]
        %v1513 = vld [vmem:[%s12 + $0xd0] sm:$0xff]
        %v1514 = vld [vmem:[%s12 + $0xd8] sm:$0xff]
        %v1515 = vld [vmem:[%s12 + $0xe0] sm:$0xff]
        %v1516 = vld [vmem:[%s12 + $0xe8] sm:$0xff]
        %v1517 = vld [vmem:[%s12 + $0xf0] sm:$0xff]
        %v1518 = vld [vmem:[%s12 + $0xf8] sm:$0xff]
        %v1519 = vld [vmem:[%s13] sm:$0xff]
        %v1520 = vld [vmem:[%s13 + $0x8] sm:$0xff]
        %v1521 = vld [vmem:[%s13 + $0x10] sm:$0xff]
        %v1522 = vld [vmem:[%s13 + $0x18] sm:$0xff]
        %v1523 = vld [vmem:[%s13 + $0x20] sm:$0xff]
        %v1524 = vld [vmem:[%s13 + $0x28] sm:$0xff]
        %v1525 = vld [vmem:[%s13 + $0x30] sm:$0xff]
        %v1526 = vld [vmem:[%s13 + $0x38] sm:$0xff]
        %v1527 = vld [vmem:[%s13 + $0x40] sm:$0xff]
        %v1528 = vld [vmem:[%s13 + $0x48] sm:$0xff]
        %v1529 = vld [vmem:[%s13 + $0x50] sm:$0xff]
        %v1530 = vld [vmem:[%s13 + $0x58] sm:$0xff]
        %v1531 = vld [vmem:[%s13 + $0x60] sm:$0xff]
        %v1532 = vld [vmem:[%s13 + $0x68] sm:$0xff]
        %v1533 = vld [vmem:[%s13 + $0x70] sm:$0xff]
        %v1534 = vld [vmem:[%s13 + $0x78] sm:$0xff]
        %v1535 = vld [vmem:[%s13 + $0x80] sm:$0xff]
        %v1536 = vld [vmem:[%s13 + $0x88] sm:$0xff]
        %v1537 = vld [vmem:[%s13 + $0x90] sm:$0xff]
        %v1538 = vld [vmem:[%s13 + $0x98] sm:$0xff]
        %v1539 = vld [vmem:[%s13 + $0xa0] sm:$0xff]
        %v1540 = vld [vmem:[%s13 + $0xa8] sm:$0xff]
        %v1541 = vld [vmem:[%s13 + $0xb0] sm:$0xff]
        %v1542 = vld [vmem:[%s13 + $0xb8] sm:$0xff]
        %v1543 = vld [vmem:[%s13 + $0xc0] sm:$0xff]
        %v1544 = vld [vmem:[%s13 + $0xc8] sm:$0xff]
        %v1545 = vld [vmem:[%s13 + $0xd0] sm:$0xff]
        %v1546 = vld [vmem:[%s13 + $0xd8] sm:$0xff]
        %v1547 = vld [vmem:[%s13 + $0xe0] sm:$0xff]
        %v1548 = vld [vmem:[%s13 + $0xe8] sm:$0xff]
        %v1549 = vld [vmem:[%s13 + $0xf0] sm:$0xff]
        %v1550 = vld [vmem:[%s13 + $0xf8] sm:$0xff]
        %1552 = vset.pattern.permute.xlu0 0
        %1553 = vperm.xlu0 %1552, %v1519
        %v1554 = vpop.permute.xlu0 %1553
        %1557 = vset.pattern.permute.xlu0 0
        %1558 = vperm.xlu0 %1557, %v1520
        %v1559 = vpop.permute.xlu0 %1558
        %1562 = vset.pattern.permute.xlu0 0
        %1563 = vperm.xlu0 %1562, %v1521
        %v1564 = vpop.permute.xlu0 %1563
        %1567 = vset.pattern.permute.xlu0 0
        %1568 = vperm.xlu0 %1567, %v1522
        %v1569 = vpop.permute.xlu0 %1568
        %1572 = vset.pattern.permute.xlu0 0
        %1573 = vperm.xlu0 %1572, %v1523
        %v1574 = vpop.permute.xlu0 %1573
        %1577 = vset.pattern.permute.xlu0 0
        %1578 = vperm.xlu0 %1577, %v1524
        %v1579 = vpop.permute.xlu0 %1578
        %1582 = vset.pattern.permute.xlu0 0
        %1583 = vperm.xlu0 %1582, %v1525
        %v1584 = vpop.permute.xlu0 %1583
        %1587 = vset.pattern.permute.xlu0 0
        %1588 = vperm.xlu0 %1587, %v1526
        %v1589 = vpop.permute.xlu0 %1588
        %1592 = vset.pattern.permute.xlu0 0
        %1593 = vperm.xlu0 %1592, %v1527
        %v1594 = vpop.permute.xlu0 %1593
        %1597 = vset.pattern.permute.xlu0 0
        %1598 = vperm.xlu0 %1597, %v1528
        %v1599 = vpop.permute.xlu0 %1598
        %1602 = vset.pattern.permute.xlu0 0
        %1603 = vperm.xlu0 %1602, %v1529
        %v1604 = vpop.permute.xlu0 %1603
        %1607 = vset.pattern.permute.xlu0 0
        %1608 = vperm.xlu0 %1607, %v1530
        %v1609 = vpop.permute.xlu0 %1608
        %1612 = vset.pattern.permute.xlu0 0
        %1613 = vperm.xlu0 %1612, %v1531
        %v1614 = vpop.permute.xlu0 %1613
        %1617 = vset.pattern.permute.xlu0 0
        %1618 = vperm.xlu0 %1617, %v1532
        %v1619 = vpop.permute.xlu0 %1618
        %1622 = vset.pattern.permute.xlu0 0
        %1623 = vperm.xlu0 %1622, %v1533
        %v1624 = vpop.permute.xlu0 %1623
        %1627 = vset.pattern.permute.xlu0 0
        %1628 = vperm.xlu0 %1627, %v1534
        %v1629 = vpop.permute.xlu0 %1628
        %1632 = vset.pattern.permute.xlu0 0
        %1633 = vperm.xlu0 %1632, %v1535
        %v1634 = vpop.permute.xlu0 %1633
        %1637 = vset.pattern.permute.xlu0 0
        %1638 = vperm.xlu0 %1637, %v1536
        %v1639 = vpop.permute.xlu0 %1638
        %1642 = vset.pattern.permute.xlu0 0
        %1643 = vperm.xlu0 %1642, %v1537
        %v1644 = vpop.permute.xlu0 %1643
        %1647 = vset.pattern.permute.xlu0 0
        %1648 = vperm.xlu0 %1647, %v1538
        %v1649 = vpop.permute.xlu0 %1648
        %1652 = vset.pattern.permute.xlu0 0
        %1653 = vperm.xlu0 %1652, %v1539
        %v1654 = vpop.permute.xlu0 %1653
        %1657 = vset.pattern.permute.xlu0 0
        %1658 = vperm.xlu0 %1657, %v1540
        %v1659 = vpop.permute.xlu0 %1658
        %1662 = vset.pattern.permute.xlu0 0
        %1663 = vperm.xlu0 %1662, %v1541
        %v1664 = vpop.permute.xlu0 %1663
        %1667 = vset.pattern.permute.xlu0 0
        %1668 = vperm.xlu0 %1667, %v1542
        %v1669 = vpop.permute.xlu0 %1668
        %1672 = vset.pattern.permute.xlu0 0
        %1673 = vperm.xlu0 %1672, %v1543
        %v1674 = vpop.permute.xlu0 %1673
        %1677 = vset.pattern.permute.xlu0 0
        %1678 = vperm.xlu0 %1677, %v1544
        %v1679 = vpop.permute.xlu0 %1678
        %1682 = vset.pattern.permute.xlu0 0
        %1683 = vperm.xlu0 %1682, %v1545
        %v1684 = vpop.permute.xlu0 %1683
        %1687 = vset.pattern.permute.xlu0 0
        %1688 = vperm.xlu0 %1687, %v1546
        %v1689 = vpop.permute.xlu0 %1688
        %1692 = vset.pattern.permute.xlu0 0
        %1693 = vperm.xlu0 %1692, %v1547
        %v1694 = vpop.permute.xlu0 %1693
        %1697 = vset.pattern.permute.xlu0 0
        %1698 = vperm.xlu0 %1697, %v1548
        %v1699 = vpop.permute.xlu0 %1698
        %1702 = vset.pattern.permute.xlu0 0
        %1703 = vperm.xlu0 %1702, %v1549
        %v1704 = vpop.permute.xlu0 %1703
        %1707 = vset.pattern.permute.xlu0 0
        %1708 = vperm.xlu0 %1707, %v1550
        %v1709 = vpop.permute.xlu0 %1708
        %v1712 = vsel %vm712, %v1487, 0
        %v1715 = vsel %vm712, %v1488, 0
        %v1718 = vsel %vm712, %v1489, 0
        %v1721 = vsel %vm712, %v1490, 0
        %v1724 = vsel %vm712, %v1491, 0
        %v1727 = vsel %vm712, %v1492, 0
        %v1730 = vsel %vm712, %v1493, 0
        %v1733 = vsel %vm712, %v1494, 0
        %v1736 = vsel %vm712, %v1495, 0
        %v1739 = vsel %vm712, %v1496, 0
        %v1742 = vsel %vm712, %v1497, 0
        %v1745 = vsel %vm712, %v1498, 0
        %v1748 = vsel %vm712, %v1499, 0
        %v1751 = vsel %vm712, %v1500, 0
        %v1754 = vsel %vm712, %v1501, 0
        %v1757 = vsel %vm712, %v1502, 0
        %v1760 = vsel %vm712, %v1503, 0
        %v1763 = vsel %vm712, %v1504, 0
        %v1766 = vsel %vm712, %v1505, 0
        %v1769 = vsel %vm712, %v1506, 0
        %v1772 = vsel %vm712, %v1507, 0
        %v1775 = vsel %vm712, %v1508, 0
        %v1778 = vsel %vm712, %v1509, 0
        %v1781 = vsel %vm712, %v1510, 0
        %v1784 = vsel %vm712, %v1511, 0
        %v1787 = vsel %vm712, %v1512, 0
        %v1790 = vsel %vm712, %v1513, 0
        %v1793 = vsel %vm712, %v1514, 0
        %v1796 = vsel %vm712, %v1515, 0
        %v1799 = vsel %vm712, %v1516, 0
        %v1802 = vsel %vm712, %v1517, 0
        %v1805 = vsel %vm712, %v1518, 0
        %1807 = vmatprep.subr.mxu0 %v1480
        %1808 = vmatpush1.msra.mxu0 %v1479
        %1809 = vmatprep.subr.mxu0 %v1484
        %1810 = vmatpush1.msra.mxu0 %v1483
        %1811 = vmatprep.subr.mxu0 0.0
        %1812 = vmatpush1.msra.mxu0 0.0
        %1813 = vmatprep.subr.mxu0 0.0
        %1814 = vmatpush1.msra.mxu0 0.0
        %1815 = vmatprep.subr.mxu0 0.0
        %1816 = vmatpush1.msra.mxu0 0.0
        %1817 = vmatprep.subr.mxu0 0.0
        %1818 = vmatpush1.msra.mxu0 0.0
        %1819 = vmatprep.subr.mxu0 0.0
        %1820 = vmatpush1.msra.mxu0 0.0
        %1821 = vmatprep.subr.mxu0 0.0
        %1822 = vmatpush1.msra.mxu0 0.0
        %1823 = vmatprep.subr.mxu0 0.0
        %1824 = vmatpush1.msra.mxu0 0.0
        %1825 = vmatprep.subr.mxu0 0.0
        %1826 = vmatpush1.msra.mxu0 0.0
        %1827 = vmatprep.subr.mxu0 0.0
        %1828 = vmatpush1.msra.mxu0 0.0
        %1829 = vmatprep.subr.mxu0 0.0
        %1830 = vmatpush1.msra.mxu0 0.0
        %1831 = vmatprep.subr.mxu0 0.0
        %1832 = vmatpush1.msra.mxu0 0.0
        %1833 = vmatprep.subr.mxu0 0.0
        %1834 = vmatpush1.msra.mxu0 0.0
        %1835 = vmatprep.subr.mxu0 0.0
        %1836 = vmatpush1.msra.mxu0 0.0
        %1837 = vmatprep.subr.mxu0 0.0
        %1838 = vmatpush1.msra.mxu0 0.0
        %1839 = vmatprep.subr.mxu0 0.0
        %1840 = vmatpush1.msra.mxu0 0.0
        %1841 = vmatprep.subr.mxu0 0.0
        %1842 = vmatpush1.msra.mxu0 0.0
        %1843 = vmatprep.subr.mxu0 0.0
        %1844 = vmatpush1.msra.mxu0 0.0
        %1845 = vmatprep.subr.mxu0 0.0
        %1846 = vmatpush1.msra.mxu0 0.0
        %1847 = vmatprep.subr.mxu0 0.0
        %1848 = vmatpush1.msra.mxu0 0.0
        %1849 = vmatprep.subr.mxu0 0.0
        %1850 = vmatpush1.msra.mxu0 0.0
        %1851 = vmatprep.subr.mxu0 0.0
        %1852 = vmatpush1.msra.mxu0 0.0
        %1853 = vmatprep.subr.mxu0 0.0
        %1854 = vmatpush1.msra.mxu0 0.0
        %1855 = vmatprep.subr.mxu0 0.0
        %1856 = vmatpush1.msra.mxu0 0.0
        %1857 = vmatprep.subr.mxu0 0.0
        %1858 = vmatpush1.msra.mxu0 0.0
        %1859 = vmatprep.subr.mxu0 0.0
        %1860 = vmatpush1.msra.mxu0 0.0
        %1861 = vmatprep.subr.mxu0 0.0
        %1862 = vmatpush1.msra.mxu0 0.0
        %1863 = vmatprep.subr.mxu0 0.0
        %1864 = vmatpush1.msra.mxu0 0.0
        %1865 = vmatprep.subr.mxu0 0.0
        %1866 = vmatpush1.msra.mxu0 0.0
        %1867 = vmatprep.subr.mxu0 0.0
        %1868 = vmatpush1.msra.mxu0 0.0
        %1869 = vmatprep.subr.mxu0 0.0
        %1870 = vmatpush1.msra.mxu0 0.0
        %1871 = vmatprep.mubr.f32.mxu0 0.0
        %1872 = vmatmul.mubr.f32.gmra.mrb[0].mxu0 %v1712
        %v1873 = vpop.f32.mrb[0].mxu0
        %v1874 = vadd.f32 %v1554, %v1873
        %v1875 = vpop.f32.mrb[0].mxu0
        %v1876 = vadd.f32 %v1554, %v1875
        %1877 = vmatprep.mubr.f32.mxu0 0.0
        %1878 = vmatmul.mubr.f32.gmra.mrb[0].mxu0 %v1715
        %v1879 = vpop.f32.mrb[0].mxu0
        %v1880 = vadd.f32 %v1559, %v1879
        %v1881 = vpop.f32.mrb[0].mxu0
        %v1882 = vadd.f32 %v1559, %v1881
        %1883 = vmatprep.mubr.f32.mxu0 0.0
        %1884 = vmatmul.mubr.f32.gmra.mrb[0].mxu0 %v1718
        %v1885 = vpop.f32.mrb[0].mxu0
        %v1886 = vadd.f32 %v1564, %v1885
        %v1887 = vpop.f32.mrb[0].mxu0
        %v1888 = vadd.f32 %v1564, %v1887
        %1889 = vmatprep.mubr.f32.mxu0 0.0
        %1890 = vmatmul.mubr.f32.gmra.mrb[0].mxu0 %v1721
        %v1891 = vpop.f32.mrb[0].mxu0
        %v1892 = vadd.f32 %v1569, %v1891
        %v1893 = vpop.f32.mrb[0].mxu0
        %v1894 = vadd.f32 %v1569, %v1893
        %1895 = vmatprep.mubr.f32.mxu0 0.0
        %1896 = vmatmul.mubr.f32.gmra.mrb[0].mxu0 %v1724
        %v1897 = vpop.f32.mrb[0].mxu0
        %v1898 = vadd.f32 %v1574, %v1897
        %v1899 = vpop.f32.mrb[0].mxu0
        %v1900 = vadd.f32 %v1574, %v1899
        %1901 = vmatprep.mubr.f32.mxu0 0.0
        %1902 = vmatmul.mubr.f32.gmra.mrb[0].mxu0 %v1727
        %v1903 = vpop.f32.mrb[0].mxu0
        %v1904 = vadd.f32 %v1579, %v1903
        %v1905 = vpop.f32.mrb[0].mxu0
        %v1906 = vadd.f32 %v1579, %v1905
        %1907 = vmatprep.mubr.f32.mxu0 0.0
        %1908 = vmatmul.mubr.f32.gmra.mrb[0].mxu0 %v1730
        %v1909 = vpop.f32.mrb[0].mxu0
        %v1910 = vadd.f32 %v1584, %v1909
        %v1911 = vpop.f32.mrb[0].mxu0
        %v1912 = vadd.f32 %v1584, %v1911
        %1913 = vmatprep.mubr.f32.mxu0 0.0
        %1914 = vmatmul.mubr.f32.gmra.mrb[0].mxu0 %v1733
        %v1915 = vpop.f32.mrb[0].mxu0
        %v1916 = vadd.f32 %v1589, %v1915
        %v1917 = vpop.f32.mrb[0].mxu0
        %v1918 = vadd.f32 %v1589, %v1917
        %1919 = vmatprep.mubr.f32.mxu0 0.0
        %1920 = vmatmul.mubr.f32.gmra.mrb[0].mxu0 %v1736
        %v1921 = vpop.f32.mrb[0].mxu0
        %v1922 = vadd.f32 %v1594, %v1921
        %v1923 = vpop.f32.mrb[0].mxu0
        %v1924 = vadd.f32 %v1594, %v1923
        %1925 = vmatprep.mubr.f32.mxu0 0.0
        %1926 = vmatmul.mubr.f32.gmra.mrb[0].mxu0 %v1739
        %v1927 = vpop.f32.mrb[0].mxu0
        %v1928 = vadd.f32 %v1599, %v1927
        %v1929 = vpop.f32.mrb[0].mxu0
        %v1930 = vadd.f32 %v1599, %v1929
        %1931 = vmatprep.mubr.f32.mxu0 0.0
        %1932 = vmatmul.mubr.f32.gmra.mrb[0].mxu0 %v1742
        %v1933 = vpop.f32.mrb[0].mxu0
        %v1934 = vadd.f32 %v1604, %v1933
        %v1935 = vpop.f32.mrb[0].mxu0
        %v1936 = vadd.f32 %v1604, %v1935
        %1937 = vmatprep.mubr.f32.mxu0 0.0
        %1938 = vmatmul.mubr.f32.gmra.mrb[0].mxu0 %v1745
        %v1939 = vpop.f32.mrb[0].mxu0
        %v1940 = vadd.f32 %v1609, %v1939
        %v1941 = vpop.f32.mrb[0].mxu0
        %v1942 = vadd.f32 %v1609, %v1941
        %1943 = vmatprep.mubr.f32.mxu0 0.0
        %1944 = vmatmul.mubr.f32.gmra.mrb[0].mxu0 %v1748
        %v1945 = vpop.f32.mrb[0].mxu0
        %v1946 = vadd.f32 %v1614, %v1945
        %v1947 = vpop.f32.mrb[0].mxu0
        %v1948 = vadd.f32 %v1614, %v1947
        %1949 = vmatprep.mubr.f32.mxu0 0.0
        %1950 = vmatmul.mubr.f32.gmra.mrb[0].mxu0 %v1751
        %v1951 = vpop.f32.mrb[0].mxu0
        %v1952 = vadd.f32 %v1619, %v1951
        %v1953 = vpop.f32.mrb[0].mxu0
        %v1954 = vadd.f32 %v1619, %v1953
        %1955 = vmatprep.mubr.f32.mxu0 0.0
        %1956 = vmatmul.mubr.f32.gmra.mrb[0].mxu0 %v1754
        %v1957 = vpop.f32.mrb[0].mxu0
        %v1958 = vadd.f32 %v1624, %v1957
        %v1959 = vpop.f32.mrb[0].mxu0
        %v1960 = vadd.f32 %v1624, %v1959
        %1961 = vmatprep.mubr.f32.mxu0 0.0
        %1962 = vmatmul.mubr.f32.gmra.mrb[0].mxu0 %v1757
        %v1963 = vpop.f32.mrb[0].mxu0
        %v1964 = vadd.f32 %v1629, %v1963
        %v1965 = vpop.f32.mrb[0].mxu0
        %v1966 = vadd.f32 %v1629, %v1965
        %1967 = vmatprep.mubr.f32.mxu0 0.0
        %1968 = vmatmul.mubr.f32.gmra.mrb[0].mxu0 %v1760
        %v1969 = vpop.f32.mrb[0].mxu0
        %v1970 = vadd.f32 %v1634, %v1969
        %v1971 = vpop.f32.mrb[0].mxu0
        %v1972 = vadd.f32 %v1634, %v1971
        %1973 = vmatprep.mubr.f32.mxu0 0.0
        %1974 = vmatmul.mubr.f32.gmra.mrb[0].mxu0 %v1763
        %v1975 = vpop.f32.mrb[0].mxu0
        %v1976 = vadd.f32 %v1639, %v1975
        %v1977 = vpop.f32.mrb[0].mxu0
        %v1978 = vadd.f32 %v1639, %v1977
        %1979 = vmatprep.mubr.f32.mxu0 0.0
        %1980 = vmatmul.mubr.f32.gmra.mrb[0].mxu0 %v1766
        %v1981 = vpop.f32.mrb[0].mxu0
        %v1982 = vadd.f32 %v1644, %v1981
        %v1983 = vpop.f32.mrb[0].mxu0
        %v1984 = vadd.f32 %v1644, %v1983
        %1985 = vmatprep.mubr.f32.mxu0 0.0
        %1986 = vmatmul.mubr.f32.gmra.mrb[0].mxu0 %v1769
        %v1987 = vpop.f32.mrb[0].mxu0
        %v1988 = vadd.f32 %v1649, %v1987
        %v1989 = vpop.f32.mrb[0].mxu0
        %v1990 = vadd.f32 %v1649, %v1989
        %1991 = vmatprep.mubr.f32.mxu0 0.0
        %1992 = vmatmul.mubr.f32.gmra.mrb[0].mxu0 %v1772
        %v1993 = vpop.f32.mrb[0].mxu0
        %v1994 = vadd.f32 %v1654, %v1993
        %v1995 = vpop.f32.mrb[0].mxu0
        %v1996 = vadd.f32 %v1654, %v1995
        %1997 = vmatprep.mubr.f32.mxu0 0.0
        %1998 = vmatmul.mubr.f32.gmra.mrb[0].mxu0 %v1775
        %v1999 = vpop.f32.mrb[0].mxu0
        %v2000 = vadd.f32 %v1659, %v1999
        %v2001 = vpop.f32.mrb[0].mxu0
        %v2002 = vadd.f32 %v1659, %v2001
        %2003 = vmatprep.mubr.f32.mxu0 0.0
        %2004 = vmatmul.mubr.f32.gmra.mrb[0].mxu0 %v1778
        %v2005 = vpop.f32.mrb[0].mxu0
        %v2006 = vadd.f32 %v1664, %v2005
        %v2007 = vpop.f32.mrb[0].mxu0
        %v2008 = vadd.f32 %v1664, %v2007
        %2009 = vmatprep.mubr.f32.mxu0 0.0
        %2010 = vmatmul.mubr.f32.gmra.mrb[0].mxu0 %v1781
        %v2011 = vpop.f32.mrb[0].mxu0
        %v2012 = vadd.f32 %v1669, %v2011
        %v2013 = vpop.f32.mrb[0].mxu0
        %v2014 = vadd.f32 %v1669, %v2013
        %2015 = vmatprep.mubr.f32.mxu0 0.0
        %2016 = vmatmul.mubr.f32.gmra.mrb[0].mxu0 %v1784
        %v2017 = vpop.f32.mrb[0].mxu0
        %v2018 = vadd.f32 %v1674, %v2017
        %v2019 = vpop.f32.mrb[0].mxu0
        %v2020 = vadd.f32 %v1674, %v2019
        %2021 = vmatprep.mubr.f32.mxu0 0.0
        %2022 = vmatmul.mubr.f32.gmra.mrb[0].mxu0 %v1787
        %v2023 = vpop.f32.mrb[0].mxu0
        %v2024 = vadd.f32 %v1679, %v2023
        %v2025 = vpop.f32.mrb[0].mxu0
        %v2026 = vadd.f32 %v1679, %v2025
        %2027 = vmatprep.mubr.f32.mxu0 0.0
        %2028 = vmatmul.mubr.f32.gmra.mrb[0].mxu0 %v1790
        %v2029 = vpop.f32.mrb[0].mxu0
        %v2030 = vadd.f32 %v1684, %v2029
        %v2031 = vpop.f32.mrb[0].mxu0
        %v2032 = vadd.f32 %v1684, %v2031
        %2033 = vmatprep.mubr.f32.mxu0 0.0
        %2034 = vmatmul.mubr.f32.gmra.mrb[0].mxu0 %v1793
        %v2035 = vpop.f32.mrb[0].mxu0
        %v2036 = vadd.f32 %v1689, %v2035
        %v2037 = vpop.f32.mrb[0].mxu0
        %v2038 = vadd.f32 %v1689, %v2037
        %2039 = vmatprep.mubr.f32.mxu0 0.0
        %2040 = vmatmul.mubr.f32.gmra.mrb[0].mxu0 %v1796
        %v2041 = vpop.f32.mrb[0].mxu0
        %v2042 = vadd.f32 %v1694, %v2041
        %v2043 = vpop.f32.mrb[0].mxu0
        %v2044 = vadd.f32 %v1694, %v2043
        %2045 = vmatprep.mubr.f32.mxu0 0.0
        %2046 = vmatmul.mubr.f32.gmra.mrb[0].mxu0 %v1799
        %v2047 = vpop.f32.mrb[0].mxu0
        %v2048 = vadd.f32 %v1699, %v2047
        %v2049 = vpop.f32.mrb[0].mxu0
        %v2050 = vadd.f32 %v1699, %v2049
        %2051 = vmatprep.mubr.f32.mxu0 0.0
        %2052 = vmatmul.mubr.f32.gmra.mrb[0].mxu0 %v1802
        %v2053 = vpop.f32.mrb[0].mxu0
        %v2054 = vadd.f32 %v1704, %v2053
        %v2055 = vpop.f32.mrb[0].mxu0
        %v2056 = vadd.f32 %v1704, %v2055
        %2057 = vmatprep.mubr.f32.mxu0 0.0
        %2058 = vmatmul.mubr.f32.gmra.mrb[0].mxu0 %v1805
        %v2059 = vpop.f32.mrb[0].mxu0
        %v2060 = vadd.f32 %v1709, %v2059
        %v2061 = vpop.f32.mrb[0].mxu0
        %v2062 = vadd.f32 %v1709, %v2061
        %2063 = vdwg.mxu0
        %2064 = vmatprep.subr.mxu0 %v1482
        %2065 = vmatpush1.msra.mxu0 %v1481
        %2066 = vmatprep.subr.mxu0 %v1486
        %2067 = vmatpush1.msra.mxu0 %v1485
        %2068 = vmatprep.subr.mxu0 0.0
        %2069 = vmatpush1.msra.mxu0 0.0
        %2070 = vmatprep.subr.mxu0 0.0
        %2071 = vmatpush1.msra.mxu0 0.0
        %2072 = vmatprep.subr.mxu0 0.0
        %2073 = vmatpush1.msra.mxu0 0.0
        %2074 = vmatprep.subr.mxu0 0.0
        %2075 = vmatpush1.msra.mxu0 0.0
        %2076 = vmatprep.subr.mxu0 0.0
        %2077 = vmatpush1.msra.mxu0 0.0
        %2078 = vmatprep.subr.mxu0 0.0
        %2079 = vmatpush1.msra.mxu0 0.0
        %2080 = vmatprep.subr.mxu0 0.0
        %2081 = vmatpush1.msra.mxu0 0.0
        %2082 = vmatprep.subr.mxu0 0.0
        %2083 = vmatpush1.msra.mxu0 0.0
        %2084 = vmatprep.subr.mxu0 0.0
        %2085 = vmatpush1.msra.mxu0 0.0
        %2086 = vmatprep.subr.mxu0 0.0
        %2087 = vmatpush1.msra.mxu0 0.0
        %2088 = vmatprep.subr.mxu0 0.0
        %2089 = vmatpush1.msra.mxu0 0.0
        %2090 = vmatprep.subr.mxu0 0.0
        %2091 = vmatpush1.msra.mxu0 0.0
        %2092 = vmatprep.subr.mxu0 0.0
        %2093 = vmatpush1.msra.mxu0 0.0
        %2094 = vmatprep.subr.mxu0 0.0
        %2095 = vmatpush1.msra.mxu0 0.0
        %2096 = vmatprep.subr.mxu0 0.0
        %2097 = vmatpush1.msra.mxu0 0.0
        %2098 = vmatprep.subr.mxu0 0.0
        %2099 = vmatpush1.msra.mxu0 0.0
        %2100 = vmatprep.subr.mxu0 0.0
        %2101 = vmatpush1.msra.mxu0 0.0
        %2102 = vmatprep.subr.mxu0 0.0
        %2103 = vmatpush1.msra.mxu0 0.0
        %2104 = vmatprep.subr.mxu0 0.0
        %2105 = vmatpush1.msra.mxu0 0.0
        %2106 = vmatprep.subr.mxu0 0.0
        %2107 = vmatpush1.msra.mxu0 0.0
        %2108 = vmatprep.subr.mxu0 0.0
        %2109 = vmatpush1.msra.mxu0 0.0
        %2110 = vmatprep.subr.mxu0 0.0
        %2111 = vmatpush1.msra.mxu0 0.0
        %2112 = vmatprep.subr.mxu0 0.0
        %2113 = vmatpush1.msra.mxu0 0.0
        %2114 = vmatprep.subr.mxu0 0.0
        %2115 = vmatpush1.msra.mxu0 0.0
        %2116 = vmatprep.subr.mxu0 0.0
        %2117 = vmatpush1.msra.mxu0 0.0
        %2118 = vmatprep.subr.mxu0 0.0
        %2119 = vmatpush1.msra.mxu0 0.0
        %2120 = vmatprep.subr.mxu0 0.0
        %2121 = vmatpush1.msra.mxu0 0.0
        %2122 = vmatprep.subr.mxu0 0.0
        %2123 = vmatpush1.msra.mxu0 0.0
        %2124 = vmatprep.subr.mxu0 0.0
        %2125 = vmatpush1.msra.mxu0 0.0
        %2126 = vmatprep.subr.mxu0 0.0
        %2127 = vmatpush1.msra.mxu0 0.0
        %2128 = vmatprep.mubr.f32.mxu0 0.0
        %2129 = vmatmul.mubr.f32.gmra.mrb[0].mxu0 %v1712
        %v2130 = vpop.f32.mrb[0].mxu0
        %v2131 = vadd.f32 %v1554, %v2130
        %v2132 = vpop.f32.mrb[0].mxu0
        %v2133 = vadd.f32 %v1554, %v2132
        %2134 = vmatprep.mubr.f32.mxu0 0.0
        %2135 = vmatmul.mubr.f32.gmra.mrb[0].mxu0 %v1715
        %v2136 = vpop.f32.mrb[0].mxu0
        %v2137 = vadd.f32 %v1559, %v2136
        %v2138 = vpop.f32.mrb[0].mxu0
        %v2139 = vadd.f32 %v1559, %v2138
        %2140 = vmatprep.mubr.f32.mxu0 0.0
        %2141 = vmatmul.mubr.f32.gmra.mrb[0].mxu0 %v1718
        %v2142 = vpop.f32.mrb[0].mxu0
        %v2143 = vadd.f32 %v1564, %v2142
        %v2144 = vpop.f32.mrb[0].mxu0
        %v2145 = vadd.f32 %v1564, %v2144
        %2146 = vmatprep.mubr.f32.mxu0 0.0
        %2147 = vmatmul.mubr.f32.gmra.mrb[0].mxu0 %v1721
        %v2148 = vpop.f32.mrb[0].mxu0
        %v2149 = vadd.f32 %v1569, %v2148
        %v2150 = vpop.f32.mrb[0].mxu0
        %v2151 = vadd.f32 %v1569, %v2150
        %2152 = vmatprep.mubr.f32.mxu0 0.0
        %2153 = vmatmul.mubr.f32.gmra.mrb[0].mxu0 %v1724
        %v2154 = vpop.f32.mrb[0].mxu0
        %v2155 = vadd.f32 %v1574, %v2154
        %v2156 = vpop.f32.mrb[0].mxu0
        %v2157 = vadd.f32 %v1574, %v2156
        %2158 = vmatprep.mubr.f32.mxu0 0.0
        %2159 = vmatmul.mubr.f32.gmra.mrb[0].mxu0 %v1727
        %v2160 = vpop.f32.mrb[0].mxu0
        %v2161 = vadd.f32 %v1579, %v2160
        %v2162 = vpop.f32.mrb[0].mxu0
        %v2163 = vadd.f32 %v1579, %v2162
        %2164 = vmatprep.mubr.f32.mxu0 0.0
        %2165 = vmatmul.mubr.f32.gmra.mrb[0].mxu0 %v1730
        %v2166 = vpop.f32.mrb[0].mxu0
        %v2167 = vadd.f32 %v1584, %v2166
        %v2168 = vpop.f32.mrb[0].mxu0
        %v2169 = vadd.f32 %v1584, %v2168
        %2170 = vmatprep.mubr.f32.mxu0 0.0
        %2171 = vmatmul.mubr.f32.gmra.mrb[0].mxu0 %v1733
        %v2172 = vpop.f32.mrb[0].mxu0
        %v2173 = vadd.f32 %v1589, %v2172
        %v2174 = vpop.f32.mrb[0].mxu0
        %v2175 = vadd.f32 %v1589, %v2174
        %2176 = vmatprep.mubr.f32.mxu0 0.0
        %2177 = vmatmul.mubr.f32.gmra.mrb[0].mxu0 %v1736
        %v2178 = vpop.f32.mrb[0].mxu0
        %v2179 = vadd.f32 %v1594, %v2178
        %v2180 = vpop.f32.mrb[0].mxu0
        %v2181 = vadd.f32 %v1594, %v2180
        %2182 = vmatprep.mubr.f32.mxu0 0.0
        %2183 = vmatmul.mubr.f32.gmra.mrb[0].mxu0 %v1739
        %v2184 = vpop.f32.mrb[0].mxu0
        %v2185 = vadd.f32 %v1599, %v2184
        %v2186 = vpop.f32.mrb[0].mxu0
        %v2187 = vadd.f32 %v1599, %v2186
        %2188 = vmatprep.mubr.f32.mxu0 0.0
        %2189 = vmatmul.mubr.f32.gmra.mrb[0].mxu0 %v1742
        %v2190 = vpop.f32.mrb[0].mxu0
        %v2191 = vadd.f32 %v1604, %v2190
        %v2192 = vpop.f32.mrb[0].mxu0
        %v2193 = vadd.f32 %v1604, %v2192
        %2194 = vmatprep.mubr.f32.mxu0 0.0
        %2195 = vmatmul.mubr.f32.gmra.mrb[0].mxu0 %v1745
        %v2196 = vpop.f32.mrb[0].mxu0
        %v2197 = vadd.f32 %v1609, %v2196
        %v2198 = vpop.f32.mrb[0].mxu0
        %v2199 = vadd.f32 %v1609, %v2198
        %2200 = vmatprep.mubr.f32.mxu0 0.0
        %2201 = vmatmul.mubr.f32.gmra.mrb[0].mxu0 %v1748
        %v2202 = vpop.f32.mrb[0].mxu0
        %v2203 = vadd.f32 %v1614, %v2202
        %v2204 = vpop.f32.mrb[0].mxu0
        %v2205 = vadd.f32 %v1614, %v2204
        %2206 = vmatprep.mubr.f32.mxu0 0.0
        %2207 = vmatmul.mubr.f32.gmra.mrb[0].mxu0 %v1751
        %v2208 = vpop.f32.mrb[0].mxu0
        %v2209 = vadd.f32 %v1619, %v2208
        %v2210 = vpop.f32.mrb[0].mxu0
        %v2211 = vadd.f32 %v1619, %v2210
        %2212 = vmatprep.mubr.f32.mxu0 0.0
        %2213 = vmatmul.mubr.f32.gmra.mrb[0].mxu0 %v1754
        %v2214 = vpop.f32.mrb[0].mxu0
        %v2215 = vadd.f32 %v1624, %v2214
        %v2216 = vpop.f32.mrb[0].mxu0
        %v2217 = vadd.f32 %v1624, %v2216
        %2218 = vmatprep.mubr.f32.mxu0 0.0
        %2219 = vmatmul.mubr.f32.gmra.mrb[0].mxu0 %v1757
        %v2220 = vpop.f32.mrb[0].mxu0
        %v2221 = vadd.f32 %v1629, %v2220
        %v2222 = vpop.f32.mrb[0].mxu0
        %v2223 = vadd.f32 %v1629, %v2222
        %2224 = vmatprep.mubr.f32.mxu0 0.0
        %2225 = vmatmul.mubr.f32.gmra.mrb[0].mxu0 %v1760
        %v2226 = vpop.f32.mrb[0].mxu0
        %v2227 = vadd.f32 %v1634, %v2226
        %v2228 = vpop.f32.mrb[0].mxu0
        %v2229 = vadd.f32 %v1634, %v2228
        %2230 = vmatprep.mubr.f32.mxu0 0.0
        %2231 = vmatmul.mubr.f32.gmra.mrb[0].mxu0 %v1763
        %v2232 = vpop.f32.mrb[0].mxu0
        %v2233 = vadd.f32 %v1639, %v2232
        %v2234 = vpop.f32.mrb[0].mxu0
        %v2235 = vadd.f32 %v1639, %v2234
        %2236 = vmatprep.mubr.f32.mxu0 0.0
        %2237 = vmatmul.mubr.f32.gmra.mrb[0].mxu0 %v1766
        %v2238 = vpop.f32.mrb[0].mxu0
        %v2239 = vadd.f32 %v1644, %v2238
        %v2240 = vpop.f32.mrb[0].mxu0
        %v2241 = vadd.f32 %v1644, %v2240
        %2242 = vmatprep.mubr.f32.mxu0 0.0
        %2243 = vmatmul.mubr.f32.gmra.mrb[0].mxu0 %v1769
        %v2244 = vpop.f32.mrb[0].mxu0
        %v2245 = vadd.f32 %v1649, %v2244
        %v2246 = vpop.f32.mrb[0].mxu0
        %v2247 = vadd.f32 %v1649, %v2246
        %2248 = vmatprep.mubr.f32.mxu0 0.0
        %2249 = vmatmul.mubr.f32.gmra.mrb[0].mxu0 %v1772
        %v2250 = vpop.f32.mrb[0].mxu0
        %v2251 = vadd.f32 %v1654, %v2250
        %v2252 = vpop.f32.mrb[0].mxu0
        %v2253 = vadd.f32 %v1654, %v2252
        %2254 = vmatprep.mubr.f32.mxu0 0.0
        %2255 = vmatmul.mubr.f32.gmra.mrb[0].mxu0 %v1775
        %v2256 = vpop.f32.mrb[0].mxu0
        %v2257 = vadd.f32 %v1659, %v2256
        %v2258 = vpop.f32.mrb[0].mxu0
        %v2259 = vadd.f32 %v1659, %v2258
        %2260 = vmatprep.mubr.f32.mxu0 0.0
        %2261 = vmatmul.mubr.f32.gmra.mrb[0].mxu0 %v1778
        %v2262 = vpop.f32.mrb[0].mxu0
        %v2263 = vadd.f32 %v1664, %v2262
        %v2264 = vpop.f32.mrb[0].mxu0
        %v2265 = vadd.f32 %v1664, %v2264
        %2266 = vmatprep.mubr.f32.mxu0 0.0
        %2267 = vmatmul.mubr.f32.gmra.mrb[0].mxu0 %v1781
        %v2268 = vpop.f32.mrb[0].mxu0
        %v2269 = vadd.f32 %v1669, %v2268
        %v2270 = vpop.f32.mrb[0].mxu0
        %v2271 = vadd.f32 %v1669, %v2270
        %2272 = vmatprep.mubr.f32.mxu0 0.0
        %2273 = vmatmul.mubr.f32.gmra.mrb[0].mxu0 %v1784
        %v2274 = vpop.f32.mrb[0].mxu0
        %v2275 = vadd.f32 %v1674, %v2274
        %v2276 = vpop.f32.mrb[0].mxu0
        %v2277 = vadd.f32 %v1674, %v2276
        %2278 = vmatprep.mubr.f32.mxu0 0.0
        %2279 = vmatmul.mubr.f32.gmra.mrb[0].mxu0 %v1787
        %v2280 = vpop.f32.mrb[0].mxu0
        %v2281 = vadd.f32 %v1679, %v2280
        %v2282 = vpop.f32.mrb[0].mxu0
        %v2283 = vadd.f32 %v1679, %v2282
        %2284 = vmatprep.mubr.f32.mxu0 0.0
        %2285 = vmatmul.mubr.f32.gmra.mrb[0].mxu0 %v1790
        %v2286 = vpop.f32.mrb[0].mxu0
        %v2287 = vadd.f32 %v1684, %v2286
        %v2288 = vpop.f32.mrb[0].mxu0
        %v2289 = vadd.f32 %v1684, %v2288
        %2290 = vmatprep.mubr.f32.mxu0 0.0
        %2291 = vmatmul.mubr.f32.gmra.mrb[0].mxu0 %v1793
        %v2292 = vpop.f32.mrb[0].mxu0
        %v2293 = vadd.f32 %v1689, %v2292
        %v2294 = vpop.f32.mrb[0].mxu0
        %v2295 = vadd.f32 %v1689, %v2294
        %2296 = vmatprep.mubr.f32.mxu0 0.0
        %2297 = vmatmul.mubr.f32.gmra.mrb[0].mxu0 %v1796
        %v2298 = vpop.f32.mrb[0].mxu0
        %v2299 = vadd.f32 %v1694, %v2298
        %v2300 = vpop.f32.mrb[0].mxu0
        %v2301 = vadd.f32 %v1694, %v2300
        %2302 = vmatprep.mubr.f32.mxu0 0.0
        %2303 = vmatmul.mubr.f32.gmra.mrb[0].mxu0 %v1799
        %v2304 = vpop.f32.mrb[0].mxu0
        %v2305 = vadd.f32 %v1699, %v2304
        %v2306 = vpop.f32.mrb[0].mxu0
        %v2307 = vadd.f32 %v1699, %v2306
        %2308 = vmatprep.mubr.f32.mxu0 0.0
        %2309 = vmatmul.mubr.f32.gmra.mrb[0].mxu0 %v1802
        %v2310 = vpop.f32.mrb[0].mxu0
        %v2311 = vadd.f32 %v1704, %v2310
        %v2312 = vpop.f32.mrb[0].mxu0
        %v2313 = vadd.f32 %v1704, %v2312
        %2314 = vmatprep.mubr.f32.mxu0 0.0
        %2315 = vmatmul.mubr.f32.gmra.mrb[0].mxu0 %v1805
        %v2316 = vpop.f32.mrb[0].mxu0
        %v2317 = vadd.f32 %v1709, %v2316
        %v2318 = vpop.f32.mrb[0].mxu0
        %v2319 = vadd.f32 %v1709, %v2318
        %2320 = vdwg.mxu0
        %v2321 = vmul.f32 %v1874, 0.5
        %v2322 = vmul.f32 %v1876, 0.5
        %v2323 = vmul.f32 %v2131, 0.5
        %v2324 = vmul.f32 %v2133, 0.5
        %v2325 = vmul.f32 %v1880, 0.5
        %v2326 = vmul.f32 %v1882, 0.5
        %v2327 = vmul.f32 %v2137, 0.5
        %v2328 = vmul.f32 %v2139, 0.5
        %v2329 = vmul.f32 %v1886, 0.5
        %v2330 = vmul.f32 %v1888, 0.5
        %v2331 = vmul.f32 %v2143, 0.5
        %v2332 = vmul.f32 %v2145, 0.5
        %v2333 = vmul.f32 %v1892, 0.5
        %v2334 = vmul.f32 %v1894, 0.5
        %v2335 = vmul.f32 %v2149, 0.5
        %v2336 = vmul.f32 %v2151, 0.5
        %v2337 = vmul.f32 %v1898, 0.5
        %v2338 = vmul.f32 %v1900, 0.5
        %v2339 = vmul.f32 %v2155, 0.5
        %v2340 = vmul.f32 %v2157, 0.5
        %v2341 = vmul.f32 %v1904, 0.5
        %v2342 = vmul.f32 %v1906, 0.5
        %v2343 = vmul.f32 %v2161, 0.5
        %v2344 = vmul.f32 %v2163, 0.5
        %v2345 = vmul.f32 %v1910, 0.5
        %v2346 = vmul.f32 %v1912, 0.5
        %v2347 = vmul.f32 %v2167, 0.5
        %v2348 = vmul.f32 %v2169, 0.5
        %v2349 = vmul.f32 %v1916, 0.5
        %v2350 = vmul.f32 %v1918, 0.5
        %v2351 = vmul.f32 %v2173, 0.5
        %v2352 = vmul.f32 %v2175, 0.5
        %v2353 = vmul.f32 %v1922, 0.5
        %v2354 = vmul.f32 %v1924, 0.5
        %v2355 = vmul.f32 %v2179, 0.5
        %v2356 = vmul.f32 %v2181, 0.5
        %v2357 = vmul.f32 %v1928, 0.5
        %v2358 = vmul.f32 %v1930, 0.5
        %v2359 = vmul.f32 %v2185, 0.5
        %v2360 = vmul.f32 %v2187, 0.5
        %v2361 = vmul.f32 %v1934, 0.5
        %v2362 = vmul.f32 %v1936, 0.5
        %v2363 = vmul.f32 %v2191, 0.5
        %v2364 = vmul.f32 %v2193, 0.5
        %v2365 = vmul.f32 %v1940, 0.5
        %v2366 = vmul.f32 %v1942, 0.5
        %v2367 = vmul.f32 %v2197, 0.5
        %v2368 = vmul.f32 %v2199, 0.5
        %v2369 = vmul.f32 %v1946, 0.5
        %v2370 = vmul.f32 %v1948, 0.5
        %v2371 = vmul.f32 %v2203, 0.5
        %v2372 = vmul.f32 %v2205, 0.5
        %v2373 = vmul.f32 %v1952, 0.5
        %v2374 = vmul.f32 %v1954, 0.5
        %v2375 = vmul.f32 %v2209, 0.5
        %v2376 = vmul.f32 %v2211, 0.5
        %v2377 = vmul.f32 %v1958, 0.5
        %v2378 = vmul.f32 %v1960, 0.5
        %v2379 = vmul.f32 %v2215, 0.5
        %v2380 = vmul.f32 %v2217, 0.5
        %v2381 = vmul.f32 %v1964, 0.5
        %v2382 = vmul.f32 %v1966, 0.5
        %v2383 = vmul.f32 %v2221, 0.5
        %v2384 = vmul.f32 %v2223, 0.5
        %v2385 = vmul.f32 %v1970, 0.5
        %v2386 = vmul.f32 %v1972, 0.5
        %v2387 = vmul.f32 %v2227, 0.5
        %v2388 = vmul.f32 %v2229, 0.5
        %v2389 = vmul.f32 %v1976, 0.5
        %v2390 = vmul.f32 %v1978, 0.5
        %v2391 = vmul.f32 %v2233, 0.5
        %v2392 = vmul.f32 %v2235, 0.5
        %v2393 = vmul.f32 %v1982, 0.5
        %v2394 = vmul.f32 %v1984, 0.5
        %v2395 = vmul.f32 %v2239, 0.5
        %v2396 = vmul.f32 %v2241, 0.5
        %v2397 = vmul.f32 %v1988, 0.5
        %v2398 = vmul.f32 %v1990, 0.5
        %v2399 = vmul.f32 %v2245, 0.5
        %v2400 = vmul.f32 %v2247, 0.5
        %v2401 = vmul.f32 %v1994, 0.5
        %v2402 = vmul.f32 %v1996, 0.5
        %v2403 = vmul.f32 %v2251, 0.5
        %v2404 = vmul.f32 %v2253, 0.5
        %v2405 = vmul.f32 %v2000, 0.5
        %v2406 = vmul.f32 %v2002, 0.5
        %v2407 = vmul.f32 %v2257, 0.5
        %v2408 = vmul.f32 %v2259, 0.5
        %v2409 = vmul.f32 %v2006, 0.5
        %v2410 = vmul.f32 %v2008, 0.5
        %v2411 = vmul.f32 %v2263, 0.5
        %v2412 = vmul.f32 %v2265, 0.5
        %v2413 = vmul.f32 %v2012, 0.5
        %v2414 = vmul.f32 %v2014, 0.5
        %v2415 = vmul.f32 %v2269, 0.5
        %v2416 = vmul.f32 %v2271, 0.5
        %v2417 = vmul.f32 %v2018, 0.5
        %v2418 = vmul.f32 %v2020, 0.5
        %v2419 = vmul.f32 %v2275, 0.5
        %v2420 = vmul.f32 %v2277, 0.5
        %v2421 = vmul.f32 %v2024, 0.5
        %v2422 = vmul.f32 %v2026, 0.5
        %v2423 = vmul.f32 %v2281, 0.5
        %v2424 = vmul.f32 %v2283, 0.5
        %v2425 = vmul.f32 %v2030, 0.5
        %v2426 = vmul.f32 %v2032, 0.5
        %v2427 = vmul.f32 %v2287, 0.5
        %v2428 = vmul.f32 %v2289, 0.5
        %v2429 = vmul.f32 %v2036, 0.5
        %v2430 = vmul.f32 %v2038, 0.5
        %v2431 = vmul.f32 %v2293, 0.5
        %v2432 = vmul.f32 %v2295, 0.5
        %v2433 = vmul.f32 %v2042, 0.5
        %v2434 = vmul.f32 %v2044, 0.5
        %v2435 = vmul.f32 %v2299, 0.5
        %v2436 = vmul.f32 %v2301, 0.5
        %v2437 = vmul.f32 %v2048, 0.5
        %v2438 = vmul.f32 %v2050, 0.5
        %v2439 = vmul.f32 %v2305, 0.5
        %v2440 = vmul.f32 %v2307, 0.5
        %v2441 = vmul.f32 %v2054, 0.5
        %v2442 = vmul.f32 %v2056, 0.5
        %v2443 = vmul.f32 %v2311, 0.5
        %v2444 = vmul.f32 %v2313, 0.5
        %v2445 = vmul.f32 %v2060, 0.5
        %v2446 = vmul.f32 %v2062, 0.5
        %v2447 = vmul.f32 %v2317, 0.5
        %v2448 = vmul.f32 %v2319, 0.5
        %v2449 = vmul.f32 %v1874, 0.70710677
        %v2450 = vmul.f32 %v1876, 0.70710677
        %v2451 = vmul.f32 %v2131, 0.70710677
        %v2452 = vmul.f32 %v2133, 0.70710677
        %v2453 = vmul.f32 %v1880, 0.70710677
        %v2454 = vmul.f32 %v1882, 0.70710677
        %v2455 = vmul.f32 %v2137, 0.70710677
        %v2456 = vmul.f32 %v2139, 0.70710677
        %v2457 = vmul.f32 %v1886, 0.70710677
        %v2458 = vmul.f32 %v1888, 0.70710677
        %v2459 = vmul.f32 %v2143, 0.70710677
        %v2460 = vmul.f32 %v2145, 0.70710677
        %v2461 = vmul.f32 %v1892, 0.70710677
        %v2462 = vmul.f32 %v1894, 0.70710677
        %v2463 = vmul.f32 %v2149, 0.70710677
        %v2464 = vmul.f32 %v2151, 0.70710677
        %v2465 = vmul.f32 %v1898, 0.70710677
        %v2466 = vmul.f32 %v1900, 0.70710677
        %v2467 = vmul.f32 %v2155, 0.70710677
        %v2468 = vmul.f32 %v2157, 0.70710677
        %v2469 = vmul.f32 %v1904, 0.70710677
        %v2470 = vmul.f32 %v1906, 0.70710677
        %v2471 = vmul.f32 %v2161, 0.70710677
        %v2472 = vmul.f32 %v2163, 0.70710677
        %v2473 = vmul.f32 %v1910, 0.70710677
        %v2474 = vmul.f32 %v1912, 0.70710677
        %v2475 = vmul.f32 %v2167, 0.70710677
        %v2476 = vmul.f32 %v2169, 0.70710677
        %v2477 = vmul.f32 %v1916, 0.70710677
        %v2478 = vmul.f32 %v1918, 0.70710677
        %v2479 = vmul.f32 %v2173, 0.70710677
        %v2480 = vmul.f32 %v2175, 0.70710677
        %v2481 = vmul.f32 %v1922, 0.70710677
        %v2482 = vmul.f32 %v1924, 0.70710677
        %v2483 = vmul.f32 %v2179, 0.70710677
        %v2484 = vmul.f32 %v2181, 0.70710677
        %v2485 = vmul.f32 %v1928, 0.70710677
        %v2486 = vmul.f32 %v1930, 0.70710677
        %v2487 = vmul.f32 %v2185, 0.70710677
        %v2488 = vmul.f32 %v2187, 0.70710677
        %v2489 = vmul.f32 %v1934, 0.70710677
        %v2490 = vmul.f32 %v1936, 0.70710677
        %v2491 = vmul.f32 %v2191, 0.70710677
        %v2492 = vmul.f32 %v2193, 0.70710677
        %v2493 = vmul.f32 %v1940, 0.70710677
        %v2494 = vmul.f32 %v1942, 0.70710677
        %v2495 = vmul.f32 %v2197, 0.70710677
        %v2496 = vmul.f32 %v2199, 0.70710677
        %v2497 = vmul.f32 %v1946, 0.70710677
        %v2498 = vmul.f32 %v1948, 0.70710677
        %v2499 = vmul.f32 %v2203, 0.70710677
        %v2500 = vmul.f32 %v2205, 0.70710677
        %v2501 = vmul.f32 %v1952, 0.70710677
        %v2502 = vmul.f32 %v1954, 0.70710677
        %v2503 = vmul.f32 %v2209, 0.70710677
        %v2504 = vmul.f32 %v2211, 0.70710677
        %v2505 = vmul.f32 %v1958, 0.70710677
        %v2506 = vmul.f32 %v1960, 0.70710677
        %v2507 = vmul.f32 %v2215, 0.70710677
        %v2508 = vmul.f32 %v2217, 0.70710677
        %v2509 = vmul.f32 %v1964, 0.70710677
        %v2510 = vmul.f32 %v1966, 0.70710677
        %v2511 = vmul.f32 %v2221, 0.70710677
        %v2512 = vmul.f32 %v2223, 0.70710677
        %v2513 = vmul.f32 %v1970, 0.70710677
        %v2514 = vmul.f32 %v1972, 0.70710677
        %v2515 = vmul.f32 %v2227, 0.70710677
        %v2516 = vmul.f32 %v2229, 0.70710677
        %v2517 = vmul.f32 %v1976, 0.70710677
        %v2518 = vmul.f32 %v1978, 0.70710677
        %v2519 = vmul.f32 %v2233, 0.70710677
        %v2520 = vmul.f32 %v2235, 0.70710677
        %v2521 = vmul.f32 %v1982, 0.70710677
        %v2522 = vmul.f32 %v1984, 0.70710677
        %v2523 = vmul.f32 %v2239, 0.70710677
        %v2524 = vmul.f32 %v2241, 0.70710677
        %v2525 = vmul.f32 %v1988, 0.70710677
        %v2526 = vmul.f32 %v1990, 0.70710677
        %v2527 = vmul.f32 %v2245, 0.70710677
        %v2528 = vmul.f32 %v2247, 0.70710677
        %v2529 = vmul.f32 %v1994, 0.70710677
        %v2530 = vmul.f32 %v1996, 0.70710677
        %v2531 = vmul.f32 %v2251, 0.70710677
        %v2532 = vmul.f32 %v2253, 0.70710677
        %v2533 = vmul.f32 %v2000, 0.70710677
        %v2534 = vmul.f32 %v2002, 0.70710677
        %v2535 = vmul.f32 %v2257, 0.70710677
        %v2536 = vmul.f32 %v2259, 0.70710677
        %v2537 = vmul.f32 %v2006, 0.70710677
        %v2538 = vmul.f32 %v2008, 0.70710677
        %v2539 = vmul.f32 %v2263, 0.70710677
        %v2540 = vmul.f32 %v2265, 0.70710677
        %v2541 = vmul.f32 %v2012, 0.70710677
        %v2542 = vmul.f32 %v2014, 0.70710677
        %v2543 = vmul.f32 %v2269, 0.70710677
        %v2544 = vmul.f32 %v2271, 0.70710677
        %v2545 = vmul.f32 %v2018, 0.70710677
        %v2546 = vmul.f32 %v2020, 0.70710677
        %v2547 = vmul.f32 %v2275, 0.70710677
        %v2548 = vmul.f32 %v2277, 0.70710677
        %v2549 = vmul.f32 %v2024, 0.70710677
        %v2550 = vmul.f32 %v2026, 0.70710677
        %v2551 = vmul.f32 %v2281, 0.70710677
        %v2552 = vmul.f32 %v2283, 0.70710677
        %v2553 = vmul.f32 %v2030, 0.70710677
        %v2554 = vmul.f32 %v2032, 0.70710677
        %v2555 = vmul.f32 %v2287, 0.70710677
        %v2556 = vmul.f32 %v2289, 0.70710677
        %v2557 = vmul.f32 %v2036, 0.70710677
        %v2558 = vmul.f32 %v2038, 0.70710677
        %v2559 = vmul.f32 %v2293, 0.70710677
        %v2560 = vmul.f32 %v2295, 0.70710677
        %v2561 = vmul.f32 %v2042, 0.70710677
        %v2562 = vmul.f32 %v2044, 0.70710677
        %v2563 = vmul.f32 %v2299, 0.70710677
        %v2564 = vmul.f32 %v2301, 0.70710677
        %v2565 = vmul.f32 %v2048, 0.70710677
        %v2566 = vmul.f32 %v2050, 0.70710677
        %v2567 = vmul.f32 %v2305, 0.70710677
        %v2568 = vmul.f32 %v2307, 0.70710677
        %v2569 = vmul.f32 %v2054, 0.70710677
        %v2570 = vmul.f32 %v2056, 0.70710677
        %v2571 = vmul.f32 %v2311, 0.70710677
        %v2572 = vmul.f32 %v2313, 0.70710677
        %v2573 = vmul.f32 %v2060, 0.70710677
        %v2574 = vmul.f32 %v2062, 0.70710677
        %v2575 = vmul.f32 %v2317, 0.70710677
        %v2576 = vmul.f32 %v2319, 0.70710677
        %v2577 = verf.f32.pop %v2449
        %v2578 = verf.f32.pop %v2450
        %v2579 = verf.f32.pop %v2451
        %v2580 = verf.f32.pop %v2452
        %v2581 = verf.f32.pop %v2453
        %v2582 = verf.f32.pop %v2454
        %v2583 = verf.f32.pop %v2455
        %v2584 = verf.f32.pop %v2456
        %v2585 = verf.f32.pop %v2457
        %v2586 = verf.f32.pop %v2458
        %v2587 = verf.f32.pop %v2459
        %v2588 = verf.f32.pop %v2460
        %v2589 = verf.f32.pop %v2461
        %v2590 = verf.f32.pop %v2462
        %v2591 = verf.f32.pop %v2463
        %v2592 = verf.f32.pop %v2464
        %v2593 = verf.f32.pop %v2465
        %v2594 = verf.f32.pop %v2466
        %v2595 = verf.f32.pop %v2467
        %v2596 = verf.f32.pop %v2468
        %v2597 = verf.f32.pop %v2469
        %v2598 = verf.f32.pop %v2470
        %v2599 = verf.f32.pop %v2471
        %v2600 = verf.f32.pop %v2472
        %v2601 = verf.f32.pop %v2473
        %v2602 = verf.f32.pop %v2474
        %v2603 = verf.f32.pop %v2475
        %v2604 = verf.f32.pop %v2476
        %v2605 = verf.f32.pop %v2477
        %v2606 = verf.f32.pop %v2478
        %v2607 = verf.f32.pop %v2479
        %v2608 = verf.f32.pop %v2480
        %v2609 = verf.f32.pop %v2481
        %v2610 = verf.f32.pop %v2482
        %v2611 = verf.f32.pop %v2483
        %v2612 = verf.f32.pop %v2484
        %v2613 = verf.f32.pop %v2485
        %v2614 = verf.f32.pop %v2486
        %v2615 = verf.f32.pop %v2487
        %v2616 = verf.f32.pop %v2488
        %v2617 = verf.f32.pop %v2489
        %v2618 = verf.f32.pop %v2490
        %v2619 = verf.f32.pop %v2491
        %v2620 = verf.f32.pop %v2492
        %v2621 = verf.f32.pop %v2493
        %v2622 = verf.f32.pop %v2494
        %v2623 = verf.f32.pop %v2495
        %v2624 = verf.f32.pop %v2496
        %v2625 = verf.f32.pop %v2497
        %v2626 = verf.f32.pop %v2498
        %v2627 = verf.f32.pop %v2499
        %v2628 = verf.f32.pop %v2500
        %v2629 = verf.f32.pop %v2501
        %v2630 = verf.f32.pop %v2502
        %v2631 = verf.f32.pop %v2503
        %v2632 = verf.f32.pop %v2504
        %v2633 = verf.f32.pop %v2505
        %v2634 = verf.f32.pop %v2506
        %v2635 = verf.f32.pop %v2507
        %v2636 = verf.f32.pop %v2508
        %v2637 = verf.f32.pop %v2509
        %v2638 = verf.f32.pop %v2510
        %v2639 = verf.f32.pop %v2511
        %v2640 = verf.f32.pop %v2512
        %v2641 = verf.f32.pop %v2513
        %v2642 = verf.f32.pop %v2514
        %v2643 = verf.f32.pop %v2515
        %v2644 = verf.f32.pop %v2516
        %v2645 = verf.f32.pop %v2517
        %v2646 = verf.f32.pop %v2518
        %v2647 = verf.f32.pop %v2519
        %v2648 = verf.f32.pop %v2520
        %v2649 = verf.f32.pop %v2521
        %v2650 = verf.f32.pop %v2522
        %v2651 = verf.f32.pop %v2523
        %v2652 = verf.f32.pop %v2524
        %v2653 = verf.f32.pop %v2525
        %v2654 = verf.f32.pop %v2526
        %v2655 = verf.f32.pop %v2527
        %v2656 = verf.f32.pop %v2528
        %v2657 = verf.f32.pop %v2529
        %v2658 = verf.f32.pop %v2530
        %v2659 = verf.f32.pop %v2531
        %v2660 = verf.f32.pop %v2532
        %v2661 = verf.f32.pop %v2533
        %v2662 = verf.f32.pop %v2534
        %v2663 = verf.f32.pop %v2535
        %v2664 = verf.f32.pop %v2536
        %v2665 = verf.f32.pop %v2537
        %v2666 = verf.f32.pop %v2538
        %v2667 = verf.f32.pop %v2539
        %v2668 = verf.f32.pop %v2540
        %v2669 = verf.f32.pop %v2541
        %v2670 = verf.f32.pop %v2542
        %v2671 = verf.f32.pop %v2543
        %v2672 = verf.f32.pop %v2544
        %v2673 = verf.f32.pop %v2545
        %v2674 = verf.f32.pop %v2546
        %v2675 = verf.f32.pop %v2547
        %v2676 = verf.f32.pop %v2548
        %v2677 = verf.f32.pop %v2549
        %v2678 = verf.f32.pop %v2550
        %v2679 = verf.f32.pop %v2551
        %v2680 = verf.f32.pop %v2552
        %v2681 = verf.f32.pop %v2553
        %v2682 = verf.f32.pop %v2554
        %v2683 = verf.f32.pop %v2555
        %v2684 = verf.f32.pop %v2556
        %v2685 = verf.f32.pop %v2557
        %v2686 = verf.f32.pop %v2558
        %v2687 = verf.f32.pop %v2559
        %v2688 = verf.f32.pop %v2560
        %v2689 = verf.f32.pop %v2561
        %v2690 = verf.f32.pop %v2562
        %v2691 = verf.f32.pop %v2563
        %v2692 = verf.f32.pop %v2564
        %v2693 = verf.f32.pop %v2565
        %v2694 = verf.f32.pop %v2566
        %v2695 = verf.f32.pop %v2567
        %v2696 = verf.f32.pop %v2568
        %v2697 = verf.f32.pop %v2569
        %v2698 = verf.f32.pop %v2570
        %v2699 = verf.f32.pop %v2571
        %v2700 = verf.f32.pop %v2572
        %v2701 = verf.f32.pop %v2573
        %v2702 = verf.f32.pop %v2574
        %v2703 = verf.f32.pop %v2575
        %v2704 = verf.f32.pop %v2576
        %v2705 = vadd.f32 %v2577, 1.0
        %v2706 = vadd.f32 %v2578, 1.0
        %v2707 = vadd.f32 %v2579, 1.0
        %v2708 = vadd.f32 %v2580, 1.0
        %v2709 = vadd.f32 %v2581, 1.0
        %v2710 = vadd.f32 %v2582, 1.0
        %v2711 = vadd.f32 %v2583, 1.0
        %v2712 = vadd.f32 %v2584, 1.0
        %v2713 = vadd.f32 %v2585, 1.0
        %v2714 = vadd.f32 %v2586, 1.0
        %v2715 = vadd.f32 %v2587, 1.0
        %v2716 = vadd.f32 %v2588, 1.0
        %v2717 = vadd.f32 %v2589, 1.0
        %v2718 = vadd.f32 %v2590, 1.0
        %v2719 = vadd.f32 %v2591, 1.0
        %v2720 = vadd.f32 %v2592, 1.0
        %v2721 = vadd.f32 %v2593, 1.0
        %v2722 = vadd.f32 %v2594, 1.0
        %v2723 = vadd.f32 %v2595, 1.0
        %v2724 = vadd.f32 %v2596, 1.0
        %v2725 = vadd.f32 %v2597, 1.0
        %v2726 = vadd.f32 %v2598, 1.0
        %v2727 = vadd.f32 %v2599, 1.0
        %v2728 = vadd.f32 %v2600, 1.0
        %v2729 = vadd.f32 %v2601, 1.0
        %v2730 = vadd.f32 %v2602, 1.0
        %v2731 = vadd.f32 %v2603, 1.0
        %v2732 = vadd.f32 %v2604, 1.0
        %v2733 = vadd.f32 %v2605, 1.0
        %v2734 = vadd.f32 %v2606, 1.0
        %v2735 = vadd.f32 %v2607, 1.0
        %v2736 = vadd.f32 %v2608, 1.0
        %v2737 = vadd.f32 %v2609, 1.0
        %v2738 = vadd.f32 %v2610, 1.0
        %v2739 = vadd.f32 %v2611, 1.0
        %v2740 = vadd.f32 %v2612, 1.0
        %v2741 = vadd.f32 %v2613, 1.0
        %v2742 = vadd.f32 %v2614, 1.0
        %v2743 = vadd.f32 %v2615, 1.0
        %v2744 = vadd.f32 %v2616, 1.0
        %v2745 = vadd.f32 %v2617, 1.0
        %v2746 = vadd.f32 %v2618, 1.0
        %v2747 = vadd.f32 %v2619, 1.0
        %v2748 = vadd.f32 %v2620, 1.0
        %v2749 = vadd.f32 %v2621, 1.0
        %v2750 = vadd.f32 %v2622, 1.0
        %v2751 = vadd.f32 %v2623, 1.0
        %v2752 = vadd.f32 %v2624, 1.0
        %v2753 = vadd.f32 %v2625, 1.0
        %v2754 = vadd.f32 %v2626, 1.0
        %v2755 = vadd.f32 %v2627, 1.0
        %v2756 = vadd.f32 %v2628, 1.0
        %v2757 = vadd.f32 %v2629, 1.0
        %v2758 = vadd.f32 %v2630, 1.0
        %v2759 = vadd.f32 %v2631, 1.0
        %v2760 = vadd.f32 %v2632, 1.0
        %v2761 = vadd.f32 %v2633, 1.0
        %v2762 = vadd.f32 %v2634, 1.0
        %v2763 = vadd.f32 %v2635, 1.0
        %v2764 = vadd.f32 %v2636, 1.0
        %v2765 = vadd.f32 %v2637, 1.0
        %v2766 = vadd.f32 %v2638, 1.0
        %v2767 = vadd.f32 %v2639, 1.0
        %v2768 = vadd.f32 %v2640, 1.0
        %v2769 = vadd.f32 %v2641, 1.0
        %v2770 = vadd.f32 %v2642, 1.0
        %v2771 = vadd.f32 %v2643, 1.0
        %v2772 = vadd.f32 %v2644, 1.0
        %v2773 = vadd.f32 %v2645, 1.0
        %v2774 = vadd.f32 %v2646, 1.0
        %v2775 = vadd.f32 %v2647, 1.0
        %v2776 = vadd.f32 %v2648, 1.0
        %v2777 = vadd.f32 %v2649, 1.0
        %v2778 = vadd.f32 %v2650, 1.0
        %v2779 = vadd.f32 %v2651, 1.0
        %v2780 = vadd.f32 %v2652, 1.0
        %v2781 = vadd.f32 %v2653, 1.0
        %v2782 = vadd.f32 %v2654, 1.0
        %v2783 = vadd.f32 %v2655, 1.0
        %v2784 = vadd.f32 %v2656, 1.0
        %v2785 = vadd.f32 %v2657, 1.0
        %v2786 = vadd.f32 %v2658, 1.0
        %v2787 = vadd.f32 %v2659, 1.0
        %v2788 = vadd.f32 %v2660, 1.0
        %v2789 = vadd.f32 %v2661, 1.0
        %v2790 = vadd.f32 %v2662, 1.0
        %v2791 = vadd.f32 %v2663, 1.0
        %v2792 = vadd.f32 %v2664, 1.0
        %v2793 = vadd.f32 %v2665, 1.0
        %v2794 = vadd.f32 %v2666, 1.0
        %v2795 = vadd.f32 %v2667, 1.0
        %v2796 = vadd.f32 %v2668, 1.0
        %v2797 = vadd.f32 %v2669, 1.0
        %v2798 = vadd.f32 %v2670, 1.0
        %v2799 = vadd.f32 %v2671, 1.0
        %v2800 = vadd.f32 %v2672, 1.0
        %v2801 = vadd.f32 %v2673, 1.0
        %v2802 = vadd.f32 %v2674, 1.0
        %v2803 = vadd.f32 %v2675, 1.0
        %v2804 = vadd.f32 %v2676, 1.0
        %v2805 = vadd.f32 %v2677, 1.0
        %v2806 = vadd.f32 %v2678, 1.0
        %v2807 = vadd.f32 %v2679, 1.0
        %v2808 = vadd.f32 %v2680, 1.0
        %v2809 = vadd.f32 %v2681, 1.0
        %v2810 = vadd.f32 %v2682, 1.0
        %v2811 = vadd.f32 %v2683, 1.0
        %v2812 = vadd.f32 %v2684, 1.0
        %v2813 = vadd.f32 %v2685, 1.0
        %v2814 = vadd.f32 %v2686, 1.0
        %v2815 = vadd.f32 %v2687, 1.0
        %v2816 = vadd.f32 %v2688, 1.0
        %v2817 = vadd.f32 %v2689, 1.0
        %v2818 = vadd.f32 %v2690, 1.0
        %v2819 = vadd.f32 %v2691, 1.0
        %v2820 = vadd.f32 %v2692, 1.0
        %v2821 = vadd.f32 %v2693, 1.0
        %v2822 = vadd.f32 %v2694, 1.0
        %v2823 = vadd.f32 %v2695, 1.0
        %v2824 = vadd.f32 %v2696, 1.0
        %v2825 = vadd.f32 %v2697, 1.0
        %v2826 = vadd.f32 %v2698, 1.0
        %v2827 = vadd.f32 %v2699, 1.0
        %v2828 = vadd.f32 %v2700, 1.0
        %v2829 = vadd.f32 %v2701, 1.0
        %v2830 = vadd.f32 %v2702, 1.0
        %v2831 = vadd.f32 %v2703, 1.0
        %v2832 = vadd.f32 %v2704, 1.0
        %v2833 = vmul.f32 %v2321, %v2705
        %v2834 = vmul.f32 %v2322, %v2706
        %v2835 = vmul.f32 %v2323, %v2707
        %v2836 = vmul.f32 %v2324, %v2708
        %v2837 = vmul.f32 %v2325, %v2709
        %v2838 = vmul.f32 %v2326, %v2710
        %v2839 = vmul.f32 %v2327, %v2711
        %v2840 = vmul.f32 %v2328, %v2712
        %v2841 = vmul.f32 %v2329, %v2713
        %v2842 = vmul.f32 %v2330, %v2714
        %v2843 = vmul.f32 %v2331, %v2715
        %v2844 = vmul.f32 %v2332, %v2716
        %v2845 = vmul.f32 %v2333, %v2717
        %v2846 = vmul.f32 %v2334, %v2718
        %v2847 = vmul.f32 %v2335, %v2719
        %v2848 = vmul.f32 %v2336, %v2720
        %v2849 = vmul.f32 %v2337, %v2721
        %v2850 = vmul.f32 %v2338, %v2722
        %v2851 = vmul.f32 %v2339, %v2723
        %v2852 = vmul.f32 %v2340, %v2724
        %v2853 = vmul.f32 %v2341, %v2725
        %v2854 = vmul.f32 %v2342, %v2726
        %v2855 = vmul.f32 %v2343, %v2727
        %v2856 = vmul.f32 %v2344, %v2728
        %v2857 = vmul.f32 %v2345, %v2729
        %v2858 = vmul.f32 %v2346, %v2730
        %v2859 = vmul.f32 %v2347, %v2731
        %v2860 = vmul.f32 %v2348, %v2732
        %v2861 = vmul.f32 %v2349, %v2733
        %v2862 = vmul.f32 %v2350, %v2734
        %v2863 = vmul.f32 %v2351, %v2735
        %v2864 = vmul.f32 %v2352, %v2736
        %v2865 = vmul.f32 %v2353, %v2737
        %v2866 = vmul.f32 %v2354, %v2738
        %v2867 = vmul.f32 %v2355, %v2739
        %v2868 = vmul.f32 %v2356, %v2740
        %v2869 = vmul.f32 %v2357, %v2741
        %v2870 = vmul.f32 %v2358, %v2742
        %v2871 = vmul.f32 %v2359, %v2743
        %v2872 = vmul.f32 %v2360, %v2744
        %v2873 = vmul.f32 %v2361, %v2745
        %v2874 = vmul.f32 %v2362, %v2746
        %v2875 = vmul.f32 %v2363, %v2747
        %v2876 = vmul.f32 %v2364, %v2748
        %v2877 = vmul.f32 %v2365, %v2749
        %v2878 = vmul.f32 %v2366, %v2750
        %v2879 = vmul.f32 %v2367, %v2751
        %v2880 = vmul.f32 %v2368, %v2752
        %v2881 = vmul.f32 %v2369, %v2753
        %v2882 = vmul.f32 %v2370, %v2754
        %v2883 = vmul.f32 %v2371, %v2755
        %v2884 = vmul.f32 %v2372, %v2756
        %v2885 = vmul.f32 %v2373, %v2757
        %v2886 = vmul.f32 %v2374, %v2758
        %v2887 = vmul.f32 %v2375, %v2759
        %v2888 = vmul.f32 %v2376, %v2760
        %v2889 = vmul.f32 %v2377, %v2761
        %v2890 = vmul.f32 %v2378, %v2762
        %v2891 = vmul.f32 %v2379, %v2763
        %v2892 = vmul.f32 %v2380, %v2764
        %v2893 = vmul.f32 %v2381, %v2765
        %v2894 = vmul.f32 %v2382, %v2766
        %v2895 = vmul.f32 %v2383, %v2767
        %v2896 = vmul.f32 %v2384, %v2768
        %v2897 = vmul.f32 %v2385, %v2769
        %v2898 = vmul.f32 %v2386, %v2770
        %v2899 = vmul.f32 %v2387, %v2771
        %v2900 = vmul.f32 %v2388, %v2772
        %v2901 = vmul.f32 %v2389, %v2773
        %v2902 = vmul.f32 %v2390, %v2774
        %v2903 = vmul.f32 %v2391, %v2775
        %v2904 = vmul.f32 %v2392, %v2776
        %v2905 = vmul.f32 %v2393, %v2777
        %v2906 = vmul.f32 %v2394, %v2778
        %v2907 = vmul.f32 %v2395, %v2779
        %v2908 = vmul.f32 %v2396, %v2780
        %v2909 = vmul.f32 %v2397, %v2781
        %v2910 = vmul.f32 %v2398, %v2782
        %v2911 = vmul.f32 %v2399, %v2783
        %v2912 = vmul.f32 %v2400, %v2784
        %v2913 = vmul.f32 %v2401, %v2785
        %v2914 = vmul.f32 %v2402, %v2786
        %v2915 = vmul.f32 %v2403, %v2787
        %v2916 = vmul.f32 %v2404, %v2788
        %v2917 = vmul.f32 %v2405, %v2789
        %v2918 = vmul.f32 %v2406, %v2790
        %v2919 = vmul.f32 %v2407, %v2791
        %v2920 = vmul.f32 %v2408, %v2792
        %v2921 = vmul.f32 %v2409, %v2793
        %v2922 = vmul.f32 %v2410, %v2794
        %v2923 = vmul.f32 %v2411, %v2795
        %v2924 = vmul.f32 %v2412, %v2796
        %v2925 = vmul.f32 %v2413, %v2797
        %v2926 = vmul.f32 %v2414, %v2798
        %v2927 = vmul.f32 %v2415, %v2799
        %v2928 = vmul.f32 %v2416, %v2800
        %v2929 = vmul.f32 %v2417, %v2801
        %v2930 = vmul.f32 %v2418, %v2802
        %v2931 = vmul.f32 %v2419, %v2803
        %v2932 = vmul.f32 %v2420, %v2804
        %v2933 = vmul.f32 %v2421, %v2805
        %v2934 = vmul.f32 %v2422, %v2806
        %v2935 = vmul.f32 %v2423, %v2807
        %v2936 = vmul.f32 %v2424, %v2808
        %v2937 = vmul.f32 %v2425, %v2809
        %v2938 = vmul.f32 %v2426, %v2810
        %v2939 = vmul.f32 %v2427, %v2811
        %v2940 = vmul.f32 %v2428, %v2812
        %v2941 = vmul.f32 %v2429, %v2813
        %v2942 = vmul.f32 %v2430, %v2814
        %v2943 = vmul.f32 %v2431, %v2815
        %v2944 = vmul.f32 %v2432, %v2816
        %v2945 = vmul.f32 %v2433, %v2817
        %v2946 = vmul.f32 %v2434, %v2818
        %v2947 = vmul.f32 %v2435, %v2819
        %v2948 = vmul.f32 %v2436, %v2820
        %v2949 = vmul.f32 %v2437, %v2821
        %v2950 = vmul.f32 %v2438, %v2822
        %v2951 = vmul.f32 %v2439, %v2823
        %v2952 = vmul.f32 %v2440, %v2824
        %v2953 = vmul.f32 %v2441, %v2825
        %v2954 = vmul.f32 %v2442, %v2826
        %v2955 = vmul.f32 %v2443, %v2827
        %v2956 = vmul.f32 %v2444, %v2828
        %v2957 = vmul.f32 %v2445, %v2829
        %v2958 = vmul.f32 %v2446, %v2830
        %v2959 = vmul.f32 %v2447, %v2831
        %v2960 = vmul.f32 %v2448, %v2832
        %v2961 = vld [vmem:[%s14] sm:$0x1f]
        %v2962 = vld [vmem:[%s14 + $0x8] sm:$0x1f]
        %v2963 = vld [vmem:[%s15] sm:$0x1f]
        %2965 = vset.pattern.permute.xlu0 0
        %2966 = vperm.xlu0 %2965, %v2963
        %v2967 = vpop.permute.xlu0 %2966
        %2969 = vmatprep.subr.mxu0 %v2834
        %2970 = vmatpush1.msra.mxu0 %v2833
        %2971 = vmatprep.subr.mxu0 %v2838
        %2972 = vmatpush1.msra.mxu0 %v2837
        %2973 = vmatprep.subr.mxu0 %v2842
        %2974 = vmatpush1.msra.mxu0 %v2841
        %2975 = vmatprep.subr.mxu0 %v2846
        %2976 = vmatpush1.msra.mxu0 %v2845
        %2977 = vmatprep.subr.mxu0 %v2850
        %2978 = vmatpush1.msra.mxu0 %v2849
        %2979 = vmatprep.subr.mxu0 %v2854
        %2980 = vmatpush1.msra.mxu0 %v2853
        %2981 = vmatprep.subr.mxu0 %v2858
        %2982 = vmatpush1.msra.mxu0 %v2857
        %2983 = vmatprep.subr.mxu0 %v2862
        %2984 = vmatpush1.msra.mxu0 %v2861
        %2985 = vmatprep.subr.mxu0 %v2866
        %2986 = vmatpush1.msra.mxu0 %v2865
        %2987 = vmatprep.subr.mxu0 %v2870
        %2988 = vmatpush1.msra.mxu0 %v2869
        %2989 = vmatprep.subr.mxu0 %v2874
        %2990 = vmatpush1.msra.mxu0 %v2873
        %2991 = vmatprep.subr.mxu0 %v2878
        %2992 = vmatpush1.msra.mxu0 %v2877
        %2993 = vmatprep.subr.mxu0 %v2882
        %2994 = vmatpush1.msra.mxu0 %v2881
        %2995 = vmatprep.subr.mxu0 %v2886
        %2996 = vmatpush1.msra.mxu0 %v2885
        %2997 = vmatprep.subr.mxu0 %v2890
        %2998 = vmatpush1.msra.mxu0 %v2889
        %2999 = vmatprep.subr.mxu0 %v2894
        %3000 = vmatpush1.msra.mxu0 %v2893
        %3001 = vmatprep.subr.mxu0 %v2898
        %3002 = vmatpush1.msra.mxu0 %v2897
        %3003 = vmatprep.subr.mxu0 %v2902
        %3004 = vmatpush1.msra.mxu0 %v2901
        %3005 = vmatprep.subr.mxu0 %v2906
        %3006 = vmatpush1.msra.mxu0 %v2905
        %3007 = vmatprep.subr.mxu0 %v2910
        %3008 = vmatpush1.msra.mxu0 %v2909
        %3009 = vmatprep.subr.mxu0 %v2914
        %3010 = vmatpush1.msra.mxu0 %v2913
        %3011 = vmatprep.subr.mxu0 %v2918
        %3012 = vmatpush1.msra.mxu0 %v2917
        %3013 = vmatprep.subr.mxu0 %v2922
        %3014 = vmatpush1.msra.mxu0 %v2921
        %3015 = vmatprep.subr.mxu0 %v2926
        %3016 = vmatpush1.msra.mxu0 %v2925
        %3017 = vmatprep.subr.mxu0 %v2930
        %3018 = vmatpush1.msra.mxu0 %v2929
        %3019 = vmatprep.subr.mxu0 %v2934
        %3020 = vmatpush1.msra.mxu0 %v2933
        %3021 = vmatprep.subr.mxu0 %v2938
        %3022 = vmatpush1.msra.mxu0 %v2937
        %3023 = vmatprep.subr.mxu0 %v2942
        %3024 = vmatpush1.msra.mxu0 %v2941
        %3025 = vmatprep.subr.mxu0 %v2946
        %3026 = vmatpush1.msra.mxu0 %v2945
        %3027 = vmatprep.subr.mxu0 %v2950
        %3028 = vmatpush1.msra.mxu0 %v2949
        %3029 = vmatprep.subr.mxu0 %v2954
        %3030 = vmatpush1.msra.mxu0 %v2953
        %3031 = vmatprep.subr.mxu0 %v2958
        %3032 = vmatpush1.msra.mxu0 %v2957
        %3033 = vmatprep.mubr.f32.mxu0 %v2962
        %3034 = vmatmul.mubr.f32.gmra.mrb[0].mxu0 %v2961
        %v3035 = vpop.f32.mrb[0].mxu0
        %v3036 = vadd.f32 %v2967, %v3035
        %v3037 = vpop.f32.mrb[0].mxu0
        %v3038 = vadd.f32 %v2967, %v3037
        %3039 = vdwg.mxu0
        %3040 = vmatprep.subr.mxu0 %v2836
        %3041 = vmatpush1.msra.mxu0 %v2835
        %3042 = vmatprep.subr.mxu0 %v2840
        %3043 = vmatpush1.msra.mxu0 %v2839
        %3044 = vmatprep.subr.mxu0 %v2844
        %3045 = vmatpush1.msra.mxu0 %v2843
        %3046 = vmatprep.subr.mxu0 %v2848
        %3047 = vmatpush1.msra.mxu0 %v2847
        %3048 = vmatprep.subr.mxu0 %v2852
        %3049 = vmatpush1.msra.mxu0 %v2851
        %3050 = vmatprep.subr.mxu0 %v2856
        %3051 = vmatpush1.msra.mxu0 %v2855
        %3052 = vmatprep.subr.mxu0 %v2860
        %3053 = vmatpush1.msra.mxu0 %v2859
        %3054 = vmatprep.subr.mxu0 %v2864
        %3055 = vmatpush1.msra.mxu0 %v2863
        %3056 = vmatprep.subr.mxu0 %v2868
        %3057 = vmatpush1.msra.mxu0 %v2867
        %3058 = vmatprep.subr.mxu0 %v2872
        %3059 = vmatpush1.msra.mxu0 %v2871
        %3060 = vmatprep.subr.mxu0 %v2876
        %3061 = vmatpush1.msra.mxu0 %v2875
        %3062 = vmatprep.subr.mxu0 %v2880
        %3063 = vmatpush1.msra.mxu0 %v2879
        %3064 = vmatprep.subr.mxu0 %v2884
        %3065 = vmatpush1.msra.mxu0 %v2883
        %3066 = vmatprep.subr.mxu0 %v2888
        %3067 = vmatpush1.msra.mxu0 %v2887
        %3068 = vmatprep.subr.mxu0 %v2892
        %3069 = vmatpush1.msra.mxu0 %v2891
        %3070 = vmatprep.subr.mxu0 %v2896
        %3071 = vmatpush1.msra.mxu0 %v2895
        %3072 = vmatprep.subr.mxu0 %v2900
        %3073 = vmatpush1.msra.mxu0 %v2899
        %3074 = vmatprep.subr.mxu0 %v2904
        %3075 = vmatpush1.msra.mxu0 %v2903
        %3076 = vmatprep.subr.mxu0 %v2908
        %3077 = vmatpush1.msra.mxu0 %v2907
        %3078 = vmatprep.subr.mxu0 %v2912
        %3079 = vmatpush1.msra.mxu0 %v2911
        %3080 = vmatprep.subr.mxu0 %v2916
        %3081 = vmatpush1.msra.mxu0 %v2915
        %3082 = vmatprep.subr.mxu0 %v2920
        %3083 = vmatpush1.msra.mxu0 %v2919
        %3084 = vmatprep.subr.mxu0 %v2924
        %3085 = vmatpush1.msra.mxu0 %v2923
        %3086 = vmatprep.subr.mxu0 %v2928
        %3087 = vmatpush1.msra.mxu0 %v2927
        %3088 = vmatprep.subr.mxu0 %v2932
        %3089 = vmatpush1.msra.mxu0 %v2931
        %3090 = vmatprep.subr.mxu0 %v2936
        %3091 = vmatpush1.msra.mxu0 %v2935
        %3092 = vmatprep.subr.mxu0 %v2940
        %3093 = vmatpush1.msra.mxu0 %v2939
        %3094 = vmatprep.subr.mxu0 %v2944
        %3095 = vmatpush1.msra.mxu0 %v2943
        %3096 = vmatprep.subr.mxu0 %v2948
        %3097 = vmatpush1.msra.mxu0 %v2947
        %3098 = vmatprep.subr.mxu0 %v2952
        %3099 = vmatpush1.msra.mxu0 %v2951
        %3100 = vmatprep.subr.mxu0 %v2956
        %3101 = vmatpush1.msra.mxu0 %v2955
        %3102 = vmatprep.subr.mxu0 %v2960
        %3103 = vmatpush1.msra.mxu0 %v2959
        %3104 = vmatprep.mubr.f32.mxu0 %v2962
        %3105 = vmatmul.mubr.f32.gmra.mrb[0].mxu0 %v2961
        %v3106 = vpop.f32.mrb[0].mxu0
        %v3107 = vadd.f32 %v2967, %v3106
        %v3108 = vpop.f32.mrb[0].mxu0
        %v3109 = vadd.f32 %v2967, %v3108
        %3110 = vdwg.mxu0
        %3111 = vst [vmem:[%s688] sm:$0x1f] %v3036
        %3112 = vst [vmem:[%s688 + $0x8] sm:$0x1f] %v3038
        %3113 = vst [vmem:[%s688 + $0x10] sm:$0x1f] %v3107
        %3114 = vst [vmem:[%s688 + $0x18] sm:$0x1f] %v3109
        %s3115 = smul.u32 4, %s27
        %p3116 = scmp.lt.s32.totalorder %s3115, 11
        %s3117 = scalar_select %p3116, %s3115, 11
        %s3118 = smul.addr %s3117, 8
        %s3119 = scalar_lea.vmem %s16, %s3118
        // Predicated region
        $region154: #{fno_multi_forward.25} parent=140 // pred_check
          %p3120 = pneg %p401
        $region155: #{fno_multi_forward.25} parent=140 // pred_check_branch
          %3122 = sbr.rel (%p3120) target = $region157
        $region156: #{fno_multi_forward.25} parent=140 // pred_region
          %s3123 = smul.u32 4, %s27
        $region157: #{fno_multi_forward.25} parent=140 // pred_fallthru
          _
      $region141: #{fno_multi_forward.25} parent=5 // pred_fallthru
        _
      %p3124 = scmp.le.s32.totalorder 2, %s22
      // Predicated region
      $region158: #{fno_multi_forward.25} parent=5 // pred_check
        %p3125 = pneg %p3124
      $region159: #{fno_multi_forward.25} parent=5 // pred_check_branch
        %3127 = sbr.rel (%p3125) target = $region161
      $region160: #{fno_multi_forward.25} parent=5 // pred_region
        %s3128 = ssub.s32 %s22, 2
        // Predicated region
        $region162: #{fno_multi_forward.25} parent=160 // pred_check
          %p3129 = pneg %p407
        $region163: #{fno_multi_forward.25} parent=160 // pred_check_branch
          %3131 = sbr.rel (%p3129) target = $region165
        $region164: #{fno_multi_forward.25} parent=160 // pred_region
          %s3132 = smul.u32 4, %s28
          %p3133 = scmp.lt.s32.totalorder %s3132, 11
          %s3134 = scalar_select %p3133, %s3132, 11
          %s3135 = smul.addr %s3134, 8
          %s3136 = scalar_lea.vmem %s16, %s3135
        $region165: #{fno_multi_forward.25} parent=160 // pred_fallthru
          _
      $region161: #{fno_multi_forward.25} parent=5 // pred_fallthru
        _
    $region6: #{fno_multi_forward.25} parent=1 // loop_footer
      %s26 = sadd.s32 1, %s22
    $region7: #{fno_multi_forward.25} parent=1 // loop_footer_branch
      %21 = sbr.rel target = $region3
    $region8: #{fno_multi_forward.25} parent=1 // loop_exit
      _

</llo_original>
